<compile_context>
chip_gen: v7x
topology: tpu7x:2x2x1
jax: 0.10.0
libtpu: 0.0.40
codegen_flags: <defaults>
</compile_context>

<pallas_src>
import functools

import jax
import jax.numpy as jnp
from jax.experimental import pallas as pl
from jax.experimental.pallas import tpu as pltpu


def _ceil_to(x, m):
    return ((x + m - 1) // m) * m


def _pe_kernel(coords_ref, freqs_t_ref, out_ref, *, enc_dim, zdim, pack):
    # coords_ref : (T, pack * (3 + zdim)) f32   -- `pack` points per row
    # freqs_t_ref: (3, 3*enc_dim) f32           -- pre-scaled by D2, pre-transposed
    # out_ref    : (T, pack * (6*enc_dim + zdim)) f32
    c_in = 3 + zdim
    c = coords_ref[...]
    ft = freqs_t_ref[...]

    parts = []
    for p in range(pack):
        base = p * c_in
        # k[n, f] = sum_j coords[n, j] * ft[j, f]  (K=3 -> 3 VPU broadcast FMAs,
        # exact f32, same accumulation order j = 0, 1, 2 as the reference).
        k = (c[:, base + 0:base + 1] * ft[0:1, :]
             + c[:, base + 1:base + 2] * ft[1:2, :]
             + c[:, base + 2:base + 3] * ft[2:3, :])      # (T, 3*enc_dim)
        parts.append(jnp.sin(k))
        parts.append(jnp.cos(k))
        if zdim > 0:
            parts.append(c[:, base + 3:base + c_in])

    # Assemble the full row in registers (XLU/VPU lane shifts) and issue a
    # single full-width store — no unaligned slice-stores.
    out_ref[...] = jnp.concatenate(parts, axis=-1)


def positional_encoding_gaussian_pallas(coords, rand_freqs, *, size, enc_dim, zdim,
                                        tile_n=2048):
    """coords: [..., 3+zdim] f32 ; rand_freqs: (3*enc_dim, 3) f32."""
    assert coords.shape[-1] == 3 + zdim
    assert rand_freqs.shape == (3 * enc_dim, 3)

    D2 = size // 2
    # Pre-transpose + pre-scale in the wrapper (no in-kernel transpose/rescale).
    freqs_t = (rand_freqs.T * float(D2)).astype(jnp.float32)   # (3, 3*enc_dim)

    lead_shape = coords.shape[:-1]
    C_in = 3 + zdim
    F_out = 6 * enc_dim + zdim

    coords_flat = coords.reshape(-1, C_in).astype(jnp.float32)
    N = coords_flat.shape[0]

    # ---- lane-dense packing factor ------------------------------------------
    # Pack `pack` consecutive points into one 128-lane output row when the
    # output width divides 128 exactly (F_out == 64 for the shipped config).
    pack = 1
    if F_out <= 128 and 128 % F_out == 0:
        cand = 128 // F_out
        if 1 < cand <= 4 and N % cand == 0:
            pack = cand

    N_rows = N // pack
    C_row = pack * C_in
    F_row = pack * F_out

    # Free row-major reshape: two consecutive points share one kernel row.
    coords_rows = coords_flat.reshape(N_rows, C_row)

    # ---- tile sizing ---------------------------------------------------------
    tile = max(8, (int(tile_n) // 8) * 8)
    rows_ceil8 = _ceil_to(max(N_rows, 1), 8)
    if N_rows > 1024:
        # Keep >= 2 grid steps (but >= 512 rows/step) so ("parallel",) can shard
        # across v7x's two TensorCores for mid-sized N.
        half_rows = _ceil_to(pl.cdiv(N_rows, 2), 8)
        tile = min(tile, max(512, half_rows))
    tile = min(tile, rows_ceil8)

    grid = (pl.cdiv(N_rows, tile),)

    # ---- VMEM budget (lane-padded, double-buffered in + out) -----------------
    vmem_bytes = 2 * tile * (_ceil_to(C_row, 128) + _ceil_to(F_row, 128)) * 4
    vmem_limit = min(64 << 20, max(32 << 20, 2 * vmem_bytes))

    kernel = functools.partial(_pe_kernel, enc_dim=enc_dim, zdim=zdim, pack=pack)

    out_rows = pl.pallas_call(
        kernel,
        out_shape=jax.ShapeDtypeStruct((N_rows, F_row), jnp.float32),
        grid_spec=pltpu.PrefetchScalarGridSpec(
            num_scalar_prefetch=0,
            grid=grid,
            in_specs=[
                pl.BlockSpec((tile, C_row), lambda i: (i, 0)),
                pl.BlockSpec((3, 3 * enc_dim), lambda i: (0, 0)),
            ],
            out_specs=pl.BlockSpec((tile, F_row), lambda i: (i, 0)),
        ),
        compiler_params=pltpu.CompilerParams(
            dimension_semantics=("parallel",),
            vmem_limit_bytes=int(vmem_limit)),
    )(coords_rows, freqs_t)

    # Free row-major reshapes back to the logical layout.
    return out_rows.reshape(*lead_shape, F_out)


def _reference_jax(coords, rand_freqs, *, size, enc_dim, zdim):
    D2 = size // 2
    freqs = rand_freqs.reshape(*([1] * (coords.ndim - 1)), -1, 3) * D2
    kxkykz = coords[..., None, 0:3] * freqs
    k = kxkykz.sum(-1)
    x = jnp.concatenate([jnp.sin(k), jnp.cos(k)], -1)
    if zdim > 0:
        x = jnp.concatenate([x, coords[..., 3:]], -1)
    return x


if __name__ == "__main__":
    # Module hyperparameters (D2 = size // 2; zdim / in_dim implied by forward).
    size = 16
    enc_dim = 10
    zdim = 4
    in_dim = 6 * enc_dim + zdim  # 64

    key = jax.random.PRNGKey(0)
    k_freq, k_coords = jax.random.split(key)

    # Deterministic "parameter" init: randn * 0.5, shape (3*enc_dim, 3).
    rand_freqs = jax.random.normal(k_freq, (3 * enc_dim, 3), dtype=jnp.float32) * 0.5

    # Example input: batch of points, channel-last [..., 3 + zdim].
    coords = jax.random.uniform(k_coords, (2, 128, 3 + zdim),
                                dtype=jnp.float32, minval=-0.5, maxval=0.5)

    out = positional_encoding_gaussian_pallas(
        coords, rand_freqs, size=size, enc_dim=enc_dim, zdim=zdim)
    out = jax.block_until_ready(out)

    ref = _reference_jax(coords, rand_freqs, size=size, enc_dim=enc_dim, zdim=zdim)
    assert out.shape == (*coords.shape[:-1], in_dim), out.shape
    assert jnp.allclose(out, ref, atol=1e-5, rtol=1e-5), "mismatch vs reference"

    # Non-tile-aligned N: exercises the partial boundary block (no wrapper pad,
    # no output tail-slice) on the lane-dense packed path.
    coords2 = jax.random.uniform(jax.random.PRNGKey(1), (3, 1000, 3 + zdim),
                                 dtype=jnp.float32, minval=-0.5, maxval=0.5)
    out2 = jax.block_until_ready(positional_encoding_gaussian_pallas(
        coords2, rand_freqs, size=size, enc_dim=enc_dim, zdim=zdim, tile_n=512))
    ref2 = _reference_jax(coords2, rand_freqs, size=size, enc_dim=enc_dim, zdim=zdim)
    assert jnp.allclose(out2, ref2, atol=1e-5, rtol=1e-5), "mismatch (ragged) vs ref"

    # Odd N: packing disabled (N % pack != 0), generic single-store fallback path
    # plus a partial boundary block.
    coords3 = jax.random.uniform(jax.random.PRNGKey(2), (1, 999, 3 + zdim),
                                 dtype=jnp.float32, minval=-0.5, maxval=0.5)
    out3 = jax.block_until_ready(positional_encoding_gaussian_pallas(
        coords3, rand_freqs, size=size, enc_dim=enc_dim, zdim=zdim, tile_n=256))
    ref3 = _reference_jax(coords3, rand_freqs, size=size, enc_dim=enc_dim, zdim=zdim)
    assert jnp.allclose(out3, ref3, atol=1e-5, rtol=1e-5), "mismatch (odd N) vs ref"

    print("KERNEL_OK")
</pallas_src>

<mosaic_0001>
module attributes {stable_mosaic.version = 11 : i64} {
  func.func @_pe_kernel(%arg0: i32, %arg1: memref<128x14xf32, #tpu.memory_space<vmem>>, %arg2: memref<3x30xf32, #tpu.memory_space<vmem>>, %arg3: memref<128x128xf32, #tpu.memory_space<vmem>>) attributes {dimension_semantics = [#tpu.dimension_semantics<parallel>], iteration_bounds = array<i64: 1>, scalar_prefetch = 0 : i64, scratch_operands = 0 : i64, tpu.core_type = #tpu.core_type<tc>, window_params = [{transform_indices = @transform_0, window_bounds = array<i64: 128, 14>}, {pipeline_mode = #tpu.pipeline_mode<synchronous>, transform_indices = @transform_1, window_bounds = array<i64: 3, 30>}, {transform_indices = @transform_2, window_bounds = array<i64: 128, 128>}]} {
    %c0 = arith.constant 0 : index
    %c0_0 = arith.constant 0 : index
    %0 = vector.load %arg1[%c0, %c0_0] : memref<128x14xf32, #tpu.memory_space<vmem>>, vector<128x14xf32>
    %c0_1 = arith.constant 0 : index
    %c0_2 = arith.constant 0 : index
    %1 = vector.load %arg2[%c0_1, %c0_2] : memref<3x30xf32, #tpu.memory_space<vmem>>, vector<3x30xf32>
    %2 = vector.extract_strided_slice %0 {offsets = [0, 0], sizes = [128, 1], strides = [1, 1]} : vector<128x14xf32> to vector<128x1xf32>
    %3 = vector.extract_strided_slice %1 {offsets = [0, 0], sizes = [1, 30], strides = [1, 1]} : vector<3x30xf32> to vector<1x30xf32>
    %4 = vector.broadcast %2 : vector<128x1xf32> to vector<128x30xf32>
    %5 = vector.broadcast %3 : vector<1x30xf32> to vector<128x30xf32>
    %6 = arith.mulf %4, %5 : vector<128x30xf32>
    %7 = vector.extract_strided_slice %0 {offsets = [0, 1], sizes = [128, 1], strides = [1, 1]} : vector<128x14xf32> to vector<128x1xf32>
    %8 = vector.extract_strided_slice %1 {offsets = [1, 0], sizes = [1, 30], strides = [1, 1]} : vector<3x30xf32> to vector<1x30xf32>
    %9 = vector.broadcast %7 : vector<128x1xf32> to vector<128x30xf32>
    %10 = vector.broadcast %8 : vector<1x30xf32> to vector<128x30xf32>
    %11 = arith.mulf %9, %10 : vector<128x30xf32>
    %12 = arith.addf %6, %11 : vector<128x30xf32>
    %13 = vector.extract_strided_slice %0 {offsets = [0, 2], sizes = [128, 1], strides = [1, 1]} : vector<128x14xf32> to vector<128x1xf32>
    %14 = vector.extract_strided_slice %1 {offsets = [2, 0], sizes = [1, 30], strides = [1, 1]} : vector<3x30xf32> to vector<1x30xf32>
    %15 = vector.broadcast %13 : vector<128x1xf32> to vector<128x30xf32>
    %16 = vector.broadcast %14 : vector<1x30xf32> to vector<128x30xf32>
    %17 = arith.mulf %15, %16 : vector<128x30xf32>
    %18 = arith.addf %12, %17 : vector<128x30xf32>
    %19 = math.sin %18 : vector<128x30xf32>
    %20 = math.cos %18 : vector<128x30xf32>
    %21 = vector.extract_strided_slice %0 {offsets = [0, 3], sizes = [128, 4], strides = [1, 1]} : vector<128x14xf32> to vector<128x4xf32>
    %22 = vector.extract_strided_slice %0 {offsets = [0, 7], sizes = [128, 1], strides = [1, 1]} : vector<128x14xf32> to vector<128x1xf32>
    %23 = vector.extract_strided_slice %1 {offsets = [0, 0], sizes = [1, 30], strides = [1, 1]} : vector<3x30xf32> to vector<1x30xf32>
    %24 = vector.broadcast %22 : vector<128x1xf32> to vector<128x30xf32>
    %25 = vector.broadcast %23 : vector<1x30xf32> to vector<128x30xf32>
    %26 = arith.mulf %24, %25 : vector<128x30xf32>
    %27 = vector.extract_strided_slice %0 {offsets = [0, 8], sizes = [128, 1], strides = [1, 1]} : vector<128x14xf32> to vector<128x1xf32>
    %28 = vector.extract_strided_slice %1 {offsets = [1, 0], sizes = [1, 30], strides = [1, 1]} : vector<3x30xf32> to vector<1x30xf32>
    %29 = vector.broadcast %27 : vector<128x1xf32> to vector<128x30xf32>
    %30 = vector.broadcast %28 : vector<1x30xf32> to vector<128x30xf32>
    %31 = arith.mulf %29, %30 : vector<128x30xf32>
    %32 = arith.addf %26, %31 : vector<128x30xf32>
    %33 = vector.extract_strided_slice %0 {offsets = [0, 9], sizes = [128, 1], strides = [1, 1]} : vector<128x14xf32> to vector<128x1xf32>
    %34 = vector.extract_strided_slice %1 {offsets = [2, 0], sizes = [1, 30], strides = [1, 1]} : vector<3x30xf32> to vector<1x30xf32>
    %35 = vector.broadcast %33 : vector<128x1xf32> to vector<128x30xf32>
    %36 = vector.broadcast %34 : vector<1x30xf32> to vector<128x30xf32>
    %37 = arith.mulf %35, %36 : vector<128x30xf32>
    %38 = arith.addf %32, %37 : vector<128x30xf32>
    %39 = math.sin %38 : vector<128x30xf32>
    %40 = math.cos %38 : vector<128x30xf32>
    %41 = vector.extract_strided_slice %0 {offsets = [0, 10], sizes = [128, 4], strides = [1, 1]} : vector<128x14xf32> to vector<128x4xf32>
    %42 = tpu.concatenate %19, %20, %21, %39, %40, %41 in 1 : vector<128x30xf32>, vector<128x30xf32>, vector<128x4xf32>, vector<128x30xf32>, vector<128x30xf32>, vector<128x4xf32> -> vector<128x128xf32>
    %c0_3 = arith.constant 0 : index
    %c0_4 = arith.constant 0 : index
    %43 = vector.load %arg3[%c0_3, %c0_4] : memref<128x128xf32, #tpu.memory_space<vmem>>, vector<128x128xf32>
    tpu.vector_store %arg3[%c0_3, %c0_4], %42 {strides = array<i32>} : memref<128x128xf32, #tpu.memory_space<vmem>>, vector<128x128xf32>,
    return
  }
  func.func @transform_0(%arg0: i32) -> (i32, i32) {
    %c0_i32 = arith.constant 0 : i32
    %c0_i32_0 = arith.constant 0 : i32
    return %arg0, %c0_i32 : i32, i32
  }
  func.func @transform_1(%arg0: i32) -> (i32, i32) {
    %c0_i32 = arith.constant 0 : i32
    %c0_i32_0 = arith.constant 0 : i32
    %c0_i32_1 = arith.constant 0 : i32
    return %c0_i32, %c0_i32_0 : i32, i32
  }
  func.func @transform_2(%arg0: i32) -> (i32, i32) {
    %c0_i32 = arith.constant 0 : i32
    %c0_i32_0 = arith.constant 0 : i32
    return %arg0, %c0_i32 : i32, i32
  }
}

</mosaic_0001>

<llo_original>
// kernel: tpu_custom_call.1
$region0: #{tpu_custom_call.1}
  #allocation0 [shape = 'u32[]', space=smem, size = 0x4, offset = 0x4, fixed_abs, tag = 'smem constant byte address 0x4 - core index']
  #allocation1 [shape = 'u32[144,128]{1,0:T(1,128)}', space=vmem, size = 0x12000, scoped, tag = 'internal scratch']
  %s0 = inlined_call_operand.vmem [shape: f32[128,14], index: 0, kind: input, shape index: {}]
  %s1 = inlined_call_operand.vmem [shape: f32[3,30], index: 1, kind: input, shape index: {}]
  %s2 = inlined_call_operand.hbm [shape: f32[128,128], index: 2, kind: output, shape index: {}]
  %s3 = sld [smem:[#allocation0]]
  $region18: #{tpu_custom_call.1} parent=0
    _
  %s5 = ssub.s32 1, %s3
  %s6 = scalar_select 0, %s5, %s3
  $region1: #{tpu_custom_call.1} parent=0
    #allocation2 [shape = 'u8[65536]{0}', space=vmem, size = 0x10000, scoped, tag = 'output window, operand 0, single buffered']
    #allocation3 [shape = 's32[1]{0}', space=sflag, size = 0x4, scoped, tag = 'scoped memory for tpu_custom_call.1']
    %7 = vsyncpa [#allocation3], 0
    // Predicated region
    $region2: #{tpu_custom_call.1} parent=1 // pred_check
      _
    $region3: #{tpu_custom_call.1} parent=1 // pred_check_branch
      %9 = sbr.rel (0) target = $region5
    $region4: #{tpu_custom_call.1} parent=1 // pred_region
      _
    $region5: #{tpu_custom_call.1} parent=1 // pred_fallthru
      _
    // Predicated region
    $region6: #{tpu_custom_call.1} parent=1 // pred_check
      _
    $region7: #{tpu_custom_call.1} parent=1 // pred_check_branch
      %11 = sbr.rel (0) target = $region9
    $region8: #{tpu_custom_call.1} parent=1 // pred_region
      _
    $region9: #{tpu_custom_call.1} parent=1 // pred_fallthru
      _
    %v12 = vld [vmem:[%s0] sm:$0xff]
    %v13 = vld [vmem:[%s0 + $0x8] sm:$0xff]
    %v14 = vld [vmem:[%s0 + $0x10] sm:$0xff]
    %v15 = vld [vmem:[%s0 + $0x18] sm:$0xff]
    %v16 = vld [vmem:[%s0 + $0x20] sm:$0xff]
    %v17 = vld [vmem:[%s0 + $0x28] sm:$0xff]
    %v18 = vld [vmem:[%s0 + $0x30] sm:$0xff]
    %v19 = vld [vmem:[%s0 + $0x38] sm:$0xff]
    %v20 = vld [vmem:[%s0 + $0x40] sm:$0xff]
    %v21 = vld [vmem:[%s0 + $0x48] sm:$0xff]
    %v22 = vld [vmem:[%s0 + $0x50] sm:$0xff]
    %v23 = vld [vmem:[%s0 + $0x58] sm:$0xff]
    %v24 = vld [vmem:[%s0 + $0x60] sm:$0xff]
    %v25 = vld [vmem:[%s0 + $0x68] sm:$0xff]
    %v26 = vld [vmem:[%s0 + $0x70] sm:$0xff]
    %v27 = vld [vmem:[%s0 + $0x78] sm:$0xff]
    %v28 = vld [vmem:[%s1] sm:$0x7]
    %30 = vset.pattern.permute.xlu0 0
    %31 = vperm.xlu0 %30, %v12
    %v32 = vpop.permute.xlu0 %31
    %35 = vset.pattern.permute.xlu0 0
    %36 = vperm.xlu0 %35, %v13
    %v37 = vpop.permute.xlu0 %36
    %40 = vset.pattern.permute.xlu0 0
    %41 = vperm.xlu0 %40, %v14
    %v42 = vpop.permute.xlu0 %41
    %45 = vset.pattern.permute.xlu0 0
    %46 = vperm.xlu0 %45, %v15
    %v47 = vpop.permute.xlu0 %46
    %50 = vset.pattern.permute.xlu0 0
    %51 = vperm.xlu0 %50, %v16
    %v52 = vpop.permute.xlu0 %51
    %55 = vset.pattern.permute.xlu0 0
    %56 = vperm.xlu0 %55, %v17
    %v57 = vpop.permute.xlu0 %56
    %60 = vset.pattern.permute.xlu0 0
    %61 = vperm.xlu0 %60, %v18
    %v62 = vpop.permute.xlu0 %61
    %65 = vset.pattern.permute.xlu0 0
    %66 = vperm.xlu0 %65, %v19
    %v67 = vpop.permute.xlu0 %66
    %70 = vset.pattern.permute.xlu0 0
    %71 = vperm.xlu0 %70, %v20
    %v72 = vpop.permute.xlu0 %71
    %75 = vset.pattern.permute.xlu0 0
    %76 = vperm.xlu0 %75, %v21
    %v77 = vpop.permute.xlu0 %76
    %80 = vset.pattern.permute.xlu0 0
    %81 = vperm.xlu0 %80, %v22
    %v82 = vpop.permute.xlu0 %81
    %85 = vset.pattern.permute.xlu0 0
    %86 = vperm.xlu0 %85, %v23
    %v87 = vpop.permute.xlu0 %86
    %90 = vset.pattern.permute.xlu0 0
    %91 = vperm.xlu0 %90, %v24
    %v92 = vpop.permute.xlu0 %91
    %95 = vset.pattern.permute.xlu0 0
    %96 = vperm.xlu0 %95, %v25
    %v97 = vpop.permute.xlu0 %96
    %100 = vset.pattern.permute.xlu0 0
    %101 = vperm.xlu0 %100, %v26
    %v102 = vpop.permute.xlu0 %101
    %105 = vset.pattern.permute.xlu0 0
    %106 = vperm.xlu0 %105, %v27
    %v107 = vpop.permute.xlu0 %106
    %v109 = vlaneseq
    %v110 = vshrl.u32 %v109, 7
    %v111 = vsub.s32 0, %v110
    %v112 = vrot.slane %v28, %v111
    %v113 = vmul.f32 %v32, %v112
    %v114 = vmul.f32 %v37, %v112
    %v115 = vmul.f32 %v42, %v112
    %v116 = vmul.f32 %v47, %v112
    %v117 = vmul.f32 %v52, %v112
    %v118 = vmul.f32 %v57, %v112
    %v119 = vmul.f32 %v62, %v112
    %v120 = vmul.f32 %v67, %v112
    %v121 = vmul.f32 %v72, %v112
    %v122 = vmul.f32 %v77, %v112
    %v123 = vmul.f32 %v82, %v112
    %v124 = vmul.f32 %v87, %v112
    %v125 = vmul.f32 %v92, %v112
    %v126 = vmul.f32 %v97, %v112
    %v127 = vmul.f32 %v102, %v112
    %v128 = vmul.f32 %v107, %v112
    %129 = vset.pattern.permute.xlu0 1
    %130 = vperm.xlu0 %129, %v12
    %v131 = vpop.permute.xlu0 %130
    %133 = vset.pattern.permute.xlu0 1
    %134 = vperm.xlu0 %133, %v13
    %v135 = vpop.permute.xlu0 %134
    %137 = vset.pattern.permute.xlu0 1
    %138 = vperm.xlu0 %137, %v14
    %v139 = vpop.permute.xlu0 %138
    %141 = vset.pattern.permute.xlu0 1
    %142 = vperm.xlu0 %141, %v15
    %v143 = vpop.permute.xlu0 %142
    %145 = vset.pattern.permute.xlu0 1
    %146 = vperm.xlu0 %145, %v16
    %v147 = vpop.permute.xlu0 %146
    %149 = vset.pattern.permute.xlu0 1
    %150 = vperm.xlu0 %149, %v17
    %v151 = vpop.permute.xlu0 %150
    %153 = vset.pattern.permute.xlu0 1
    %154 = vperm.xlu0 %153, %v18
    %v155 = vpop.permute.xlu0 %154
    %157 = vset.pattern.permute.xlu0 1
    %158 = vperm.xlu0 %157, %v19
    %v159 = vpop.permute.xlu0 %158
    %161 = vset.pattern.permute.xlu0 1
    %162 = vperm.xlu0 %161, %v20
    %v163 = vpop.permute.xlu0 %162
    %165 = vset.pattern.permute.xlu0 1
    %166 = vperm.xlu0 %165, %v21
    %v167 = vpop.permute.xlu0 %166
    %169 = vset.pattern.permute.xlu0 1
    %170 = vperm.xlu0 %169, %v22
    %v171 = vpop.permute.xlu0 %170
    %173 = vset.pattern.permute.xlu0 1
    %174 = vperm.xlu0 %173, %v23
    %v175 = vpop.permute.xlu0 %174
    %177 = vset.pattern.permute.xlu0 1
    %178 = vperm.xlu0 %177, %v24
    %v179 = vpop.permute.xlu0 %178
    %181 = vset.pattern.permute.xlu0 1
    %182 = vperm.xlu0 %181, %v25
    %v183 = vpop.permute.xlu0 %182
    %185 = vset.pattern.permute.xlu0 1
    %186 = vperm.xlu0 %185, %v26
    %v187 = vpop.permute.xlu0 %186
    %189 = vset.pattern.permute.xlu0 1
    %190 = vperm.xlu0 %189, %v27
    %v191 = vpop.permute.xlu0 %190
    %v193 = vlaneseq
    %v194 = vshrl.u32 %v193, 7
    %v195 = vsub.s32 1, %v194
    %v196 = vrot.slane %v28, %v195
    %v197 = vmul.f32 %v131, %v196
    %v198 = vmul.f32 %v135, %v196
    %v199 = vmul.f32 %v139, %v196
    %v200 = vmul.f32 %v143, %v196
    %v201 = vmul.f32 %v147, %v196
    %v202 = vmul.f32 %v151, %v196
    %v203 = vmul.f32 %v155, %v196
    %v204 = vmul.f32 %v159, %v196
    %v205 = vmul.f32 %v163, %v196
    %v206 = vmul.f32 %v167, %v196
    %v207 = vmul.f32 %v171, %v196
    %v208 = vmul.f32 %v175, %v196
    %v209 = vmul.f32 %v179, %v196
    %v210 = vmul.f32 %v183, %v196
    %v211 = vmul.f32 %v187, %v196
    %v212 = vmul.f32 %v191, %v196
    %v213 = vadd.f32 %v113, %v197
    %v214 = vadd.f32 %v114, %v198
    %v215 = vadd.f32 %v115, %v199
    %v216 = vadd.f32 %v116, %v200
    %v217 = vadd.f32 %v117, %v201
    %v218 = vadd.f32 %v118, %v202
    %v219 = vadd.f32 %v119, %v203
    %v220 = vadd.f32 %v120, %v204
    %v221 = vadd.f32 %v121, %v205
    %v222 = vadd.f32 %v122, %v206
    %v223 = vadd.f32 %v123, %v207
    %v224 = vadd.f32 %v124, %v208
    %v225 = vadd.f32 %v125, %v209
    %v226 = vadd.f32 %v126, %v210
    %v227 = vadd.f32 %v127, %v211
    %v228 = vadd.f32 %v128, %v212
    %229 = vset.pattern.permute.xlu0 2
    %230 = vperm.xlu0 %229, %v12
    %v231 = vpop.permute.xlu0 %230
    %233 = vset.pattern.permute.xlu0 2
    %234 = vperm.xlu0 %233, %v13
    %v235 = vpop.permute.xlu0 %234
    %237 = vset.pattern.permute.xlu0 2
    %238 = vperm.xlu0 %237, %v14
    %v239 = vpop.permute.xlu0 %238
    %241 = vset.pattern.permute.xlu0 2
    %242 = vperm.xlu0 %241, %v15
    %v243 = vpop.permute.xlu0 %242
    %245 = vset.pattern.permute.xlu0 2
    %246 = vperm.xlu0 %245, %v16
    %v247 = vpop.permute.xlu0 %246
    %249 = vset.pattern.permute.xlu0 2
    %250 = vperm.xlu0 %249, %v17
    %v251 = vpop.permute.xlu0 %250
    %253 = vset.pattern.permute.xlu0 2
    %254 = vperm.xlu0 %253, %v18
    %v255 = vpop.permute.xlu0 %254
    %257 = vset.pattern.permute.xlu0 2
    %258 = vperm.xlu0 %257, %v19
    %v259 = vpop.permute.xlu0 %258
    %261 = vset.pattern.permute.xlu0 2
    %262 = vperm.xlu0 %261, %v20
    %v263 = vpop.permute.xlu0 %262
    %265 = vset.pattern.permute.xlu0 2
    %266 = vperm.xlu0 %265, %v21
    %v267 = vpop.permute.xlu0 %266
    %269 = vset.pattern.permute.xlu0 2
    %270 = vperm.xlu0 %269, %v22
    %v271 = vpop.permute.xlu0 %270
    %273 = vset.pattern.permute.xlu0 2
    %274 = vperm.xlu0 %273, %v23
    %v275 = vpop.permute.xlu0 %274
    %277 = vset.pattern.permute.xlu0 2
    %278 = vperm.xlu0 %277, %v24
    %v279 = vpop.permute.xlu0 %278
    %281 = vset.pattern.permute.xlu0 2
    %282 = vperm.xlu0 %281, %v25
    %v283 = vpop.permute.xlu0 %282
    %285 = vset.pattern.permute.xlu0 2
    %286 = vperm.xlu0 %285, %v26
    %v287 = vpop.permute.xlu0 %286
    %289 = vset.pattern.permute.xlu0 2
    %290 = vperm.xlu0 %289, %v27
    %v291 = vpop.permute.xlu0 %290
    %v293 = vlaneseq
    %v294 = vshrl.u32 %v293, 7
    %v295 = vsub.s32 2, %v294
    %v296 = vrot.slane %v28, %v295
    %v297 = vmul.f32 %v231, %v296
    %v298 = vmul.f32 %v235, %v296
    %v299 = vmul.f32 %v239, %v296
    %v300 = vmul.f32 %v243, %v296
    %v301 = vmul.f32 %v247, %v296
    %v302 = vmul.f32 %v251, %v296
    %v303 = vmul.f32 %v255, %v296
    %v304 = vmul.f32 %v259, %v296
    %v305 = vmul.f32 %v263, %v296
    %v306 = vmul.f32 %v267, %v296
    %v307 = vmul.f32 %v271, %v296
    %v308 = vmul.f32 %v275, %v296
    %v309 = vmul.f32 %v279, %v296
    %v310 = vmul.f32 %v283, %v296
    %v311 = vmul.f32 %v287, %v296
    %v312 = vmul.f32 %v291, %v296
    %v313 = vadd.f32 %v213, %v297
    %v314 = vadd.f32 %v214, %v298
    %v315 = vadd.f32 %v215, %v299
    %v316 = vadd.f32 %v216, %v300
    %v317 = vadd.f32 %v217, %v301
    %v318 = vadd.f32 %v218, %v302
    %v319 = vadd.f32 %v219, %v303
    %v320 = vadd.f32 %v220, %v304
    %v321 = vadd.f32 %v221, %v305
    %v322 = vadd.f32 %v222, %v306
    %v323 = vadd.f32 %v223, %v307
    %v324 = vadd.f32 %v224, %v308
    %v325 = vadd.f32 %v225, %v309
    %v326 = vadd.f32 %v226, %v310
    %v327 = vadd.f32 %v227, %v311
    %v328 = vadd.f32 %v228, %v312
    %v329 = vand.u32 2147483647, %v313
    %vm330 = vcmp.le.f32.partialorder %v329, 0.7853982
    %vm331 = vcmp.lt.s32.totalorder %v313, 0
    %v332 = vand.u32 %v313, 2139095040
    %v333 = vshrl.u32 %v332, 23
    %v334 = vsub.s32 %v333, 127
    %v335 = vand.u32 2147483647, %v313
    %v336 = vand.u32 %v335, 8388607
    %v337 = vor.u32 %v336, 8388608
    %v338 = vsub.s32 0, %v337
    %v339 = vadd.s32 %v334, 1
    %vm340 = vcmp.gt.s32.totalorder %v339, 0
    %v341 = vsel %vm340, %v339, 0
    %v342 = vshrl.u32 %v341, 5
    %v343 = vand.u32 %v341, 31
    %v344 = vsub.s32 32, %v343
    %v345 = vshrl.u32 683565275, %v344
    %v346 = vshll.u32 683565275, %v343
    %v347 = vshrl.u32 2475754826, %v344
    %v348 = vor.u32 %v346, %v347
    %v349 = vshll.u32 2475754826, %v343
    %v350 = vshrl.u32 2131351028, %v344
    %v351 = vor.u32 %v349, %v350
    %v352 = vshll.u32 2131351028, %v343
    %v353 = vshrl.u32 2102212464, %v344
    %v354 = vor.u32 %v352, %v353
    %v355 = vshll.u32 2102212464, %v343
    %v356 = vshrl.u32 920167782, %v344
    %v357 = vor.u32 %v355, %v356
    %v358 = vshll.u32 920167782, %v343
    %v359 = vshrl.u32 1326507024, %v344
    %v360 = vor.u32 %v358, %v359
    %vm361 = vcmp.lt.s32.totalorder %v342, 1
    %vm362 = vcmp.lt.s32.totalorder %v342, 2
    %vm363 = vcmp.lt.s32.totalorder %v342, 3
    %vm364 = vcmp.lt.s32.totalorder %v342, 4
    %v365 = vsel %vm361, %v345, %v348
    %v366 = vsel %vm364, %v354, 2102212464
    %v367 = vsel %vm363, %v351, %v366
    %v368 = vsel %vm362, %v365, %v367
    %v369 = vsel %vm361, %v348, %v351
    %v370 = vsel %vm364, %v357, 920167782
    %v371 = vsel %vm363, %v354, %v370
    %v372 = vsel %vm362, %v369, %v371
    %v373 = vsel %vm361, %v351, %v354
    %v374 = vsel %vm364, %v360, 1326507024
    %v375 = vsel %vm363, %v357, %v374
    %v376 = vsel %vm362, %v373, %v375
    %v377 = vshll.u32 %v337, 8
    %v378 = vmul.u32.u64.compose %v377, %v376
    %v379 = vextract.low.u32 %v378
    %v380 = vextract.high.u32 %v378
    %v381 = vmul.u32.u64.compose %v377, %v372
    %v382 = vextract.low.u32 %v381
    %v383 = vextract.high.u32 %v381
    %v384 = vmul.u32 %v377, %v368
    %v385 = vadd.s32 %v380, %v382
    %vm386 = vc.u32 %v380, %v382
    %v387 = vadd.s32 %v383, 1
    %v388 = vsel %vm386, %v387, %v383
    %v389 = vadd.s32 %v384, %v388
    %v390 = vadd.s32 %v389, 536870912
    %v391 = vshrl.u32 %v390, 30
    %v392 = vshll.u32 %v391, 30
    %v393 = vsub.s32 %v389, %v392
    %vm394 = vcmp.lt.s32.totalorder %v393, 0
    %v395 = vsub.s32 0, %v393
    %v396 = vsel %vm394, %v395, %v393
    %v397 = vclz %v396
    %v398 = vsub.s32 %v397, 2
    %vm399 = vcmp.gt.s32.totalorder 0, %v398
    %v400 = vsel %vm399, 0, %v398
    %v401 = vsub.s32 32, %v400
    %v402 = vshll.u32 %v393, %v400
    %v403 = vshrl.u32 %v385, %v401
    %v404 = vor.u32 %v402, %v403
    %v405 = vsub.s32 4294967266, %v400
    %v406 = vadd.s32 %v405, 127
    %v407 = vshll.u32 %v406, 23
    %v408 = vor.u32 4788187, %v407
    %v409 = vand.u32 2147483647, %v408
    %v411 = vcvt.s32.f32 %v404
    %v412 = vmul.f32 %v411, %v409
    %v413 = vxor.u32 %v412, 2147483648
    %v414 = vsel %vm331, %v413, %v412
    %v415 = vsub.s32 4, %v391
    %v416 = vsel %vm331, %v415, %v391
    %v417 = vsel %vm330, %v313, %v414
    %v418 = vsel %vm330, 0, %v416
    %v419 = vcosq.f32.pop %v417
    %v420 = vsinq.f32.pop %v417
    %vm421 = vweird.f32 %v313
    %v422 = vadd.s32 %v418, 3
    %v423 = vand.u32 %v422, 3
    %vm424 = vcmp.lt.s32.totalorder %v423, 2
    %vm425 = vcmp.eq.s32.totalorder %v423, 0
    %v426 = vxor.u32 %v420, 2147483648
    %v427 = vsel %vm425, %v419, %v426
    %vm428 = vcmp.eq.s32.totalorder %v423, 2
    %v429 = vxor.u32 %v419, 2147483648
    %v430 = vsel %vm428, %v429, %v420
    %v431 = vsel %vm424, %v427, %v430
    %v432 = vsel %vm421, nan, %v431
    %v433 = vand.u32 2147483647, %v314
    %vm434 = vcmp.le.f32.partialorder %v433, 0.7853982
    %vm435 = vcmp.lt.s32.totalorder %v314, 0
    %v436 = vand.u32 %v314, 2139095040
    %v437 = vshrl.u32 %v436, 23
    %v438 = vsub.s32 %v437, 127
    %v439 = vand.u32 2147483647, %v314
    %v440 = vand.u32 %v439, 8388607
    %v441 = vor.u32 %v440, 8388608
    %v442 = vsub.s32 0, %v441
    %v443 = vadd.s32 %v438, 1
    %vm444 = vcmp.gt.s32.totalorder %v443, 0
    %v445 = vsel %vm444, %v443, 0
    %v446 = vshrl.u32 %v445, 5
    %v447 = vand.u32 %v445, 31
    %v448 = vsub.s32 32, %v447
    %v449 = vshrl.u32 683565275, %v448
    %v450 = vshll.u32 683565275, %v447
    %v451 = vshrl.u32 2475754826, %v448
    %v452 = vor.u32 %v450, %v451
    %v453 = vshll.u32 2475754826, %v447
    %v454 = vshrl.u32 2131351028, %v448
    %v455 = vor.u32 %v453, %v454
    %v456 = vshll.u32 2131351028, %v447
    %v457 = vshrl.u32 2102212464, %v448
    %v458 = vor.u32 %v456, %v457
    %v459 = vshll.u32 2102212464, %v447
    %v460 = vshrl.u32 920167782, %v448
    %v461 = vor.u32 %v459, %v460
    %v462 = vshll.u32 920167782, %v447
    %v463 = vshrl.u32 1326507024, %v448
    %v464 = vor.u32 %v462, %v463
    %vm465 = vcmp.lt.s32.totalorder %v446, 1
    %vm466 = vcmp.lt.s32.totalorder %v446, 2
    %vm467 = vcmp.lt.s32.totalorder %v446, 3
    %vm468 = vcmp.lt.s32.totalorder %v446, 4
    %v469 = vsel %vm465, %v449, %v452
    %v470 = vsel %vm468, %v458, 2102212464
    %v471 = vsel %vm467, %v455, %v470
    %v472 = vsel %vm466, %v469, %v471
    %v473 = vsel %vm465, %v452, %v455
    %v474 = vsel %vm468, %v461, 920167782
    %v475 = vsel %vm467, %v458, %v474
    %v476 = vsel %vm466, %v473, %v475
    %v477 = vsel %vm465, %v455, %v458
    %v478 = vsel %vm468, %v464, 1326507024
    %v479 = vsel %vm467, %v461, %v478
    %v480 = vsel %vm466, %v477, %v479
    %v481 = vshll.u32 %v441, 8
    %v482 = vmul.u32.u64.compose %v481, %v480
    %v483 = vextract.low.u32 %v482
    %v484 = vextract.high.u32 %v482
    %v485 = vmul.u32.u64.compose %v481, %v476
    %v486 = vextract.low.u32 %v485
    %v487 = vextract.high.u32 %v485
    %v488 = vmul.u32 %v481, %v472
    %v489 = vadd.s32 %v484, %v486
    %vm490 = vc.u32 %v484, %v486
    %v491 = vadd.s32 %v487, 1
    %v492 = vsel %vm490, %v491, %v487
    %v493 = vadd.s32 %v488, %v492
    %v494 = vadd.s32 %v493, 536870912
    %v495 = vshrl.u32 %v494, 30
    %v496 = vshll.u32 %v495, 30
    %v497 = vsub.s32 %v493, %v496
    %vm498 = vcmp.lt.s32.totalorder %v497, 0
    %v499 = vsub.s32 0, %v497
    %v500 = vsel %vm498, %v499, %v497
    %v501 = vclz %v500
    %v502 = vsub.s32 %v501, 2
    %vm503 = vcmp.gt.s32.totalorder 0, %v502
    %v504 = vsel %vm503, 0, %v502
    %v505 = vsub.s32 32, %v504
    %v506 = vshll.u32 %v497, %v504
    %v507 = vshrl.u32 %v489, %v505
    %v508 = vor.u32 %v506, %v507
    %v509 = vsub.s32 4294967266, %v504
    %v510 = vadd.s32 %v509, 127
    %v511 = vshll.u32 %v510, 23
    %v512 = vor.u32 4788187, %v511
    %v513 = vand.u32 2147483647, %v512
    %v515 = vcvt.s32.f32 %v508
    %v516 = vmul.f32 %v515, %v513
    %v517 = vxor.u32 %v516, 2147483648
    %v518 = vsel %vm435, %v517, %v516
    %v519 = vsub.s32 4, %v495
    %v520 = vsel %vm435, %v519, %v495
    %v521 = vsel %vm434, %v314, %v518
    %v522 = vsel %vm434, 0, %v520
    %v523 = vcosq.f32.pop %v521
    %v524 = vsinq.f32.pop %v521
    %vm525 = vweird.f32 %v314
    %v526 = vadd.s32 %v522, 3
    %v527 = vand.u32 %v526, 3
    %vm528 = vcmp.lt.s32.totalorder %v527, 2
    %vm529 = vcmp.eq.s32.totalorder %v527, 0
    %v530 = vxor.u32 %v524, 2147483648
    %v531 = vsel %vm529, %v523, %v530
    %vm532 = vcmp.eq.s32.totalorder %v527, 2
    %v533 = vxor.u32 %v523, 2147483648
    %v534 = vsel %vm532, %v533, %v524
    %v535 = vsel %vm528, %v531, %v534
    %v536 = vsel %vm525, nan, %v535
    %v537 = vand.u32 2147483647, %v315
    %vm538 = vcmp.le.f32.partialorder %v537, 0.7853982
    %vm539 = vcmp.lt.s32.totalorder %v315, 0
    %v540 = vand.u32 %v315, 2139095040
    %v541 = vshrl.u32 %v540, 23
    %v542 = vsub.s32 %v541, 127
    %v543 = vand.u32 2147483647, %v315
    %v544 = vand.u32 %v543, 8388607
    %v545 = vor.u32 %v544, 8388608
    %v546 = vsub.s32 0, %v545
    %v547 = vadd.s32 %v542, 1
    %vm548 = vcmp.gt.s32.totalorder %v547, 0
    %v549 = vsel %vm548, %v547, 0
    %v550 = vshrl.u32 %v549, 5
    %v551 = vand.u32 %v549, 31
    %v552 = vsub.s32 32, %v551
    %v553 = vshrl.u32 683565275, %v552
    %v554 = vshll.u32 683565275, %v551
    %v555 = vshrl.u32 2475754826, %v552
    %v556 = vor.u32 %v554, %v555
    %v557 = vshll.u32 2475754826, %v551
    %v558 = vshrl.u32 2131351028, %v552
    %v559 = vor.u32 %v557, %v558
    %v560 = vshll.u32 2131351028, %v551
    %v561 = vshrl.u32 2102212464, %v552
    %v562 = vor.u32 %v560, %v561
    %v563 = vshll.u32 2102212464, %v551
    %v564 = vshrl.u32 920167782, %v552
    %v565 = vor.u32 %v563, %v564
    %v566 = vshll.u32 920167782, %v551
    %v567 = vshrl.u32 1326507024, %v552
    %v568 = vor.u32 %v566, %v567
    %vm569 = vcmp.lt.s32.totalorder %v550, 1
    %vm570 = vcmp.lt.s32.totalorder %v550, 2
    %vm571 = vcmp.lt.s32.totalorder %v550, 3
    %vm572 = vcmp.lt.s32.totalorder %v550, 4
    %v573 = vsel %vm569, %v553, %v556
    %v574 = vsel %vm572, %v562, 2102212464
    %v575 = vsel %vm571, %v559, %v574
    %v576 = vsel %vm570, %v573, %v575
    %v577 = vsel %vm569, %v556, %v559
    %v578 = vsel %vm572, %v565, 920167782
    %v579 = vsel %vm571, %v562, %v578
    %v580 = vsel %vm570, %v577, %v579
    %v581 = vsel %vm569, %v559, %v562
    %v582 = vsel %vm572, %v568, 1326507024
    %v583 = vsel %vm571, %v565, %v582
    %v584 = vsel %vm570, %v581, %v583
    %v585 = vshll.u32 %v545, 8
    %v586 = vmul.u32.u64.compose %v585, %v584
    %v587 = vextract.low.u32 %v586
    %v588 = vextract.high.u32 %v586
    %v589 = vmul.u32.u64.compose %v585, %v580
    %v590 = vextract.low.u32 %v589
    %v591 = vextract.high.u32 %v589
    %v592 = vmul.u32 %v585, %v576
    %v593 = vadd.s32 %v588, %v590
    %vm594 = vc.u32 %v588, %v590
    %v595 = vadd.s32 %v591, 1
    %v596 = vsel %vm594, %v595, %v591
    %v597 = vadd.s32 %v592, %v596
    %v598 = vadd.s32 %v597, 536870912
    %v599 = vshrl.u32 %v598, 30
    %v600 = vshll.u32 %v599, 30
    %v601 = vsub.s32 %v597, %v600
    %vm602 = vcmp.lt.s32.totalorder %v601, 0
    %v603 = vsub.s32 0, %v601
    %v604 = vsel %vm602, %v603, %v601
    %v605 = vclz %v604
    %v606 = vsub.s32 %v605, 2
    %vm607 = vcmp.gt.s32.totalorder 0, %v606
    %v608 = vsel %vm607, 0, %v606
    %v609 = vsub.s32 32, %v608
    %v610 = vshll.u32 %v601, %v608
    %v611 = vshrl.u32 %v593, %v609
    %v612 = vor.u32 %v610, %v611
    %v613 = vsub.s32 4294967266, %v608
    %v614 = vadd.s32 %v613, 127
    %v615 = vshll.u32 %v614, 23
    %v616 = vor.u32 4788187, %v615
    %v617 = vand.u32 2147483647, %v616
    %v619 = vcvt.s32.f32 %v612
    %v620 = vmul.f32 %v619, %v617
    %v621 = vxor.u32 %v620, 2147483648
    %v622 = vsel %vm539, %v621, %v620
    %v623 = vsub.s32 4, %v599
    %v624 = vsel %vm539, %v623, %v599
    %v625 = vsel %vm538, %v315, %v622
    %v626 = vsel %vm538, 0, %v624
    %v627 = vcosq.f32.pop %v625
    %v628 = vsinq.f32.pop %v625
    %vm629 = vweird.f32 %v315
    %v630 = vadd.s32 %v626, 3
    %v631 = vand.u32 %v630, 3
    %vm632 = vcmp.lt.s32.totalorder %v631, 2
    %vm633 = vcmp.eq.s32.totalorder %v631, 0
    %v634 = vxor.u32 %v628, 2147483648
    %v635 = vsel %vm633, %v627, %v634
    %vm636 = vcmp.eq.s32.totalorder %v631, 2
    %v637 = vxor.u32 %v627, 2147483648
    %v638 = vsel %vm636, %v637, %v628
    %v639 = vsel %vm632, %v635, %v638
    %v640 = vsel %vm629, nan, %v639
    %v641 = vand.u32 2147483647, %v316
    %vm642 = vcmp.le.f32.partialorder %v641, 0.7853982
    %vm643 = vcmp.lt.s32.totalorder %v316, 0
    %v644 = vand.u32 %v316, 2139095040
    %v645 = vshrl.u32 %v644, 23
    %v646 = vsub.s32 %v645, 127
    %v647 = vand.u32 2147483647, %v316
    %v648 = vand.u32 %v647, 8388607
    %v649 = vor.u32 %v648, 8388608
    %v650 = vsub.s32 0, %v649
    %v651 = vadd.s32 %v646, 1
    %vm652 = vcmp.gt.s32.totalorder %v651, 0
    %v653 = vsel %vm652, %v651, 0
    %v654 = vshrl.u32 %v653, 5
    %v655 = vand.u32 %v653, 31
    %v656 = vsub.s32 32, %v655
    %v657 = vshrl.u32 683565275, %v656
    %v658 = vshll.u32 683565275, %v655
    %v659 = vshrl.u32 2475754826, %v656
    %v660 = vor.u32 %v658, %v659
    %v661 = vshll.u32 2475754826, %v655
    %v662 = vshrl.u32 2131351028, %v656
    %v663 = vor.u32 %v661, %v662
    %v664 = vshll.u32 2131351028, %v655
    %v665 = vshrl.u32 2102212464, %v656
    %v666 = vor.u32 %v664, %v665
    %v667 = vshll.u32 2102212464, %v655
    %v668 = vshrl.u32 920167782, %v656
    %v669 = vor.u32 %v667, %v668
    %v670 = vshll.u32 920167782, %v655
    %v671 = vshrl.u32 1326507024, %v656
    %v672 = vor.u32 %v670, %v671
    %vm673 = vcmp.lt.s32.totalorder %v654, 1
    %vm674 = vcmp.lt.s32.totalorder %v654, 2
    %vm675 = vcmp.lt.s32.totalorder %v654, 3
    %vm676 = vcmp.lt.s32.totalorder %v654, 4
    %v677 = vsel %vm673, %v657, %v660
    %v678 = vsel %vm676, %v666, 2102212464
    %v679 = vsel %vm675, %v663, %v678
    %v680 = vsel %vm674, %v677, %v679
    %v681 = vsel %vm673, %v660, %v663
    %v682 = vsel %vm676, %v669, 920167782
    %v683 = vsel %vm675, %v666, %v682
    %v684 = vsel %vm674, %v681, %v683
    %v685 = vsel %vm673, %v663, %v666
    %v686 = vsel %vm676, %v672, 1326507024
    %v687 = vsel %vm675, %v669, %v686
    %v688 = vsel %vm674, %v685, %v687
    %v689 = vshll.u32 %v649, 8
    %v690 = vmul.u32.u64.compose %v689, %v688
    %v691 = vextract.low.u32 %v690
    %v692 = vextract.high.u32 %v690
    %v693 = vmul.u32.u64.compose %v689, %v684
    %v694 = vextract.low.u32 %v693
    %v695 = vextract.high.u32 %v693
    %v696 = vmul.u32 %v689, %v680
    %v697 = vadd.s32 %v692, %v694
    %vm698 = vc.u32 %v692, %v694
    %v699 = vadd.s32 %v695, 1
    %v700 = vsel %vm698, %v699, %v695
    %v701 = vadd.s32 %v696, %v700
    %v702 = vadd.s32 %v701, 536870912
    %v703 = vshrl.u32 %v702, 30
    %v704 = vshll.u32 %v703, 30
    %v705 = vsub.s32 %v701, %v704
    %vm706 = vcmp.lt.s32.totalorder %v705, 0
    %v707 = vsub.s32 0, %v705
    %v708 = vsel %vm706, %v707, %v705
    %v709 = vclz %v708
    %v710 = vsub.s32 %v709, 2
    %vm711 = vcmp.gt.s32.totalorder 0, %v710
    %v712 = vsel %vm711, 0, %v710
    %v713 = vsub.s32 32, %v712
    %v714 = vshll.u32 %v705, %v712
    %v715 = vshrl.u32 %v697, %v713
    %v716 = vor.u32 %v714, %v715
    %v717 = vsub.s32 4294967266, %v712
    %v718 = vadd.s32 %v717, 127
    %v719 = vshll.u32 %v718, 23
    %v720 = vor.u32 4788187, %v719
    %v721 = vand.u32 2147483647, %v720
    %v723 = vcvt.s32.f32 %v716
    %v724 = vmul.f32 %v723, %v721
    %v725 = vxor.u32 %v724, 2147483648
    %v726 = vsel %vm643, %v725, %v724
    %v727 = vsub.s32 4, %v703
    %v728 = vsel %vm643, %v727, %v703
    %v729 = vsel %vm642, %v316, %v726
    %v730 = vsel %vm642, 0, %v728
    %v731 = vcosq.f32.pop %v729
    %v732 = vsinq.f32.pop %v729
    %vm733 = vweird.f32 %v316
    %v734 = vadd.s32 %v730, 3
    %v735 = vand.u32 %v734, 3
    %vm736 = vcmp.lt.s32.totalorder %v735, 2
    %vm737 = vcmp.eq.s32.totalorder %v735, 0
    %v738 = vxor.u32 %v732, 2147483648
    %v739 = vsel %vm737, %v731, %v738
    %vm740 = vcmp.eq.s32.totalorder %v735, 2
    %v741 = vxor.u32 %v731, 2147483648
    %v742 = vsel %vm740, %v741, %v732
    %v743 = vsel %vm736, %v739, %v742
    %v744 = vsel %vm733, nan, %v743
    %v745 = vand.u32 2147483647, %v317
    %vm746 = vcmp.le.f32.partialorder %v745, 0.7853982
    %vm747 = vcmp.lt.s32.totalorder %v317, 0
    %v748 = vand.u32 %v317, 2139095040
    %v749 = vshrl.u32 %v748, 23
    %v750 = vsub.s32 %v749, 127
    %v751 = vand.u32 2147483647, %v317
    %v752 = vand.u32 %v751, 8388607
    %v753 = vor.u32 %v752, 8388608
    %v754 = vsub.s32 0, %v753
    %v755 = vadd.s32 %v750, 1
    %vm756 = vcmp.gt.s32.totalorder %v755, 0
    %v757 = vsel %vm756, %v755, 0
    %v758 = vshrl.u32 %v757, 5
    %v759 = vand.u32 %v757, 31
    %v760 = vsub.s32 32, %v759
    %v761 = vshrl.u32 683565275, %v760
    %v762 = vshll.u32 683565275, %v759
    %v763 = vshrl.u32 2475754826, %v760
    %v764 = vor.u32 %v762, %v763
    %v765 = vshll.u32 2475754826, %v759
    %v766 = vshrl.u32 2131351028, %v760
    %v767 = vor.u32 %v765, %v766
    %v768 = vshll.u32 2131351028, %v759
    %v769 = vshrl.u32 2102212464, %v760
    %v770 = vor.u32 %v768, %v769
    %v771 = vshll.u32 2102212464, %v759
    %v772 = vshrl.u32 920167782, %v760
    %v773 = vor.u32 %v771, %v772
    %v774 = vshll.u32 920167782, %v759
    %v775 = vshrl.u32 1326507024, %v760
    %v776 = vor.u32 %v774, %v775
    %vm777 = vcmp.lt.s32.totalorder %v758, 1
    %vm778 = vcmp.lt.s32.totalorder %v758, 2
    %vm779 = vcmp.lt.s32.totalorder %v758, 3
    %vm780 = vcmp.lt.s32.totalorder %v758, 4
    %v781 = vsel %vm777, %v761, %v764
    %v782 = vsel %vm780, %v770, 2102212464
    %v783 = vsel %vm779, %v767, %v782
    %v784 = vsel %vm778, %v781, %v783
    %v785 = vsel %vm777, %v764, %v767
    %v786 = vsel %vm780, %v773, 920167782
    %v787 = vsel %vm779, %v770, %v786
    %v788 = vsel %vm778, %v785, %v787
    %v789 = vsel %vm777, %v767, %v770
    %v790 = vsel %vm780, %v776, 1326507024
    %v791 = vsel %vm779, %v773, %v790
    %v792 = vsel %vm778, %v789, %v791
    %v793 = vshll.u32 %v753, 8
    %v794 = vmul.u32.u64.compose %v793, %v792
    %v795 = vextract.low.u32 %v794
    %v796 = vextract.high.u32 %v794
    %v797 = vmul.u32.u64.compose %v793, %v788
    %v798 = vextract.low.u32 %v797
    %v799 = vextract.high.u32 %v797
    %v800 = vmul.u32 %v793, %v784
    %v801 = vadd.s32 %v796, %v798
    %vm802 = vc.u32 %v796, %v798
    %v803 = vadd.s32 %v799, 1
    %v804 = vsel %vm802, %v803, %v799
    %v805 = vadd.s32 %v800, %v804
    %v806 = vadd.s32 %v805, 536870912
    %v807 = vshrl.u32 %v806, 30
    %v808 = vshll.u32 %v807, 30
    %v809 = vsub.s32 %v805, %v808
    %vm810 = vcmp.lt.s32.totalorder %v809, 0
    %v811 = vsub.s32 0, %v809
    %v812 = vsel %vm810, %v811, %v809
    %v813 = vclz %v812
    %v814 = vsub.s32 %v813, 2
    %vm815 = vcmp.gt.s32.totalorder 0, %v814
    %v816 = vsel %vm815, 0, %v814
    %v817 = vsub.s32 32, %v816
    %v818 = vshll.u32 %v809, %v816
    %v819 = vshrl.u32 %v801, %v817
    %v820 = vor.u32 %v818, %v819
    %v821 = vsub.s32 4294967266, %v816
    %v822 = vadd.s32 %v821, 127
    %v823 = vshll.u32 %v822, 23
    %v824 = vor.u32 4788187, %v823
    %v825 = vand.u32 2147483647, %v824
    %v827 = vcvt.s32.f32 %v820
    %v828 = vmul.f32 %v827, %v825
    %v829 = vxor.u32 %v828, 2147483648
    %v830 = vsel %vm747, %v829, %v828
    %v831 = vsub.s32 4, %v807
    %v832 = vsel %vm747, %v831, %v807
    %v833 = vsel %vm746, %v317, %v830
    %v834 = vsel %vm746, 0, %v832
    %v835 = vcosq.f32.pop %v833
    %v836 = vsinq.f32.pop %v833
    %vm837 = vweird.f32 %v317
    %v838 = vadd.s32 %v834, 3
    %v839 = vand.u32 %v838, 3
    %vm840 = vcmp.lt.s32.totalorder %v839, 2
    %vm841 = vcmp.eq.s32.totalorder %v839, 0
    %v842 = vxor.u32 %v836, 2147483648
    %v843 = vsel %vm841, %v835, %v842
    %vm844 = vcmp.eq.s32.totalorder %v839, 2
    %v845 = vxor.u32 %v835, 2147483648
    %v846 = vsel %vm844, %v845, %v836
    %v847 = vsel %vm840, %v843, %v846
    %v848 = vsel %vm837, nan, %v847
    %v849 = vand.u32 2147483647, %v318
    %vm850 = vcmp.le.f32.partialorder %v849, 0.7853982
    %vm851 = vcmp.lt.s32.totalorder %v318, 0
    %v852 = vand.u32 %v318, 2139095040
    %v853 = vshrl.u32 %v852, 23
    %v854 = vsub.s32 %v853, 127
    %v855 = vand.u32 2147483647, %v318
    %v856 = vand.u32 %v855, 8388607
    %v857 = vor.u32 %v856, 8388608
    %v858 = vsub.s32 0, %v857
    %v859 = vadd.s32 %v854, 1
    %vm860 = vcmp.gt.s32.totalorder %v859, 0
    %v861 = vsel %vm860, %v859, 0
    %v862 = vshrl.u32 %v861, 5
    %v863 = vand.u32 %v861, 31
    %v864 = vsub.s32 32, %v863
    %v865 = vshrl.u32 683565275, %v864
    %v866 = vshll.u32 683565275, %v863
    %v867 = vshrl.u32 2475754826, %v864
    %v868 = vor.u32 %v866, %v867
    %v869 = vshll.u32 2475754826, %v863
    %v870 = vshrl.u32 2131351028, %v864
    %v871 = vor.u32 %v869, %v870
    %v872 = vshll.u32 2131351028, %v863
    %v873 = vshrl.u32 2102212464, %v864
    %v874 = vor.u32 %v872, %v873
    %v875 = vshll.u32 2102212464, %v863
    %v876 = vshrl.u32 920167782, %v864
    %v877 = vor.u32 %v875, %v876
    %v878 = vshll.u32 920167782, %v863
    %v879 = vshrl.u32 1326507024, %v864
    %v880 = vor.u32 %v878, %v879
    %vm881 = vcmp.lt.s32.totalorder %v862, 1
    %vm882 = vcmp.lt.s32.totalorder %v862, 2
    %vm883 = vcmp.lt.s32.totalorder %v862, 3
    %vm884 = vcmp.lt.s32.totalorder %v862, 4
    %v885 = vsel %vm881, %v865, %v868
    %v886 = vsel %vm884, %v874, 2102212464
    %v887 = vsel %vm883, %v871, %v886
    %v888 = vsel %vm882, %v885, %v887
    %v889 = vsel %vm881, %v868, %v871
    %v890 = vsel %vm884, %v877, 920167782
    %v891 = vsel %vm883, %v874, %v890
    %v892 = vsel %vm882, %v889, %v891
    %v893 = vsel %vm881, %v871, %v874
    %v894 = vsel %vm884, %v880, 1326507024
    %v895 = vsel %vm883, %v877, %v894
    %v896 = vsel %vm882, %v893, %v895
    %v897 = vshll.u32 %v857, 8
    %v898 = vmul.u32.u64.compose %v897, %v896
    %v899 = vextract.low.u32 %v898
    %v900 = vextract.high.u32 %v898
    %v901 = vmul.u32.u64.compose %v897, %v892
    %v902 = vextract.low.u32 %v901
    %v903 = vextract.high.u32 %v901
    %v904 = vmul.u32 %v897, %v888
    %v905 = vadd.s32 %v900, %v902
    %vm906 = vc.u32 %v900, %v902
    %v907 = vadd.s32 %v903, 1
    %v908 = vsel %vm906, %v907, %v903
    %v909 = vadd.s32 %v904, %v908
    %v910 = vadd.s32 %v909, 536870912
    %v911 = vshrl.u32 %v910, 30
    %v912 = vshll.u32 %v911, 30
    %v913 = vsub.s32 %v909, %v912
    %vm914 = vcmp.lt.s32.totalorder %v913, 0
    %v915 = vsub.s32 0, %v913
    %v916 = vsel %vm914, %v915, %v913
    %v917 = vclz %v916
    %v918 = vsub.s32 %v917, 2
    %vm919 = vcmp.gt.s32.totalorder 0, %v918
    %v920 = vsel %vm919, 0, %v918
    %v921 = vsub.s32 32, %v920
    %v922 = vshll.u32 %v913, %v920
    %v923 = vshrl.u32 %v905, %v921
    %v924 = vor.u32 %v922, %v923
    %v925 = vsub.s32 4294967266, %v920
    %v926 = vadd.s32 %v925, 127
    %v927 = vshll.u32 %v926, 23
    %v928 = vor.u32 4788187, %v927
    %v929 = vand.u32 2147483647, %v928
    %v931 = vcvt.s32.f32 %v924
    %v932 = vmul.f32 %v931, %v929
    %v933 = vxor.u32 %v932, 2147483648
    %v934 = vsel %vm851, %v933, %v932
    %v935 = vsub.s32 4, %v911
    %v936 = vsel %vm851, %v935, %v911
    %v937 = vsel %vm850, %v318, %v934
    %v938 = vsel %vm850, 0, %v936
    %v939 = vcosq.f32.pop %v937
    %v940 = vsinq.f32.pop %v937
    %vm941 = vweird.f32 %v318
    %v942 = vadd.s32 %v938, 3
    %v943 = vand.u32 %v942, 3
    %vm944 = vcmp.lt.s32.totalorder %v943, 2
    %vm945 = vcmp.eq.s32.totalorder %v943, 0
    %v946 = vxor.u32 %v940, 2147483648
    %v947 = vsel %vm945, %v939, %v946
    %vm948 = vcmp.eq.s32.totalorder %v943, 2
    %v949 = vxor.u32 %v939, 2147483648
    %v950 = vsel %vm948, %v949, %v940
    %v951 = vsel %vm944, %v947, %v950
    %v952 = vsel %vm941, nan, %v951
    %v953 = vand.u32 2147483647, %v319
    %vm954 = vcmp.le.f32.partialorder %v953, 0.7853982
    %vm955 = vcmp.lt.s32.totalorder %v319, 0
    %v956 = vand.u32 %v319, 2139095040
    %v957 = vshrl.u32 %v956, 23
    %v958 = vsub.s32 %v957, 127
    %v959 = vand.u32 2147483647, %v319
    %v960 = vand.u32 %v959, 8388607
    %v961 = vor.u32 %v960, 8388608
    %v962 = vsub.s32 0, %v961
    %v963 = vadd.s32 %v958, 1
    %vm964 = vcmp.gt.s32.totalorder %v963, 0
    %v965 = vsel %vm964, %v963, 0
    %v966 = vshrl.u32 %v965, 5
    %v967 = vand.u32 %v965, 31
    %v968 = vsub.s32 32, %v967
    %v969 = vshrl.u32 683565275, %v968
    %v970 = vshll.u32 683565275, %v967
    %v971 = vshrl.u32 2475754826, %v968
    %v972 = vor.u32 %v970, %v971
    %v973 = vshll.u32 2475754826, %v967
    %v974 = vshrl.u32 2131351028, %v968
    %v975 = vor.u32 %v973, %v974
    %v976 = vshll.u32 2131351028, %v967
    %v977 = vshrl.u32 2102212464, %v968
    %v978 = vor.u32 %v976, %v977
    %v979 = vshll.u32 2102212464, %v967
    %v980 = vshrl.u32 920167782, %v968
    %v981 = vor.u32 %v979, %v980
    %v982 = vshll.u32 920167782, %v967
    %v983 = vshrl.u32 1326507024, %v968
    %v984 = vor.u32 %v982, %v983
    %vm985 = vcmp.lt.s32.totalorder %v966, 1
    %vm986 = vcmp.lt.s32.totalorder %v966, 2
    %vm987 = vcmp.lt.s32.totalorder %v966, 3
    %vm988 = vcmp.lt.s32.totalorder %v966, 4
    %v989 = vsel %vm985, %v969, %v972
    %v990 = vsel %vm988, %v978, 2102212464
    %v991 = vsel %vm987, %v975, %v990
    %v992 = vsel %vm986, %v989, %v991
    %v993 = vsel %vm985, %v972, %v975
    %v994 = vsel %vm988, %v981, 920167782
    %v995 = vsel %vm987, %v978, %v994
    %v996 = vsel %vm986, %v993, %v995
    %v997 = vsel %vm985, %v975, %v978
    %v998 = vsel %vm988, %v984, 1326507024
    %v999 = vsel %vm987, %v981, %v998
    %v1000 = vsel %vm986, %v997, %v999
    %v1001 = vshll.u32 %v961, 8
    %v1002 = vmul.u32.u64.compose %v1001, %v1000
    %v1003 = vextract.low.u32 %v1002
    %v1004 = vextract.high.u32 %v1002
    %v1005 = vmul.u32.u64.compose %v1001, %v996
    %v1006 = vextract.low.u32 %v1005
    %v1007 = vextract.high.u32 %v1005
    %v1008 = vmul.u32 %v1001, %v992
    %v1009 = vadd.s32 %v1004, %v1006
    %vm1010 = vc.u32 %v1004, %v1006
    %v1011 = vadd.s32 %v1007, 1
    %v1012 = vsel %vm1010, %v1011, %v1007
    %v1013 = vadd.s32 %v1008, %v1012
    %v1014 = vadd.s32 %v1013, 536870912
    %v1015 = vshrl.u32 %v1014, 30
    %v1016 = vshll.u32 %v1015, 30
    %v1017 = vsub.s32 %v1013, %v1016
    %vm1018 = vcmp.lt.s32.totalorder %v1017, 0
    %v1019 = vsub.s32 0, %v1017
    %v1020 = vsel %vm1018, %v1019, %v1017
    %v1021 = vclz %v1020
    %v1022 = vsub.s32 %v1021, 2
    %vm1023 = vcmp.gt.s32.totalorder 0, %v1022
    %v1024 = vsel %vm1023, 0, %v1022
    %v1025 = vsub.s32 32, %v1024
    %v1026 = vshll.u32 %v1017, %v1024
    %v1027 = vshrl.u32 %v1009, %v1025
    %v1028 = vor.u32 %v1026, %v1027
    %v1029 = vsub.s32 4294967266, %v1024
    %v1030 = vadd.s32 %v1029, 127
    %v1031 = vshll.u32 %v1030, 23
    %v1032 = vor.u32 4788187, %v1031
    %v1033 = vand.u32 2147483647, %v1032
    %v1035 = vcvt.s32.f32 %v1028
    %v1036 = vmul.f32 %v1035, %v1033
    %v1037 = vxor.u32 %v1036, 2147483648
    %v1038 = vsel %vm955, %v1037, %v1036
    %v1039 = vsub.s32 4, %v1015
    %v1040 = vsel %vm955, %v1039, %v1015
    %v1041 = vsel %vm954, %v319, %v1038
    %v1042 = vsel %vm954, 0, %v1040
    %v1043 = vcosq.f32.pop %v1041
    %v1044 = vsinq.f32.pop %v1041
    %vm1045 = vweird.f32 %v319
    %v1046 = vadd.s32 %v1042, 3
    %v1047 = vand.u32 %v1046, 3
    %vm1048 = vcmp.lt.s32.totalorder %v1047, 2
    %vm1049 = vcmp.eq.s32.totalorder %v1047, 0
    %v1050 = vxor.u32 %v1044, 2147483648
    %v1051 = vsel %vm1049, %v1043, %v1050
    %vm1052 = vcmp.eq.s32.totalorder %v1047, 2
    %v1053 = vxor.u32 %v1043, 2147483648
    %v1054 = vsel %vm1052, %v1053, %v1044
    %v1055 = vsel %vm1048, %v1051, %v1054
    %v1056 = vsel %vm1045, nan, %v1055
    %v1057 = vand.u32 2147483647, %v320
    %vm1058 = vcmp.le.f32.partialorder %v1057, 0.7853982
    %vm1059 = vcmp.lt.s32.totalorder %v320, 0
    %v1060 = vand.u32 %v320, 2139095040
    %v1061 = vshrl.u32 %v1060, 23
    %v1062 = vsub.s32 %v1061, 127
    %v1063 = vand.u32 2147483647, %v320
    %v1064 = vand.u32 %v1063, 8388607
    %v1065 = vor.u32 %v1064, 8388608
    %v1066 = vsub.s32 0, %v1065
    %v1067 = vadd.s32 %v1062, 1
    %vm1068 = vcmp.gt.s32.totalorder %v1067, 0
    %v1069 = vsel %vm1068, %v1067, 0
    %v1070 = vshrl.u32 %v1069, 5
    %v1071 = vand.u32 %v1069, 31
    %v1072 = vsub.s32 32, %v1071
    %v1073 = vshrl.u32 683565275, %v1072
    %v1074 = vshll.u32 683565275, %v1071
    %v1075 = vshrl.u32 2475754826, %v1072
    %v1076 = vor.u32 %v1074, %v1075
    %v1077 = vshll.u32 2475754826, %v1071
    %v1078 = vshrl.u32 2131351028, %v1072
    %v1079 = vor.u32 %v1077, %v1078
    %v1080 = vshll.u32 2131351028, %v1071
    %v1081 = vshrl.u32 2102212464, %v1072
    %v1082 = vor.u32 %v1080, %v1081
    %v1083 = vshll.u32 2102212464, %v1071
    %v1084 = vshrl.u32 920167782, %v1072
    %v1085 = vor.u32 %v1083, %v1084
    %v1086 = vshll.u32 920167782, %v1071
    %v1087 = vshrl.u32 1326507024, %v1072
    %v1088 = vor.u32 %v1086, %v1087
    %vm1089 = vcmp.lt.s32.totalorder %v1070, 1
    %vm1090 = vcmp.lt.s32.totalorder %v1070, 2
    %vm1091 = vcmp.lt.s32.totalorder %v1070, 3
    %vm1092 = vcmp.lt.s32.totalorder %v1070, 4
    %v1093 = vsel %vm1089, %v1073, %v1076
    %v1094 = vsel %vm1092, %v1082, 2102212464
    %v1095 = vsel %vm1091, %v1079, %v1094
    %v1096 = vsel %vm1090, %v1093, %v1095
    %v1097 = vsel %vm1089, %v1076, %v1079
    %v1098 = vsel %vm1092, %v1085, 920167782
    %v1099 = vsel %vm1091, %v1082, %v1098
    %v1100 = vsel %vm1090, %v1097, %v1099
    %v1101 = vsel %vm1089, %v1079, %v1082
    %v1102 = vsel %vm1092, %v1088, 1326507024
    %v1103 = vsel %vm1091, %v1085, %v1102
    %v1104 = vsel %vm1090, %v1101, %v1103
    %v1105 = vshll.u32 %v1065, 8
    %v1106 = vmul.u32.u64.compose %v1105, %v1104
    %v1107 = vextract.low.u32 %v1106
    %v1108 = vextract.high.u32 %v1106
    %v1109 = vmul.u32.u64.compose %v1105, %v1100
    %v1110 = vextract.low.u32 %v1109
    %v1111 = vextract.high.u32 %v1109
    %v1112 = vmul.u32 %v1105, %v1096
    %v1113 = vadd.s32 %v1108, %v1110
    %vm1114 = vc.u32 %v1108, %v1110
    %v1115 = vadd.s32 %v1111, 1
    %v1116 = vsel %vm1114, %v1115, %v1111
    %v1117 = vadd.s32 %v1112, %v1116
    %v1118 = vadd.s32 %v1117, 536870912
    %v1119 = vshrl.u32 %v1118, 30
    %v1120 = vshll.u32 %v1119, 30
    %v1121 = vsub.s32 %v1117, %v1120
    %vm1122 = vcmp.lt.s32.totalorder %v1121, 0
    %v1123 = vsub.s32 0, %v1121
    %v1124 = vsel %vm1122, %v1123, %v1121
    %v1125 = vclz %v1124
    %v1126 = vsub.s32 %v1125, 2
    %vm1127 = vcmp.gt.s32.totalorder 0, %v1126
    %v1128 = vsel %vm1127, 0, %v1126
    %v1129 = vsub.s32 32, %v1128
    %v1130 = vshll.u32 %v1121, %v1128
    %v1131 = vshrl.u32 %v1113, %v1129
    %v1132 = vor.u32 %v1130, %v1131
    %v1133 = vsub.s32 4294967266, %v1128
    %v1134 = vadd.s32 %v1133, 127
    %v1135 = vshll.u32 %v1134, 23
    %v1136 = vor.u32 4788187, %v1135
    %v1137 = vand.u32 2147483647, %v1136
    %v1139 = vcvt.s32.f32 %v1132
    %v1140 = vmul.f32 %v1139, %v1137
    %v1141 = vxor.u32 %v1140, 2147483648
    %v1142 = vsel %vm1059, %v1141, %v1140
    %v1143 = vsub.s32 4, %v1119
    %v1144 = vsel %vm1059, %v1143, %v1119
    %v1145 = vsel %vm1058, %v320, %v1142
    %v1146 = vsel %vm1058, 0, %v1144
    %v1147 = vcosq.f32.pop %v1145
    %v1148 = vsinq.f32.pop %v1145
    %vm1149 = vweird.f32 %v320
    %v1150 = vadd.s32 %v1146, 3
    %v1151 = vand.u32 %v1150, 3
    %vm1152 = vcmp.lt.s32.totalorder %v1151, 2
    %vm1153 = vcmp.eq.s32.totalorder %v1151, 0
    %v1154 = vxor.u32 %v1148, 2147483648
    %v1155 = vsel %vm1153, %v1147, %v1154
    %vm1156 = vcmp.eq.s32.totalorder %v1151, 2
    %v1157 = vxor.u32 %v1147, 2147483648
    %v1158 = vsel %vm1156, %v1157, %v1148
    %v1159 = vsel %vm1152, %v1155, %v1158
    %v1160 = vsel %vm1149, nan, %v1159
    %v1161 = vand.u32 2147483647, %v321
    %vm1162 = vcmp.le.f32.partialorder %v1161, 0.7853982
    %vm1163 = vcmp.lt.s32.totalorder %v321, 0
    %v1164 = vand.u32 %v321, 2139095040
    %v1165 = vshrl.u32 %v1164, 23
    %v1166 = vsub.s32 %v1165, 127
    %v1167 = vand.u32 2147483647, %v321
    %v1168 = vand.u32 %v1167, 8388607
    %v1169 = vor.u32 %v1168, 8388608
    %v1170 = vsub.s32 0, %v1169
    %v1171 = vadd.s32 %v1166, 1
    %vm1172 = vcmp.gt.s32.totalorder %v1171, 0
    %v1173 = vsel %vm1172, %v1171, 0
    %v1174 = vshrl.u32 %v1173, 5
    %v1175 = vand.u32 %v1173, 31
    %v1176 = vsub.s32 32, %v1175
    %v1177 = vshrl.u32 683565275, %v1176
    %v1178 = vshll.u32 683565275, %v1175
    %v1179 = vshrl.u32 2475754826, %v1176
    %v1180 = vor.u32 %v1178, %v1179
    %v1181 = vshll.u32 2475754826, %v1175
    %v1182 = vshrl.u32 2131351028, %v1176
    %v1183 = vor.u32 %v1181, %v1182
    %v1184 = vshll.u32 2131351028, %v1175
    %v1185 = vshrl.u32 2102212464, %v1176
    %v1186 = vor.u32 %v1184, %v1185
    %v1187 = vshll.u32 2102212464, %v1175
    %v1188 = vshrl.u32 920167782, %v1176
    %v1189 = vor.u32 %v1187, %v1188
    %v1190 = vshll.u32 920167782, %v1175
    %v1191 = vshrl.u32 1326507024, %v1176
    %v1192 = vor.u32 %v1190, %v1191
    %vm1193 = vcmp.lt.s32.totalorder %v1174, 1
    %vm1194 = vcmp.lt.s32.totalorder %v1174, 2
    %vm1195 = vcmp.lt.s32.totalorder %v1174, 3
    %vm1196 = vcmp.lt.s32.totalorder %v1174, 4
    %v1197 = vsel %vm1193, %v1177, %v1180
    %v1198 = vsel %vm1196, %v1186, 2102212464
    %v1199 = vsel %vm1195, %v1183, %v1198
    %v1200 = vsel %vm1194, %v1197, %v1199
    %v1201 = vsel %vm1193, %v1180, %v1183
    %v1202 = vsel %vm1196, %v1189, 920167782
    %v1203 = vsel %vm1195, %v1186, %v1202
    %v1204 = vsel %vm1194, %v1201, %v1203
    %v1205 = vsel %vm1193, %v1183, %v1186
    %v1206 = vsel %vm1196, %v1192, 1326507024
    %v1207 = vsel %vm1195, %v1189, %v1206
    %v1208 = vsel %vm1194, %v1205, %v1207
    %v1209 = vshll.u32 %v1169, 8
    %v1210 = vmul.u32.u64.compose %v1209, %v1208
    %v1211 = vextract.low.u32 %v1210
    %v1212 = vextract.high.u32 %v1210
    %v1213 = vmul.u32.u64.compose %v1209, %v1204
    %v1214 = vextract.low.u32 %v1213
    %v1215 = vextract.high.u32 %v1213
    %v1216 = vmul.u32 %v1209, %v1200
    %v1217 = vadd.s32 %v1212, %v1214
    %vm1218 = vc.u32 %v1212, %v1214
    %v1219 = vadd.s32 %v1215, 1
    %v1220 = vsel %vm1218, %v1219, %v1215
    %v1221 = vadd.s32 %v1216, %v1220
    %v1222 = vadd.s32 %v1221, 536870912
    %v1223 = vshrl.u32 %v1222, 30
    %v1224 = vshll.u32 %v1223, 30
    %v1225 = vsub.s32 %v1221, %v1224
    %vm1226 = vcmp.lt.s32.totalorder %v1225, 0
    %v1227 = vsub.s32 0, %v1225
    %v1228 = vsel %vm1226, %v1227, %v1225
    %v1229 = vclz %v1228
    %v1230 = vsub.s32 %v1229, 2
    %vm1231 = vcmp.gt.s32.totalorder 0, %v1230
    %v1232 = vsel %vm1231, 0, %v1230
    %v1233 = vsub.s32 32, %v1232
    %v1234 = vshll.u32 %v1225, %v1232
    %v1235 = vshrl.u32 %v1217, %v1233
    %v1236 = vor.u32 %v1234, %v1235
    %v1237 = vsub.s32 4294967266, %v1232
    %v1238 = vadd.s32 %v1237, 127
    %v1239 = vshll.u32 %v1238, 23
    %v1240 = vor.u32 4788187, %v1239
    %v1241 = vand.u32 2147483647, %v1240
    %v1243 = vcvt.s32.f32 %v1236
    %v1244 = vmul.f32 %v1243, %v1241
    %v1245 = vxor.u32 %v1244, 2147483648
    %v1246 = vsel %vm1163, %v1245, %v1244
    %v1247 = vsub.s32 4, %v1223
    %v1248 = vsel %vm1163, %v1247, %v1223
    %v1249 = vsel %vm1162, %v321, %v1246
    %v1250 = vsel %vm1162, 0, %v1248
    %v1251 = vcosq.f32.pop %v1249
    %v1252 = vsinq.f32.pop %v1249
    %vm1253 = vweird.f32 %v321
    %v1254 = vadd.s32 %v1250, 3
    %v1255 = vand.u32 %v1254, 3
    %vm1256 = vcmp.lt.s32.totalorder %v1255, 2
    %vm1257 = vcmp.eq.s32.totalorder %v1255, 0
    %v1258 = vxor.u32 %v1252, 2147483648
    %v1259 = vsel %vm1257, %v1251, %v1258
    %vm1260 = vcmp.eq.s32.totalorder %v1255, 2
    %v1261 = vxor.u32 %v1251, 2147483648
    %v1262 = vsel %vm1260, %v1261, %v1252
    %v1263 = vsel %vm1256, %v1259, %v1262
    %v1264 = vsel %vm1253, nan, %v1263
    %v1265 = vand.u32 2147483647, %v322
    %vm1266 = vcmp.le.f32.partialorder %v1265, 0.7853982
    %vm1267 = vcmp.lt.s32.totalorder %v322, 0
    %v1268 = vand.u32 %v322, 2139095040
    %v1269 = vshrl.u32 %v1268, 23
    %v1270 = vsub.s32 %v1269, 127
    %v1271 = vand.u32 2147483647, %v322
    %v1272 = vand.u32 %v1271, 8388607
    %v1273 = vor.u32 %v1272, 8388608
    %v1274 = vsub.s32 0, %v1273
    %v1275 = vadd.s32 %v1270, 1
    %vm1276 = vcmp.gt.s32.totalorder %v1275, 0
    %v1277 = vsel %vm1276, %v1275, 0
    %v1278 = vshrl.u32 %v1277, 5
    %v1279 = vand.u32 %v1277, 31
    %v1280 = vsub.s32 32, %v1279
    %v1281 = vshrl.u32 683565275, %v1280
    %v1282 = vshll.u32 683565275, %v1279
    %v1283 = vshrl.u32 2475754826, %v1280
    %v1284 = vor.u32 %v1282, %v1283
    %v1285 = vshll.u32 2475754826, %v1279
    %v1286 = vshrl.u32 2131351028, %v1280
    %v1287 = vor.u32 %v1285, %v1286
    %v1288 = vshll.u32 2131351028, %v1279
    %v1289 = vshrl.u32 2102212464, %v1280
    %v1290 = vor.u32 %v1288, %v1289
    %v1291 = vshll.u32 2102212464, %v1279
    %v1292 = vshrl.u32 920167782, %v1280
    %v1293 = vor.u32 %v1291, %v1292
    %v1294 = vshll.u32 920167782, %v1279
    %v1295 = vshrl.u32 1326507024, %v1280
    %v1296 = vor.u32 %v1294, %v1295
    %vm1297 = vcmp.lt.s32.totalorder %v1278, 1
    %vm1298 = vcmp.lt.s32.totalorder %v1278, 2
    %vm1299 = vcmp.lt.s32.totalorder %v1278, 3
    %vm1300 = vcmp.lt.s32.totalorder %v1278, 4
    %v1301 = vsel %vm1297, %v1281, %v1284
    %v1302 = vsel %vm1300, %v1290, 2102212464
    %v1303 = vsel %vm1299, %v1287, %v1302
    %v1304 = vsel %vm1298, %v1301, %v1303
    %v1305 = vsel %vm1297, %v1284, %v1287
    %v1306 = vsel %vm1300, %v1293, 920167782
    %v1307 = vsel %vm1299, %v1290, %v1306
    %v1308 = vsel %vm1298, %v1305, %v1307
    %v1309 = vsel %vm1297, %v1287, %v1290
    %v1310 = vsel %vm1300, %v1296, 1326507024
    %v1311 = vsel %vm1299, %v1293, %v1310
    %v1312 = vsel %vm1298, %v1309, %v1311
    %v1313 = vshll.u32 %v1273, 8
    %v1314 = vmul.u32.u64.compose %v1313, %v1312
    %v1315 = vextract.low.u32 %v1314
    %v1316 = vextract.high.u32 %v1314
    %v1317 = vmul.u32.u64.compose %v1313, %v1308
    %v1318 = vextract.low.u32 %v1317
    %v1319 = vextract.high.u32 %v1317
    %v1320 = vmul.u32 %v1313, %v1304
    %v1321 = vadd.s32 %v1316, %v1318
    %vm1322 = vc.u32 %v1316, %v1318
    %v1323 = vadd.s32 %v1319, 1
    %v1324 = vsel %vm1322, %v1323, %v1319
    %v1325 = vadd.s32 %v1320, %v1324
    %v1326 = vadd.s32 %v1325, 536870912
    %v1327 = vshrl.u32 %v1326, 30
    %v1328 = vshll.u32 %v1327, 30
    %v1329 = vsub.s32 %v1325, %v1328
    %vm1330 = vcmp.lt.s32.totalorder %v1329, 0
    %v1331 = vsub.s32 0, %v1329
    %v1332 = vsel %vm1330, %v1331, %v1329
    %v1333 = vclz %v1332
    %v1334 = vsub.s32 %v1333, 2
    %vm1335 = vcmp.gt.s32.totalorder 0, %v1334
    %v1336 = vsel %vm1335, 0, %v1334
    %v1337 = vsub.s32 32, %v1336
    %v1338 = vshll.u32 %v1329, %v1336
    %v1339 = vshrl.u32 %v1321, %v1337
    %v1340 = vor.u32 %v1338, %v1339
    %v1341 = vsub.s32 4294967266, %v1336
    %v1342 = vadd.s32 %v1341, 127
    %v1343 = vshll.u32 %v1342, 23
    %v1344 = vor.u32 4788187, %v1343
    %v1345 = vand.u32 2147483647, %v1344
    %v1347 = vcvt.s32.f32 %v1340
    %v1348 = vmul.f32 %v1347, %v1345
    %v1349 = vxor.u32 %v1348, 2147483648
    %v1350 = vsel %vm1267, %v1349, %v1348
    %v1351 = vsub.s32 4, %v1327
    %v1352 = vsel %vm1267, %v1351, %v1327
    %v1353 = vsel %vm1266, %v322, %v1350
    %v1354 = vsel %vm1266, 0, %v1352
    %v1355 = vcosq.f32.pop %v1353
    %v1356 = vsinq.f32.pop %v1353
    %vm1357 = vweird.f32 %v322
    %v1358 = vadd.s32 %v1354, 3
    %v1359 = vand.u32 %v1358, 3
    %vm1360 = vcmp.lt.s32.totalorder %v1359, 2
    %vm1361 = vcmp.eq.s32.totalorder %v1359, 0
    %v1362 = vxor.u32 %v1356, 2147483648
    %v1363 = vsel %vm1361, %v1355, %v1362
    %vm1364 = vcmp.eq.s32.totalorder %v1359, 2
    %v1365 = vxor.u32 %v1355, 2147483648
    %v1366 = vsel %vm1364, %v1365, %v1356
    %v1367 = vsel %vm1360, %v1363, %v1366
    %v1368 = vsel %vm1357, nan, %v1367
    %v1369 = vand.u32 2147483647, %v323
    %vm1370 = vcmp.le.f32.partialorder %v1369, 0.7853982
    %vm1371 = vcmp.lt.s32.totalorder %v323, 0
    %v1372 = vand.u32 %v323, 2139095040
    %v1373 = vshrl.u32 %v1372, 23
    %v1374 = vsub.s32 %v1373, 127
    %v1375 = vand.u32 2147483647, %v323
    %v1376 = vand.u32 %v1375, 8388607
    %v1377 = vor.u32 %v1376, 8388608
    %v1378 = vsub.s32 0, %v1377
    %v1379 = vadd.s32 %v1374, 1
    %vm1380 = vcmp.gt.s32.totalorder %v1379, 0
    %v1381 = vsel %vm1380, %v1379, 0
    %v1382 = vshrl.u32 %v1381, 5
    %v1383 = vand.u32 %v1381, 31
    %v1384 = vsub.s32 32, %v1383
    %v1385 = vshrl.u32 683565275, %v1384
    %v1386 = vshll.u32 683565275, %v1383
    %v1387 = vshrl.u32 2475754826, %v1384
    %v1388 = vor.u32 %v1386, %v1387
    %v1389 = vshll.u32 2475754826, %v1383
    %v1390 = vshrl.u32 2131351028, %v1384
    %v1391 = vor.u32 %v1389, %v1390
    %v1392 = vshll.u32 2131351028, %v1383
    %v1393 = vshrl.u32 2102212464, %v1384
    %v1394 = vor.u32 %v1392, %v1393
    %v1395 = vshll.u32 2102212464, %v1383
    %v1396 = vshrl.u32 920167782, %v1384
    %v1397 = vor.u32 %v1395, %v1396
    %v1398 = vshll.u32 920167782, %v1383
    %v1399 = vshrl.u32 1326507024, %v1384
    %v1400 = vor.u32 %v1398, %v1399
    %vm1401 = vcmp.lt.s32.totalorder %v1382, 1
    %vm1402 = vcmp.lt.s32.totalorder %v1382, 2
    %vm1403 = vcmp.lt.s32.totalorder %v1382, 3
    %vm1404 = vcmp.lt.s32.totalorder %v1382, 4
    %v1405 = vsel %vm1401, %v1385, %v1388
    %v1406 = vsel %vm1404, %v1394, 2102212464
    %v1407 = vsel %vm1403, %v1391, %v1406
    %v1408 = vsel %vm1402, %v1405, %v1407
    %v1409 = vsel %vm1401, %v1388, %v1391
    %v1410 = vsel %vm1404, %v1397, 920167782
    %v1411 = vsel %vm1403, %v1394, %v1410
    %v1412 = vsel %vm1402, %v1409, %v1411
    %v1413 = vsel %vm1401, %v1391, %v1394
    %v1414 = vsel %vm1404, %v1400, 1326507024
    %v1415 = vsel %vm1403, %v1397, %v1414
    %v1416 = vsel %vm1402, %v1413, %v1415
    %v1417 = vshll.u32 %v1377, 8
    %v1418 = vmul.u32.u64.compose %v1417, %v1416
    %v1419 = vextract.low.u32 %v1418
    %v1420 = vextract.high.u32 %v1418
    %v1421 = vmul.u32.u64.compose %v1417, %v1412
    %v1422 = vextract.low.u32 %v1421
    %v1423 = vextract.high.u32 %v1421
    %v1424 = vmul.u32 %v1417, %v1408
    %v1425 = vadd.s32 %v1420, %v1422
    %vm1426 = vc.u32 %v1420, %v1422
    %v1427 = vadd.s32 %v1423, 1
    %v1428 = vsel %vm1426, %v1427, %v1423
    %v1429 = vadd.s32 %v1424, %v1428
    %v1430 = vadd.s32 %v1429, 536870912
    %v1431 = vshrl.u32 %v1430, 30
    %v1432 = vshll.u32 %v1431, 30
    %v1433 = vsub.s32 %v1429, %v1432
    %vm1434 = vcmp.lt.s32.totalorder %v1433, 0
    %v1435 = vsub.s32 0, %v1433
    %v1436 = vsel %vm1434, %v1435, %v1433
    %v1437 = vclz %v1436
    %v1438 = vsub.s32 %v1437, 2
    %vm1439 = vcmp.gt.s32.totalorder 0, %v1438
    %v1440 = vsel %vm1439, 0, %v1438
    %v1441 = vsub.s32 32, %v1440
    %v1442 = vshll.u32 %v1433, %v1440
    %v1443 = vshrl.u32 %v1425, %v1441
    %v1444 = vor.u32 %v1442, %v1443
    %v1445 = vsub.s32 4294967266, %v1440
    %v1446 = vadd.s32 %v1445, 127
    %v1447 = vshll.u32 %v1446, 23
    %v1448 = vor.u32 4788187, %v1447
    %v1449 = vand.u32 2147483647, %v1448
    %v1451 = vcvt.s32.f32 %v1444
    %v1452 = vmul.f32 %v1451, %v1449
    %v1453 = vxor.u32 %v1452, 2147483648
    %v1454 = vsel %vm1371, %v1453, %v1452
    %v1455 = vsub.s32 4, %v1431
    %v1456 = vsel %vm1371, %v1455, %v1431
    %v1457 = vsel %vm1370, %v323, %v1454
    %v1458 = vsel %vm1370, 0, %v1456
    %v1459 = vcosq.f32.pop %v1457
    %v1460 = vsinq.f32.pop %v1457
    %vm1461 = vweird.f32 %v323
    %v1462 = vadd.s32 %v1458, 3
    %v1463 = vand.u32 %v1462, 3
    %vm1464 = vcmp.lt.s32.totalorder %v1463, 2
    %vm1465 = vcmp.eq.s32.totalorder %v1463, 0
    %v1466 = vxor.u32 %v1460, 2147483648
    %v1467 = vsel %vm1465, %v1459, %v1466
    %vm1468 = vcmp.eq.s32.totalorder %v1463, 2
    %v1469 = vxor.u32 %v1459, 2147483648
    %v1470 = vsel %vm1468, %v1469, %v1460
    %v1471 = vsel %vm1464, %v1467, %v1470
    %v1472 = vsel %vm1461, nan, %v1471
    %v1473 = vand.u32 2147483647, %v324
    %vm1474 = vcmp.le.f32.partialorder %v1473, 0.7853982
    %vm1475 = vcmp.lt.s32.totalorder %v324, 0
    %v1476 = vand.u32 %v324, 2139095040
    %v1477 = vshrl.u32 %v1476, 23
    %v1478 = vsub.s32 %v1477, 127
    %v1479 = vand.u32 2147483647, %v324
    %v1480 = vand.u32 %v1479, 8388607
    %v1481 = vor.u32 %v1480, 8388608
    %v1482 = vsub.s32 0, %v1481
    %v1483 = vadd.s32 %v1478, 1
    %vm1484 = vcmp.gt.s32.totalorder %v1483, 0
    %v1485 = vsel %vm1484, %v1483, 0
    %v1486 = vshrl.u32 %v1485, 5
    %v1487 = vand.u32 %v1485, 31
    %v1488 = vsub.s32 32, %v1487
    %v1489 = vshrl.u32 683565275, %v1488
    %v1490 = vshll.u32 683565275, %v1487
    %v1491 = vshrl.u32 2475754826, %v1488
    %v1492 = vor.u32 %v1490, %v1491
    %v1493 = vshll.u32 2475754826, %v1487
    %v1494 = vshrl.u32 2131351028, %v1488
    %v1495 = vor.u32 %v1493, %v1494
    %v1496 = vshll.u32 2131351028, %v1487
    %v1497 = vshrl.u32 2102212464, %v1488
    %v1498 = vor.u32 %v1496, %v1497
    %v1499 = vshll.u32 2102212464, %v1487
    %v1500 = vshrl.u32 920167782, %v1488
    %v1501 = vor.u32 %v1499, %v1500
    %v1502 = vshll.u32 920167782, %v1487
    %v1503 = vshrl.u32 1326507024, %v1488
    %v1504 = vor.u32 %v1502, %v1503
    %vm1505 = vcmp.lt.s32.totalorder %v1486, 1
    %vm1506 = vcmp.lt.s32.totalorder %v1486, 2
    %vm1507 = vcmp.lt.s32.totalorder %v1486, 3
    %vm1508 = vcmp.lt.s32.totalorder %v1486, 4
    %v1509 = vsel %vm1505, %v1489, %v1492
    %v1510 = vsel %vm1508, %v1498, 2102212464
    %v1511 = vsel %vm1507, %v1495, %v1510
    %v1512 = vsel %vm1506, %v1509, %v1511
    %v1513 = vsel %vm1505, %v1492, %v1495
    %v1514 = vsel %vm1508, %v1501, 920167782
    %v1515 = vsel %vm1507, %v1498, %v1514
    %v1516 = vsel %vm1506, %v1513, %v1515
    %v1517 = vsel %vm1505, %v1495, %v1498
    %v1518 = vsel %vm1508, %v1504, 1326507024
    %v1519 = vsel %vm1507, %v1501, %v1518
    %v1520 = vsel %vm1506, %v1517, %v1519
    %v1521 = vshll.u32 %v1481, 8
    %v1522 = vmul.u32.u64.compose %v1521, %v1520
    %v1523 = vextract.low.u32 %v1522
    %v1524 = vextract.high.u32 %v1522
    %v1525 = vmul.u32.u64.compose %v1521, %v1516
    %v1526 = vextract.low.u32 %v1525
    %v1527 = vextract.high.u32 %v1525
    %v1528 = vmul.u32 %v1521, %v1512
    %v1529 = vadd.s32 %v1524, %v1526
    %vm1530 = vc.u32 %v1524, %v1526
    %v1531 = vadd.s32 %v1527, 1
    %v1532 = vsel %vm1530, %v1531, %v1527
    %v1533 = vadd.s32 %v1528, %v1532
    %v1534 = vadd.s32 %v1533, 536870912
    %v1535 = vshrl.u32 %v1534, 30
    %v1536 = vshll.u32 %v1535, 30
    %v1537 = vsub.s32 %v1533, %v1536
    %vm1538 = vcmp.lt.s32.totalorder %v1537, 0
    %v1539 = vsub.s32 0, %v1537
    %v1540 = vsel %vm1538, %v1539, %v1537
    %v1541 = vclz %v1540
    %v1542 = vsub.s32 %v1541, 2
    %vm1543 = vcmp.gt.s32.totalorder 0, %v1542
    %v1544 = vsel %vm1543, 0, %v1542
    %v1545 = vsub.s32 32, %v1544
    %v1546 = vshll.u32 %v1537, %v1544
    %v1547 = vshrl.u32 %v1529, %v1545
    %v1548 = vor.u32 %v1546, %v1547
    %v1549 = vsub.s32 4294967266, %v1544
    %v1550 = vadd.s32 %v1549, 127
    %v1551 = vshll.u32 %v1550, 23
    %v1552 = vor.u32 4788187, %v1551
    %v1553 = vand.u32 2147483647, %v1552
    %v1555 = vcvt.s32.f32 %v1548
    %v1556 = vmul.f32 %v1555, %v1553
    %v1557 = vxor.u32 %v1556, 2147483648
    %v1558 = vsel %vm1475, %v1557, %v1556
    %v1559 = vsub.s32 4, %v1535
    %v1560 = vsel %vm1475, %v1559, %v1535
    %v1561 = vsel %vm1474, %v324, %v1558
    %v1562 = vsel %vm1474, 0, %v1560
    %v1563 = vcosq.f32.pop %v1561
    %v1564 = vsinq.f32.pop %v1561
    %vm1565 = vweird.f32 %v324
    %v1566 = vadd.s32 %v1562, 3
    %v1567 = vand.u32 %v1566, 3
    %vm1568 = vcmp.lt.s32.totalorder %v1567, 2
    %vm1569 = vcmp.eq.s32.totalorder %v1567, 0
    %v1570 = vxor.u32 %v1564, 2147483648
    %v1571 = vsel %vm1569, %v1563, %v1570
    %vm1572 = vcmp.eq.s32.totalorder %v1567, 2
    %v1573 = vxor.u32 %v1563, 2147483648
    %v1574 = vsel %vm1572, %v1573, %v1564
    %v1575 = vsel %vm1568, %v1571, %v1574
    %v1576 = vsel %vm1565, nan, %v1575
    %v1577 = vand.u32 2147483647, %v325
    %vm1578 = vcmp.le.f32.partialorder %v1577, 0.7853982
    %vm1579 = vcmp.lt.s32.totalorder %v325, 0
    %v1580 = vand.u32 %v325, 2139095040
    %v1581 = vshrl.u32 %v1580, 23
    %v1582 = vsub.s32 %v1581, 127
    %v1583 = vand.u32 2147483647, %v325
    %v1584 = vand.u32 %v1583, 8388607
    %v1585 = vor.u32 %v1584, 8388608
    %v1586 = vsub.s32 0, %v1585
    %v1587 = vadd.s32 %v1582, 1
    %vm1588 = vcmp.gt.s32.totalorder %v1587, 0
    %v1589 = vsel %vm1588, %v1587, 0
    %v1590 = vshrl.u32 %v1589, 5
    %v1591 = vand.u32 %v1589, 31
    %v1592 = vsub.s32 32, %v1591
    %v1593 = vshrl.u32 683565275, %v1592
    %v1594 = vshll.u32 683565275, %v1591
    %v1595 = vshrl.u32 2475754826, %v1592
    %v1596 = vor.u32 %v1594, %v1595
    %v1597 = vshll.u32 2475754826, %v1591
    %v1598 = vshrl.u32 2131351028, %v1592
    %v1599 = vor.u32 %v1597, %v1598
    %v1600 = vshll.u32 2131351028, %v1591
    %v1601 = vshrl.u32 2102212464, %v1592
    %v1602 = vor.u32 %v1600, %v1601
    %v1603 = vshll.u32 2102212464, %v1591
    %v1604 = vshrl.u32 920167782, %v1592
    %v1605 = vor.u32 %v1603, %v1604
    %v1606 = vshll.u32 920167782, %v1591
    %v1607 = vshrl.u32 1326507024, %v1592
    %v1608 = vor.u32 %v1606, %v1607
    %vm1609 = vcmp.lt.s32.totalorder %v1590, 1
    %vm1610 = vcmp.lt.s32.totalorder %v1590, 2
    %vm1611 = vcmp.lt.s32.totalorder %v1590, 3
    %vm1612 = vcmp.lt.s32.totalorder %v1590, 4
    %v1613 = vsel %vm1609, %v1593, %v1596
    %v1614 = vsel %vm1612, %v1602, 2102212464
    %v1615 = vsel %vm1611, %v1599, %v1614
    %v1616 = vsel %vm1610, %v1613, %v1615
    %v1617 = vsel %vm1609, %v1596, %v1599
    %v1618 = vsel %vm1612, %v1605, 920167782
    %v1619 = vsel %vm1611, %v1602, %v1618
    %v1620 = vsel %vm1610, %v1617, %v1619
    %v1621 = vsel %vm1609, %v1599, %v1602
    %v1622 = vsel %vm1612, %v1608, 1326507024
    %v1623 = vsel %vm1611, %v1605, %v1622
    %v1624 = vsel %vm1610, %v1621, %v1623
    %v1625 = vshll.u32 %v1585, 8
    %v1626 = vmul.u32.u64.compose %v1625, %v1624
    %v1627 = vextract.low.u32 %v1626
    %v1628 = vextract.high.u32 %v1626
    %v1629 = vmul.u32.u64.compose %v1625, %v1620
    %v1630 = vextract.low.u32 %v1629
    %v1631 = vextract.high.u32 %v1629
    %v1632 = vmul.u32 %v1625, %v1616
    %v1633 = vadd.s32 %v1628, %v1630
    %vm1634 = vc.u32 %v1628, %v1630
    %v1635 = vadd.s32 %v1631, 1
    %v1636 = vsel %vm1634, %v1635, %v1631
    %v1637 = vadd.s32 %v1632, %v1636
    %v1638 = vadd.s32 %v1637, 536870912
    %v1639 = vshrl.u32 %v1638, 30
    %v1640 = vshll.u32 %v1639, 30
    %v1641 = vsub.s32 %v1637, %v1640
    %vm1642 = vcmp.lt.s32.totalorder %v1641, 0
    %v1643 = vsub.s32 0, %v1641
    %v1644 = vsel %vm1642, %v1643, %v1641
    %v1645 = vclz %v1644
    %v1646 = vsub.s32 %v1645, 2
    %vm1647 = vcmp.gt.s32.totalorder 0, %v1646
    %v1648 = vsel %vm1647, 0, %v1646
    %v1649 = vsub.s32 32, %v1648
    %v1650 = vshll.u32 %v1641, %v1648
    %v1651 = vshrl.u32 %v1633, %v1649
    %v1652 = vor.u32 %v1650, %v1651
    %v1653 = vsub.s32 4294967266, %v1648
    %v1654 = vadd.s32 %v1653, 127
    %v1655 = vshll.u32 %v1654, 23
    %v1656 = vor.u32 4788187, %v1655
    %v1657 = vand.u32 2147483647, %v1656
    %v1659 = vcvt.s32.f32 %v1652
    %v1660 = vmul.f32 %v1659, %v1657
    %v1661 = vxor.u32 %v1660, 2147483648
    %v1662 = vsel %vm1579, %v1661, %v1660
    %v1663 = vsub.s32 4, %v1639
    %v1664 = vsel %vm1579, %v1663, %v1639
    %v1665 = vsel %vm1578, %v325, %v1662
    %v1666 = vsel %vm1578, 0, %v1664
    %v1667 = vcosq.f32.pop %v1665
    %v1668 = vsinq.f32.pop %v1665
    %vm1669 = vweird.f32 %v325
    %v1670 = vadd.s32 %v1666, 3
    %v1671 = vand.u32 %v1670, 3
    %vm1672 = vcmp.lt.s32.totalorder %v1671, 2
    %vm1673 = vcmp.eq.s32.totalorder %v1671, 0
    %v1674 = vxor.u32 %v1668, 2147483648
    %v1675 = vsel %vm1673, %v1667, %v1674
    %vm1676 = vcmp.eq.s32.totalorder %v1671, 2
    %v1677 = vxor.u32 %v1667, 2147483648
    %v1678 = vsel %vm1676, %v1677, %v1668
    %v1679 = vsel %vm1672, %v1675, %v1678
    %v1680 = vsel %vm1669, nan, %v1679
    %v1681 = vand.u32 2147483647, %v326
    %vm1682 = vcmp.le.f32.partialorder %v1681, 0.7853982
    %vm1683 = vcmp.lt.s32.totalorder %v326, 0
    %v1684 = vand.u32 %v326, 2139095040
    %v1685 = vshrl.u32 %v1684, 23
    %v1686 = vsub.s32 %v1685, 127
    %v1687 = vand.u32 2147483647, %v326
    %v1688 = vand.u32 %v1687, 8388607
    %v1689 = vor.u32 %v1688, 8388608
    %v1690 = vsub.s32 0, %v1689
    %v1691 = vadd.s32 %v1686, 1
    %vm1692 = vcmp.gt.s32.totalorder %v1691, 0
    %v1693 = vsel %vm1692, %v1691, 0
    %v1694 = vshrl.u32 %v1693, 5
    %v1695 = vand.u32 %v1693, 31
    %v1696 = vsub.s32 32, %v1695
    %v1697 = vshrl.u32 683565275, %v1696
    %v1698 = vshll.u32 683565275, %v1695
    %v1699 = vshrl.u32 2475754826, %v1696
    %v1700 = vor.u32 %v1698, %v1699
    %v1701 = vshll.u32 2475754826, %v1695
    %v1702 = vshrl.u32 2131351028, %v1696
    %v1703 = vor.u32 %v1701, %v1702
    %v1704 = vshll.u32 2131351028, %v1695
    %v1705 = vshrl.u32 2102212464, %v1696
    %v1706 = vor.u32 %v1704, %v1705
    %v1707 = vshll.u32 2102212464, %v1695
    %v1708 = vshrl.u32 920167782, %v1696
    %v1709 = vor.u32 %v1707, %v1708
    %v1710 = vshll.u32 920167782, %v1695
    %v1711 = vshrl.u32 1326507024, %v1696
    %v1712 = vor.u32 %v1710, %v1711
    %vm1713 = vcmp.lt.s32.totalorder %v1694, 1
    %vm1714 = vcmp.lt.s32.totalorder %v1694, 2
    %vm1715 = vcmp.lt.s32.totalorder %v1694, 3
    %vm1716 = vcmp.lt.s32.totalorder %v1694, 4
    %v1717 = vsel %vm1713, %v1697, %v1700
    %v1718 = vsel %vm1716, %v1706, 2102212464
    %v1719 = vsel %vm1715, %v1703, %v1718
    %v1720 = vsel %vm1714, %v1717, %v1719
    %v1721 = vsel %vm1713, %v1700, %v1703
    %v1722 = vsel %vm1716, %v1709, 920167782
    %v1723 = vsel %vm1715, %v1706, %v1722
    %v1724 = vsel %vm1714, %v1721, %v1723
    %v1725 = vsel %vm1713, %v1703, %v1706
    %v1726 = vsel %vm1716, %v1712, 1326507024
    %v1727 = vsel %vm1715, %v1709, %v1726
    %v1728 = vsel %vm1714, %v1725, %v1727
    %v1729 = vshll.u32 %v1689, 8
    %v1730 = vmul.u32.u64.compose %v1729, %v1728
    %v1731 = vextract.low.u32 %v1730
    %v1732 = vextract.high.u32 %v1730
    %v1733 = vmul.u32.u64.compose %v1729, %v1724
    %v1734 = vextract.low.u32 %v1733
    %v1735 = vextract.high.u32 %v1733
    %v1736 = vmul.u32 %v1729, %v1720
    %v1737 = vadd.s32 %v1732, %v1734
    %vm1738 = vc.u32 %v1732, %v1734
    %v1739 = vadd.s32 %v1735, 1
    %v1740 = vsel %vm1738, %v1739, %v1735
    %v1741 = vadd.s32 %v1736, %v1740
    %v1742 = vadd.s32 %v1741, 536870912
    %v1743 = vshrl.u32 %v1742, 30
    %v1744 = vshll.u32 %v1743, 30
    %v1745 = vsub.s32 %v1741, %v1744
    %vm1746 = vcmp.lt.s32.totalorder %v1745, 0
    %v1747 = vsub.s32 0, %v1745
    %v1748 = vsel %vm1746, %v1747, %v1745
    %v1749 = vclz %v1748
    %v1750 = vsub.s32 %v1749, 2
    %vm1751 = vcmp.gt.s32.totalorder 0, %v1750
    %v1752 = vsel %vm1751, 0, %v1750
    %v1753 = vsub.s32 32, %v1752
    %v1754 = vshll.u32 %v1745, %v1752
    %v1755 = vshrl.u32 %v1737, %v1753
    %v1756 = vor.u32 %v1754, %v1755
    %v1757 = vsub.s32 4294967266, %v1752
    %v1758 = vadd.s32 %v1757, 127
    %v1759 = vshll.u32 %v1758, 23
    %v1760 = vor.u32 4788187, %v1759
    %v1761 = vand.u32 2147483647, %v1760
    %v1763 = vcvt.s32.f32 %v1756
    %v1764 = vmul.f32 %v1763, %v1761
    %v1765 = vxor.u32 %v1764, 2147483648
    %v1766 = vsel %vm1683, %v1765, %v1764
    %v1767 = vsub.s32 4, %v1743
    %v1768 = vsel %vm1683, %v1767, %v1743
    %v1769 = vsel %vm1682, %v326, %v1766
    %v1770 = vsel %vm1682, 0, %v1768
    %v1771 = vcosq.f32.pop %v1769
    %v1772 = vsinq.f32.pop %v1769
    %vm1773 = vweird.f32 %v326
    %v1774 = vadd.s32 %v1770, 3
    %v1775 = vand.u32 %v1774, 3
    %vm1776 = vcmp.lt.s32.totalorder %v1775, 2
    %vm1777 = vcmp.eq.s32.totalorder %v1775, 0
    %v1778 = vxor.u32 %v1772, 2147483648
    %v1779 = vsel %vm1777, %v1771, %v1778
    %vm1780 = vcmp.eq.s32.totalorder %v1775, 2
    %v1781 = vxor.u32 %v1771, 2147483648
    %v1782 = vsel %vm1780, %v1781, %v1772
    %v1783 = vsel %vm1776, %v1779, %v1782
    %v1784 = vsel %vm1773, nan, %v1783
    %v1785 = vand.u32 2147483647, %v327
    %vm1786 = vcmp.le.f32.partialorder %v1785, 0.7853982
    %vm1787 = vcmp.lt.s32.totalorder %v327, 0
    %v1788 = vand.u32 %v327, 2139095040
    %v1789 = vshrl.u32 %v1788, 23
    %v1790 = vsub.s32 %v1789, 127
    %v1791 = vand.u32 2147483647, %v327
    %v1792 = vand.u32 %v1791, 8388607
    %v1793 = vor.u32 %v1792, 8388608
    %v1794 = vsub.s32 0, %v1793
    %v1795 = vadd.s32 %v1790, 1
    %vm1796 = vcmp.gt.s32.totalorder %v1795, 0
    %v1797 = vsel %vm1796, %v1795, 0
    %v1798 = vshrl.u32 %v1797, 5
    %v1799 = vand.u32 %v1797, 31
    %v1800 = vsub.s32 32, %v1799
    %v1801 = vshrl.u32 683565275, %v1800
    %v1802 = vshll.u32 683565275, %v1799
    %v1803 = vshrl.u32 2475754826, %v1800
    %v1804 = vor.u32 %v1802, %v1803
    %v1805 = vshll.u32 2475754826, %v1799
    %v1806 = vshrl.u32 2131351028, %v1800
    %v1807 = vor.u32 %v1805, %v1806
    %v1808 = vshll.u32 2131351028, %v1799
    %v1809 = vshrl.u32 2102212464, %v1800
    %v1810 = vor.u32 %v1808, %v1809
    %v1811 = vshll.u32 2102212464, %v1799
    %v1812 = vshrl.u32 920167782, %v1800
    %v1813 = vor.u32 %v1811, %v1812
    %v1814 = vshll.u32 920167782, %v1799
    %v1815 = vshrl.u32 1326507024, %v1800
    %v1816 = vor.u32 %v1814, %v1815
    %vm1817 = vcmp.lt.s32.totalorder %v1798, 1
    %vm1818 = vcmp.lt.s32.totalorder %v1798, 2
    %vm1819 = vcmp.lt.s32.totalorder %v1798, 3
    %vm1820 = vcmp.lt.s32.totalorder %v1798, 4
    %v1821 = vsel %vm1817, %v1801, %v1804
    %v1822 = vsel %vm1820, %v1810, 2102212464
    %v1823 = vsel %vm1819, %v1807, %v1822
    %v1824 = vsel %vm1818, %v1821, %v1823
    %v1825 = vsel %vm1817, %v1804, %v1807
    %v1826 = vsel %vm1820, %v1813, 920167782
    %v1827 = vsel %vm1819, %v1810, %v1826
    %v1828 = vsel %vm1818, %v1825, %v1827
    %v1829 = vsel %vm1817, %v1807, %v1810
    %v1830 = vsel %vm1820, %v1816, 1326507024
    %v1831 = vsel %vm1819, %v1813, %v1830
    %v1832 = vsel %vm1818, %v1829, %v1831
    %v1833 = vshll.u32 %v1793, 8
    %v1834 = vmul.u32.u64.compose %v1833, %v1832
    %v1835 = vextract.low.u32 %v1834
    %v1836 = vextract.high.u32 %v1834
    %v1837 = vmul.u32.u64.compose %v1833, %v1828
    %v1838 = vextract.low.u32 %v1837
    %v1839 = vextract.high.u32 %v1837
    %v1840 = vmul.u32 %v1833, %v1824
    %v1841 = vadd.s32 %v1836, %v1838
    %vm1842 = vc.u32 %v1836, %v1838
    %v1843 = vadd.s32 %v1839, 1
    %v1844 = vsel %vm1842, %v1843, %v1839
    %v1845 = vadd.s32 %v1840, %v1844
    %v1846 = vadd.s32 %v1845, 536870912
    %v1847 = vshrl.u32 %v1846, 30
    %v1848 = vshll.u32 %v1847, 30
    %v1849 = vsub.s32 %v1845, %v1848
    %vm1850 = vcmp.lt.s32.totalorder %v1849, 0
    %v1851 = vsub.s32 0, %v1849
    %v1852 = vsel %vm1850, %v1851, %v1849
    %v1853 = vclz %v1852
    %v1854 = vsub.s32 %v1853, 2
    %vm1855 = vcmp.gt.s32.totalorder 0, %v1854
    %v1856 = vsel %vm1855, 0, %v1854
    %v1857 = vsub.s32 32, %v1856
    %v1858 = vshll.u32 %v1849, %v1856
    %v1859 = vshrl.u32 %v1841, %v1857
    %v1860 = vor.u32 %v1858, %v1859
    %v1861 = vsub.s32 4294967266, %v1856
    %v1862 = vadd.s32 %v1861, 127
    %v1863 = vshll.u32 %v1862, 23
    %v1864 = vor.u32 4788187, %v1863
    %v1865 = vand.u32 2147483647, %v1864
    %v1867 = vcvt.s32.f32 %v1860
    %v1868 = vmul.f32 %v1867, %v1865
    %v1869 = vxor.u32 %v1868, 2147483648
    %v1870 = vsel %vm1787, %v1869, %v1868
    %v1871 = vsub.s32 4, %v1847
    %v1872 = vsel %vm1787, %v1871, %v1847
    %v1873 = vsel %vm1786, %v327, %v1870
    %v1874 = vsel %vm1786, 0, %v1872
    %v1875 = vcosq.f32.pop %v1873
    %v1876 = vsinq.f32.pop %v1873
    %vm1877 = vweird.f32 %v327
    %v1878 = vadd.s32 %v1874, 3
    %v1879 = vand.u32 %v1878, 3
    %vm1880 = vcmp.lt.s32.totalorder %v1879, 2
    %vm1881 = vcmp.eq.s32.totalorder %v1879, 0
    %v1882 = vxor.u32 %v1876, 2147483648
    %v1883 = vsel %vm1881, %v1875, %v1882
    %vm1884 = vcmp.eq.s32.totalorder %v1879, 2
    %v1885 = vxor.u32 %v1875, 2147483648
    %v1886 = vsel %vm1884, %v1885, %v1876
    %v1887 = vsel %vm1880, %v1883, %v1886
    %v1888 = vsel %vm1877, nan, %v1887
    %v1889 = vand.u32 2147483647, %v328
    %vm1890 = vcmp.le.f32.partialorder %v1889, 0.7853982
    %vm1891 = vcmp.lt.s32.totalorder %v328, 0
    %v1892 = vand.u32 %v328, 2139095040
    %v1893 = vshrl.u32 %v1892, 23
    %v1894 = vsub.s32 %v1893, 127
    %v1895 = vand.u32 2147483647, %v328
    %v1896 = vand.u32 %v1895, 8388607
    %v1897 = vor.u32 %v1896, 8388608
    %v1898 = vsub.s32 0, %v1897
    %v1899 = vadd.s32 %v1894, 1
    %vm1900 = vcmp.gt.s32.totalorder %v1899, 0
    %v1901 = vsel %vm1900, %v1899, 0
    %v1902 = vshrl.u32 %v1901, 5
    %v1903 = vand.u32 %v1901, 31
    %v1904 = vsub.s32 32, %v1903
    %v1905 = vshrl.u32 683565275, %v1904
    %v1906 = vshll.u32 683565275, %v1903
    %v1907 = vshrl.u32 2475754826, %v1904
    %v1908 = vor.u32 %v1906, %v1907
    %v1909 = vshll.u32 2475754826, %v1903
    %v1910 = vshrl.u32 2131351028, %v1904
    %v1911 = vor.u32 %v1909, %v1910
    %v1912 = vshll.u32 2131351028, %v1903
    %v1913 = vshrl.u32 2102212464, %v1904
    %v1914 = vor.u32 %v1912, %v1913
    %v1915 = vshll.u32 2102212464, %v1903
    %v1916 = vshrl.u32 920167782, %v1904
    %v1917 = vor.u32 %v1915, %v1916
    %v1918 = vshll.u32 920167782, %v1903
    %v1919 = vshrl.u32 1326507024, %v1904
    %v1920 = vor.u32 %v1918, %v1919
    %vm1921 = vcmp.lt.s32.totalorder %v1902, 1
    %vm1922 = vcmp.lt.s32.totalorder %v1902, 2
    %vm1923 = vcmp.lt.s32.totalorder %v1902, 3
    %vm1924 = vcmp.lt.s32.totalorder %v1902, 4
    %v1925 = vsel %vm1921, %v1905, %v1908
    %v1926 = vsel %vm1924, %v1914, 2102212464
    %v1927 = vsel %vm1923, %v1911, %v1926
    %v1928 = vsel %vm1922, %v1925, %v1927
    %v1929 = vsel %vm1921, %v1908, %v1911
    %v1930 = vsel %vm1924, %v1917, 920167782
    %v1931 = vsel %vm1923, %v1914, %v1930
    %v1932 = vsel %vm1922, %v1929, %v1931
    %v1933 = vsel %vm1921, %v1911, %v1914
    %v1934 = vsel %vm1924, %v1920, 1326507024
    %v1935 = vsel %vm1923, %v1917, %v1934
    %v1936 = vsel %vm1922, %v1933, %v1935
    %v1937 = vshll.u32 %v1897, 8
    %v1938 = vmul.u32.u64.compose %v1937, %v1936
    %v1939 = vextract.low.u32 %v1938
    %v1940 = vextract.high.u32 %v1938
    %v1941 = vmul.u32.u64.compose %v1937, %v1932
    %v1942 = vextract.low.u32 %v1941
    %v1943 = vextract.high.u32 %v1941
    %v1944 = vmul.u32 %v1937, %v1928
    %v1945 = vadd.s32 %v1940, %v1942
    %vm1946 = vc.u32 %v1940, %v1942
    %v1947 = vadd.s32 %v1943, 1
    %v1948 = vsel %vm1946, %v1947, %v1943
    %v1949 = vadd.s32 %v1944, %v1948
    %v1950 = vadd.s32 %v1949, 536870912
    %v1951 = vshrl.u32 %v1950, 30
    %v1952 = vshll.u32 %v1951, 30
    %v1953 = vsub.s32 %v1949, %v1952
    %vm1954 = vcmp.lt.s32.totalorder %v1953, 0
    %v1955 = vsub.s32 0, %v1953
    %v1956 = vsel %vm1954, %v1955, %v1953
    %v1957 = vclz %v1956
    %v1958 = vsub.s32 %v1957, 2
    %vm1959 = vcmp.gt.s32.totalorder 0, %v1958
    %v1960 = vsel %vm1959, 0, %v1958
    %v1961 = vsub.s32 32, %v1960
    %v1962 = vshll.u32 %v1953, %v1960
    %v1963 = vshrl.u32 %v1945, %v1961
    %v1964 = vor.u32 %v1962, %v1963
    %v1965 = vsub.s32 4294967266, %v1960
    %v1966 = vadd.s32 %v1965, 127
    %v1967 = vshll.u32 %v1966, 23
    %v1968 = vor.u32 4788187, %v1967
    %v1969 = vand.u32 2147483647, %v1968
    %v1971 = vcvt.s32.f32 %v1964
    %v1972 = vmul.f32 %v1971, %v1969
    %v1973 = vxor.u32 %v1972, 2147483648
    %v1974 = vsel %vm1891, %v1973, %v1972
    %v1975 = vsub.s32 4, %v1951
    %v1976 = vsel %vm1891, %v1975, %v1951
    %v1977 = vsel %vm1890, %v328, %v1974
    %v1978 = vsel %vm1890, 0, %v1976
    %v1979 = vcosq.f32.pop %v1977
    %v1980 = vsinq.f32.pop %v1977
    %vm1981 = vweird.f32 %v328
    %v1982 = vadd.s32 %v1978, 3
    %v1983 = vand.u32 %v1982, 3
    %vm1984 = vcmp.lt.s32.totalorder %v1983, 2
    %vm1985 = vcmp.eq.s32.totalorder %v1983, 0
    %v1986 = vxor.u32 %v1980, 2147483648
    %v1987 = vsel %vm1985, %v1979, %v1986
    %vm1988 = vcmp.eq.s32.totalorder %v1983, 2
    %v1989 = vxor.u32 %v1979, 2147483648
    %v1990 = vsel %vm1988, %v1989, %v1980
    %v1991 = vsel %vm1984, %v1987, %v1990
    %v1992 = vsel %vm1981, nan, %v1991
    %v1993 = vand.u32 2147483647, %v313
    %vm1994 = vcmp.le.f32.partialorder %v1993, 0.7853982
    %vm1995 = vcmp.lt.s32.totalorder %v313, 0
    %v1996 = vand.u32 %v313, 2139095040
    %v1997 = vshrl.u32 %v1996, 23
    %v1998 = vsub.s32 %v1997, 127
    %v1999 = vand.u32 2147483647, %v313
    %v2000 = vand.u32 %v1999, 8388607
    %v2001 = vor.u32 %v2000, 8388608
    %v2002 = vsub.s32 0, %v2001
    %v2003 = vadd.s32 %v1998, 1
    %vm2004 = vcmp.gt.s32.totalorder %v2003, 0
    %v2005 = vsel %vm2004, %v2003, 0
    %v2006 = vshrl.u32 %v2005, 5
    %v2007 = vand.u32 %v2005, 31
    %v2008 = vsub.s32 32, %v2007
    %v2009 = vshrl.u32 683565275, %v2008
    %v2010 = vshll.u32 683565275, %v2007
    %v2011 = vshrl.u32 2475754826, %v2008
    %v2012 = vor.u32 %v2010, %v2011
    %v2013 = vshll.u32 2475754826, %v2007
    %v2014 = vshrl.u32 2131351028, %v2008
    %v2015 = vor.u32 %v2013, %v2014
    %v2016 = vshll.u32 2131351028, %v2007
    %v2017 = vshrl.u32 2102212464, %v2008
    %v2018 = vor.u32 %v2016, %v2017
    %v2019 = vshll.u32 2102212464, %v2007
    %v2020 = vshrl.u32 920167782, %v2008
    %v2021 = vor.u32 %v2019, %v2020
    %v2022 = vshll.u32 920167782, %v2007
    %v2023 = vshrl.u32 1326507024, %v2008
    %v2024 = vor.u32 %v2022, %v2023
    %vm2025 = vcmp.lt.s32.totalorder %v2006, 1
    %vm2026 = vcmp.lt.s32.totalorder %v2006, 2
    %vm2027 = vcmp.lt.s32.totalorder %v2006, 3
    %vm2028 = vcmp.lt.s32.totalorder %v2006, 4
    %v2029 = vsel %vm2025, %v2009, %v2012
    %v2030 = vsel %vm2028, %v2018, 2102212464
    %v2031 = vsel %vm2027, %v2015, %v2030
    %v2032 = vsel %vm2026, %v2029, %v2031
    %v2033 = vsel %vm2025, %v2012, %v2015
    %v2034 = vsel %vm2028, %v2021, 920167782
    %v2035 = vsel %vm2027, %v2018, %v2034
    %v2036 = vsel %vm2026, %v2033, %v2035
    %v2037 = vsel %vm2025, %v2015, %v2018
    %v2038 = vsel %vm2028, %v2024, 1326507024
    %v2039 = vsel %vm2027, %v2021, %v2038
    %v2040 = vsel %vm2026, %v2037, %v2039
    %v2041 = vshll.u32 %v2001, 8
    %v2042 = vmul.u32.u64.compose %v2041, %v2040
    %v2043 = vextract.low.u32 %v2042
    %v2044 = vextract.high.u32 %v2042
    %v2045 = vmul.u32.u64.compose %v2041, %v2036
    %v2046 = vextract.low.u32 %v2045
    %v2047 = vextract.high.u32 %v2045
    %v2048 = vmul.u32 %v2041, %v2032
    %v2049 = vadd.s32 %v2044, %v2046
    %vm2050 = vc.u32 %v2044, %v2046
    %v2051 = vadd.s32 %v2047, 1
    %v2052 = vsel %vm2050, %v2051, %v2047
    %v2053 = vadd.s32 %v2048, %v2052
    %v2054 = vadd.s32 %v2053, 536870912
    %v2055 = vshrl.u32 %v2054, 30
    %v2056 = vshll.u32 %v2055, 30
    %v2057 = vsub.s32 %v2053, %v2056
    %vm2058 = vcmp.lt.s32.totalorder %v2057, 0
    %v2059 = vsub.s32 0, %v2057
    %v2060 = vsel %vm2058, %v2059, %v2057
    %v2061 = vclz %v2060
    %v2062 = vsub.s32 %v2061, 2
    %vm2063 = vcmp.gt.s32.totalorder 0, %v2062
    %v2064 = vsel %vm2063, 0, %v2062
    %v2065 = vsub.s32 32, %v2064
    %v2066 = vshll.u32 %v2057, %v2064
    %v2067 = vshrl.u32 %v2049, %v2065
    %v2068 = vor.u32 %v2066, %v2067
    %v2069 = vsub.s32 4294967266, %v2064
    %v2070 = vadd.s32 %v2069, 127
    %v2071 = vshll.u32 %v2070, 23
    %v2072 = vor.u32 4788187, %v2071
    %v2073 = vand.u32 2147483647, %v2072
    %v2075 = vcvt.s32.f32 %v2068
    %v2076 = vmul.f32 %v2075, %v2073
    %v2077 = vxor.u32 %v2076, 2147483648
    %v2078 = vsel %vm1995, %v2077, %v2076
    %v2079 = vsub.s32 4, %v2055
    %v2080 = vsel %vm1995, %v2079, %v2055
    %v2081 = vsel %vm1994, %v313, %v2078
    %v2082 = vsel %vm1994, 0, %v2080
    %v2083 = vcosq.f32.pop %v2081
    %v2084 = vsinq.f32.pop %v2081
    %vm2085 = vweird.f32 %v313
    %v2086 = vand.u32 %v2082, 3
    %vm2087 = vcmp.lt.s32.totalorder %v2086, 2
    %vm2088 = vcmp.eq.s32.totalorder %v2086, 0
    %v2089 = vxor.u32 %v2084, 2147483648
    %v2090 = vsel %vm2088, %v2083, %v2089
    %vm2091 = vcmp.eq.s32.totalorder %v2086, 2
    %v2092 = vxor.u32 %v2083, 2147483648
    %v2093 = vsel %vm2091, %v2092, %v2084
    %v2094 = vsel %vm2087, %v2090, %v2093
    %v2095 = vsel %vm2085, nan, %v2094
    %v2096 = vand.u32 2147483647, %v314
    %vm2097 = vcmp.le.f32.partialorder %v2096, 0.7853982
    %vm2098 = vcmp.lt.s32.totalorder %v314, 0
    %v2099 = vand.u32 %v314, 2139095040
    %v2100 = vshrl.u32 %v2099, 23
    %v2101 = vsub.s32 %v2100, 127
    %v2102 = vand.u32 2147483647, %v314
    %v2103 = vand.u32 %v2102, 8388607
    %v2104 = vor.u32 %v2103, 8388608
    %v2105 = vsub.s32 0, %v2104
    %v2106 = vadd.s32 %v2101, 1
    %vm2107 = vcmp.gt.s32.totalorder %v2106, 0
    %v2108 = vsel %vm2107, %v2106, 0
    %v2109 = vshrl.u32 %v2108, 5
    %v2110 = vand.u32 %v2108, 31
    %v2111 = vsub.s32 32, %v2110
    %v2112 = vshrl.u32 683565275, %v2111
    %v2113 = vshll.u32 683565275, %v2110
    %v2114 = vshrl.u32 2475754826, %v2111
    %v2115 = vor.u32 %v2113, %v2114
    %v2116 = vshll.u32 2475754826, %v2110
    %v2117 = vshrl.u32 2131351028, %v2111
    %v2118 = vor.u32 %v2116, %v2117
    %v2119 = vshll.u32 2131351028, %v2110
    %v2120 = vshrl.u32 2102212464, %v2111
    %v2121 = vor.u32 %v2119, %v2120
    %v2122 = vshll.u32 2102212464, %v2110
    %v2123 = vshrl.u32 920167782, %v2111
    %v2124 = vor.u32 %v2122, %v2123
    %v2125 = vshll.u32 920167782, %v2110
    %v2126 = vshrl.u32 1326507024, %v2111
    %v2127 = vor.u32 %v2125, %v2126
    %vm2128 = vcmp.lt.s32.totalorder %v2109, 1
    %vm2129 = vcmp.lt.s32.totalorder %v2109, 2
    %vm2130 = vcmp.lt.s32.totalorder %v2109, 3
    %vm2131 = vcmp.lt.s32.totalorder %v2109, 4
    %v2132 = vsel %vm2128, %v2112, %v2115
    %v2133 = vsel %vm2131, %v2121, 2102212464
    %v2134 = vsel %vm2130, %v2118, %v2133
    %v2135 = vsel %vm2129, %v2132, %v2134
    %v2136 = vsel %vm2128, %v2115, %v2118
    %v2137 = vsel %vm2131, %v2124, 920167782
    %v2138 = vsel %vm2130, %v2121, %v2137
    %v2139 = vsel %vm2129, %v2136, %v2138
    %v2140 = vsel %vm2128, %v2118, %v2121
    %v2141 = vsel %vm2131, %v2127, 1326507024
    %v2142 = vsel %vm2130, %v2124, %v2141
    %v2143 = vsel %vm2129, %v2140, %v2142
    %v2144 = vshll.u32 %v2104, 8
    %v2145 = vmul.u32.u64.compose %v2144, %v2143
    %v2146 = vextract.low.u32 %v2145
    %v2147 = vextract.high.u32 %v2145
    %v2148 = vmul.u32.u64.compose %v2144, %v2139
    %v2149 = vextract.low.u32 %v2148
    %v2150 = vextract.high.u32 %v2148
    %v2151 = vmul.u32 %v2144, %v2135
    %v2152 = vadd.s32 %v2147, %v2149
    %vm2153 = vc.u32 %v2147, %v2149
    %v2154 = vadd.s32 %v2150, 1
    %v2155 = vsel %vm2153, %v2154, %v2150
    %v2156 = vadd.s32 %v2151, %v2155
    %v2157 = vadd.s32 %v2156, 536870912
    %v2158 = vshrl.u32 %v2157, 30
    %v2159 = vshll.u32 %v2158, 30
    %v2160 = vsub.s32 %v2156, %v2159
    %vm2161 = vcmp.lt.s32.totalorder %v2160, 0
    %v2162 = vsub.s32 0, %v2160
    %v2163 = vsel %vm2161, %v2162, %v2160
    %v2164 = vclz %v2163
    %v2165 = vsub.s32 %v2164, 2
    %vm2166 = vcmp.gt.s32.totalorder 0, %v2165
    %v2167 = vsel %vm2166, 0, %v2165
    %v2168 = vsub.s32 32, %v2167
    %v2169 = vshll.u32 %v2160, %v2167
    %v2170 = vshrl.u32 %v2152, %v2168
    %v2171 = vor.u32 %v2169, %v2170
    %v2172 = vsub.s32 4294967266, %v2167
    %v2173 = vadd.s32 %v2172, 127
    %v2174 = vshll.u32 %v2173, 23
    %v2175 = vor.u32 4788187, %v2174
    %v2176 = vand.u32 2147483647, %v2175
    %v2178 = vcvt.s32.f32 %v2171
    %v2179 = vmul.f32 %v2178, %v2176
    %v2180 = vxor.u32 %v2179, 2147483648
    %v2181 = vsel %vm2098, %v2180, %v2179
    %v2182 = vsub.s32 4, %v2158
    %v2183 = vsel %vm2098, %v2182, %v2158
    %v2184 = vsel %vm2097, %v314, %v2181
    %v2185 = vsel %vm2097, 0, %v2183
    %v2186 = vcosq.f32.pop %v2184
    %v2187 = vsinq.f32.pop %v2184
    %vm2188 = vweird.f32 %v314
    %v2189 = vand.u32 %v2185, 3
    %vm2190 = vcmp.lt.s32.totalorder %v2189, 2
    %vm2191 = vcmp.eq.s32.totalorder %v2189, 0
    %v2192 = vxor.u32 %v2187, 2147483648
    %v2193 = vsel %vm2191, %v2186, %v2192
    %vm2194 = vcmp.eq.s32.totalorder %v2189, 2
    %v2195 = vxor.u32 %v2186, 2147483648
    %v2196 = vsel %vm2194, %v2195, %v2187
    %v2197 = vsel %vm2190, %v2193, %v2196
    %v2198 = vsel %vm2188, nan, %v2197
    %v2199 = vand.u32 2147483647, %v315
    %vm2200 = vcmp.le.f32.partialorder %v2199, 0.7853982
    %vm2201 = vcmp.lt.s32.totalorder %v315, 0
    %v2202 = vand.u32 %v315, 2139095040
    %v2203 = vshrl.u32 %v2202, 23
    %v2204 = vsub.s32 %v2203, 127
    %v2205 = vand.u32 2147483647, %v315
    %v2206 = vand.u32 %v2205, 8388607
    %v2207 = vor.u32 %v2206, 8388608
    %v2208 = vsub.s32 0, %v2207
    %v2209 = vadd.s32 %v2204, 1
    %vm2210 = vcmp.gt.s32.totalorder %v2209, 0
    %v2211 = vsel %vm2210, %v2209, 0
    %v2212 = vshrl.u32 %v2211, 5
    %v2213 = vand.u32 %v2211, 31
    %v2214 = vsub.s32 32, %v2213
    %v2215 = vshrl.u32 683565275, %v2214
    %v2216 = vshll.u32 683565275, %v2213
    %v2217 = vshrl.u32 2475754826, %v2214
    %v2218 = vor.u32 %v2216, %v2217
    %v2219 = vshll.u32 2475754826, %v2213
    %v2220 = vshrl.u32 2131351028, %v2214
    %v2221 = vor.u32 %v2219, %v2220
    %v2222 = vshll.u32 2131351028, %v2213
    %v2223 = vshrl.u32 2102212464, %v2214
    %v2224 = vor.u32 %v2222, %v2223
    %v2225 = vshll.u32 2102212464, %v2213
    %v2226 = vshrl.u32 920167782, %v2214
    %v2227 = vor.u32 %v2225, %v2226
    %v2228 = vshll.u32 920167782, %v2213
    %v2229 = vshrl.u32 1326507024, %v2214
    %v2230 = vor.u32 %v2228, %v2229
    %vm2231 = vcmp.lt.s32.totalorder %v2212, 1
    %vm2232 = vcmp.lt.s32.totalorder %v2212, 2
    %vm2233 = vcmp.lt.s32.totalorder %v2212, 3
    %vm2234 = vcmp.lt.s32.totalorder %v2212, 4
    %v2235 = vsel %vm2231, %v2215, %v2218
    %v2236 = vsel %vm2234, %v2224, 2102212464
    %v2237 = vsel %vm2233, %v2221, %v2236
    %v2238 = vsel %vm2232, %v2235, %v2237
    %v2239 = vsel %vm2231, %v2218, %v2221
    %v2240 = vsel %vm2234, %v2227, 920167782
    %v2241 = vsel %vm2233, %v2224, %v2240
    %v2242 = vsel %vm2232, %v2239, %v2241
    %v2243 = vsel %vm2231, %v2221, %v2224
    %v2244 = vsel %vm2234, %v2230, 1326507024
    %v2245 = vsel %vm2233, %v2227, %v2244
    %v2246 = vsel %vm2232, %v2243, %v2245
    %v2247 = vshll.u32 %v2207, 8
    %v2248 = vmul.u32.u64.compose %v2247, %v2246
    %v2249 = vextract.low.u32 %v2248
    %v2250 = vextract.high.u32 %v2248
    %v2251 = vmul.u32.u64.compose %v2247, %v2242
    %v2252 = vextract.low.u32 %v2251
    %v2253 = vextract.high.u32 %v2251
    %v2254 = vmul.u32 %v2247, %v2238
    %v2255 = vadd.s32 %v2250, %v2252
    %vm2256 = vc.u32 %v2250, %v2252
    %v2257 = vadd.s32 %v2253, 1
    %v2258 = vsel %vm2256, %v2257, %v2253
    %v2259 = vadd.s32 %v2254, %v2258
    %v2260 = vadd.s32 %v2259, 536870912
    %v2261 = vshrl.u32 %v2260, 30
    %v2262 = vshll.u32 %v2261, 30
    %v2263 = vsub.s32 %v2259, %v2262
    %vm2264 = vcmp.lt.s32.totalorder %v2263, 0
    %v2265 = vsub.s32 0, %v2263
    %v2266 = vsel %vm2264, %v2265, %v2263
    %v2267 = vclz %v2266
    %v2268 = vsub.s32 %v2267, 2
    %vm2269 = vcmp.gt.s32.totalorder 0, %v2268
    %v2270 = vsel %vm2269, 0, %v2268
    %v2271 = vsub.s32 32, %v2270
    %v2272 = vshll.u32 %v2263, %v2270
    %v2273 = vshrl.u32 %v2255, %v2271
    %v2274 = vor.u32 %v2272, %v2273
    %v2275 = vsub.s32 4294967266, %v2270
    %v2276 = vadd.s32 %v2275, 127
    %v2277 = vshll.u32 %v2276, 23
    %v2278 = vor.u32 4788187, %v2277
    %v2279 = vand.u32 2147483647, %v2278
    %v2281 = vcvt.s32.f32 %v2274
    %v2282 = vmul.f32 %v2281, %v2279
    %v2283 = vxor.u32 %v2282, 2147483648
    %v2284 = vsel %vm2201, %v2283, %v2282
    %v2285 = vsub.s32 4, %v2261
    %v2286 = vsel %vm2201, %v2285, %v2261
    %v2287 = vsel %vm2200, %v315, %v2284
    %v2288 = vsel %vm2200, 0, %v2286
    %v2289 = vcosq.f32.pop %v2287
    %v2290 = vsinq.f32.pop %v2287
    %vm2291 = vweird.f32 %v315
    %v2292 = vand.u32 %v2288, 3
    %vm2293 = vcmp.lt.s32.totalorder %v2292, 2
    %vm2294 = vcmp.eq.s32.totalorder %v2292, 0
    %v2295 = vxor.u32 %v2290, 2147483648
    %v2296 = vsel %vm2294, %v2289, %v2295
    %vm2297 = vcmp.eq.s32.totalorder %v2292, 2
    %v2298 = vxor.u32 %v2289, 2147483648
    %v2299 = vsel %vm2297, %v2298, %v2290
    %v2300 = vsel %vm2293, %v2296, %v2299
    %v2301 = vsel %vm2291, nan, %v2300
    %v2302 = vand.u32 2147483647, %v316
    %vm2303 = vcmp.le.f32.partialorder %v2302, 0.7853982
    %vm2304 = vcmp.lt.s32.totalorder %v316, 0
    %v2305 = vand.u32 %v316, 2139095040
    %v2306 = vshrl.u32 %v2305, 23
    %v2307 = vsub.s32 %v2306, 127
    %v2308 = vand.u32 2147483647, %v316
    %v2309 = vand.u32 %v2308, 8388607
    %v2310 = vor.u32 %v2309, 8388608
    %v2311 = vsub.s32 0, %v2310
    %v2312 = vadd.s32 %v2307, 1
    %vm2313 = vcmp.gt.s32.totalorder %v2312, 0
    %v2314 = vsel %vm2313, %v2312, 0
    %v2315 = vshrl.u32 %v2314, 5
    %v2316 = vand.u32 %v2314, 31
    %v2317 = vsub.s32 32, %v2316
    %v2318 = vshrl.u32 683565275, %v2317
    %v2319 = vshll.u32 683565275, %v2316
    %v2320 = vshrl.u32 2475754826, %v2317
    %v2321 = vor.u32 %v2319, %v2320
    %v2322 = vshll.u32 2475754826, %v2316
    %v2323 = vshrl.u32 2131351028, %v2317
    %v2324 = vor.u32 %v2322, %v2323
    %v2325 = vshll.u32 2131351028, %v2316
    %v2326 = vshrl.u32 2102212464, %v2317
    %v2327 = vor.u32 %v2325, %v2326
    %v2328 = vshll.u32 2102212464, %v2316
    %v2329 = vshrl.u32 920167782, %v2317
    %v2330 = vor.u32 %v2328, %v2329
    %v2331 = vshll.u32 920167782, %v2316
    %v2332 = vshrl.u32 1326507024, %v2317
    %v2333 = vor.u32 %v2331, %v2332
    %vm2334 = vcmp.lt.s32.totalorder %v2315, 1
    %vm2335 = vcmp.lt.s32.totalorder %v2315, 2
    %vm2336 = vcmp.lt.s32.totalorder %v2315, 3
    %vm2337 = vcmp.lt.s32.totalorder %v2315, 4
    %v2338 = vsel %vm2334, %v2318, %v2321
    %v2339 = vsel %vm2337, %v2327, 2102212464
    %v2340 = vsel %vm2336, %v2324, %v2339
    %v2341 = vsel %vm2335, %v2338, %v2340
    %v2342 = vsel %vm2334, %v2321, %v2324
    %v2343 = vsel %vm2337, %v2330, 920167782
    %v2344 = vsel %vm2336, %v2327, %v2343
    %v2345 = vsel %vm2335, %v2342, %v2344
    %v2346 = vsel %vm2334, %v2324, %v2327
    %v2347 = vsel %vm2337, %v2333, 1326507024
    %v2348 = vsel %vm2336, %v2330, %v2347
    %v2349 = vsel %vm2335, %v2346, %v2348
    %v2350 = vshll.u32 %v2310, 8
    %v2351 = vmul.u32.u64.compose %v2350, %v2349
    %v2352 = vextract.low.u32 %v2351
    %v2353 = vextract.high.u32 %v2351
    %v2354 = vmul.u32.u64.compose %v2350, %v2345
    %v2355 = vextract.low.u32 %v2354
    %v2356 = vextract.high.u32 %v2354
    %v2357 = vmul.u32 %v2350, %v2341
    %v2358 = vadd.s32 %v2353, %v2355
    %vm2359 = vc.u32 %v2353, %v2355
    %v2360 = vadd.s32 %v2356, 1
    %v2361 = vsel %vm2359, %v2360, %v2356
    %v2362 = vadd.s32 %v2357, %v2361
    %v2363 = vadd.s32 %v2362, 536870912
    %v2364 = vshrl.u32 %v2363, 30
    %v2365 = vshll.u32 %v2364, 30
    %v2366 = vsub.s32 %v2362, %v2365
    %vm2367 = vcmp.lt.s32.totalorder %v2366, 0
    %v2368 = vsub.s32 0, %v2366
    %v2369 = vsel %vm2367, %v2368, %v2366
    %v2370 = vclz %v2369
    %v2371 = vsub.s32 %v2370, 2
    %vm2372 = vcmp.gt.s32.totalorder 0, %v2371
    %v2373 = vsel %vm2372, 0, %v2371
    %v2374 = vsub.s32 32, %v2373
    %v2375 = vshll.u32 %v2366, %v2373
    %v2376 = vshrl.u32 %v2358, %v2374
    %v2377 = vor.u32 %v2375, %v2376
    %v2378 = vsub.s32 4294967266, %v2373
    %v2379 = vadd.s32 %v2378, 127
    %v2380 = vshll.u32 %v2379, 23
    %v2381 = vor.u32 4788187, %v2380
    %v2382 = vand.u32 2147483647, %v2381
    %v2384 = vcvt.s32.f32 %v2377
    %v2385 = vmul.f32 %v2384, %v2382
    %v2386 = vxor.u32 %v2385, 2147483648
    %v2387 = vsel %vm2304, %v2386, %v2385
    %v2388 = vsub.s32 4, %v2364
    %v2389 = vsel %vm2304, %v2388, %v2364
    %v2390 = vsel %vm2303, %v316, %v2387
    %v2391 = vsel %vm2303, 0, %v2389
    %v2392 = vcosq.f32.pop %v2390
    %v2393 = vsinq.f32.pop %v2390
    %vm2394 = vweird.f32 %v316
    %v2395 = vand.u32 %v2391, 3
    %vm2396 = vcmp.lt.s32.totalorder %v2395, 2
    %vm2397 = vcmp.eq.s32.totalorder %v2395, 0
    %v2398 = vxor.u32 %v2393, 2147483648
    %v2399 = vsel %vm2397, %v2392, %v2398
    %vm2400 = vcmp.eq.s32.totalorder %v2395, 2
    %v2401 = vxor.u32 %v2392, 2147483648
    %v2402 = vsel %vm2400, %v2401, %v2393
    %v2403 = vsel %vm2396, %v2399, %v2402
    %v2404 = vsel %vm2394, nan, %v2403
    %v2405 = vand.u32 2147483647, %v317
    %vm2406 = vcmp.le.f32.partialorder %v2405, 0.7853982
    %vm2407 = vcmp.lt.s32.totalorder %v317, 0
    %v2408 = vand.u32 %v317, 2139095040
    %v2409 = vshrl.u32 %v2408, 23
    %v2410 = vsub.s32 %v2409, 127
    %v2411 = vand.u32 2147483647, %v317
    %v2412 = vand.u32 %v2411, 8388607
    %v2413 = vor.u32 %v2412, 8388608
    %v2414 = vsub.s32 0, %v2413
    %v2415 = vadd.s32 %v2410, 1
    %vm2416 = vcmp.gt.s32.totalorder %v2415, 0
    %v2417 = vsel %vm2416, %v2415, 0
    %v2418 = vshrl.u32 %v2417, 5
    %v2419 = vand.u32 %v2417, 31
    %v2420 = vsub.s32 32, %v2419
    %v2421 = vshrl.u32 683565275, %v2420
    %v2422 = vshll.u32 683565275, %v2419
    %v2423 = vshrl.u32 2475754826, %v2420
    %v2424 = vor.u32 %v2422, %v2423
    %v2425 = vshll.u32 2475754826, %v2419
    %v2426 = vshrl.u32 2131351028, %v2420
    %v2427 = vor.u32 %v2425, %v2426
    %v2428 = vshll.u32 2131351028, %v2419
    %v2429 = vshrl.u32 2102212464, %v2420
    %v2430 = vor.u32 %v2428, %v2429
    %v2431 = vshll.u32 2102212464, %v2419
    %v2432 = vshrl.u32 920167782, %v2420
    %v2433 = vor.u32 %v2431, %v2432
    %v2434 = vshll.u32 920167782, %v2419
    %v2435 = vshrl.u32 1326507024, %v2420
    %v2436 = vor.u32 %v2434, %v2435
    %vm2437 = vcmp.lt.s32.totalorder %v2418, 1
    %vm2438 = vcmp.lt.s32.totalorder %v2418, 2
    %vm2439 = vcmp.lt.s32.totalorder %v2418, 3
    %vm2440 = vcmp.lt.s32.totalorder %v2418, 4
    %v2441 = vsel %vm2437, %v2421, %v2424
    %v2442 = vsel %vm2440, %v2430, 2102212464
    %v2443 = vsel %vm2439, %v2427, %v2442
    %v2444 = vsel %vm2438, %v2441, %v2443
    %v2445 = vsel %vm2437, %v2424, %v2427
    %v2446 = vsel %vm2440, %v2433, 920167782
    %v2447 = vsel %vm2439, %v2430, %v2446
    %v2448 = vsel %vm2438, %v2445, %v2447
    %v2449 = vsel %vm2437, %v2427, %v2430
    %v2450 = vsel %vm2440, %v2436, 1326507024
    %v2451 = vsel %vm2439, %v2433, %v2450
    %v2452 = vsel %vm2438, %v2449, %v2451
    %v2453 = vshll.u32 %v2413, 8
    %v2454 = vmul.u32.u64.compose %v2453, %v2452
    %v2455 = vextract.low.u32 %v2454
    %v2456 = vextract.high.u32 %v2454
    %v2457 = vmul.u32.u64.compose %v2453, %v2448
    %v2458 = vextract.low.u32 %v2457
    %v2459 = vextract.high.u32 %v2457
    %v2460 = vmul.u32 %v2453, %v2444
    %v2461 = vadd.s32 %v2456, %v2458
    %vm2462 = vc.u32 %v2456, %v2458
    %v2463 = vadd.s32 %v2459, 1
    %v2464 = vsel %vm2462, %v2463, %v2459
    %v2465 = vadd.s32 %v2460, %v2464
    %v2466 = vadd.s32 %v2465, 536870912
    %v2467 = vshrl.u32 %v2466, 30
    %v2468 = vshll.u32 %v2467, 30
    %v2469 = vsub.s32 %v2465, %v2468
    %vm2470 = vcmp.lt.s32.totalorder %v2469, 0
    %v2471 = vsub.s32 0, %v2469
    %v2472 = vsel %vm2470, %v2471, %v2469
    %v2473 = vclz %v2472
    %v2474 = vsub.s32 %v2473, 2
    %vm2475 = vcmp.gt.s32.totalorder 0, %v2474
    %v2476 = vsel %vm2475, 0, %v2474
    %v2477 = vsub.s32 32, %v2476
    %v2478 = vshll.u32 %v2469, %v2476
    %v2479 = vshrl.u32 %v2461, %v2477
    %v2480 = vor.u32 %v2478, %v2479
    %v2481 = vsub.s32 4294967266, %v2476
    %v2482 = vadd.s32 %v2481, 127
    %v2483 = vshll.u32 %v2482, 23
    %v2484 = vor.u32 4788187, %v2483
    %v2485 = vand.u32 2147483647, %v2484
    %v2487 = vcvt.s32.f32 %v2480
    %v2488 = vmul.f32 %v2487, %v2485
    %v2489 = vxor.u32 %v2488, 2147483648
    %v2490 = vsel %vm2407, %v2489, %v2488
    %v2491 = vsub.s32 4, %v2467
    %v2492 = vsel %vm2407, %v2491, %v2467
    %v2493 = vsel %vm2406, %v317, %v2490
    %v2494 = vsel %vm2406, 0, %v2492
    %v2495 = vcosq.f32.pop %v2493
    %v2496 = vsinq.f32.pop %v2493
    %vm2497 = vweird.f32 %v317
    %v2498 = vand.u32 %v2494, 3
    %vm2499 = vcmp.lt.s32.totalorder %v2498, 2
    %vm2500 = vcmp.eq.s32.totalorder %v2498, 0
    %v2501 = vxor.u32 %v2496, 2147483648
    %v2502 = vsel %vm2500, %v2495, %v2501
    %vm2503 = vcmp.eq.s32.totalorder %v2498, 2
    %v2504 = vxor.u32 %v2495, 2147483648
    %v2505 = vsel %vm2503, %v2504, %v2496
    %v2506 = vsel %vm2499, %v2502, %v2505
    %v2507 = vsel %vm2497, nan, %v2506
    %v2508 = vand.u32 2147483647, %v318
    %vm2509 = vcmp.le.f32.partialorder %v2508, 0.7853982
    %vm2510 = vcmp.lt.s32.totalorder %v318, 0
    %v2511 = vand.u32 %v318, 2139095040
    %v2512 = vshrl.u32 %v2511, 23
    %v2513 = vsub.s32 %v2512, 127
    %v2514 = vand.u32 2147483647, %v318
    %v2515 = vand.u32 %v2514, 8388607
    %v2516 = vor.u32 %v2515, 8388608
    %v2517 = vsub.s32 0, %v2516
    %v2518 = vadd.s32 %v2513, 1
    %vm2519 = vcmp.gt.s32.totalorder %v2518, 0
    %v2520 = vsel %vm2519, %v2518, 0
    %v2521 = vshrl.u32 %v2520, 5
    %v2522 = vand.u32 %v2520, 31
    %v2523 = vsub.s32 32, %v2522
    %v2524 = vshrl.u32 683565275, %v2523
    %v2525 = vshll.u32 683565275, %v2522
    %v2526 = vshrl.u32 2475754826, %v2523
    %v2527 = vor.u32 %v2525, %v2526
    %v2528 = vshll.u32 2475754826, %v2522
    %v2529 = vshrl.u32 2131351028, %v2523
    %v2530 = vor.u32 %v2528, %v2529
    %v2531 = vshll.u32 2131351028, %v2522
    %v2532 = vshrl.u32 2102212464, %v2523
    %v2533 = vor.u32 %v2531, %v2532
    %v2534 = vshll.u32 2102212464, %v2522
    %v2535 = vshrl.u32 920167782, %v2523
    %v2536 = vor.u32 %v2534, %v2535
    %v2537 = vshll.u32 920167782, %v2522
    %v2538 = vshrl.u32 1326507024, %v2523
    %v2539 = vor.u32 %v2537, %v2538
    %vm2540 = vcmp.lt.s32.totalorder %v2521, 1
    %vm2541 = vcmp.lt.s32.totalorder %v2521, 2
    %vm2542 = vcmp.lt.s32.totalorder %v2521, 3
    %vm2543 = vcmp.lt.s32.totalorder %v2521, 4
    %v2544 = vsel %vm2540, %v2524, %v2527
    %v2545 = vsel %vm2543, %v2533, 2102212464
    %v2546 = vsel %vm2542, %v2530, %v2545
    %v2547 = vsel %vm2541, %v2544, %v2546
    %v2548 = vsel %vm2540, %v2527, %v2530
    %v2549 = vsel %vm2543, %v2536, 920167782
    %v2550 = vsel %vm2542, %v2533, %v2549
    %v2551 = vsel %vm2541, %v2548, %v2550
    %v2552 = vsel %vm2540, %v2530, %v2533
    %v2553 = vsel %vm2543, %v2539, 1326507024
    %v2554 = vsel %vm2542, %v2536, %v2553
    %v2555 = vsel %vm2541, %v2552, %v2554
    %v2556 = vshll.u32 %v2516, 8
    %v2557 = vmul.u32.u64.compose %v2556, %v2555
    %v2558 = vextract.low.u32 %v2557
    %v2559 = vextract.high.u32 %v2557
    %v2560 = vmul.u32.u64.compose %v2556, %v2551
    %v2561 = vextract.low.u32 %v2560
    %v2562 = vextract.high.u32 %v2560
    %v2563 = vmul.u32 %v2556, %v2547
    %v2564 = vadd.s32 %v2559, %v2561
    %vm2565 = vc.u32 %v2559, %v2561
    %v2566 = vadd.s32 %v2562, 1
    %v2567 = vsel %vm2565, %v2566, %v2562
    %v2568 = vadd.s32 %v2563, %v2567
    %v2569 = vadd.s32 %v2568, 536870912
    %v2570 = vshrl.u32 %v2569, 30
    %v2571 = vshll.u32 %v2570, 30
    %v2572 = vsub.s32 %v2568, %v2571
    %vm2573 = vcmp.lt.s32.totalorder %v2572, 0
    %v2574 = vsub.s32 0, %v2572
    %v2575 = vsel %vm2573, %v2574, %v2572
    %v2576 = vclz %v2575
    %v2577 = vsub.s32 %v2576, 2
    %vm2578 = vcmp.gt.s32.totalorder 0, %v2577
    %v2579 = vsel %vm2578, 0, %v2577
    %v2580 = vsub.s32 32, %v2579
    %v2581 = vshll.u32 %v2572, %v2579
    %v2582 = vshrl.u32 %v2564, %v2580
    %v2583 = vor.u32 %v2581, %v2582
    %v2584 = vsub.s32 4294967266, %v2579
    %v2585 = vadd.s32 %v2584, 127
    %v2586 = vshll.u32 %v2585, 23
    %v2587 = vor.u32 4788187, %v2586
    %v2588 = vand.u32 2147483647, %v2587
    %v2590 = vcvt.s32.f32 %v2583
    %v2591 = vmul.f32 %v2590, %v2588
    %v2592 = vxor.u32 %v2591, 2147483648
    %v2593 = vsel %vm2510, %v2592, %v2591
    %v2594 = vsub.s32 4, %v2570
    %v2595 = vsel %vm2510, %v2594, %v2570
    %v2596 = vsel %vm2509, %v318, %v2593
    %v2597 = vsel %vm2509, 0, %v2595
    %v2598 = vcosq.f32.pop %v2596
    %v2599 = vsinq.f32.pop %v2596
    %vm2600 = vweird.f32 %v318
    %v2601 = vand.u32 %v2597, 3
    %vm2602 = vcmp.lt.s32.totalorder %v2601, 2
    %vm2603 = vcmp.eq.s32.totalorder %v2601, 0
    %v2604 = vxor.u32 %v2599, 2147483648
    %v2605 = vsel %vm2603, %v2598, %v2604
    %vm2606 = vcmp.eq.s32.totalorder %v2601, 2
    %v2607 = vxor.u32 %v2598, 2147483648
    %v2608 = vsel %vm2606, %v2607, %v2599
    %v2609 = vsel %vm2602, %v2605, %v2608
    %v2610 = vsel %vm2600, nan, %v2609
    %v2611 = vand.u32 2147483647, %v319
    %vm2612 = vcmp.le.f32.partialorder %v2611, 0.7853982
    %vm2613 = vcmp.lt.s32.totalorder %v319, 0
    %v2614 = vand.u32 %v319, 2139095040
    %v2615 = vshrl.u32 %v2614, 23
    %v2616 = vsub.s32 %v2615, 127
    %v2617 = vand.u32 2147483647, %v319
    %v2618 = vand.u32 %v2617, 8388607
    %v2619 = vor.u32 %v2618, 8388608
    %v2620 = vsub.s32 0, %v2619
    %v2621 = vadd.s32 %v2616, 1
    %vm2622 = vcmp.gt.s32.totalorder %v2621, 0
    %v2623 = vsel %vm2622, %v2621, 0
    %v2624 = vshrl.u32 %v2623, 5
    %v2625 = vand.u32 %v2623, 31
    %v2626 = vsub.s32 32, %v2625
    %v2627 = vshrl.u32 683565275, %v2626
    %v2628 = vshll.u32 683565275, %v2625
    %v2629 = vshrl.u32 2475754826, %v2626
    %v2630 = vor.u32 %v2628, %v2629
    %v2631 = vshll.u32 2475754826, %v2625
    %v2632 = vshrl.u32 2131351028, %v2626
    %v2633 = vor.u32 %v2631, %v2632
    %v2634 = vshll.u32 2131351028, %v2625
    %v2635 = vshrl.u32 2102212464, %v2626
    %v2636 = vor.u32 %v2634, %v2635
    %v2637 = vshll.u32 2102212464, %v2625
    %v2638 = vshrl.u32 920167782, %v2626
    %v2639 = vor.u32 %v2637, %v2638
    %v2640 = vshll.u32 920167782, %v2625
    %v2641 = vshrl.u32 1326507024, %v2626
    %v2642 = vor.u32 %v2640, %v2641
    %vm2643 = vcmp.lt.s32.totalorder %v2624, 1
    %vm2644 = vcmp.lt.s32.totalorder %v2624, 2
    %vm2645 = vcmp.lt.s32.totalorder %v2624, 3
    %vm2646 = vcmp.lt.s32.totalorder %v2624, 4
    %v2647 = vsel %vm2643, %v2627, %v2630
    %v2648 = vsel %vm2646, %v2636, 2102212464
    %v2649 = vsel %vm2645, %v2633, %v2648
    %v2650 = vsel %vm2644, %v2647, %v2649
    %v2651 = vsel %vm2643, %v2630, %v2633
    %v2652 = vsel %vm2646, %v2639, 920167782
    %v2653 = vsel %vm2645, %v2636, %v2652
    %v2654 = vsel %vm2644, %v2651, %v2653
    %v2655 = vsel %vm2643, %v2633, %v2636
    %v2656 = vsel %vm2646, %v2642, 1326507024
    %v2657 = vsel %vm2645, %v2639, %v2656
    %v2658 = vsel %vm2644, %v2655, %v2657
    %v2659 = vshll.u32 %v2619, 8
    %v2660 = vmul.u32.u64.compose %v2659, %v2658
    %v2661 = vextract.low.u32 %v2660
    %v2662 = vextract.high.u32 %v2660
    %v2663 = vmul.u32.u64.compose %v2659, %v2654
    %v2664 = vextract.low.u32 %v2663
    %v2665 = vextract.high.u32 %v2663
    %v2666 = vmul.u32 %v2659, %v2650
    %v2667 = vadd.s32 %v2662, %v2664
    %vm2668 = vc.u32 %v2662, %v2664
    %v2669 = vadd.s32 %v2665, 1
    %v2670 = vsel %vm2668, %v2669, %v2665
    %v2671 = vadd.s32 %v2666, %v2670
    %v2672 = vadd.s32 %v2671, 536870912
    %v2673 = vshrl.u32 %v2672, 30
    %v2674 = vshll.u32 %v2673, 30
    %v2675 = vsub.s32 %v2671, %v2674
    %vm2676 = vcmp.lt.s32.totalorder %v2675, 0
    %v2677 = vsub.s32 0, %v2675
    %v2678 = vsel %vm2676, %v2677, %v2675
    %v2679 = vclz %v2678
    %v2680 = vsub.s32 %v2679, 2
    %vm2681 = vcmp.gt.s32.totalorder 0, %v2680
    %v2682 = vsel %vm2681, 0, %v2680
    %v2683 = vsub.s32 32, %v2682
    %v2684 = vshll.u32 %v2675, %v2682
    %v2685 = vshrl.u32 %v2667, %v2683
    %v2686 = vor.u32 %v2684, %v2685
    %v2687 = vsub.s32 4294967266, %v2682
    %v2688 = vadd.s32 %v2687, 127
    %v2689 = vshll.u32 %v2688, 23
    %v2690 = vor.u32 4788187, %v2689
    %v2691 = vand.u32 2147483647, %v2690
    %v2693 = vcvt.s32.f32 %v2686
    %v2694 = vmul.f32 %v2693, %v2691
    %v2695 = vxor.u32 %v2694, 2147483648
    %v2696 = vsel %vm2613, %v2695, %v2694
    %v2697 = vsub.s32 4, %v2673
    %v2698 = vsel %vm2613, %v2697, %v2673
    %v2699 = vsel %vm2612, %v319, %v2696
    %v2700 = vsel %vm2612, 0, %v2698
    %v2701 = vcosq.f32.pop %v2699
    %v2702 = vsinq.f32.pop %v2699
    %vm2703 = vweird.f32 %v319
    %v2704 = vand.u32 %v2700, 3
    %vm2705 = vcmp.lt.s32.totalorder %v2704, 2
    %vm2706 = vcmp.eq.s32.totalorder %v2704, 0
    %v2707 = vxor.u32 %v2702, 2147483648
    %v2708 = vsel %vm2706, %v2701, %v2707
    %vm2709 = vcmp.eq.s32.totalorder %v2704, 2
    %v2710 = vxor.u32 %v2701, 2147483648
    %v2711 = vsel %vm2709, %v2710, %v2702
    %v2712 = vsel %vm2705, %v2708, %v2711
    %v2713 = vsel %vm2703, nan, %v2712
    %v2714 = vand.u32 2147483647, %v320
    %vm2715 = vcmp.le.f32.partialorder %v2714, 0.7853982
    %vm2716 = vcmp.lt.s32.totalorder %v320, 0
    %v2717 = vand.u32 %v320, 2139095040
    %v2718 = vshrl.u32 %v2717, 23
    %v2719 = vsub.s32 %v2718, 127
    %v2720 = vand.u32 2147483647, %v320
    %v2721 = vand.u32 %v2720, 8388607
    %v2722 = vor.u32 %v2721, 8388608
    %v2723 = vsub.s32 0, %v2722
    %v2724 = vadd.s32 %v2719, 1
    %vm2725 = vcmp.gt.s32.totalorder %v2724, 0
    %v2726 = vsel %vm2725, %v2724, 0
    %v2727 = vshrl.u32 %v2726, 5
    %v2728 = vand.u32 %v2726, 31
    %v2729 = vsub.s32 32, %v2728
    %v2730 = vshrl.u32 683565275, %v2729
    %v2731 = vshll.u32 683565275, %v2728
    %v2732 = vshrl.u32 2475754826, %v2729
    %v2733 = vor.u32 %v2731, %v2732
    %v2734 = vshll.u32 2475754826, %v2728
    %v2735 = vshrl.u32 2131351028, %v2729
    %v2736 = vor.u32 %v2734, %v2735
    %v2737 = vshll.u32 2131351028, %v2728
    %v2738 = vshrl.u32 2102212464, %v2729
    %v2739 = vor.u32 %v2737, %v2738
    %v2740 = vshll.u32 2102212464, %v2728
    %v2741 = vshrl.u32 920167782, %v2729
    %v2742 = vor.u32 %v2740, %v2741
    %v2743 = vshll.u32 920167782, %v2728
    %v2744 = vshrl.u32 1326507024, %v2729
    %v2745 = vor.u32 %v2743, %v2744
    %vm2746 = vcmp.lt.s32.totalorder %v2727, 1
    %vm2747 = vcmp.lt.s32.totalorder %v2727, 2
    %vm2748 = vcmp.lt.s32.totalorder %v2727, 3
    %vm2749 = vcmp.lt.s32.totalorder %v2727, 4
    %v2750 = vsel %vm2746, %v2730, %v2733
    %v2751 = vsel %vm2749, %v2739, 2102212464
    %v2752 = vsel %vm2748, %v2736, %v2751
    %v2753 = vsel %vm2747, %v2750, %v2752
    %v2754 = vsel %vm2746, %v2733, %v2736
    %v2755 = vsel %vm2749, %v2742, 920167782
    %v2756 = vsel %vm2748, %v2739, %v2755
    %v2757 = vsel %vm2747, %v2754, %v2756
    %v2758 = vsel %vm2746, %v2736, %v2739
    %v2759 = vsel %vm2749, %v2745, 1326507024
    %v2760 = vsel %vm2748, %v2742, %v2759
    %v2761 = vsel %vm2747, %v2758, %v2760
    %v2762 = vshll.u32 %v2722, 8
    %v2763 = vmul.u32.u64.compose %v2762, %v2761
    %v2764 = vextract.low.u32 %v2763
    %v2765 = vextract.high.u32 %v2763
    %v2766 = vmul.u32.u64.compose %v2762, %v2757
    %v2767 = vextract.low.u32 %v2766
    %v2768 = vextract.high.u32 %v2766
    %v2769 = vmul.u32 %v2762, %v2753
    %v2770 = vadd.s32 %v2765, %v2767
    %vm2771 = vc.u32 %v2765, %v2767
    %v2772 = vadd.s32 %v2768, 1
    %v2773 = vsel %vm2771, %v2772, %v2768
    %v2774 = vadd.s32 %v2769, %v2773
    %v2775 = vadd.s32 %v2774, 536870912
    %v2776 = vshrl.u32 %v2775, 30
    %v2777 = vshll.u32 %v2776, 30
    %v2778 = vsub.s32 %v2774, %v2777
    %vm2779 = vcmp.lt.s32.totalorder %v2778, 0
    %v2780 = vsub.s32 0, %v2778
    %v2781 = vsel %vm2779, %v2780, %v2778
    %v2782 = vclz %v2781
    %v2783 = vsub.s32 %v2782, 2
    %vm2784 = vcmp.gt.s32.totalorder 0, %v2783
    %v2785 = vsel %vm2784, 0, %v2783
    %v2786 = vsub.s32 32, %v2785
    %v2787 = vshll.u32 %v2778, %v2785
    %v2788 = vshrl.u32 %v2770, %v2786
    %v2789 = vor.u32 %v2787, %v2788
    %v2790 = vsub.s32 4294967266, %v2785
    %v2791 = vadd.s32 %v2790, 127
    %v2792 = vshll.u32 %v2791, 23
    %v2793 = vor.u32 4788187, %v2792
    %v2794 = vand.u32 2147483647, %v2793
    %v2796 = vcvt.s32.f32 %v2789
    %v2797 = vmul.f32 %v2796, %v2794
    %v2798 = vxor.u32 %v2797, 2147483648
    %v2799 = vsel %vm2716, %v2798, %v2797
    %v2800 = vsub.s32 4, %v2776
    %v2801 = vsel %vm2716, %v2800, %v2776
    %v2802 = vsel %vm2715, %v320, %v2799
    %v2803 = vsel %vm2715, 0, %v2801
    %v2804 = vcosq.f32.pop %v2802
    %v2805 = vsinq.f32.pop %v2802
    %vm2806 = vweird.f32 %v320
    %v2807 = vand.u32 %v2803, 3
    %vm2808 = vcmp.lt.s32.totalorder %v2807, 2
    %vm2809 = vcmp.eq.s32.totalorder %v2807, 0
    %v2810 = vxor.u32 %v2805, 2147483648
    %v2811 = vsel %vm2809, %v2804, %v2810
    %vm2812 = vcmp.eq.s32.totalorder %v2807, 2
    %v2813 = vxor.u32 %v2804, 2147483648
    %v2814 = vsel %vm2812, %v2813, %v2805
    %v2815 = vsel %vm2808, %v2811, %v2814
    %v2816 = vsel %vm2806, nan, %v2815
    %v2817 = vand.u32 2147483647, %v321
    %vm2818 = vcmp.le.f32.partialorder %v2817, 0.7853982
    %vm2819 = vcmp.lt.s32.totalorder %v321, 0
    %v2820 = vand.u32 %v321, 2139095040
    %v2821 = vshrl.u32 %v2820, 23
    %v2822 = vsub.s32 %v2821, 127
    %v2823 = vand.u32 2147483647, %v321
    %v2824 = vand.u32 %v2823, 8388607
    %v2825 = vor.u32 %v2824, 8388608
    %v2826 = vsub.s32 0, %v2825
    %v2827 = vadd.s32 %v2822, 1
    %vm2828 = vcmp.gt.s32.totalorder %v2827, 0
    %v2829 = vsel %vm2828, %v2827, 0
    %v2830 = vshrl.u32 %v2829, 5
    %v2831 = vand.u32 %v2829, 31
    %v2832 = vsub.s32 32, %v2831
    %v2833 = vshrl.u32 683565275, %v2832
    %v2834 = vshll.u32 683565275, %v2831
    %v2835 = vshrl.u32 2475754826, %v2832
    %v2836 = vor.u32 %v2834, %v2835
    %v2837 = vshll.u32 2475754826, %v2831
    %v2838 = vshrl.u32 2131351028, %v2832
    %v2839 = vor.u32 %v2837, %v2838
    %v2840 = vshll.u32 2131351028, %v2831
    %v2841 = vshrl.u32 2102212464, %v2832
    %v2842 = vor.u32 %v2840, %v2841
    %v2843 = vshll.u32 2102212464, %v2831
    %v2844 = vshrl.u32 920167782, %v2832
    %v2845 = vor.u32 %v2843, %v2844
    %v2846 = vshll.u32 920167782, %v2831
    %v2847 = vshrl.u32 1326507024, %v2832
    %v2848 = vor.u32 %v2846, %v2847
    %vm2849 = vcmp.lt.s32.totalorder %v2830, 1
    %vm2850 = vcmp.lt.s32.totalorder %v2830, 2
    %vm2851 = vcmp.lt.s32.totalorder %v2830, 3
    %vm2852 = vcmp.lt.s32.totalorder %v2830, 4
    %v2853 = vsel %vm2849, %v2833, %v2836
    %v2854 = vsel %vm2852, %v2842, 2102212464
    %v2855 = vsel %vm2851, %v2839, %v2854
    %v2856 = vsel %vm2850, %v2853, %v2855
    %v2857 = vsel %vm2849, %v2836, %v2839
    %v2858 = vsel %vm2852, %v2845, 920167782
    %v2859 = vsel %vm2851, %v2842, %v2858
    %v2860 = vsel %vm2850, %v2857, %v2859
    %v2861 = vsel %vm2849, %v2839, %v2842
    %v2862 = vsel %vm2852, %v2848, 1326507024
    %v2863 = vsel %vm2851, %v2845, %v2862
    %v2864 = vsel %vm2850, %v2861, %v2863
    %v2865 = vshll.u32 %v2825, 8
    %v2866 = vmul.u32.u64.compose %v2865, %v2864
    %v2867 = vextract.low.u32 %v2866
    %v2868 = vextract.high.u32 %v2866
    %v2869 = vmul.u32.u64.compose %v2865, %v2860
    %v2870 = vextract.low.u32 %v2869
    %v2871 = vextract.high.u32 %v2869
    %v2872 = vmul.u32 %v2865, %v2856
    %v2873 = vadd.s32 %v2868, %v2870
    %vm2874 = vc.u32 %v2868, %v2870
    %v2875 = vadd.s32 %v2871, 1
    %v2876 = vsel %vm2874, %v2875, %v2871
    %v2877 = vadd.s32 %v2872, %v2876
    %v2878 = vadd.s32 %v2877, 536870912
    %v2879 = vshrl.u32 %v2878, 30
    %v2880 = vshll.u32 %v2879, 30
    %v2881 = vsub.s32 %v2877, %v2880
    %vm2882 = vcmp.lt.s32.totalorder %v2881, 0
    %v2883 = vsub.s32 0, %v2881
    %v2884 = vsel %vm2882, %v2883, %v2881
    %v2885 = vclz %v2884
    %v2886 = vsub.s32 %v2885, 2
    %vm2887 = vcmp.gt.s32.totalorder 0, %v2886
    %v2888 = vsel %vm2887, 0, %v2886
    %v2889 = vsub.s32 32, %v2888
    %v2890 = vshll.u32 %v2881, %v2888
    %v2891 = vshrl.u32 %v2873, %v2889
    %v2892 = vor.u32 %v2890, %v2891
    %v2893 = vsub.s32 4294967266, %v2888
    %v2894 = vadd.s32 %v2893, 127
    %v2895 = vshll.u32 %v2894, 23
    %v2896 = vor.u32 4788187, %v2895
    %v2897 = vand.u32 2147483647, %v2896
    %v2899 = vcvt.s32.f32 %v2892
    %v2900 = vmul.f32 %v2899, %v2897
    %v2901 = vxor.u32 %v2900, 2147483648
    %v2902 = vsel %vm2819, %v2901, %v2900
    %v2903 = vsub.s32 4, %v2879
    %v2904 = vsel %vm2819, %v2903, %v2879
    %v2905 = vsel %vm2818, %v321, %v2902
    %v2906 = vsel %vm2818, 0, %v2904
    %v2907 = vcosq.f32.pop %v2905
    %v2908 = vsinq.f32.pop %v2905
    %vm2909 = vweird.f32 %v321
    %v2910 = vand.u32 %v2906, 3
    %vm2911 = vcmp.lt.s32.totalorder %v2910, 2
    %vm2912 = vcmp.eq.s32.totalorder %v2910, 0
    %v2913 = vxor.u32 %v2908, 2147483648
    %v2914 = vsel %vm2912, %v2907, %v2913
    %vm2915 = vcmp.eq.s32.totalorder %v2910, 2
    %v2916 = vxor.u32 %v2907, 2147483648
    %v2917 = vsel %vm2915, %v2916, %v2908
    %v2918 = vsel %vm2911, %v2914, %v2917
    %v2919 = vsel %vm2909, nan, %v2918
    %v2920 = vand.u32 2147483647, %v322
    %vm2921 = vcmp.le.f32.partialorder %v2920, 0.7853982
    %vm2922 = vcmp.lt.s32.totalorder %v322, 0
    %v2923 = vand.u32 %v322, 2139095040
    %v2924 = vshrl.u32 %v2923, 23
    %v2925 = vsub.s32 %v2924, 127
    %v2926 = vand.u32 2147483647, %v322
    %v2927 = vand.u32 %v2926, 8388607
    %v2928 = vor.u32 %v2927, 8388608
    %v2929 = vsub.s32 0, %v2928
    %v2930 = vadd.s32 %v2925, 1
    %vm2931 = vcmp.gt.s32.totalorder %v2930, 0
    %v2932 = vsel %vm2931, %v2930, 0
    %v2933 = vshrl.u32 %v2932, 5
    %v2934 = vand.u32 %v2932, 31
    %v2935 = vsub.s32 32, %v2934
    %v2936 = vshrl.u32 683565275, %v2935
    %v2937 = vshll.u32 683565275, %v2934
    %v2938 = vshrl.u32 2475754826, %v2935
    %v2939 = vor.u32 %v2937, %v2938
    %v2940 = vshll.u32 2475754826, %v2934
    %v2941 = vshrl.u32 2131351028, %v2935
    %v2942 = vor.u32 %v2940, %v2941
    %v2943 = vshll.u32 2131351028, %v2934
    %v2944 = vshrl.u32 2102212464, %v2935
    %v2945 = vor.u32 %v2943, %v2944
    %v2946 = vshll.u32 2102212464, %v2934
    %v2947 = vshrl.u32 920167782, %v2935
    %v2948 = vor.u32 %v2946, %v2947
    %v2949 = vshll.u32 920167782, %v2934
    %v2950 = vshrl.u32 1326507024, %v2935
    %v2951 = vor.u32 %v2949, %v2950
    %vm2952 = vcmp.lt.s32.totalorder %v2933, 1
    %vm2953 = vcmp.lt.s32.totalorder %v2933, 2
    %vm2954 = vcmp.lt.s32.totalorder %v2933, 3
    %vm2955 = vcmp.lt.s32.totalorder %v2933, 4
    %v2956 = vsel %vm2952, %v2936, %v2939
    %v2957 = vsel %vm2955, %v2945, 2102212464
    %v2958 = vsel %vm2954, %v2942, %v2957
    %v2959 = vsel %vm2953, %v2956, %v2958
    %v2960 = vsel %vm2952, %v2939, %v2942
    %v2961 = vsel %vm2955, %v2948, 920167782
    %v2962 = vsel %vm2954, %v2945, %v2961
    %v2963 = vsel %vm2953, %v2960, %v2962
    %v2964 = vsel %vm2952, %v2942, %v2945
    %v2965 = vsel %vm2955, %v2951, 1326507024
    %v2966 = vsel %vm2954, %v2948, %v2965
    %v2967 = vsel %vm2953, %v2964, %v2966
    %v2968 = vshll.u32 %v2928, 8
    %v2969 = vmul.u32.u64.compose %v2968, %v2967
    %v2970 = vextract.low.u32 %v2969
    %v2971 = vextract.high.u32 %v2969
    %v2972 = vmul.u32.u64.compose %v2968, %v2963
    %v2973 = vextract.low.u32 %v2972
    %v2974 = vextract.high.u32 %v2972
    %v2975 = vmul.u32 %v2968, %v2959
    %v2976 = vadd.s32 %v2971, %v2973
    %vm2977 = vc.u32 %v2971, %v2973
    %v2978 = vadd.s32 %v2974, 1
    %v2979 = vsel %vm2977, %v2978, %v2974
    %v2980 = vadd.s32 %v2975, %v2979
    %v2981 = vadd.s32 %v2980, 536870912
    %v2982 = vshrl.u32 %v2981, 30
    %v2983 = vshll.u32 %v2982, 30
    %v2984 = vsub.s32 %v2980, %v2983
    %vm2985 = vcmp.lt.s32.totalorder %v2984, 0
    %v2986 = vsub.s32 0, %v2984
    %v2987 = vsel %vm2985, %v2986, %v2984
    %v2988 = vclz %v2987
    %v2989 = vsub.s32 %v2988, 2
    %vm2990 = vcmp.gt.s32.totalorder 0, %v2989
    %v2991 = vsel %vm2990, 0, %v2989
    %v2992 = vsub.s32 32, %v2991
    %v2993 = vshll.u32 %v2984, %v2991
    %v2994 = vshrl.u32 %v2976, %v2992
    %v2995 = vor.u32 %v2993, %v2994
    %v2996 = vsub.s32 4294967266, %v2991
    %v2997 = vadd.s32 %v2996, 127
    %v2998 = vshll.u32 %v2997, 23
    %v2999 = vor.u32 4788187, %v2998
    %v3000 = vand.u32 2147483647, %v2999
    %v3002 = vcvt.s32.f32 %v2995
    %v3003 = vmul.f32 %v3002, %v3000
    %v3004 = vxor.u32 %v3003, 2147483648
    %v3005 = vsel %vm2922, %v3004, %v3003
    %v3006 = vsub.s32 4, %v2982
    %v3007 = vsel %vm2922, %v3006, %v2982
    %v3008 = vsel %vm2921, %v322, %v3005
    %v3009 = vsel %vm2921, 0, %v3007
    %v3010 = vcosq.f32.pop %v3008
    %v3011 = vsinq.f32.pop %v3008
    %vm3012 = vweird.f32 %v322
    %v3013 = vand.u32 %v3009, 3
    %vm3014 = vcmp.lt.s32.totalorder %v3013, 2
    %vm3015 = vcmp.eq.s32.totalorder %v3013, 0
    %v3016 = vxor.u32 %v3011, 2147483648
    %v3017 = vsel %vm3015, %v3010, %v3016
    %vm3018 = vcmp.eq.s32.totalorder %v3013, 2
    %v3019 = vxor.u32 %v3010, 2147483648
    %v3020 = vsel %vm3018, %v3019, %v3011
    %v3021 = vsel %vm3014, %v3017, %v3020
    %v3022 = vsel %vm3012, nan, %v3021
    %v3023 = vand.u32 2147483647, %v323
    %vm3024 = vcmp.le.f32.partialorder %v3023, 0.7853982
    %vm3025 = vcmp.lt.s32.totalorder %v323, 0
    %v3026 = vand.u32 %v323, 2139095040
    %v3027 = vshrl.u32 %v3026, 23
    %v3028 = vsub.s32 %v3027, 127
    %v3029 = vand.u32 2147483647, %v323
    %v3030 = vand.u32 %v3029, 8388607
    %v3031 = vor.u32 %v3030, 8388608
    %v3032 = vsub.s32 0, %v3031
    %v3033 = vadd.s32 %v3028, 1
    %vm3034 = vcmp.gt.s32.totalorder %v3033, 0
    %v3035 = vsel %vm3034, %v3033, 0
    %v3036 = vshrl.u32 %v3035, 5
    %v3037 = vand.u32 %v3035, 31
    %v3038 = vsub.s32 32, %v3037
    %v3039 = vshrl.u32 683565275, %v3038
    %v3040 = vshll.u32 683565275, %v3037
    %v3041 = vshrl.u32 2475754826, %v3038
    %v3042 = vor.u32 %v3040, %v3041
    %v3043 = vshll.u32 2475754826, %v3037
    %v3044 = vshrl.u32 2131351028, %v3038
    %v3045 = vor.u32 %v3043, %v3044
    %v3046 = vshll.u32 2131351028, %v3037
    %v3047 = vshrl.u32 2102212464, %v3038
    %v3048 = vor.u32 %v3046, %v3047
    %v3049 = vshll.u32 2102212464, %v3037
    %v3050 = vshrl.u32 920167782, %v3038
    %v3051 = vor.u32 %v3049, %v3050
    %v3052 = vshll.u32 920167782, %v3037
    %v3053 = vshrl.u32 1326507024, %v3038
    %v3054 = vor.u32 %v3052, %v3053
    %vm3055 = vcmp.lt.s32.totalorder %v3036, 1
    %vm3056 = vcmp.lt.s32.totalorder %v3036, 2
    %vm3057 = vcmp.lt.s32.totalorder %v3036, 3
    %vm3058 = vcmp.lt.s32.totalorder %v3036, 4
    %v3059 = vsel %vm3055, %v3039, %v3042
    %v3060 = vsel %vm3058, %v3048, 2102212464
    %v3061 = vsel %vm3057, %v3045, %v3060
    %v3062 = vsel %vm3056, %v3059, %v3061
    %v3063 = vsel %vm3055, %v3042, %v3045
    %v3064 = vsel %vm3058, %v3051, 920167782
    %v3065 = vsel %vm3057, %v3048, %v3064
    %v3066 = vsel %vm3056, %v3063, %v3065
    %v3067 = vsel %vm3055, %v3045, %v3048
    %v3068 = vsel %vm3058, %v3054, 1326507024
    %v3069 = vsel %vm3057, %v3051, %v3068
    %v3070 = vsel %vm3056, %v3067, %v3069
    %v3071 = vshll.u32 %v3031, 8
    %v3072 = vmul.u32.u64.compose %v3071, %v3070
    %v3073 = vextract.low.u32 %v3072
    %v3074 = vextract.high.u32 %v3072
    %v3075 = vmul.u32.u64.compose %v3071, %v3066
    %v3076 = vextract.low.u32 %v3075
    %v3077 = vextract.high.u32 %v3075
    %v3078 = vmul.u32 %v3071, %v3062
    %v3079 = vadd.s32 %v3074, %v3076
    %vm3080 = vc.u32 %v3074, %v3076
    %v3081 = vadd.s32 %v3077, 1
    %v3082 = vsel %vm3080, %v3081, %v3077
    %v3083 = vadd.s32 %v3078, %v3082
    %v3084 = vadd.s32 %v3083, 536870912
    %v3085 = vshrl.u32 %v3084, 30
    %v3086 = vshll.u32 %v3085, 30
    %v3087 = vsub.s32 %v3083, %v3086
    %vm3088 = vcmp.lt.s32.totalorder %v3087, 0
    %v3089 = vsub.s32 0, %v3087
    %v3090 = vsel %vm3088, %v3089, %v3087
    %v3091 = vclz %v3090
    %v3092 = vsub.s32 %v3091, 2
    %vm3093 = vcmp.gt.s32.totalorder 0, %v3092
    %v3094 = vsel %vm3093, 0, %v3092
    %v3095 = vsub.s32 32, %v3094
    %v3096 = vshll.u32 %v3087, %v3094
    %v3097 = vshrl.u32 %v3079, %v3095
    %v3098 = vor.u32 %v3096, %v3097
    %v3099 = vsub.s32 4294967266, %v3094
    %v3100 = vadd.s32 %v3099, 127
    %v3101 = vshll.u32 %v3100, 23
    %v3102 = vor.u32 4788187, %v3101
    %v3103 = vand.u32 2147483647, %v3102
    %v3105 = vcvt.s32.f32 %v3098
    %v3106 = vmul.f32 %v3105, %v3103
    %v3107 = vxor.u32 %v3106, 2147483648
    %v3108 = vsel %vm3025, %v3107, %v3106
    %v3109 = vsub.s32 4, %v3085
    %v3110 = vsel %vm3025, %v3109, %v3085
    %v3111 = vsel %vm3024, %v323, %v3108
    %v3112 = vsel %vm3024, 0, %v3110
    %v3113 = vcosq.f32.pop %v3111
    %v3114 = vsinq.f32.pop %v3111
    %vm3115 = vweird.f32 %v323
    %v3116 = vand.u32 %v3112, 3
    %vm3117 = vcmp.lt.s32.totalorder %v3116, 2
    %vm3118 = vcmp.eq.s32.totalorder %v3116, 0
    %v3119 = vxor.u32 %v3114, 2147483648
    %v3120 = vsel %vm3118, %v3113, %v3119
    %vm3121 = vcmp.eq.s32.totalorder %v3116, 2
    %v3122 = vxor.u32 %v3113, 2147483648
    %v3123 = vsel %vm3121, %v3122, %v3114
    %v3124 = vsel %vm3117, %v3120, %v3123
    %v3125 = vsel %vm3115, nan, %v3124
    %v3126 = vand.u32 2147483647, %v324
    %vm3127 = vcmp.le.f32.partialorder %v3126, 0.7853982
    %vm3128 = vcmp.lt.s32.totalorder %v324, 0
    %v3129 = vand.u32 %v324, 2139095040
    %v3130 = vshrl.u32 %v3129, 23
    %v3131 = vsub.s32 %v3130, 127
    %v3132 = vand.u32 2147483647, %v324
    %v3133 = vand.u32 %v3132, 8388607
    %v3134 = vor.u32 %v3133, 8388608
    %v3135 = vsub.s32 0, %v3134
    %v3136 = vadd.s32 %v3131, 1
    %vm3137 = vcmp.gt.s32.totalorder %v3136, 0
    %v3138 = vsel %vm3137, %v3136, 0
    %v3139 = vshrl.u32 %v3138, 5
    %v3140 = vand.u32 %v3138, 31
    %v3141 = vsub.s32 32, %v3140
    %v3142 = vshrl.u32 683565275, %v3141
    %v3143 = vshll.u32 683565275, %v3140
    %v3144 = vshrl.u32 2475754826, %v3141
    %v3145 = vor.u32 %v3143, %v3144
    %v3146 = vshll.u32 2475754826, %v3140
    %v3147 = vshrl.u32 2131351028, %v3141
    %v3148 = vor.u32 %v3146, %v3147
    %v3149 = vshll.u32 2131351028, %v3140
    %v3150 = vshrl.u32 2102212464, %v3141
    %v3151 = vor.u32 %v3149, %v3150
    %v3152 = vshll.u32 2102212464, %v3140
    %v3153 = vshrl.u32 920167782, %v3141
    %v3154 = vor.u32 %v3152, %v3153
    %v3155 = vshll.u32 920167782, %v3140
    %v3156 = vshrl.u32 1326507024, %v3141
    %v3157 = vor.u32 %v3155, %v3156
    %vm3158 = vcmp.lt.s32.totalorder %v3139, 1
    %vm3159 = vcmp.lt.s32.totalorder %v3139, 2
    %vm3160 = vcmp.lt.s32.totalorder %v3139, 3
    %vm3161 = vcmp.lt.s32.totalorder %v3139, 4
    %v3162 = vsel %vm3158, %v3142, %v3145
    %v3163 = vsel %vm3161, %v3151, 2102212464
    %v3164 = vsel %vm3160, %v3148, %v3163
    %v3165 = vsel %vm3159, %v3162, %v3164
    %v3166 = vsel %vm3158, %v3145, %v3148
    %v3167 = vsel %vm3161, %v3154, 920167782
    %v3168 = vsel %vm3160, %v3151, %v3167
    %v3169 = vsel %vm3159, %v3166, %v3168
    %v3170 = vsel %vm3158, %v3148, %v3151
    %v3171 = vsel %vm3161, %v3157, 1326507024
    %v3172 = vsel %vm3160, %v3154, %v3171
    %v3173 = vsel %vm3159, %v3170, %v3172
    %v3174 = vshll.u32 %v3134, 8
    %v3175 = vmul.u32.u64.compose %v3174, %v3173
    %v3176 = vextract.low.u32 %v3175
    %v3177 = vextract.high.u32 %v3175
    %v3178 = vmul.u32.u64.compose %v3174, %v3169
    %v3179 = vextract.low.u32 %v3178
    %v3180 = vextract.high.u32 %v3178
    %v3181 = vmul.u32 %v3174, %v3165
    %v3182 = vadd.s32 %v3177, %v3179
    %vm3183 = vc.u32 %v3177, %v3179
    %v3184 = vadd.s32 %v3180, 1
    %v3185 = vsel %vm3183, %v3184, %v3180
    %v3186 = vadd.s32 %v3181, %v3185
    %v3187 = vadd.s32 %v3186, 536870912
    %v3188 = vshrl.u32 %v3187, 30
    %v3189 = vshll.u32 %v3188, 30
    %v3190 = vsub.s32 %v3186, %v3189
    %vm3191 = vcmp.lt.s32.totalorder %v3190, 0
    %v3192 = vsub.s32 0, %v3190
    %v3193 = vsel %vm3191, %v3192, %v3190
    %v3194 = vclz %v3193
    %v3195 = vsub.s32 %v3194, 2
    %vm3196 = vcmp.gt.s32.totalorder 0, %v3195
    %v3197 = vsel %vm3196, 0, %v3195
    %v3198 = vsub.s32 32, %v3197
    %v3199 = vshll.u32 %v3190, %v3197
    %v3200 = vshrl.u32 %v3182, %v3198
    %v3201 = vor.u32 %v3199, %v3200
    %v3202 = vsub.s32 4294967266, %v3197
    %v3203 = vadd.s32 %v3202, 127
    %v3204 = vshll.u32 %v3203, 23
    %v3205 = vor.u32 4788187, %v3204
    %v3206 = vand.u32 2147483647, %v3205
    %v3208 = vcvt.s32.f32 %v3201
    %v3209 = vmul.f32 %v3208, %v3206
    %v3210 = vxor.u32 %v3209, 2147483648
    %v3211 = vsel %vm3128, %v3210, %v3209
    %v3212 = vsub.s32 4, %v3188
    %v3213 = vsel %vm3128, %v3212, %v3188
    %v3214 = vsel %vm3127, %v324, %v3211
    %v3215 = vsel %vm3127, 0, %v3213
    %v3216 = vcosq.f32.pop %v3214
    %v3217 = vsinq.f32.pop %v3214
    %vm3218 = vweird.f32 %v324
    %v3219 = vand.u32 %v3215, 3
    %vm3220 = vcmp.lt.s32.totalorder %v3219, 2
    %vm3221 = vcmp.eq.s32.totalorder %v3219, 0
    %v3222 = vxor.u32 %v3217, 2147483648
    %v3223 = vsel %vm3221, %v3216, %v3222
    %vm3224 = vcmp.eq.s32.totalorder %v3219, 2
    %v3225 = vxor.u32 %v3216, 2147483648
    %v3226 = vsel %vm3224, %v3225, %v3217
    %v3227 = vsel %vm3220, %v3223, %v3226
    %v3228 = vsel %vm3218, nan, %v3227
    %v3229 = vand.u32 2147483647, %v325
    %vm3230 = vcmp.le.f32.partialorder %v3229, 0.7853982
    %vm3231 = vcmp.lt.s32.totalorder %v325, 0
    %v3232 = vand.u32 %v325, 2139095040
    %v3233 = vshrl.u32 %v3232, 23
    %v3234 = vsub.s32 %v3233, 127
    %v3235 = vand.u32 2147483647, %v325
    %v3236 = vand.u32 %v3235, 8388607
    %v3237 = vor.u32 %v3236, 8388608
    %v3238 = vsub.s32 0, %v3237
    %v3239 = vadd.s32 %v3234, 1
    %vm3240 = vcmp.gt.s32.totalorder %v3239, 0
    %v3241 = vsel %vm3240, %v3239, 0
    %v3242 = vshrl.u32 %v3241, 5
    %v3243 = vand.u32 %v3241, 31
    %v3244 = vsub.s32 32, %v3243
    %v3245 = vshrl.u32 683565275, %v3244
    %v3246 = vshll.u32 683565275, %v3243
    %v3247 = vshrl.u32 2475754826, %v3244
    %v3248 = vor.u32 %v3246, %v3247
    %v3249 = vshll.u32 2475754826, %v3243
    %v3250 = vshrl.u32 2131351028, %v3244
    %v3251 = vor.u32 %v3249, %v3250
    %v3252 = vshll.u32 2131351028, %v3243
    %v3253 = vshrl.u32 2102212464, %v3244
    %v3254 = vor.u32 %v3252, %v3253
    %v3255 = vshll.u32 2102212464, %v3243
    %v3256 = vshrl.u32 920167782, %v3244
    %v3257 = vor.u32 %v3255, %v3256
    %v3258 = vshll.u32 920167782, %v3243
    %v3259 = vshrl.u32 1326507024, %v3244
    %v3260 = vor.u32 %v3258, %v3259
    %vm3261 = vcmp.lt.s32.totalorder %v3242, 1
    %vm3262 = vcmp.lt.s32.totalorder %v3242, 2
    %vm3263 = vcmp.lt.s32.totalorder %v3242, 3
    %vm3264 = vcmp.lt.s32.totalorder %v3242, 4
    %v3265 = vsel %vm3261, %v3245, %v3248
    %v3266 = vsel %vm3264, %v3254, 2102212464
    %v3267 = vsel %vm3263, %v3251, %v3266
    %v3268 = vsel %vm3262, %v3265, %v3267
    %v3269 = vsel %vm3261, %v3248, %v3251
    %v3270 = vsel %vm3264, %v3257, 920167782
    %v3271 = vsel %vm3263, %v3254, %v3270
    %v3272 = vsel %vm3262, %v3269, %v3271
    %v3273 = vsel %vm3261, %v3251, %v3254
    %v3274 = vsel %vm3264, %v3260, 1326507024
    %v3275 = vsel %vm3263, %v3257, %v3274
    %v3276 = vsel %vm3262, %v3273, %v3275
    %v3277 = vshll.u32 %v3237, 8
    %v3278 = vmul.u32.u64.compose %v3277, %v3276
    %v3279 = vextract.low.u32 %v3278
    %v3280 = vextract.high.u32 %v3278
    %v3281 = vmul.u32.u64.compose %v3277, %v3272
    %v3282 = vextract.low.u32 %v3281
    %v3283 = vextract.high.u32 %v3281
    %v3284 = vmul.u32 %v3277, %v3268
    %v3285 = vadd.s32 %v3280, %v3282
    %vm3286 = vc.u32 %v3280, %v3282
    %v3287 = vadd.s32 %v3283, 1
    %v3288 = vsel %vm3286, %v3287, %v3283
    %v3289 = vadd.s32 %v3284, %v3288
    %v3290 = vadd.s32 %v3289, 536870912
    %v3291 = vshrl.u32 %v3290, 30
    %v3292 = vshll.u32 %v3291, 30
    %v3293 = vsub.s32 %v3289, %v3292
    %vm3294 = vcmp.lt.s32.totalorder %v3293, 0
    %v3295 = vsub.s32 0, %v3293
    %v3296 = vsel %vm3294, %v3295, %v3293
    %v3297 = vclz %v3296
    %v3298 = vsub.s32 %v3297, 2
    %vm3299 = vcmp.gt.s32.totalorder 0, %v3298
    %v3300 = vsel %vm3299, 0, %v3298
    %v3301 = vsub.s32 32, %v3300
    %v3302 = vshll.u32 %v3293, %v3300
    %v3303 = vshrl.u32 %v3285, %v3301
    %v3304 = vor.u32 %v3302, %v3303
    %v3305 = vsub.s32 4294967266, %v3300
    %v3306 = vadd.s32 %v3305, 127
    %v3307 = vshll.u32 %v3306, 23
    %v3308 = vor.u32 4788187, %v3307
    %v3309 = vand.u32 2147483647, %v3308
    %v3311 = vcvt.s32.f32 %v3304
    %v3312 = vmul.f32 %v3311, %v3309
    %v3313 = vxor.u32 %v3312, 2147483648
    %v3314 = vsel %vm3231, %v3313, %v3312
    %v3315 = vsub.s32 4, %v3291
    %v3316 = vsel %vm3231, %v3315, %v3291
    %v3317 = vsel %vm3230, %v325, %v3314
    %v3318 = vsel %vm3230, 0, %v3316
    %v3319 = vcosq.f32.pop %v3317
    %v3320 = vsinq.f32.pop %v3317
    %vm3321 = vweird.f32 %v325
    %v3322 = vand.u32 %v3318, 3
    %vm3323 = vcmp.lt.s32.totalorder %v3322, 2
    %vm3324 = vcmp.eq.s32.totalorder %v3322, 0
    %v3325 = vxor.u32 %v3320, 2147483648
    %v3326 = vsel %vm3324, %v3319, %v3325
    %vm3327 = vcmp.eq.s32.totalorder %v3322, 2
    %v3328 = vxor.u32 %v3319, 2147483648
    %v3329 = vsel %vm3327, %v3328, %v3320
    %v3330 = vsel %vm3323, %v3326, %v3329
    %v3331 = vsel %vm3321, nan, %v3330
    %v3332 = vand.u32 2147483647, %v326
    %vm3333 = vcmp.le.f32.partialorder %v3332, 0.7853982
    %vm3334 = vcmp.lt.s32.totalorder %v326, 0
    %v3335 = vand.u32 %v326, 2139095040
    %v3336 = vshrl.u32 %v3335, 23
    %v3337 = vsub.s32 %v3336, 127
    %v3338 = vand.u32 2147483647, %v326
    %v3339 = vand.u32 %v3338, 8388607
    %v3340 = vor.u32 %v3339, 8388608
    %v3341 = vsub.s32 0, %v3340
    %v3342 = vadd.s32 %v3337, 1
    %vm3343 = vcmp.gt.s32.totalorder %v3342, 0
    %v3344 = vsel %vm3343, %v3342, 0
    %v3345 = vshrl.u32 %v3344, 5
    %v3346 = vand.u32 %v3344, 31
    %v3347 = vsub.s32 32, %v3346
    %v3348 = vshrl.u32 683565275, %v3347
    %v3349 = vshll.u32 683565275, %v3346
    %v3350 = vshrl.u32 2475754826, %v3347
    %v3351 = vor.u32 %v3349, %v3350
    %v3352 = vshll.u32 2475754826, %v3346
    %v3353 = vshrl.u32 2131351028, %v3347
    %v3354 = vor.u32 %v3352, %v3353
    %v3355 = vshll.u32 2131351028, %v3346
    %v3356 = vshrl.u32 2102212464, %v3347
    %v3357 = vor.u32 %v3355, %v3356
    %v3358 = vshll.u32 2102212464, %v3346
    %v3359 = vshrl.u32 920167782, %v3347
    %v3360 = vor.u32 %v3358, %v3359
    %v3361 = vshll.u32 920167782, %v3346
    %v3362 = vshrl.u32 1326507024, %v3347
    %v3363 = vor.u32 %v3361, %v3362
    %vm3364 = vcmp.lt.s32.totalorder %v3345, 1
    %vm3365 = vcmp.lt.s32.totalorder %v3345, 2
    %vm3366 = vcmp.lt.s32.totalorder %v3345, 3
    %vm3367 = vcmp.lt.s32.totalorder %v3345, 4
    %v3368 = vsel %vm3364, %v3348, %v3351
    %v3369 = vsel %vm3367, %v3357, 2102212464
    %v3370 = vsel %vm3366, %v3354, %v3369
    %v3371 = vsel %vm3365, %v3368, %v3370
    %v3372 = vsel %vm3364, %v3351, %v3354
    %v3373 = vsel %vm3367, %v3360, 920167782
    %v3374 = vsel %vm3366, %v3357, %v3373
    %v3375 = vsel %vm3365, %v3372, %v3374
    %v3376 = vsel %vm3364, %v3354, %v3357
    %v3377 = vsel %vm3367, %v3363, 1326507024
    %v3378 = vsel %vm3366, %v3360, %v3377
    %v3379 = vsel %vm3365, %v3376, %v3378
    %v3380 = vshll.u32 %v3340, 8
    %v3381 = vmul.u32.u64.compose %v3380, %v3379
    %v3382 = vextract.low.u32 %v3381
    %v3383 = vextract.high.u32 %v3381
    %v3384 = vmul.u32.u64.compose %v3380, %v3375
    %v3385 = vextract.low.u32 %v3384
    %v3386 = vextract.high.u32 %v3384
    %v3387 = vmul.u32 %v3380, %v3371
    %v3388 = vadd.s32 %v3383, %v3385
    %vm3389 = vc.u32 %v3383, %v3385
    %v3390 = vadd.s32 %v3386, 1
    %v3391 = vsel %vm3389, %v3390, %v3386
    %v3392 = vadd.s32 %v3387, %v3391
    %v3393 = vadd.s32 %v3392, 536870912
    %v3394 = vshrl.u32 %v3393, 30
    %v3395 = vshll.u32 %v3394, 30
    %v3396 = vsub.s32 %v3392, %v3395
    %vm3397 = vcmp.lt.s32.totalorder %v3396, 0
    %v3398 = vsub.s32 0, %v3396
    %v3399 = vsel %vm3397, %v3398, %v3396
    %v3400 = vclz %v3399
    %v3401 = vsub.s32 %v3400, 2
    %vm3402 = vcmp.gt.s32.totalorder 0, %v3401
    %v3403 = vsel %vm3402, 0, %v3401
    %v3404 = vsub.s32 32, %v3403
    %v3405 = vshll.u32 %v3396, %v3403
    %v3406 = vshrl.u32 %v3388, %v3404
    %v3407 = vor.u32 %v3405, %v3406
    %v3408 = vsub.s32 4294967266, %v3403
    %v3409 = vadd.s32 %v3408, 127
    %v3410 = vshll.u32 %v3409, 23
    %v3411 = vor.u32 4788187, %v3410
    %v3412 = vand.u32 2147483647, %v3411
    %v3414 = vcvt.s32.f32 %v3407
    %v3415 = vmul.f32 %v3414, %v3412
    %v3416 = vxor.u32 %v3415, 2147483648
    %v3417 = vsel %vm3334, %v3416, %v3415
    %v3418 = vsub.s32 4, %v3394
    %v3419 = vsel %vm3334, %v3418, %v3394
    %v3420 = vsel %vm3333, %v326, %v3417
    %v3421 = vsel %vm3333, 0, %v3419
    %v3422 = vcosq.f32.pop %v3420
    %v3423 = vsinq.f32.pop %v3420
    %vm3424 = vweird.f32 %v326
    %v3425 = vand.u32 %v3421, 3
    %vm3426 = vcmp.lt.s32.totalorder %v3425, 2
    %vm3427 = vcmp.eq.s32.totalorder %v3425, 0
    %v3428 = vxor.u32 %v3423, 2147483648
    %v3429 = vsel %vm3427, %v3422, %v3428
    %vm3430 = vcmp.eq.s32.totalorder %v3425, 2
    %v3431 = vxor.u32 %v3422, 2147483648
    %v3432 = vsel %vm3430, %v3431, %v3423
    %v3433 = vsel %vm3426, %v3429, %v3432
    %v3434 = vsel %vm3424, nan, %v3433
    %v3435 = vand.u32 2147483647, %v327
    %vm3436 = vcmp.le.f32.partialorder %v3435, 0.7853982
    %vm3437 = vcmp.lt.s32.totalorder %v327, 0
    %v3438 = vand.u32 %v327, 2139095040
    %v3439 = vshrl.u32 %v3438, 23
    %v3440 = vsub.s32 %v3439, 127
    %v3441 = vand.u32 2147483647, %v327
    %v3442 = vand.u32 %v3441, 8388607
    %v3443 = vor.u32 %v3442, 8388608
    %v3444 = vsub.s32 0, %v3443
    %v3445 = vadd.s32 %v3440, 1
    %vm3446 = vcmp.gt.s32.totalorder %v3445, 0
    %v3447 = vsel %vm3446, %v3445, 0
    %v3448 = vshrl.u32 %v3447, 5
    %v3449 = vand.u32 %v3447, 31
    %v3450 = vsub.s32 32, %v3449
    %v3451 = vshrl.u32 683565275, %v3450
    %v3452 = vshll.u32 683565275, %v3449
    %v3453 = vshrl.u32 2475754826, %v3450
    %v3454 = vor.u32 %v3452, %v3453
    %v3455 = vshll.u32 2475754826, %v3449
    %v3456 = vshrl.u32 2131351028, %v3450
    %v3457 = vor.u32 %v3455, %v3456
    %v3458 = vshll.u32 2131351028, %v3449
    %v3459 = vshrl.u32 2102212464, %v3450
    %v3460 = vor.u32 %v3458, %v3459
    %v3461 = vshll.u32 2102212464, %v3449
    %v3462 = vshrl.u32 920167782, %v3450
    %v3463 = vor.u32 %v3461, %v3462
    %v3464 = vshll.u32 920167782, %v3449
    %v3465 = vshrl.u32 1326507024, %v3450
    %v3466 = vor.u32 %v3464, %v3465
    %vm3467 = vcmp.lt.s32.totalorder %v3448, 1
    %vm3468 = vcmp.lt.s32.totalorder %v3448, 2
    %vm3469 = vcmp.lt.s32.totalorder %v3448, 3
    %vm3470 = vcmp.lt.s32.totalorder %v3448, 4
    %v3471 = vsel %vm3467, %v3451, %v3454
    %v3472 = vsel %vm3470, %v3460, 2102212464
    %v3473 = vsel %vm3469, %v3457, %v3472
    %v3474 = vsel %vm3468, %v3471, %v3473
    %v3475 = vsel %vm3467, %v3454, %v3457
    %v3476 = vsel %vm3470, %v3463, 920167782
    %v3477 = vsel %vm3469, %v3460, %v3476
    %v3478 = vsel %vm3468, %v3475, %v3477
    %v3479 = vsel %vm3467, %v3457, %v3460
    %v3480 = vsel %vm3470, %v3466, 1326507024
    %v3481 = vsel %vm3469, %v3463, %v3480
    %v3482 = vsel %vm3468, %v3479, %v3481
    %v3483 = vshll.u32 %v3443, 8
    %v3484 = vmul.u32.u64.compose %v3483, %v3482
    %v3485 = vextract.low.u32 %v3484
    %v3486 = vextract.high.u32 %v3484
    %v3487 = vmul.u32.u64.compose %v3483, %v3478
    %v3488 = vextract.low.u32 %v3487
    %v3489 = vextract.high.u32 %v3487
    %v3490 = vmul.u32 %v3483, %v3474
    %v3491 = vadd.s32 %v3486, %v3488
    %vm3492 = vc.u32 %v3486, %v3488
    %v3493 = vadd.s32 %v3489, 1
    %v3494 = vsel %vm3492, %v3493, %v3489
    %v3495 = vadd.s32 %v3490, %v3494
    %v3496 = vadd.s32 %v3495, 536870912
    %v3497 = vshrl.u32 %v3496, 30
    %v3498 = vshll.u32 %v3497, 30
    %v3499 = vsub.s32 %v3495, %v3498
    %vm3500 = vcmp.lt.s32.totalorder %v3499, 0
    %v3501 = vsub.s32 0, %v3499
    %v3502 = vsel %vm3500, %v3501, %v3499
    %v3503 = vclz %v3502
    %v3504 = vsub.s32 %v3503, 2
    %vm3505 = vcmp.gt.s32.totalorder 0, %v3504
    %v3506 = vsel %vm3505, 0, %v3504
    %v3507 = vsub.s32 32, %v3506
    %v3508 = vshll.u32 %v3499, %v3506
    %v3509 = vshrl.u32 %v3491, %v3507
    %v3510 = vor.u32 %v3508, %v3509
    %v3511 = vsub.s32 4294967266, %v3506
    %v3512 = vadd.s32 %v3511, 127
    %v3513 = vshll.u32 %v3512, 23
    %v3514 = vor.u32 4788187, %v3513
    %v3515 = vand.u32 2147483647, %v3514
    %v3517 = vcvt.s32.f32 %v3510
    %v3518 = vmul.f32 %v3517, %v3515
    %v3519 = vxor.u32 %v3518, 2147483648
    %v3520 = vsel %vm3437, %v3519, %v3518
    %v3521 = vsub.s32 4, %v3497
    %v3522 = vsel %vm3437, %v3521, %v3497
    %v3523 = vsel %vm3436, %v327, %v3520
    %v3524 = vsel %vm3436, 0, %v3522
    %v3525 = vcosq.f32.pop %v3523
    %v3526 = vsinq.f32.pop %v3523
    %vm3527 = vweird.f32 %v327
    %v3528 = vand.u32 %v3524, 3
    %vm3529 = vcmp.lt.s32.totalorder %v3528, 2
    %vm3530 = vcmp.eq.s32.totalorder %v3528, 0
    %v3531 = vxor.u32 %v3526, 2147483648
    %v3532 = vsel %vm3530, %v3525, %v3531
    %vm3533 = vcmp.eq.s32.totalorder %v3528, 2
    %v3534 = vxor.u32 %v3525, 2147483648
    %v3535 = vsel %vm3533, %v3534, %v3526
    %v3536 = vsel %vm3529, %v3532, %v3535
    %v3537 = vsel %vm3527, nan, %v3536
    %v3538 = vand.u32 2147483647, %v328
    %vm3539 = vcmp.le.f32.partialorder %v3538, 0.7853982
    %vm3540 = vcmp.lt.s32.totalorder %v328, 0
    %v3541 = vand.u32 %v328, 2139095040
    %v3542 = vshrl.u32 %v3541, 23
    %v3543 = vsub.s32 %v3542, 127
    %v3544 = vand.u32 2147483647, %v328
    %v3545 = vand.u32 %v3544, 8388607
    %v3546 = vor.u32 %v3545, 8388608
    %v3547 = vsub.s32 0, %v3546
    %v3548 = vadd.s32 %v3543, 1
    %vm3549 = vcmp.gt.s32.totalorder %v3548, 0
    %v3550 = vsel %vm3549, %v3548, 0
    %v3551 = vshrl.u32 %v3550, 5
    %v3552 = vand.u32 %v3550, 31
    %v3553 = vsub.s32 32, %v3552
    %v3554 = vshrl.u32 683565275, %v3553
    %v3555 = vshll.u32 683565275, %v3552
    %v3556 = vshrl.u32 2475754826, %v3553
    %v3557 = vor.u32 %v3555, %v3556
    %v3558 = vshll.u32 2475754826, %v3552
    %v3559 = vshrl.u32 2131351028, %v3553
    %v3560 = vor.u32 %v3558, %v3559
    %v3561 = vshll.u32 2131351028, %v3552
    %v3562 = vshrl.u32 2102212464, %v3553
    %v3563 = vor.u32 %v3561, %v3562
    %v3564 = vshll.u32 2102212464, %v3552
    %v3565 = vshrl.u32 920167782, %v3553
    %v3566 = vor.u32 %v3564, %v3565
    %v3567 = vshll.u32 920167782, %v3552
    %v3568 = vshrl.u32 1326507024, %v3553
    %v3569 = vor.u32 %v3567, %v3568
    %vm3570 = vcmp.lt.s32.totalorder %v3551, 1
    %vm3571 = vcmp.lt.s32.totalorder %v3551, 2
    %vm3572 = vcmp.lt.s32.totalorder %v3551, 3
    %vm3573 = vcmp.lt.s32.totalorder %v3551, 4
    %v3574 = vsel %vm3570, %v3554, %v3557
    %v3575 = vsel %vm3573, %v3563, 2102212464
    %v3576 = vsel %vm3572, %v3560, %v3575
    %v3577 = vsel %vm3571, %v3574, %v3576
    %v3578 = vsel %vm3570, %v3557, %v3560
    %v3579 = vsel %vm3573, %v3566, 920167782
    %v3580 = vsel %vm3572, %v3563, %v3579
    %v3581 = vsel %vm3571, %v3578, %v3580
    %v3582 = vsel %vm3570, %v3560, %v3563
    %v3583 = vsel %vm3573, %v3569, 1326507024
    %v3584 = vsel %vm3572, %v3566, %v3583
    %v3585 = vsel %vm3571, %v3582, %v3584
    %v3586 = vshll.u32 %v3546, 8
    %v3587 = vmul.u32.u64.compose %v3586, %v3585
    %v3588 = vextract.low.u32 %v3587
    %v3589 = vextract.high.u32 %v3587
    %v3590 = vmul.u32.u64.compose %v3586, %v3581
    %v3591 = vextract.low.u32 %v3590
    %v3592 = vextract.high.u32 %v3590
    %v3593 = vmul.u32 %v3586, %v3577
    %v3594 = vadd.s32 %v3589, %v3591
    %vm3595 = vc.u32 %v3589, %v3591
    %v3596 = vadd.s32 %v3592, 1
    %v3597 = vsel %vm3595, %v3596, %v3592
    %v3598 = vadd.s32 %v3593, %v3597
    %v3599 = vadd.s32 %v3598, 536870912
    %v3600 = vshrl.u32 %v3599, 30
    %v3601 = vshll.u32 %v3600, 30
    %v3602 = vsub.s32 %v3598, %v3601
    %vm3603 = vcmp.lt.s32.totalorder %v3602, 0
    %v3604 = vsub.s32 0, %v3602
    %v3605 = vsel %vm3603, %v3604, %v3602
    %v3606 = vclz %v3605
    %v3607 = vsub.s32 %v3606, 2
    %vm3608 = vcmp.gt.s32.totalorder 0, %v3607
    %v3609 = vsel %vm3608, 0, %v3607
    %v3610 = vsub.s32 32, %v3609
    %v3611 = vshll.u32 %v3602, %v3609
    %v3612 = vshrl.u32 %v3594, %v3610
    %v3613 = vor.u32 %v3611, %v3612
    %v3614 = vsub.s32 4294967266, %v3609
    %v3615 = vadd.s32 %v3614, 127
    %v3616 = vshll.u32 %v3615, 23
    %v3617 = vor.u32 4788187, %v3616
    %v3618 = vand.u32 2147483647, %v3617
    %v3620 = vcvt.s32.f32 %v3613
    %v3621 = vmul.f32 %v3620, %v3618
    %v3622 = vxor.u32 %v3621, 2147483648
    %v3623 = vsel %vm3540, %v3622, %v3621
    %v3624 = vsub.s32 4, %v3600
    %v3625 = vsel %vm3540, %v3624, %v3600
    %v3626 = vsel %vm3539, %v328, %v3623
    %v3627 = vsel %vm3539, 0, %v3625
    %v3628 = vcosq.f32.pop %v3626
    %v3629 = vsinq.f32.pop %v3626
    %vm3630 = vweird.f32 %v328
    %v3631 = vand.u32 %v3627, 3
    %vm3632 = vcmp.lt.s32.totalorder %v3631, 2
    %vm3633 = vcmp.eq.s32.totalorder %v3631, 0
    %v3634 = vxor.u32 %v3629, 2147483648
    %v3635 = vsel %vm3633, %v3628, %v3634
    %vm3636 = vcmp.eq.s32.totalorder %v3631, 2
    %v3637 = vxor.u32 %v3628, 2147483648
    %v3638 = vsel %vm3636, %v3637, %v3629
    %v3639 = vsel %vm3632, %v3635, %v3638
    %v3640 = vsel %vm3630, nan, %v3639
    %3641 = vset.pattern.permute.xlu0 7
    %3642 = vperm.xlu0 %3641, %v12
    %v3643 = vpop.permute.xlu0 %3642
    %3645 = vset.pattern.permute.xlu0 7
    %3646 = vperm.xlu0 %3645, %v13
    %v3647 = vpop.permute.xlu0 %3646
    %3649 = vset.pattern.permute.xlu0 7
    %3650 = vperm.xlu0 %3649, %v14
    %v3651 = vpop.permute.xlu0 %3650
    %3653 = vset.pattern.permute.xlu0 7
    %3654 = vperm.xlu0 %3653, %v15
    %v3655 = vpop.permute.xlu0 %3654
    %3657 = vset.pattern.permute.xlu0 7
    %3658 = vperm.xlu0 %3657, %v16
    %v3659 = vpop.permute.xlu0 %3658
    %3661 = vset.pattern.permute.xlu0 7
    %3662 = vperm.xlu0 %3661, %v17
    %v3663 = vpop.permute.xlu0 %3662
    %3665 = vset.pattern.permute.xlu0 7
    %3666 = vperm.xlu0 %3665, %v18
    %v3667 = vpop.permute.xlu0 %3666
    %3669 = vset.pattern.permute.xlu0 7
    %3670 = vperm.xlu0 %3669, %v19
    %v3671 = vpop.permute.xlu0 %3670
    %3673 = vset.pattern.permute.xlu0 7
    %3674 = vperm.xlu0 %3673, %v20
    %v3675 = vpop.permute.xlu0 %3674
    %3677 = vset.pattern.permute.xlu0 7
    %3678 = vperm.xlu0 %3677, %v21
    %v3679 = vpop.permute.xlu0 %3678
    %3681 = vset.pattern.permute.xlu0 7
    %3682 = vperm.xlu0 %3681, %v22
    %v3683 = vpop.permute.xlu0 %3682
    %3685 = vset.pattern.permute.xlu0 7
    %3686 = vperm.xlu0 %3685, %v23
    %v3687 = vpop.permute.xlu0 %3686
    %3689 = vset.pattern.permute.xlu0 7
    %3690 = vperm.xlu0 %3689, %v24
    %v3691 = vpop.permute.xlu0 %3690
    %3693 = vset.pattern.permute.xlu0 7
    %3694 = vperm.xlu0 %3693, %v25
    %v3695 = vpop.permute.xlu0 %3694
    %3697 = vset.pattern.permute.xlu0 7
    %3698 = vperm.xlu0 %3697, %v26
    %v3699 = vpop.permute.xlu0 %3698
    %3701 = vset.pattern.permute.xlu0 7
    %3702 = vperm.xlu0 %3701, %v27
    %v3703 = vpop.permute.xlu0 %3702
    %v3705 = vmul.f32 %v3643, %v112
    %v3706 = vmul.f32 %v3647, %v112
    %v3707 = vmul.f32 %v3651, %v112
    %v3708 = vmul.f32 %v3655, %v112
    %v3709 = vmul.f32 %v3659, %v112
    %v3710 = vmul.f32 %v3663, %v112
    %v3711 = vmul.f32 %v3667, %v112
    %v3712 = vmul.f32 %v3671, %v112
    %v3713 = vmul.f32 %v3675, %v112
    %v3714 = vmul.f32 %v3679, %v112
    %v3715 = vmul.f32 %v3683, %v112
    %v3716 = vmul.f32 %v3687, %v112
    %v3717 = vmul.f32 %v3691, %v112
    %v3718 = vmul.f32 %v3695, %v112
    %v3719 = vmul.f32 %v3699, %v112
    %v3720 = vmul.f32 %v3703, %v112
    %3721 = vset.pattern.permute.xlu0 8
    %3722 = vperm.xlu0 %3721, %v12
    %v3723 = vpop.permute.xlu0 %3722
    %3725 = vset.pattern.permute.xlu0 8
    %3726 = vperm.xlu0 %3725, %v13
    %v3727 = vpop.permute.xlu0 %3726
    %3729 = vset.pattern.permute.xlu0 8
    %3730 = vperm.xlu0 %3729, %v14
    %v3731 = vpop.permute.xlu0 %3730
    %3733 = vset.pattern.permute.xlu0 8
    %3734 = vperm.xlu0 %3733, %v15
    %v3735 = vpop.permute.xlu0 %3734
    %3737 = vset.pattern.permute.xlu0 8
    %3738 = vperm.xlu0 %3737, %v16
    %v3739 = vpop.permute.xlu0 %3738
    %3741 = vset.pattern.permute.xlu0 8
    %3742 = vperm.xlu0 %3741, %v17
    %v3743 = vpop.permute.xlu0 %3742
    %3745 = vset.pattern.permute.xlu0 8
    %3746 = vperm.xlu0 %3745, %v18
    %v3747 = vpop.permute.xlu0 %3746
    %3749 = vset.pattern.permute.xlu0 8
    %3750 = vperm.xlu0 %3749, %v19
    %v3751 = vpop.permute.xlu0 %3750
    %3753 = vset.pattern.permute.xlu0 8
    %3754 = vperm.xlu0 %3753, %v20
    %v3755 = vpop.permute.xlu0 %3754
    %3757 = vset.pattern.permute.xlu0 8
    %3758 = vperm.xlu0 %3757, %v21
    %v3759 = vpop.permute.xlu0 %3758
    %3761 = vset.pattern.permute.xlu0 8
    %3762 = vperm.xlu0 %3761, %v22
    %v3763 = vpop.permute.xlu0 %3762
    %3765 = vset.pattern.permute.xlu0 8
    %3766 = vperm.xlu0 %3765, %v23
    %v3767 = vpop.permute.xlu0 %3766
    %3769 = vset.pattern.permute.xlu0 8
    %3770 = vperm.xlu0 %3769, %v24
    %v3771 = vpop.permute.xlu0 %3770
    %3773 = vset.pattern.permute.xlu0 8
    %3774 = vperm.xlu0 %3773, %v25
    %v3775 = vpop.permute.xlu0 %3774
    %3777 = vset.pattern.permute.xlu0 8
    %3778 = vperm.xlu0 %3777, %v26
    %v3779 = vpop.permute.xlu0 %3778
    %3781 = vset.pattern.permute.xlu0 8
    %3782 = vperm.xlu0 %3781, %v27
    %v3783 = vpop.permute.xlu0 %3782
    %v3785 = vmul.f32 %v3723, %v196
    %v3786 = vmul.f32 %v3727, %v196
    %v3787 = vmul.f32 %v3731, %v196
    %v3788 = vmul.f32 %v3735, %v196
    %v3789 = vmul.f32 %v3739, %v196
    %v3790 = vmul.f32 %v3743, %v196
    %v3791 = vmul.f32 %v3747, %v196
    %v3792 = vmul.f32 %v3751, %v196
    %v3793 = vmul.f32 %v3755, %v196
    %v3794 = vmul.f32 %v3759, %v196
    %v3795 = vmul.f32 %v3763, %v196
    %v3796 = vmul.f32 %v3767, %v196
    %v3797 = vmul.f32 %v3771, %v196
    %v3798 = vmul.f32 %v3775, %v196
    %v3799 = vmul.f32 %v3779, %v196
    %v3800 = vmul.f32 %v3783, %v196
    %v3801 = vadd.f32 %v3705, %v3785
    %v3802 = vadd.f32 %v3706, %v3786
    %v3803 = vadd.f32 %v3707, %v3787
    %v3804 = vadd.f32 %v3708, %v3788
    %v3805 = vadd.f32 %v3709, %v3789
    %v3806 = vadd.f32 %v3710, %v3790
    %v3807 = vadd.f32 %v3711, %v3791
    %v3808 = vadd.f32 %v3712, %v3792
    %v3809 = vadd.f32 %v3713, %v3793
    %v3810 = vadd.f32 %v3714, %v3794
    %v3811 = vadd.f32 %v3715, %v3795
    %v3812 = vadd.f32 %v3716, %v3796
    %v3813 = vadd.f32 %v3717, %v3797
    %v3814 = vadd.f32 %v3718, %v3798
    %v3815 = vadd.f32 %v3719, %v3799
    %v3816 = vadd.f32 %v3720, %v3800
    %3817 = vset.pattern.permute.xlu0 9
    %3818 = vperm.xlu0 %3817, %v12
    %v3819 = vpop.permute.xlu0 %3818
    %3821 = vset.pattern.permute.xlu0 9
    %3822 = vperm.xlu0 %3821, %v13
    %v3823 = vpop.permute.xlu0 %3822
    %3825 = vset.pattern.permute.xlu0 9
    %3826 = vperm.xlu0 %3825, %v14
    %v3827 = vpop.permute.xlu0 %3826
    %3829 = vset.pattern.permute.xlu0 9
    %3830 = vperm.xlu0 %3829, %v15
    %v3831 = vpop.permute.xlu0 %3830
    %3833 = vset.pattern.permute.xlu0 9
    %3834 = vperm.xlu0 %3833, %v16
    %v3835 = vpop.permute.xlu0 %3834
    %3837 = vset.pattern.permute.xlu0 9
    %3838 = vperm.xlu0 %3837, %v17
    %v3839 = vpop.permute.xlu0 %3838
    %3841 = vset.pattern.permute.xlu0 9
    %3842 = vperm.xlu0 %3841, %v18
    %v3843 = vpop.permute.xlu0 %3842
    %3845 = vset.pattern.permute.xlu0 9
    %3846 = vperm.xlu0 %3845, %v19
    %v3847 = vpop.permute.xlu0 %3846
    %3849 = vset.pattern.permute.xlu0 9
    %3850 = vperm.xlu0 %3849, %v20
    %v3851 = vpop.permute.xlu0 %3850
    %3853 = vset.pattern.permute.xlu0 9
    %3854 = vperm.xlu0 %3853, %v21
    %v3855 = vpop.permute.xlu0 %3854
    %3857 = vset.pattern.permute.xlu0 9
    %3858 = vperm.xlu0 %3857, %v22
    %v3859 = vpop.permute.xlu0 %3858
    %3861 = vset.pattern.permute.xlu0 9
    %3862 = vperm.xlu0 %3861, %v23
    %v3863 = vpop.permute.xlu0 %3862
    %3865 = vset.pattern.permute.xlu0 9
    %3866 = vperm.xlu0 %3865, %v24
    %v3867 = vpop.permute.xlu0 %3866
    %3869 = vset.pattern.permute.xlu0 9
    %3870 = vperm.xlu0 %3869, %v25
    %v3871 = vpop.permute.xlu0 %3870
    %3873 = vset.pattern.permute.xlu0 9
    %3874 = vperm.xlu0 %3873, %v26
    %v3875 = vpop.permute.xlu0 %3874
    %3877 = vset.pattern.permute.xlu0 9
    %3878 = vperm.xlu0 %3877, %v27
    %v3879 = vpop.permute.xlu0 %3878
    %v3881 = vmul.f32 %v3819, %v296
    %v3882 = vmul.f32 %v3823, %v296
    %v3883 = vmul.f32 %v3827, %v296
    %v3884 = vmul.f32 %v3831, %v296
    %v3885 = vmul.f32 %v3835, %v296
    %v3886 = vmul.f32 %v3839, %v296
    %v3887 = vmul.f32 %v3843, %v296
    %v3888 = vmul.f32 %v3847, %v296
    %v3889 = vmul.f32 %v3851, %v296
    %v3890 = vmul.f32 %v3855, %v296
    %v3891 = vmul.f32 %v3859, %v296
    %v3892 = vmul.f32 %v3863, %v296
    %v3893 = vmul.f32 %v3867, %v296
    %v3894 = vmul.f32 %v3871, %v296
    %v3895 = vmul.f32 %v3875, %v296
    %v3896 = vmul.f32 %v3879, %v296
    %v3897 = vadd.f32 %v3801, %v3881
    %v3898 = vadd.f32 %v3802, %v3882
    %v3899 = vadd.f32 %v3803, %v3883
    %v3900 = vadd.f32 %v3804, %v3884
    %v3901 = vadd.f32 %v3805, %v3885
    %v3902 = vadd.f32 %v3806, %v3886
    %v3903 = vadd.f32 %v3807, %v3887
    %v3904 = vadd.f32 %v3808, %v3888
    %v3905 = vadd.f32 %v3809, %v3889
    %v3906 = vadd.f32 %v3810, %v3890
    %v3907 = vadd.f32 %v3811, %v3891
    %v3908 = vadd.f32 %v3812, %v3892
    %v3909 = vadd.f32 %v3813, %v3893
    %v3910 = vadd.f32 %v3814, %v3894
    %v3911 = vadd.f32 %v3815, %v3895
    %v3912 = vadd.f32 %v3816, %v3896
    %v3913 = vand.u32 2147483647, %v3897
    %vm3914 = vcmp.le.f32.partialorder %v3913, 0.7853982
    %vm3915 = vcmp.lt.s32.totalorder %v3897, 0
    %v3916 = vand.u32 %v3897, 2139095040
    %v3917 = vshrl.u32 %v3916, 23
    %v3918 = vsub.s32 %v3917, 127
    %v3919 = vand.u32 2147483647, %v3897
    %v3920 = vand.u32 %v3919, 8388607
    %v3921 = vor.u32 %v3920, 8388608
    %v3922 = vsub.s32 0, %v3921
    %v3923 = vadd.s32 %v3918, 1
    %vm3924 = vcmp.gt.s32.totalorder %v3923, 0
    %v3925 = vsel %vm3924, %v3923, 0
    %v3926 = vshrl.u32 %v3925, 5
    %v3927 = vand.u32 %v3925, 31
    %v3928 = vsub.s32 32, %v3927
    %v3929 = vshrl.u32 683565275, %v3928
    %v3930 = vshll.u32 683565275, %v3927
    %v3931 = vshrl.u32 2475754826, %v3928
    %v3932 = vor.u32 %v3930, %v3931
    %v3933 = vshll.u32 2475754826, %v3927
    %v3934 = vshrl.u32 2131351028, %v3928
    %v3935 = vor.u32 %v3933, %v3934
    %v3936 = vshll.u32 2131351028, %v3927
    %v3937 = vshrl.u32 2102212464, %v3928
    %v3938 = vor.u32 %v3936, %v3937
    %v3939 = vshll.u32 2102212464, %v3927
    %v3940 = vshrl.u32 920167782, %v3928
    %v3941 = vor.u32 %v3939, %v3940
    %v3942 = vshll.u32 920167782, %v3927
    %v3943 = vshrl.u32 1326507024, %v3928
    %v3944 = vor.u32 %v3942, %v3943
    %vm3945 = vcmp.lt.s32.totalorder %v3926, 1
    %vm3946 = vcmp.lt.s32.totalorder %v3926, 2
    %vm3947 = vcmp.lt.s32.totalorder %v3926, 3
    %vm3948 = vcmp.lt.s32.totalorder %v3926, 4
    %v3949 = vsel %vm3945, %v3929, %v3932
    %v3950 = vsel %vm3948, %v3938, 2102212464
    %v3951 = vsel %vm3947, %v3935, %v3950
    %v3952 = vsel %vm3946, %v3949, %v3951
    %v3953 = vsel %vm3945, %v3932, %v3935
    %v3954 = vsel %vm3948, %v3941, 920167782
    %v3955 = vsel %vm3947, %v3938, %v3954
    %v3956 = vsel %vm3946, %v3953, %v3955
    %v3957 = vsel %vm3945, %v3935, %v3938
    %v3958 = vsel %vm3948, %v3944, 1326507024
    %v3959 = vsel %vm3947, %v3941, %v3958
    %v3960 = vsel %vm3946, %v3957, %v3959
    %v3961 = vshll.u32 %v3921, 8
    %v3962 = vmul.u32.u64.compose %v3961, %v3960
    %v3963 = vextract.low.u32 %v3962
    %v3964 = vextract.high.u32 %v3962
    %v3965 = vmul.u32.u64.compose %v3961, %v3956
    %v3966 = vextract.low.u32 %v3965
    %v3967 = vextract.high.u32 %v3965
    %v3968 = vmul.u32 %v3961, %v3952
    %v3969 = vadd.s32 %v3964, %v3966
    %vm3970 = vc.u32 %v3964, %v3966
    %v3971 = vadd.s32 %v3967, 1
    %v3972 = vsel %vm3970, %v3971, %v3967
    %v3973 = vadd.s32 %v3968, %v3972
    %v3974 = vadd.s32 %v3973, 536870912
    %v3975 = vshrl.u32 %v3974, 30
    %v3976 = vshll.u32 %v3975, 30
    %v3977 = vsub.s32 %v3973, %v3976
    %vm3978 = vcmp.lt.s32.totalorder %v3977, 0
    %v3979 = vsub.s32 0, %v3977
    %v3980 = vsel %vm3978, %v3979, %v3977
    %v3981 = vclz %v3980
    %v3982 = vsub.s32 %v3981, 2
    %vm3983 = vcmp.gt.s32.totalorder 0, %v3982
    %v3984 = vsel %vm3983, 0, %v3982
    %v3985 = vsub.s32 32, %v3984
    %v3986 = vshll.u32 %v3977, %v3984
    %v3987 = vshrl.u32 %v3969, %v3985
    %v3988 = vor.u32 %v3986, %v3987
    %v3989 = vsub.s32 4294967266, %v3984
    %v3990 = vadd.s32 %v3989, 127
    %v3991 = vshll.u32 %v3990, 23
    %v3992 = vor.u32 4788187, %v3991
    %v3993 = vand.u32 2147483647, %v3992
    %v3995 = vcvt.s32.f32 %v3988
    %v3996 = vmul.f32 %v3995, %v3993
    %v3997 = vxor.u32 %v3996, 2147483648
    %v3998 = vsel %vm3915, %v3997, %v3996
    %v3999 = vsub.s32 4, %v3975
    %v4000 = vsel %vm3915, %v3999, %v3975
    %v4001 = vsel %vm3914, %v3897, %v3998
    %v4002 = vsel %vm3914, 0, %v4000
    %v4003 = vcosq.f32.pop %v4001
    %v4004 = vsinq.f32.pop %v4001
    %vm4005 = vweird.f32 %v3897
    %v4006 = vadd.s32 %v4002, 3
    %v4007 = vand.u32 %v4006, 3
    %vm4008 = vcmp.lt.s32.totalorder %v4007, 2
    %vm4009 = vcmp.eq.s32.totalorder %v4007, 0
    %v4010 = vxor.u32 %v4004, 2147483648
    %v4011 = vsel %vm4009, %v4003, %v4010
    %vm4012 = vcmp.eq.s32.totalorder %v4007, 2
    %v4013 = vxor.u32 %v4003, 2147483648
    %v4014 = vsel %vm4012, %v4013, %v4004
    %v4015 = vsel %vm4008, %v4011, %v4014
    %v4016 = vsel %vm4005, nan, %v4015
    %v4017 = vand.u32 2147483647, %v3898
    %vm4018 = vcmp.le.f32.partialorder %v4017, 0.7853982
    %vm4019 = vcmp.lt.s32.totalorder %v3898, 0
    %v4020 = vand.u32 %v3898, 2139095040
    %v4021 = vshrl.u32 %v4020, 23
    %v4022 = vsub.s32 %v4021, 127
    %v4023 = vand.u32 2147483647, %v3898
    %v4024 = vand.u32 %v4023, 8388607
    %v4025 = vor.u32 %v4024, 8388608
    %v4026 = vsub.s32 0, %v4025
    %v4027 = vadd.s32 %v4022, 1
    %vm4028 = vcmp.gt.s32.totalorder %v4027, 0
    %v4029 = vsel %vm4028, %v4027, 0
    %v4030 = vshrl.u32 %v4029, 5
    %v4031 = vand.u32 %v4029, 31
    %v4032 = vsub.s32 32, %v4031
    %v4033 = vshrl.u32 683565275, %v4032
    %v4034 = vshll.u32 683565275, %v4031
    %v4035 = vshrl.u32 2475754826, %v4032
    %v4036 = vor.u32 %v4034, %v4035
    %v4037 = vshll.u32 2475754826, %v4031
    %v4038 = vshrl.u32 2131351028, %v4032
    %v4039 = vor.u32 %v4037, %v4038
    %v4040 = vshll.u32 2131351028, %v4031
    %v4041 = vshrl.u32 2102212464, %v4032
    %v4042 = vor.u32 %v4040, %v4041
    %v4043 = vshll.u32 2102212464, %v4031
    %v4044 = vshrl.u32 920167782, %v4032
    %v4045 = vor.u32 %v4043, %v4044
    %v4046 = vshll.u32 920167782, %v4031
    %v4047 = vshrl.u32 1326507024, %v4032
    %v4048 = vor.u32 %v4046, %v4047
    %vm4049 = vcmp.lt.s32.totalorder %v4030, 1
    %vm4050 = vcmp.lt.s32.totalorder %v4030, 2
    %vm4051 = vcmp.lt.s32.totalorder %v4030, 3
    %vm4052 = vcmp.lt.s32.totalorder %v4030, 4
    %v4053 = vsel %vm4049, %v4033, %v4036
    %v4054 = vsel %vm4052, %v4042, 2102212464
    %v4055 = vsel %vm4051, %v4039, %v4054
    %v4056 = vsel %vm4050, %v4053, %v4055
    %v4057 = vsel %vm4049, %v4036, %v4039
    %v4058 = vsel %vm4052, %v4045, 920167782
    %v4059 = vsel %vm4051, %v4042, %v4058
    %v4060 = vsel %vm4050, %v4057, %v4059
    %v4061 = vsel %vm4049, %v4039, %v4042
    %v4062 = vsel %vm4052, %v4048, 1326507024
    %v4063 = vsel %vm4051, %v4045, %v4062
    %v4064 = vsel %vm4050, %v4061, %v4063
    %v4065 = vshll.u32 %v4025, 8
    %v4066 = vmul.u32.u64.compose %v4065, %v4064
    %v4067 = vextract.low.u32 %v4066
    %v4068 = vextract.high.u32 %v4066
    %v4069 = vmul.u32.u64.compose %v4065, %v4060
    %v4070 = vextract.low.u32 %v4069
    %v4071 = vextract.high.u32 %v4069
    %v4072 = vmul.u32 %v4065, %v4056
    %v4073 = vadd.s32 %v4068, %v4070
    %vm4074 = vc.u32 %v4068, %v4070
    %v4075 = vadd.s32 %v4071, 1
    %v4076 = vsel %vm4074, %v4075, %v4071
    %v4077 = vadd.s32 %v4072, %v4076
    %v4078 = vadd.s32 %v4077, 536870912
    %v4079 = vshrl.u32 %v4078, 30
    %v4080 = vshll.u32 %v4079, 30
    %v4081 = vsub.s32 %v4077, %v4080
    %vm4082 = vcmp.lt.s32.totalorder %v4081, 0
    %v4083 = vsub.s32 0, %v4081
    %v4084 = vsel %vm4082, %v4083, %v4081
    %v4085 = vclz %v4084
    %v4086 = vsub.s32 %v4085, 2
    %vm4087 = vcmp.gt.s32.totalorder 0, %v4086
    %v4088 = vsel %vm4087, 0, %v4086
    %v4089 = vsub.s32 32, %v4088
    %v4090 = vshll.u32 %v4081, %v4088
    %v4091 = vshrl.u32 %v4073, %v4089
    %v4092 = vor.u32 %v4090, %v4091
    %v4093 = vsub.s32 4294967266, %v4088
    %v4094 = vadd.s32 %v4093, 127
    %v4095 = vshll.u32 %v4094, 23
    %v4096 = vor.u32 4788187, %v4095
    %v4097 = vand.u32 2147483647, %v4096
    %v4099 = vcvt.s32.f32 %v4092
    %v4100 = vmul.f32 %v4099, %v4097
    %v4101 = vxor.u32 %v4100, 2147483648
    %v4102 = vsel %vm4019, %v4101, %v4100
    %v4103 = vsub.s32 4, %v4079
    %v4104 = vsel %vm4019, %v4103, %v4079
    %v4105 = vsel %vm4018, %v3898, %v4102
    %v4106 = vsel %vm4018, 0, %v4104
    %v4107 = vcosq.f32.pop %v4105
    %v4108 = vsinq.f32.pop %v4105
    %vm4109 = vweird.f32 %v3898
    %v4110 = vadd.s32 %v4106, 3
    %v4111 = vand.u32 %v4110, 3
    %vm4112 = vcmp.lt.s32.totalorder %v4111, 2
    %vm4113 = vcmp.eq.s32.totalorder %v4111, 0
    %v4114 = vxor.u32 %v4108, 2147483648
    %v4115 = vsel %vm4113, %v4107, %v4114
    %vm4116 = vcmp.eq.s32.totalorder %v4111, 2
    %v4117 = vxor.u32 %v4107, 2147483648
    %v4118 = vsel %vm4116, %v4117, %v4108
    %v4119 = vsel %vm4112, %v4115, %v4118
    %v4120 = vsel %vm4109, nan, %v4119
    %v4121 = vand.u32 2147483647, %v3899
    %vm4122 = vcmp.le.f32.partialorder %v4121, 0.7853982
    %vm4123 = vcmp.lt.s32.totalorder %v3899, 0
    %v4124 = vand.u32 %v3899, 2139095040
    %v4125 = vshrl.u32 %v4124, 23
    %v4126 = vsub.s32 %v4125, 127
    %v4127 = vand.u32 2147483647, %v3899
    %v4128 = vand.u32 %v4127, 8388607
    %v4129 = vor.u32 %v4128, 8388608
    %v4130 = vsub.s32 0, %v4129
    %v4131 = vadd.s32 %v4126, 1
    %vm4132 = vcmp.gt.s32.totalorder %v4131, 0
    %v4133 = vsel %vm4132, %v4131, 0
    %v4134 = vshrl.u32 %v4133, 5
    %v4135 = vand.u32 %v4133, 31
    %v4136 = vsub.s32 32, %v4135
    %v4137 = vshrl.u32 683565275, %v4136
    %v4138 = vshll.u32 683565275, %v4135
    %v4139 = vshrl.u32 2475754826, %v4136
    %v4140 = vor.u32 %v4138, %v4139
    %v4141 = vshll.u32 2475754826, %v4135
    %v4142 = vshrl.u32 2131351028, %v4136
    %v4143 = vor.u32 %v4141, %v4142
    %v4144 = vshll.u32 2131351028, %v4135
    %v4145 = vshrl.u32 2102212464, %v4136
    %v4146 = vor.u32 %v4144, %v4145
    %v4147 = vshll.u32 2102212464, %v4135
    %v4148 = vshrl.u32 920167782, %v4136
    %v4149 = vor.u32 %v4147, %v4148
    %v4150 = vshll.u32 920167782, %v4135
    %v4151 = vshrl.u32 1326507024, %v4136
    %v4152 = vor.u32 %v4150, %v4151
    %vm4153 = vcmp.lt.s32.totalorder %v4134, 1
    %vm4154 = vcmp.lt.s32.totalorder %v4134, 2
    %vm4155 = vcmp.lt.s32.totalorder %v4134, 3
    %vm4156 = vcmp.lt.s32.totalorder %v4134, 4
    %v4157 = vsel %vm4153, %v4137, %v4140
    %v4158 = vsel %vm4156, %v4146, 2102212464
    %v4159 = vsel %vm4155, %v4143, %v4158
    %v4160 = vsel %vm4154, %v4157, %v4159
    %v4161 = vsel %vm4153, %v4140, %v4143
    %v4162 = vsel %vm4156, %v4149, 920167782
    %v4163 = vsel %vm4155, %v4146, %v4162
    %v4164 = vsel %vm4154, %v4161, %v4163
    %v4165 = vsel %vm4153, %v4143, %v4146
    %v4166 = vsel %vm4156, %v4152, 1326507024
    %v4167 = vsel %vm4155, %v4149, %v4166
    %v4168 = vsel %vm4154, %v4165, %v4167
    %v4169 = vshll.u32 %v4129, 8
    %v4170 = vmul.u32.u64.compose %v4169, %v4168
    %v4171 = vextract.low.u32 %v4170
    %v4172 = vextract.high.u32 %v4170
    %v4173 = vmul.u32.u64.compose %v4169, %v4164
    %v4174 = vextract.low.u32 %v4173
    %v4175 = vextract.high.u32 %v4173
    %v4176 = vmul.u32 %v4169, %v4160
    %v4177 = vadd.s32 %v4172, %v4174
    %vm4178 = vc.u32 %v4172, %v4174
    %v4179 = vadd.s32 %v4175, 1
    %v4180 = vsel %vm4178, %v4179, %v4175
    %v4181 = vadd.s32 %v4176, %v4180
    %v4182 = vadd.s32 %v4181, 536870912
    %v4183 = vshrl.u32 %v4182, 30
    %v4184 = vshll.u32 %v4183, 30
    %v4185 = vsub.s32 %v4181, %v4184
    %vm4186 = vcmp.lt.s32.totalorder %v4185, 0
    %v4187 = vsub.s32 0, %v4185
    %v4188 = vsel %vm4186, %v4187, %v4185
    %v4189 = vclz %v4188
    %v4190 = vsub.s32 %v4189, 2
    %vm4191 = vcmp.gt.s32.totalorder 0, %v4190
    %v4192 = vsel %vm4191, 0, %v4190
    %v4193 = vsub.s32 32, %v4192
    %v4194 = vshll.u32 %v4185, %v4192
    %v4195 = vshrl.u32 %v4177, %v4193
    %v4196 = vor.u32 %v4194, %v4195
    %v4197 = vsub.s32 4294967266, %v4192
    %v4198 = vadd.s32 %v4197, 127
    %v4199 = vshll.u32 %v4198, 23
    %v4200 = vor.u32 4788187, %v4199
    %v4201 = vand.u32 2147483647, %v4200
    %v4203 = vcvt.s32.f32 %v4196
    %v4204 = vmul.f32 %v4203, %v4201
    %v4205 = vxor.u32 %v4204, 2147483648
    %v4206 = vsel %vm4123, %v4205, %v4204
    %v4207 = vsub.s32 4, %v4183
    %v4208 = vsel %vm4123, %v4207, %v4183
    %v4209 = vsel %vm4122, %v3899, %v4206
    %v4210 = vsel %vm4122, 0, %v4208
    %v4211 = vcosq.f32.pop %v4209
    %v4212 = vsinq.f32.pop %v4209
    %vm4213 = vweird.f32 %v3899
    %v4214 = vadd.s32 %v4210, 3
    %v4215 = vand.u32 %v4214, 3
    %vm4216 = vcmp.lt.s32.totalorder %v4215, 2
    %vm4217 = vcmp.eq.s32.totalorder %v4215, 0
    %v4218 = vxor.u32 %v4212, 2147483648
    %v4219 = vsel %vm4217, %v4211, %v4218
    %vm4220 = vcmp.eq.s32.totalorder %v4215, 2
    %v4221 = vxor.u32 %v4211, 2147483648
    %v4222 = vsel %vm4220, %v4221, %v4212
    %v4223 = vsel %vm4216, %v4219, %v4222
    %v4224 = vsel %vm4213, nan, %v4223
    %v4225 = vand.u32 2147483647, %v3900
    %vm4226 = vcmp.le.f32.partialorder %v4225, 0.7853982
    %vm4227 = vcmp.lt.s32.totalorder %v3900, 0
    %v4228 = vand.u32 %v3900, 2139095040
    %v4229 = vshrl.u32 %v4228, 23
    %v4230 = vsub.s32 %v4229, 127
    %v4231 = vand.u32 2147483647, %v3900
    %v4232 = vand.u32 %v4231, 8388607
    %v4233 = vor.u32 %v4232, 8388608
    %v4234 = vsub.s32 0, %v4233
    %v4235 = vadd.s32 %v4230, 1
    %vm4236 = vcmp.gt.s32.totalorder %v4235, 0
    %v4237 = vsel %vm4236, %v4235, 0
    %v4238 = vshrl.u32 %v4237, 5
    %v4239 = vand.u32 %v4237, 31
    %v4240 = vsub.s32 32, %v4239
    %v4241 = vshrl.u32 683565275, %v4240
    %v4242 = vshll.u32 683565275, %v4239
    %v4243 = vshrl.u32 2475754826, %v4240
    %v4244 = vor.u32 %v4242, %v4243
    %v4245 = vshll.u32 2475754826, %v4239
    %v4246 = vshrl.u32 2131351028, %v4240
    %v4247 = vor.u32 %v4245, %v4246
    %v4248 = vshll.u32 2131351028, %v4239
    %v4249 = vshrl.u32 2102212464, %v4240
    %v4250 = vor.u32 %v4248, %v4249
    %v4251 = vshll.u32 2102212464, %v4239
    %v4252 = vshrl.u32 920167782, %v4240
    %v4253 = vor.u32 %v4251, %v4252
    %v4254 = vshll.u32 920167782, %v4239
    %v4255 = vshrl.u32 1326507024, %v4240
    %v4256 = vor.u32 %v4254, %v4255
    %vm4257 = vcmp.lt.s32.totalorder %v4238, 1
    %vm4258 = vcmp.lt.s32.totalorder %v4238, 2
    %vm4259 = vcmp.lt.s32.totalorder %v4238, 3
    %vm4260 = vcmp.lt.s32.totalorder %v4238, 4
    %v4261 = vsel %vm4257, %v4241, %v4244
    %v4262 = vsel %vm4260, %v4250, 2102212464
    %v4263 = vsel %vm4259, %v4247, %v4262
    %v4264 = vsel %vm4258, %v4261, %v4263
    %v4265 = vsel %vm4257, %v4244, %v4247
    %v4266 = vsel %vm4260, %v4253, 920167782
    %v4267 = vsel %vm4259, %v4250, %v4266
    %v4268 = vsel %vm4258, %v4265, %v4267
    %v4269 = vsel %vm4257, %v4247, %v4250
    %v4270 = vsel %vm4260, %v4256, 1326507024
    %v4271 = vsel %vm4259, %v4253, %v4270
    %v4272 = vsel %vm4258, %v4269, %v4271
    %v4273 = vshll.u32 %v4233, 8
    %v4274 = vmul.u32.u64.compose %v4273, %v4272
    %v4275 = vextract.low.u32 %v4274
    %v4276 = vextract.high.u32 %v4274
    %v4277 = vmul.u32.u64.compose %v4273, %v4268
    %v4278 = vextract.low.u32 %v4277
    %v4279 = vextract.high.u32 %v4277
    %v4280 = vmul.u32 %v4273, %v4264
    %v4281 = vadd.s32 %v4276, %v4278
    %vm4282 = vc.u32 %v4276, %v4278
    %v4283 = vadd.s32 %v4279, 1
    %v4284 = vsel %vm4282, %v4283, %v4279
    %v4285 = vadd.s32 %v4280, %v4284
    %v4286 = vadd.s32 %v4285, 536870912
    %v4287 = vshrl.u32 %v4286, 30
    %v4288 = vshll.u32 %v4287, 30
    %v4289 = vsub.s32 %v4285, %v4288
    %vm4290 = vcmp.lt.s32.totalorder %v4289, 0
    %v4291 = vsub.s32 0, %v4289
    %v4292 = vsel %vm4290, %v4291, %v4289
    %v4293 = vclz %v4292
    %v4294 = vsub.s32 %v4293, 2
    %vm4295 = vcmp.gt.s32.totalorder 0, %v4294
    %v4296 = vsel %vm4295, 0, %v4294
    %v4297 = vsub.s32 32, %v4296
    %v4298 = vshll.u32 %v4289, %v4296
    %v4299 = vshrl.u32 %v4281, %v4297
    %v4300 = vor.u32 %v4298, %v4299
    %v4301 = vsub.s32 4294967266, %v4296
    %v4302 = vadd.s32 %v4301, 127
    %v4303 = vshll.u32 %v4302, 23
    %v4304 = vor.u32 4788187, %v4303
    %v4305 = vand.u32 2147483647, %v4304
    %v4307 = vcvt.s32.f32 %v4300
    %v4308 = vmul.f32 %v4307, %v4305
    %v4309 = vxor.u32 %v4308, 2147483648
    %v4310 = vsel %vm4227, %v4309, %v4308
    %v4311 = vsub.s32 4, %v4287
    %v4312 = vsel %vm4227, %v4311, %v4287
    %v4313 = vsel %vm4226, %v3900, %v4310
    %v4314 = vsel %vm4226, 0, %v4312
    %v4315 = vcosq.f32.pop %v4313
    %v4316 = vsinq.f32.pop %v4313
    %vm4317 = vweird.f32 %v3900
    %v4318 = vadd.s32 %v4314, 3
    %v4319 = vand.u32 %v4318, 3
    %vm4320 = vcmp.lt.s32.totalorder %v4319, 2
    %vm4321 = vcmp.eq.s32.totalorder %v4319, 0
    %v4322 = vxor.u32 %v4316, 2147483648
    %v4323 = vsel %vm4321, %v4315, %v4322
    %vm4324 = vcmp.eq.s32.totalorder %v4319, 2
    %v4325 = vxor.u32 %v4315, 2147483648
    %v4326 = vsel %vm4324, %v4325, %v4316
    %v4327 = vsel %vm4320, %v4323, %v4326
    %v4328 = vsel %vm4317, nan, %v4327
    %v4329 = vand.u32 2147483647, %v3901
    %vm4330 = vcmp.le.f32.partialorder %v4329, 0.7853982
    %vm4331 = vcmp.lt.s32.totalorder %v3901, 0
    %v4332 = vand.u32 %v3901, 2139095040
    %v4333 = vshrl.u32 %v4332, 23
    %v4334 = vsub.s32 %v4333, 127
    %v4335 = vand.u32 2147483647, %v3901
    %v4336 = vand.u32 %v4335, 8388607
    %v4337 = vor.u32 %v4336, 8388608
    %v4338 = vsub.s32 0, %v4337
    %v4339 = vadd.s32 %v4334, 1
    %vm4340 = vcmp.gt.s32.totalorder %v4339, 0
    %v4341 = vsel %vm4340, %v4339, 0
    %v4342 = vshrl.u32 %v4341, 5
    %v4343 = vand.u32 %v4341, 31
    %v4344 = vsub.s32 32, %v4343
    %v4345 = vshrl.u32 683565275, %v4344
    %v4346 = vshll.u32 683565275, %v4343
    %v4347 = vshrl.u32 2475754826, %v4344
    %v4348 = vor.u32 %v4346, %v4347
    %v4349 = vshll.u32 2475754826, %v4343
    %v4350 = vshrl.u32 2131351028, %v4344
    %v4351 = vor.u32 %v4349, %v4350
    %v4352 = vshll.u32 2131351028, %v4343
    %v4353 = vshrl.u32 2102212464, %v4344
    %v4354 = vor.u32 %v4352, %v4353
    %v4355 = vshll.u32 2102212464, %v4343
    %v4356 = vshrl.u32 920167782, %v4344
    %v4357 = vor.u32 %v4355, %v4356
    %v4358 = vshll.u32 920167782, %v4343
    %v4359 = vshrl.u32 1326507024, %v4344
    %v4360 = vor.u32 %v4358, %v4359
    %vm4361 = vcmp.lt.s32.totalorder %v4342, 1
    %vm4362 = vcmp.lt.s32.totalorder %v4342, 2
    %vm4363 = vcmp.lt.s32.totalorder %v4342, 3
    %vm4364 = vcmp.lt.s32.totalorder %v4342, 4
    %v4365 = vsel %vm4361, %v4345, %v4348
    %v4366 = vsel %vm4364, %v4354, 2102212464
    %v4367 = vsel %vm4363, %v4351, %v4366
    %v4368 = vsel %vm4362, %v4365, %v4367
    %v4369 = vsel %vm4361, %v4348, %v4351
    %v4370 = vsel %vm4364, %v4357, 920167782
    %v4371 = vsel %vm4363, %v4354, %v4370
    %v4372 = vsel %vm4362, %v4369, %v4371
    %v4373 = vsel %vm4361, %v4351, %v4354
    %v4374 = vsel %vm4364, %v4360, 1326507024
    %v4375 = vsel %vm4363, %v4357, %v4374
    %v4376 = vsel %vm4362, %v4373, %v4375
    %v4377 = vshll.u32 %v4337, 8
    %v4378 = vmul.u32.u64.compose %v4377, %v4376
    %v4379 = vextract.low.u32 %v4378
    %v4380 = vextract.high.u32 %v4378
    %v4381 = vmul.u32.u64.compose %v4377, %v4372
    %v4382 = vextract.low.u32 %v4381
    %v4383 = vextract.high.u32 %v4381
    %v4384 = vmul.u32 %v4377, %v4368
    %v4385 = vadd.s32 %v4380, %v4382
    %vm4386 = vc.u32 %v4380, %v4382
    %v4387 = vadd.s32 %v4383, 1
    %v4388 = vsel %vm4386, %v4387, %v4383
    %v4389 = vadd.s32 %v4384, %v4388
    %v4390 = vadd.s32 %v4389, 536870912
    %v4391 = vshrl.u32 %v4390, 30
    %v4392 = vshll.u32 %v4391, 30
    %v4393 = vsub.s32 %v4389, %v4392
    %vm4394 = vcmp.lt.s32.totalorder %v4393, 0
    %v4395 = vsub.s32 0, %v4393
    %v4396 = vsel %vm4394, %v4395, %v4393
    %v4397 = vclz %v4396
    %v4398 = vsub.s32 %v4397, 2
    %vm4399 = vcmp.gt.s32.totalorder 0, %v4398
    %v4400 = vsel %vm4399, 0, %v4398
    %v4401 = vsub.s32 32, %v4400
    %v4402 = vshll.u32 %v4393, %v4400
    %v4403 = vshrl.u32 %v4385, %v4401
    %v4404 = vor.u32 %v4402, %v4403
    %v4405 = vsub.s32 4294967266, %v4400
    %v4406 = vadd.s32 %v4405, 127
    %v4407 = vshll.u32 %v4406, 23
    %v4408 = vor.u32 4788187, %v4407
    %v4409 = vand.u32 2147483647, %v4408
    %v4411 = vcvt.s32.f32 %v4404
    %v4412 = vmul.f32 %v4411, %v4409
    %v4413 = vxor.u32 %v4412, 2147483648
    %v4414 = vsel %vm4331, %v4413, %v4412
    %v4415 = vsub.s32 4, %v4391
    %v4416 = vsel %vm4331, %v4415, %v4391
    %v4417 = vsel %vm4330, %v3901, %v4414
    %v4418 = vsel %vm4330, 0, %v4416
    %v4419 = vcosq.f32.pop %v4417
    %v4420 = vsinq.f32.pop %v4417
    %vm4421 = vweird.f32 %v3901
    %v4422 = vadd.s32 %v4418, 3
    %v4423 = vand.u32 %v4422, 3
    %vm4424 = vcmp.lt.s32.totalorder %v4423, 2
    %vm4425 = vcmp.eq.s32.totalorder %v4423, 0
    %v4426 = vxor.u32 %v4420, 2147483648
    %v4427 = vsel %vm4425, %v4419, %v4426
    %vm4428 = vcmp.eq.s32.totalorder %v4423, 2
    %v4429 = vxor.u32 %v4419, 2147483648
    %v4430 = vsel %vm4428, %v4429, %v4420
    %v4431 = vsel %vm4424, %v4427, %v4430
    %v4432 = vsel %vm4421, nan, %v4431
    %v4433 = vand.u32 2147483647, %v3902
    %vm4434 = vcmp.le.f32.partialorder %v4433, 0.7853982
    %vm4435 = vcmp.lt.s32.totalorder %v3902, 0
    %v4436 = vand.u32 %v3902, 2139095040
    %v4437 = vshrl.u32 %v4436, 23
    %v4438 = vsub.s32 %v4437, 127
    %v4439 = vand.u32 2147483647, %v3902
    %v4440 = vand.u32 %v4439, 8388607
    %v4441 = vor.u32 %v4440, 8388608
    %v4442 = vsub.s32 0, %v4441
    %v4443 = vadd.s32 %v4438, 1
    %vm4444 = vcmp.gt.s32.totalorder %v4443, 0
    %v4445 = vsel %vm4444, %v4443, 0
    %v4446 = vshrl.u32 %v4445, 5
    %v4447 = vand.u32 %v4445, 31
    %v4448 = vsub.s32 32, %v4447
    %v4449 = vshrl.u32 683565275, %v4448
    %v4450 = vshll.u32 683565275, %v4447
    %v4451 = vshrl.u32 2475754826, %v4448
    %v4452 = vor.u32 %v4450, %v4451
    %v4453 = vshll.u32 2475754826, %v4447
    %v4454 = vshrl.u32 2131351028, %v4448
    %v4455 = vor.u32 %v4453, %v4454
    %v4456 = vshll.u32 2131351028, %v4447
    %v4457 = vshrl.u32 2102212464, %v4448
    %v4458 = vor.u32 %v4456, %v4457
    %v4459 = vshll.u32 2102212464, %v4447
    %v4460 = vshrl.u32 920167782, %v4448
    %v4461 = vor.u32 %v4459, %v4460
    %v4462 = vshll.u32 920167782, %v4447
    %v4463 = vshrl.u32 1326507024, %v4448
    %v4464 = vor.u32 %v4462, %v4463
    %vm4465 = vcmp.lt.s32.totalorder %v4446, 1
    %vm4466 = vcmp.lt.s32.totalorder %v4446, 2
    %vm4467 = vcmp.lt.s32.totalorder %v4446, 3
    %vm4468 = vcmp.lt.s32.totalorder %v4446, 4
    %v4469 = vsel %vm4465, %v4449, %v4452
    %v4470 = vsel %vm4468, %v4458, 2102212464
    %v4471 = vsel %vm4467, %v4455, %v4470
    %v4472 = vsel %vm4466, %v4469, %v4471
    %v4473 = vsel %vm4465, %v4452, %v4455
    %v4474 = vsel %vm4468, %v4461, 920167782
    %v4475 = vsel %vm4467, %v4458, %v4474
    %v4476 = vsel %vm4466, %v4473, %v4475
    %v4477 = vsel %vm4465, %v4455, %v4458
    %v4478 = vsel %vm4468, %v4464, 1326507024
    %v4479 = vsel %vm4467, %v4461, %v4478
    %v4480 = vsel %vm4466, %v4477, %v4479
    %v4481 = vshll.u32 %v4441, 8
    %v4482 = vmul.u32.u64.compose %v4481, %v4480
    %v4483 = vextract.low.u32 %v4482
    %v4484 = vextract.high.u32 %v4482
    %v4485 = vmul.u32.u64.compose %v4481, %v4476
    %v4486 = vextract.low.u32 %v4485
    %v4487 = vextract.high.u32 %v4485
    %v4488 = vmul.u32 %v4481, %v4472
    %v4489 = vadd.s32 %v4484, %v4486
    %vm4490 = vc.u32 %v4484, %v4486
    %v4491 = vadd.s32 %v4487, 1
    %v4492 = vsel %vm4490, %v4491, %v4487
    %v4493 = vadd.s32 %v4488, %v4492
    %v4494 = vadd.s32 %v4493, 536870912
    %v4495 = vshrl.u32 %v4494, 30
    %v4496 = vshll.u32 %v4495, 30
    %v4497 = vsub.s32 %v4493, %v4496
    %vm4498 = vcmp.lt.s32.totalorder %v4497, 0
    %v4499 = vsub.s32 0, %v4497
    %v4500 = vsel %vm4498, %v4499, %v4497
    %v4501 = vclz %v4500
    %v4502 = vsub.s32 %v4501, 2
    %vm4503 = vcmp.gt.s32.totalorder 0, %v4502
    %v4504 = vsel %vm4503, 0, %v4502
    %v4505 = vsub.s32 32, %v4504
    %v4506 = vshll.u32 %v4497, %v4504
    %v4507 = vshrl.u32 %v4489, %v4505
    %v4508 = vor.u32 %v4506, %v4507
    %v4509 = vsub.s32 4294967266, %v4504
    %v4510 = vadd.s32 %v4509, 127
    %v4511 = vshll.u32 %v4510, 23
    %v4512 = vor.u32 4788187, %v4511
    %v4513 = vand.u32 2147483647, %v4512
    %v4515 = vcvt.s32.f32 %v4508
    %v4516 = vmul.f32 %v4515, %v4513
    %v4517 = vxor.u32 %v4516, 2147483648
    %v4518 = vsel %vm4435, %v4517, %v4516
    %v4519 = vsub.s32 4, %v4495
    %v4520 = vsel %vm4435, %v4519, %v4495
    %v4521 = vsel %vm4434, %v3902, %v4518
    %v4522 = vsel %vm4434, 0, %v4520
    %v4523 = vcosq.f32.pop %v4521
    %v4524 = vsinq.f32.pop %v4521
    %vm4525 = vweird.f32 %v3902
    %v4526 = vadd.s32 %v4522, 3
    %v4527 = vand.u32 %v4526, 3
    %vm4528 = vcmp.lt.s32.totalorder %v4527, 2
    %vm4529 = vcmp.eq.s32.totalorder %v4527, 0
    %v4530 = vxor.u32 %v4524, 2147483648
    %v4531 = vsel %vm4529, %v4523, %v4530
    %vm4532 = vcmp.eq.s32.totalorder %v4527, 2
    %v4533 = vxor.u32 %v4523, 2147483648
    %v4534 = vsel %vm4532, %v4533, %v4524
    %v4535 = vsel %vm4528, %v4531, %v4534
    %v4536 = vsel %vm4525, nan, %v4535
    %v4537 = vand.u32 2147483647, %v3903
    %vm4538 = vcmp.le.f32.partialorder %v4537, 0.7853982
    %vm4539 = vcmp.lt.s32.totalorder %v3903, 0
    %v4540 = vand.u32 %v3903, 2139095040
    %v4541 = vshrl.u32 %v4540, 23
    %v4542 = vsub.s32 %v4541, 127
    %v4543 = vand.u32 2147483647, %v3903
    %v4544 = vand.u32 %v4543, 8388607
    %v4545 = vor.u32 %v4544, 8388608
    %v4546 = vsub.s32 0, %v4545
    %v4547 = vadd.s32 %v4542, 1
    %vm4548 = vcmp.gt.s32.totalorder %v4547, 0
    %v4549 = vsel %vm4548, %v4547, 0
    %v4550 = vshrl.u32 %v4549, 5
    %v4551 = vand.u32 %v4549, 31
    %v4552 = vsub.s32 32, %v4551
    %v4553 = vshrl.u32 683565275, %v4552
    %v4554 = vshll.u32 683565275, %v4551
    %v4555 = vshrl.u32 2475754826, %v4552
    %v4556 = vor.u32 %v4554, %v4555
    %v4557 = vshll.u32 2475754826, %v4551
    %v4558 = vshrl.u32 2131351028, %v4552
    %v4559 = vor.u32 %v4557, %v4558
    %v4560 = vshll.u32 2131351028, %v4551
    %v4561 = vshrl.u32 2102212464, %v4552
    %v4562 = vor.u32 %v4560, %v4561
    %v4563 = vshll.u32 2102212464, %v4551
    %v4564 = vshrl.u32 920167782, %v4552
    %v4565 = vor.u32 %v4563, %v4564
    %v4566 = vshll.u32 920167782, %v4551
    %v4567 = vshrl.u32 1326507024, %v4552
    %v4568 = vor.u32 %v4566, %v4567
    %vm4569 = vcmp.lt.s32.totalorder %v4550, 1
    %vm4570 = vcmp.lt.s32.totalorder %v4550, 2
    %vm4571 = vcmp.lt.s32.totalorder %v4550, 3
    %vm4572 = vcmp.lt.s32.totalorder %v4550, 4
    %v4573 = vsel %vm4569, %v4553, %v4556
    %v4574 = vsel %vm4572, %v4562, 2102212464
    %v4575 = vsel %vm4571, %v4559, %v4574
    %v4576 = vsel %vm4570, %v4573, %v4575
    %v4577 = vsel %vm4569, %v4556, %v4559
    %v4578 = vsel %vm4572, %v4565, 920167782
    %v4579 = vsel %vm4571, %v4562, %v4578
    %v4580 = vsel %vm4570, %v4577, %v4579
    %v4581 = vsel %vm4569, %v4559, %v4562
    %v4582 = vsel %vm4572, %v4568, 1326507024
    %v4583 = vsel %vm4571, %v4565, %v4582
    %v4584 = vsel %vm4570, %v4581, %v4583
    %v4585 = vshll.u32 %v4545, 8
    %v4586 = vmul.u32.u64.compose %v4585, %v4584
    %v4587 = vextract.low.u32 %v4586
    %v4588 = vextract.high.u32 %v4586
    %v4589 = vmul.u32.u64.compose %v4585, %v4580
    %v4590 = vextract.low.u32 %v4589
    %v4591 = vextract.high.u32 %v4589
    %v4592 = vmul.u32 %v4585, %v4576
    %v4593 = vadd.s32 %v4588, %v4590
    %vm4594 = vc.u32 %v4588, %v4590
    %v4595 = vadd.s32 %v4591, 1
    %v4596 = vsel %vm4594, %v4595, %v4591
    %v4597 = vadd.s32 %v4592, %v4596
    %v4598 = vadd.s32 %v4597, 536870912
    %v4599 = vshrl.u32 %v4598, 30
    %v4600 = vshll.u32 %v4599, 30
    %v4601 = vsub.s32 %v4597, %v4600
    %vm4602 = vcmp.lt.s32.totalorder %v4601, 0
    %v4603 = vsub.s32 0, %v4601
    %v4604 = vsel %vm4602, %v4603, %v4601
    %v4605 = vclz %v4604
    %v4606 = vsub.s32 %v4605, 2
    %vm4607 = vcmp.gt.s32.totalorder 0, %v4606
    %v4608 = vsel %vm4607, 0, %v4606
    %v4609 = vsub.s32 32, %v4608
    %v4610 = vshll.u32 %v4601, %v4608
    %v4611 = vshrl.u32 %v4593, %v4609
    %v4612 = vor.u32 %v4610, %v4611
    %v4613 = vsub.s32 4294967266, %v4608
    %v4614 = vadd.s32 %v4613, 127
    %v4615 = vshll.u32 %v4614, 23
    %v4616 = vor.u32 4788187, %v4615
    %v4617 = vand.u32 2147483647, %v4616
    %v4619 = vcvt.s32.f32 %v4612
    %v4620 = vmul.f32 %v4619, %v4617
    %v4621 = vxor.u32 %v4620, 2147483648
    %v4622 = vsel %vm4539, %v4621, %v4620
    %v4623 = vsub.s32 4, %v4599
    %v4624 = vsel %vm4539, %v4623, %v4599
    %v4625 = vsel %vm4538, %v3903, %v4622
    %v4626 = vsel %vm4538, 0, %v4624
    %v4627 = vcosq.f32.pop %v4625
    %v4628 = vsinq.f32.pop %v4625
    %vm4629 = vweird.f32 %v3903
    %v4630 = vadd.s32 %v4626, 3
    %v4631 = vand.u32 %v4630, 3
    %vm4632 = vcmp.lt.s32.totalorder %v4631, 2
    %vm4633 = vcmp.eq.s32.totalorder %v4631, 0
    %v4634 = vxor.u32 %v4628, 2147483648
    %v4635 = vsel %vm4633, %v4627, %v4634
    %vm4636 = vcmp.eq.s32.totalorder %v4631, 2
    %v4637 = vxor.u32 %v4627, 2147483648
    %v4638 = vsel %vm4636, %v4637, %v4628
    %v4639 = vsel %vm4632, %v4635, %v4638
    %v4640 = vsel %vm4629, nan, %v4639
    %v4641 = vand.u32 2147483647, %v3904
    %vm4642 = vcmp.le.f32.partialorder %v4641, 0.7853982
    %vm4643 = vcmp.lt.s32.totalorder %v3904, 0
    %v4644 = vand.u32 %v3904, 2139095040
    %v4645 = vshrl.u32 %v4644, 23
    %v4646 = vsub.s32 %v4645, 127
    %v4647 = vand.u32 2147483647, %v3904
    %v4648 = vand.u32 %v4647, 8388607
    %v4649 = vor.u32 %v4648, 8388608
    %v4650 = vsub.s32 0, %v4649
    %v4651 = vadd.s32 %v4646, 1
    %vm4652 = vcmp.gt.s32.totalorder %v4651, 0
    %v4653 = vsel %vm4652, %v4651, 0
    %v4654 = vshrl.u32 %v4653, 5
    %v4655 = vand.u32 %v4653, 31
    %v4656 = vsub.s32 32, %v4655
    %v4657 = vshrl.u32 683565275, %v4656
    %v4658 = vshll.u32 683565275, %v4655
    %v4659 = vshrl.u32 2475754826, %v4656
    %v4660 = vor.u32 %v4658, %v4659
    %v4661 = vshll.u32 2475754826, %v4655
    %v4662 = vshrl.u32 2131351028, %v4656
    %v4663 = vor.u32 %v4661, %v4662
    %v4664 = vshll.u32 2131351028, %v4655
    %v4665 = vshrl.u32 2102212464, %v4656
    %v4666 = vor.u32 %v4664, %v4665
    %v4667 = vshll.u32 2102212464, %v4655
    %v4668 = vshrl.u32 920167782, %v4656
    %v4669 = vor.u32 %v4667, %v4668
    %v4670 = vshll.u32 920167782, %v4655
    %v4671 = vshrl.u32 1326507024, %v4656
    %v4672 = vor.u32 %v4670, %v4671
    %vm4673 = vcmp.lt.s32.totalorder %v4654, 1
    %vm4674 = vcmp.lt.s32.totalorder %v4654, 2
    %vm4675 = vcmp.lt.s32.totalorder %v4654, 3
    %vm4676 = vcmp.lt.s32.totalorder %v4654, 4
    %v4677 = vsel %vm4673, %v4657, %v4660
    %v4678 = vsel %vm4676, %v4666, 2102212464
    %v4679 = vsel %vm4675, %v4663, %v4678
    %v4680 = vsel %vm4674, %v4677, %v4679
    %v4681 = vsel %vm4673, %v4660, %v4663
    %v4682 = vsel %vm4676, %v4669, 920167782
    %v4683 = vsel %vm4675, %v4666, %v4682
    %v4684 = vsel %vm4674, %v4681, %v4683
    %v4685 = vsel %vm4673, %v4663, %v4666
    %v4686 = vsel %vm4676, %v4672, 1326507024
    %v4687 = vsel %vm4675, %v4669, %v4686
    %v4688 = vsel %vm4674, %v4685, %v4687
    %v4689 = vshll.u32 %v4649, 8
    %v4690 = vmul.u32.u64.compose %v4689, %v4688
    %v4691 = vextract.low.u32 %v4690
    %v4692 = vextract.high.u32 %v4690
    %v4693 = vmul.u32.u64.compose %v4689, %v4684
    %v4694 = vextract.low.u32 %v4693
    %v4695 = vextract.high.u32 %v4693
    %v4696 = vmul.u32 %v4689, %v4680
    %v4697 = vadd.s32 %v4692, %v4694
    %vm4698 = vc.u32 %v4692, %v4694
    %v4699 = vadd.s32 %v4695, 1
    %v4700 = vsel %vm4698, %v4699, %v4695
    %v4701 = vadd.s32 %v4696, %v4700
    %v4702 = vadd.s32 %v4701, 536870912
    %v4703 = vshrl.u32 %v4702, 30
    %v4704 = vshll.u32 %v4703, 30
    %v4705 = vsub.s32 %v4701, %v4704
    %vm4706 = vcmp.lt.s32.totalorder %v4705, 0
    %v4707 = vsub.s32 0, %v4705
    %v4708 = vsel %vm4706, %v4707, %v4705
    %v4709 = vclz %v4708
    %v4710 = vsub.s32 %v4709, 2
    %vm4711 = vcmp.gt.s32.totalorder 0, %v4710
    %v4712 = vsel %vm4711, 0, %v4710
    %v4713 = vsub.s32 32, %v4712
    %v4714 = vshll.u32 %v4705, %v4712
    %v4715 = vshrl.u32 %v4697, %v4713
    %v4716 = vor.u32 %v4714, %v4715
    %v4717 = vsub.s32 4294967266, %v4712
    %v4718 = vadd.s32 %v4717, 127
    %v4719 = vshll.u32 %v4718, 23
    %v4720 = vor.u32 4788187, %v4719
    %v4721 = vand.u32 2147483647, %v4720
    %v4723 = vcvt.s32.f32 %v4716
    %v4724 = vmul.f32 %v4723, %v4721
    %v4725 = vxor.u32 %v4724, 2147483648
    %v4726 = vsel %vm4643, %v4725, %v4724
    %v4727 = vsub.s32 4, %v4703
    %v4728 = vsel %vm4643, %v4727, %v4703
    %v4729 = vsel %vm4642, %v3904, %v4726
    %v4730 = vsel %vm4642, 0, %v4728
    %v4731 = vcosq.f32.pop %v4729
    %v4732 = vsinq.f32.pop %v4729
    %vm4733 = vweird.f32 %v3904
    %v4734 = vadd.s32 %v4730, 3
    %v4735 = vand.u32 %v4734, 3
    %vm4736 = vcmp.lt.s32.totalorder %v4735, 2
    %vm4737 = vcmp.eq.s32.totalorder %v4735, 0
    %v4738 = vxor.u32 %v4732, 2147483648
    %v4739 = vsel %vm4737, %v4731, %v4738
    %vm4740 = vcmp.eq.s32.totalorder %v4735, 2
    %v4741 = vxor.u32 %v4731, 2147483648
    %v4742 = vsel %vm4740, %v4741, %v4732
    %v4743 = vsel %vm4736, %v4739, %v4742
    %v4744 = vsel %vm4733, nan, %v4743
    %v4745 = vand.u32 2147483647, %v3905
    %vm4746 = vcmp.le.f32.partialorder %v4745, 0.7853982
    %vm4747 = vcmp.lt.s32.totalorder %v3905, 0
    %v4748 = vand.u32 %v3905, 2139095040
    %v4749 = vshrl.u32 %v4748, 23
    %v4750 = vsub.s32 %v4749, 127
    %v4751 = vand.u32 2147483647, %v3905
    %v4752 = vand.u32 %v4751, 8388607
    %v4753 = vor.u32 %v4752, 8388608
    %v4754 = vsub.s32 0, %v4753
    %v4755 = vadd.s32 %v4750, 1
    %vm4756 = vcmp.gt.s32.totalorder %v4755, 0
    %v4757 = vsel %vm4756, %v4755, 0
    %v4758 = vshrl.u32 %v4757, 5
    %v4759 = vand.u32 %v4757, 31
    %v4760 = vsub.s32 32, %v4759
    %v4761 = vshrl.u32 683565275, %v4760
    %v4762 = vshll.u32 683565275, %v4759
    %v4763 = vshrl.u32 2475754826, %v4760
    %v4764 = vor.u32 %v4762, %v4763
    %v4765 = vshll.u32 2475754826, %v4759
    %v4766 = vshrl.u32 2131351028, %v4760
    %v4767 = vor.u32 %v4765, %v4766
    %v4768 = vshll.u32 2131351028, %v4759
    %v4769 = vshrl.u32 2102212464, %v4760
    %v4770 = vor.u32 %v4768, %v4769
    %v4771 = vshll.u32 2102212464, %v4759
    %v4772 = vshrl.u32 920167782, %v4760
    %v4773 = vor.u32 %v4771, %v4772
    %v4774 = vshll.u32 920167782, %v4759
    %v4775 = vshrl.u32 1326507024, %v4760
    %v4776 = vor.u32 %v4774, %v4775
    %vm4777 = vcmp.lt.s32.totalorder %v4758, 1
    %vm4778 = vcmp.lt.s32.totalorder %v4758, 2
    %vm4779 = vcmp.lt.s32.totalorder %v4758, 3
    %vm4780 = vcmp.lt.s32.totalorder %v4758, 4
    %v4781 = vsel %vm4777, %v4761, %v4764
    %v4782 = vsel %vm4780, %v4770, 2102212464
    %v4783 = vsel %vm4779, %v4767, %v4782
    %v4784 = vsel %vm4778, %v4781, %v4783
    %v4785 = vsel %vm4777, %v4764, %v4767
    %v4786 = vsel %vm4780, %v4773, 920167782
    %v4787 = vsel %vm4779, %v4770, %v4786
    %v4788 = vsel %vm4778, %v4785, %v4787
    %v4789 = vsel %vm4777, %v4767, %v4770
    %v4790 = vsel %vm4780, %v4776, 1326507024
    %v4791 = vsel %vm4779, %v4773, %v4790
    %v4792 = vsel %vm4778, %v4789, %v4791
    %v4793 = vshll.u32 %v4753, 8
    %v4794 = vmul.u32.u64.compose %v4793, %v4792
    %v4795 = vextract.low.u32 %v4794
    %v4796 = vextract.high.u32 %v4794
    %v4797 = vmul.u32.u64.compose %v4793, %v4788
    %v4798 = vextract.low.u32 %v4797
    %v4799 = vextract.high.u32 %v4797
    %v4800 = vmul.u32 %v4793, %v4784
    %v4801 = vadd.s32 %v4796, %v4798
    %vm4802 = vc.u32 %v4796, %v4798
    %v4803 = vadd.s32 %v4799, 1
    %v4804 = vsel %vm4802, %v4803, %v4799
    %v4805 = vadd.s32 %v4800, %v4804
    %v4806 = vadd.s32 %v4805, 536870912
    %v4807 = vshrl.u32 %v4806, 30
    %v4808 = vshll.u32 %v4807, 30
    %v4809 = vsub.s32 %v4805, %v4808
    %vm4810 = vcmp.lt.s32.totalorder %v4809, 0
    %v4811 = vsub.s32 0, %v4809
    %v4812 = vsel %vm4810, %v4811, %v4809
    %v4813 = vclz %v4812
    %v4814 = vsub.s32 %v4813, 2
    %vm4815 = vcmp.gt.s32.totalorder 0, %v4814
    %v4816 = vsel %vm4815, 0, %v4814
    %v4817 = vsub.s32 32, %v4816
    %v4818 = vshll.u32 %v4809, %v4816
    %v4819 = vshrl.u32 %v4801, %v4817
    %v4820 = vor.u32 %v4818, %v4819
    %v4821 = vsub.s32 4294967266, %v4816
    %v4822 = vadd.s32 %v4821, 127
    %v4823 = vshll.u32 %v4822, 23
    %v4824 = vor.u32 4788187, %v4823
    %v4825 = vand.u32 2147483647, %v4824
    %v4827 = vcvt.s32.f32 %v4820
    %v4828 = vmul.f32 %v4827, %v4825
    %v4829 = vxor.u32 %v4828, 2147483648
    %v4830 = vsel %vm4747, %v4829, %v4828
    %v4831 = vsub.s32 4, %v4807
    %v4832 = vsel %vm4747, %v4831, %v4807
    %v4833 = vsel %vm4746, %v3905, %v4830
    %v4834 = vsel %vm4746, 0, %v4832
    %v4835 = vcosq.f32.pop %v4833
    %v4836 = vsinq.f32.pop %v4833
    %vm4837 = vweird.f32 %v3905
    %v4838 = vadd.s32 %v4834, 3
    %v4839 = vand.u32 %v4838, 3
    %vm4840 = vcmp.lt.s32.totalorder %v4839, 2
    %vm4841 = vcmp.eq.s32.totalorder %v4839, 0
    %v4842 = vxor.u32 %v4836, 2147483648
    %v4843 = vsel %vm4841, %v4835, %v4842
    %vm4844 = vcmp.eq.s32.totalorder %v4839, 2
    %v4845 = vxor.u32 %v4835, 2147483648
    %v4846 = vsel %vm4844, %v4845, %v4836
    %v4847 = vsel %vm4840, %v4843, %v4846
    %v4848 = vsel %vm4837, nan, %v4847
    %v4849 = vand.u32 2147483647, %v3906
    %vm4850 = vcmp.le.f32.partialorder %v4849, 0.7853982
    %vm4851 = vcmp.lt.s32.totalorder %v3906, 0
    %v4852 = vand.u32 %v3906, 2139095040
    %v4853 = vshrl.u32 %v4852, 23
    %v4854 = vsub.s32 %v4853, 127
    %v4855 = vand.u32 2147483647, %v3906
    %v4856 = vand.u32 %v4855, 8388607
    %v4857 = vor.u32 %v4856, 8388608
    %v4858 = vsub.s32 0, %v4857
    %v4859 = vadd.s32 %v4854, 1
    %vm4860 = vcmp.gt.s32.totalorder %v4859, 0
    %v4861 = vsel %vm4860, %v4859, 0
    %v4862 = vshrl.u32 %v4861, 5
    %v4863 = vand.u32 %v4861, 31
    %v4864 = vsub.s32 32, %v4863
    %v4865 = vshrl.u32 683565275, %v4864
    %v4866 = vshll.u32 683565275, %v4863
    %v4867 = vshrl.u32 2475754826, %v4864
    %v4868 = vor.u32 %v4866, %v4867
    %v4869 = vshll.u32 2475754826, %v4863
    %v4870 = vshrl.u32 2131351028, %v4864
    %v4871 = vor.u32 %v4869, %v4870
    %v4872 = vshll.u32 2131351028, %v4863
    %v4873 = vshrl.u32 2102212464, %v4864
    %v4874 = vor.u32 %v4872, %v4873
    %v4875 = vshll.u32 2102212464, %v4863
    %v4876 = vshrl.u32 920167782, %v4864
    %v4877 = vor.u32 %v4875, %v4876
    %v4878 = vshll.u32 920167782, %v4863
    %v4879 = vshrl.u32 1326507024, %v4864
    %v4880 = vor.u32 %v4878, %v4879
    %vm4881 = vcmp.lt.s32.totalorder %v4862, 1
    %vm4882 = vcmp.lt.s32.totalorder %v4862, 2
    %vm4883 = vcmp.lt.s32.totalorder %v4862, 3
    %vm4884 = vcmp.lt.s32.totalorder %v4862, 4
    %v4885 = vsel %vm4881, %v4865, %v4868
    %v4886 = vsel %vm4884, %v4874, 2102212464
    %v4887 = vsel %vm4883, %v4871, %v4886
    %v4888 = vsel %vm4882, %v4885, %v4887
    %v4889 = vsel %vm4881, %v4868, %v4871
    %v4890 = vsel %vm4884, %v4877, 920167782
    %v4891 = vsel %vm4883, %v4874, %v4890
    %v4892 = vsel %vm4882, %v4889, %v4891
    %v4893 = vsel %vm4881, %v4871, %v4874
    %v4894 = vsel %vm4884, %v4880, 1326507024
    %v4895 = vsel %vm4883, %v4877, %v4894
    %v4896 = vsel %vm4882, %v4893, %v4895
    %v4897 = vshll.u32 %v4857, 8
    %v4898 = vmul.u32.u64.compose %v4897, %v4896
    %v4899 = vextract.low.u32 %v4898
    %v4900 = vextract.high.u32 %v4898
    %v4901 = vmul.u32.u64.compose %v4897, %v4892
    %v4902 = vextract.low.u32 %v4901
    %v4903 = vextract.high.u32 %v4901
    %v4904 = vmul.u32 %v4897, %v4888
    %v4905 = vadd.s32 %v4900, %v4902
    %vm4906 = vc.u32 %v4900, %v4902
    %v4907 = vadd.s32 %v4903, 1
    %v4908 = vsel %vm4906, %v4907, %v4903
    %v4909 = vadd.s32 %v4904, %v4908
    %v4910 = vadd.s32 %v4909, 536870912
    %v4911 = vshrl.u32 %v4910, 30
    %v4912 = vshll.u32 %v4911, 30
    %v4913 = vsub.s32 %v4909, %v4912
    %vm4914 = vcmp.lt.s32.totalorder %v4913, 0
    %v4915 = vsub.s32 0, %v4913
    %v4916 = vsel %vm4914, %v4915, %v4913
    %v4917 = vclz %v4916
    %v4918 = vsub.s32 %v4917, 2
    %vm4919 = vcmp.gt.s32.totalorder 0, %v4918
    %v4920 = vsel %vm4919, 0, %v4918
    %v4921 = vsub.s32 32, %v4920
    %v4922 = vshll.u32 %v4913, %v4920
    %v4923 = vshrl.u32 %v4905, %v4921
    %v4924 = vor.u32 %v4922, %v4923
    %v4925 = vsub.s32 4294967266, %v4920
    %v4926 = vadd.s32 %v4925, 127
    %v4927 = vshll.u32 %v4926, 23
    %v4928 = vor.u32 4788187, %v4927
    %v4929 = vand.u32 2147483647, %v4928
    %v4931 = vcvt.s32.f32 %v4924
    %v4932 = vmul.f32 %v4931, %v4929
    %v4933 = vxor.u32 %v4932, 2147483648
    %v4934 = vsel %vm4851, %v4933, %v4932
    %v4935 = vsub.s32 4, %v4911
    %v4936 = vsel %vm4851, %v4935, %v4911
    %v4937 = vsel %vm4850, %v3906, %v4934
    %v4938 = vsel %vm4850, 0, %v4936
    %v4939 = vcosq.f32.pop %v4937
    %v4940 = vsinq.f32.pop %v4937
    %vm4941 = vweird.f32 %v3906
    %v4942 = vadd.s32 %v4938, 3
    %v4943 = vand.u32 %v4942, 3
    %vm4944 = vcmp.lt.s32.totalorder %v4943, 2
    %vm4945 = vcmp.eq.s32.totalorder %v4943, 0
    %v4946 = vxor.u32 %v4940, 2147483648
    %v4947 = vsel %vm4945, %v4939, %v4946
    %vm4948 = vcmp.eq.s32.totalorder %v4943, 2
    %v4949 = vxor.u32 %v4939, 2147483648
    %v4950 = vsel %vm4948, %v4949, %v4940
    %v4951 = vsel %vm4944, %v4947, %v4950
    %v4952 = vsel %vm4941, nan, %v4951
    %v4953 = vand.u32 2147483647, %v3907
    %vm4954 = vcmp.le.f32.partialorder %v4953, 0.7853982
    %vm4955 = vcmp.lt.s32.totalorder %v3907, 0
    %v4956 = vand.u32 %v3907, 2139095040
    %v4957 = vshrl.u32 %v4956, 23
    %v4958 = vsub.s32 %v4957, 127
    %v4959 = vand.u32 2147483647, %v3907
    %v4960 = vand.u32 %v4959, 8388607
    %v4961 = vor.u32 %v4960, 8388608
    %v4962 = vsub.s32 0, %v4961
    %v4963 = vadd.s32 %v4958, 1
    %vm4964 = vcmp.gt.s32.totalorder %v4963, 0
    %v4965 = vsel %vm4964, %v4963, 0
    %v4966 = vshrl.u32 %v4965, 5
    %v4967 = vand.u32 %v4965, 31
    %v4968 = vsub.s32 32, %v4967
    %v4969 = vshrl.u32 683565275, %v4968
    %v4970 = vshll.u32 683565275, %v4967
    %v4971 = vshrl.u32 2475754826, %v4968
    %v4972 = vor.u32 %v4970, %v4971
    %v4973 = vshll.u32 2475754826, %v4967
    %v4974 = vshrl.u32 2131351028, %v4968
    %v4975 = vor.u32 %v4973, %v4974
    %v4976 = vshll.u32 2131351028, %v4967
    %v4977 = vshrl.u32 2102212464, %v4968
    %v4978 = vor.u32 %v4976, %v4977
    %v4979 = vshll.u32 2102212464, %v4967
    %v4980 = vshrl.u32 920167782, %v4968
    %v4981 = vor.u32 %v4979, %v4980
    %v4982 = vshll.u32 920167782, %v4967
    %v4983 = vshrl.u32 1326507024, %v4968
    %v4984 = vor.u32 %v4982, %v4983
    %vm4985 = vcmp.lt.s32.totalorder %v4966, 1
    %vm4986 = vcmp.lt.s32.totalorder %v4966, 2
    %vm4987 = vcmp.lt.s32.totalorder %v4966, 3
    %vm4988 = vcmp.lt.s32.totalorder %v4966, 4
    %v4989 = vsel %vm4985, %v4969, %v4972
    %v4990 = vsel %vm4988, %v4978, 2102212464
    %v4991 = vsel %vm4987, %v4975, %v4990
    %v4992 = vsel %vm4986, %v4989, %v4991
    %v4993 = vsel %vm4985, %v4972, %v4975
    %v4994 = vsel %vm4988, %v4981, 920167782
    %v4995 = vsel %vm4987, %v4978, %v4994
    %v4996 = vsel %vm4986, %v4993, %v4995
    %v4997 = vsel %vm4985, %v4975, %v4978
    %v4998 = vsel %vm4988, %v4984, 1326507024
    %v4999 = vsel %vm4987, %v4981, %v4998
    %v5000 = vsel %vm4986, %v4997, %v4999
    %v5001 = vshll.u32 %v4961, 8
    %v5002 = vmul.u32.u64.compose %v5001, %v5000
    %v5003 = vextract.low.u32 %v5002
    %v5004 = vextract.high.u32 %v5002
    %v5005 = vmul.u32.u64.compose %v5001, %v4996
    %v5006 = vextract.low.u32 %v5005
    %v5007 = vextract.high.u32 %v5005
    %v5008 = vmul.u32 %v5001, %v4992
    %v5009 = vadd.s32 %v5004, %v5006
    %vm5010 = vc.u32 %v5004, %v5006
    %v5011 = vadd.s32 %v5007, 1
    %v5012 = vsel %vm5010, %v5011, %v5007
    %v5013 = vadd.s32 %v5008, %v5012
    %v5014 = vadd.s32 %v5013, 536870912
    %v5015 = vshrl.u32 %v5014, 30
    %v5016 = vshll.u32 %v5015, 30
    %v5017 = vsub.s32 %v5013, %v5016
    %vm5018 = vcmp.lt.s32.totalorder %v5017, 0
    %v5019 = vsub.s32 0, %v5017
    %v5020 = vsel %vm5018, %v5019, %v5017
    %v5021 = vclz %v5020
    %v5022 = vsub.s32 %v5021, 2
    %vm5023 = vcmp.gt.s32.totalorder 0, %v5022
    %v5024 = vsel %vm5023, 0, %v5022
    %v5025 = vsub.s32 32, %v5024
    %v5026 = vshll.u32 %v5017, %v5024
    %v5027 = vshrl.u32 %v5009, %v5025
    %v5028 = vor.u32 %v5026, %v5027
    %v5029 = vsub.s32 4294967266, %v5024
    %v5030 = vadd.s32 %v5029, 127
    %v5031 = vshll.u32 %v5030, 23
    %v5032 = vor.u32 4788187, %v5031
    %v5033 = vand.u32 2147483647, %v5032
    %v5035 = vcvt.s32.f32 %v5028
    %v5036 = vmul.f32 %v5035, %v5033
    %v5037 = vxor.u32 %v5036, 2147483648
    %v5038 = vsel %vm4955, %v5037, %v5036
    %v5039 = vsub.s32 4, %v5015
    %v5040 = vsel %vm4955, %v5039, %v5015
    %v5041 = vsel %vm4954, %v3907, %v5038
    %v5042 = vsel %vm4954, 0, %v5040
    %v5043 = vcosq.f32.pop %v5041
    %v5044 = vsinq.f32.pop %v5041
    %vm5045 = vweird.f32 %v3907
    %v5046 = vadd.s32 %v5042, 3
    %v5047 = vand.u32 %v5046, 3
    %vm5048 = vcmp.lt.s32.totalorder %v5047, 2
    %vm5049 = vcmp.eq.s32.totalorder %v5047, 0
    %v5050 = vxor.u32 %v5044, 2147483648
    %v5051 = vsel %vm5049, %v5043, %v5050
    %vm5052 = vcmp.eq.s32.totalorder %v5047, 2
    %v5053 = vxor.u32 %v5043, 2147483648
    %v5054 = vsel %vm5052, %v5053, %v5044
    %v5055 = vsel %vm5048, %v5051, %v5054
    %v5056 = vsel %vm5045, nan, %v5055
    %v5057 = vand.u32 2147483647, %v3908
    %vm5058 = vcmp.le.f32.partialorder %v5057, 0.7853982
    %vm5059 = vcmp.lt.s32.totalorder %v3908, 0
    %v5060 = vand.u32 %v3908, 2139095040
    %v5061 = vshrl.u32 %v5060, 23
    %v5062 = vsub.s32 %v5061, 127
    %v5063 = vand.u32 2147483647, %v3908
    %v5064 = vand.u32 %v5063, 8388607
    %v5065 = vor.u32 %v5064, 8388608
    %v5066 = vsub.s32 0, %v5065
    %v5067 = vadd.s32 %v5062, 1
    %vm5068 = vcmp.gt.s32.totalorder %v5067, 0
    %v5069 = vsel %vm5068, %v5067, 0
    %v5070 = vshrl.u32 %v5069, 5
    %v5071 = vand.u32 %v5069, 31
    %v5072 = vsub.s32 32, %v5071
    %v5073 = vshrl.u32 683565275, %v5072
    %v5074 = vshll.u32 683565275, %v5071
    %v5075 = vshrl.u32 2475754826, %v5072
    %v5076 = vor.u32 %v5074, %v5075
    %v5077 = vshll.u32 2475754826, %v5071
    %v5078 = vshrl.u32 2131351028, %v5072
    %v5079 = vor.u32 %v5077, %v5078
    %v5080 = vshll.u32 2131351028, %v5071
    %v5081 = vshrl.u32 2102212464, %v5072
    %v5082 = vor.u32 %v5080, %v5081
    %v5083 = vshll.u32 2102212464, %v5071
    %v5084 = vshrl.u32 920167782, %v5072
    %v5085 = vor.u32 %v5083, %v5084
    %v5086 = vshll.u32 920167782, %v5071
    %v5087 = vshrl.u32 1326507024, %v5072
    %v5088 = vor.u32 %v5086, %v5087
    %vm5089 = vcmp.lt.s32.totalorder %v5070, 1
    %vm5090 = vcmp.lt.s32.totalorder %v5070, 2
    %vm5091 = vcmp.lt.s32.totalorder %v5070, 3
    %vm5092 = vcmp.lt.s32.totalorder %v5070, 4
    %v5093 = vsel %vm5089, %v5073, %v5076
    %v5094 = vsel %vm5092, %v5082, 2102212464
    %v5095 = vsel %vm5091, %v5079, %v5094
    %v5096 = vsel %vm5090, %v5093, %v5095
    %v5097 = vsel %vm5089, %v5076, %v5079
    %v5098 = vsel %vm5092, %v5085, 920167782
    %v5099 = vsel %vm5091, %v5082, %v5098
    %v5100 = vsel %vm5090, %v5097, %v5099
    %v5101 = vsel %vm5089, %v5079, %v5082
    %v5102 = vsel %vm5092, %v5088, 1326507024
    %v5103 = vsel %vm5091, %v5085, %v5102
    %v5104 = vsel %vm5090, %v5101, %v5103
    %v5105 = vshll.u32 %v5065, 8
    %v5106 = vmul.u32.u64.compose %v5105, %v5104
    %v5107 = vextract.low.u32 %v5106
    %v5108 = vextract.high.u32 %v5106
    %v5109 = vmul.u32.u64.compose %v5105, %v5100
    %v5110 = vextract.low.u32 %v5109
    %v5111 = vextract.high.u32 %v5109
    %v5112 = vmul.u32 %v5105, %v5096
    %v5113 = vadd.s32 %v5108, %v5110
    %vm5114 = vc.u32 %v5108, %v5110
    %v5115 = vadd.s32 %v5111, 1
    %v5116 = vsel %vm5114, %v5115, %v5111
    %v5117 = vadd.s32 %v5112, %v5116
    %v5118 = vadd.s32 %v5117, 536870912
    %v5119 = vshrl.u32 %v5118, 30
    %v5120 = vshll.u32 %v5119, 30
    %v5121 = vsub.s32 %v5117, %v5120
    %vm5122 = vcmp.lt.s32.totalorder %v5121, 0
    %v5123 = vsub.s32 0, %v5121
    %v5124 = vsel %vm5122, %v5123, %v5121
    %v5125 = vclz %v5124
    %v5126 = vsub.s32 %v5125, 2
    %vm5127 = vcmp.gt.s32.totalorder 0, %v5126
    %v5128 = vsel %vm5127, 0, %v5126
    %v5129 = vsub.s32 32, %v5128
    %v5130 = vshll.u32 %v5121, %v5128
    %v5131 = vshrl.u32 %v5113, %v5129
    %v5132 = vor.u32 %v5130, %v5131
    %v5133 = vsub.s32 4294967266, %v5128
    %v5134 = vadd.s32 %v5133, 127
    %v5135 = vshll.u32 %v5134, 23
    %v5136 = vor.u32 4788187, %v5135
    %v5137 = vand.u32 2147483647, %v5136
    %v5139 = vcvt.s32.f32 %v5132
    %v5140 = vmul.f32 %v5139, %v5137
    %v5141 = vxor.u32 %v5140, 2147483648
    %v5142 = vsel %vm5059, %v5141, %v5140
    %v5143 = vsub.s32 4, %v5119
    %v5144 = vsel %vm5059, %v5143, %v5119
    %v5145 = vsel %vm5058, %v3908, %v5142
    %v5146 = vsel %vm5058, 0, %v5144
    %v5147 = vcosq.f32.pop %v5145
    %v5148 = vsinq.f32.pop %v5145
    %vm5149 = vweird.f32 %v3908
    %v5150 = vadd.s32 %v5146, 3
    %v5151 = vand.u32 %v5150, 3
    %vm5152 = vcmp.lt.s32.totalorder %v5151, 2
    %vm5153 = vcmp.eq.s32.totalorder %v5151, 0
    %v5154 = vxor.u32 %v5148, 2147483648
    %v5155 = vsel %vm5153, %v5147, %v5154
    %vm5156 = vcmp.eq.s32.totalorder %v5151, 2
    %v5157 = vxor.u32 %v5147, 2147483648
    %v5158 = vsel %vm5156, %v5157, %v5148
    %v5159 = vsel %vm5152, %v5155, %v5158
    %v5160 = vsel %vm5149, nan, %v5159
    %v5161 = vand.u32 2147483647, %v3909
    %vm5162 = vcmp.le.f32.partialorder %v5161, 0.7853982
    %vm5163 = vcmp.lt.s32.totalorder %v3909, 0
    %v5164 = vand.u32 %v3909, 2139095040
    %v5165 = vshrl.u32 %v5164, 23
    %v5166 = vsub.s32 %v5165, 127
    %v5167 = vand.u32 2147483647, %v3909
    %v5168 = vand.u32 %v5167, 8388607
    %v5169 = vor.u32 %v5168, 8388608
    %v5170 = vsub.s32 0, %v5169
    %v5171 = vadd.s32 %v5166, 1
    %vm5172 = vcmp.gt.s32.totalorder %v5171, 0
    %v5173 = vsel %vm5172, %v5171, 0
    %v5174 = vshrl.u32 %v5173, 5
    %v5175 = vand.u32 %v5173, 31
    %v5176 = vsub.s32 32, %v5175
    %v5177 = vshrl.u32 683565275, %v5176
    %v5178 = vshll.u32 683565275, %v5175
    %v5179 = vshrl.u32 2475754826, %v5176
    %v5180 = vor.u32 %v5178, %v5179
    %v5181 = vshll.u32 2475754826, %v5175
    %v5182 = vshrl.u32 2131351028, %v5176
    %v5183 = vor.u32 %v5181, %v5182
    %v5184 = vshll.u32 2131351028, %v5175
    %v5185 = vshrl.u32 2102212464, %v5176
    %v5186 = vor.u32 %v5184, %v5185
    %v5187 = vshll.u32 2102212464, %v5175
    %v5188 = vshrl.u32 920167782, %v5176
    %v5189 = vor.u32 %v5187, %v5188
    %v5190 = vshll.u32 920167782, %v5175
    %v5191 = vshrl.u32 1326507024, %v5176
    %v5192 = vor.u32 %v5190, %v5191
    %vm5193 = vcmp.lt.s32.totalorder %v5174, 1
    %vm5194 = vcmp.lt.s32.totalorder %v5174, 2
    %vm5195 = vcmp.lt.s32.totalorder %v5174, 3
    %vm5196 = vcmp.lt.s32.totalorder %v5174, 4
    %v5197 = vsel %vm5193, %v5177, %v5180
    %v5198 = vsel %vm5196, %v5186, 2102212464
    %v5199 = vsel %vm5195, %v5183, %v5198
    %v5200 = vsel %vm5194, %v5197, %v5199
    %v5201 = vsel %vm5193, %v5180, %v5183
    %v5202 = vsel %vm5196, %v5189, 920167782
    %v5203 = vsel %vm5195, %v5186, %v5202
    %v5204 = vsel %vm5194, %v5201, %v5203
    %v5205 = vsel %vm5193, %v5183, %v5186
    %v5206 = vsel %vm5196, %v5192, 1326507024
    %v5207 = vsel %vm5195, %v5189, %v5206
    %v5208 = vsel %vm5194, %v5205, %v5207
    %v5209 = vshll.u32 %v5169, 8
    %v5210 = vmul.u32.u64.compose %v5209, %v5208
    %v5211 = vextract.low.u32 %v5210
    %v5212 = vextract.high.u32 %v5210
    %v5213 = vmul.u32.u64.compose %v5209, %v5204
    %v5214 = vextract.low.u32 %v5213
    %v5215 = vextract.high.u32 %v5213
    %v5216 = vmul.u32 %v5209, %v5200
    %v5217 = vadd.s32 %v5212, %v5214
    %vm5218 = vc.u32 %v5212, %v5214
    %v5219 = vadd.s32 %v5215, 1
    %v5220 = vsel %vm5218, %v5219, %v5215
    %v5221 = vadd.s32 %v5216, %v5220
    %v5222 = vadd.s32 %v5221, 536870912
    %v5223 = vshrl.u32 %v5222, 30
    %v5224 = vshll.u32 %v5223, 30
    %v5225 = vsub.s32 %v5221, %v5224
    %vm5226 = vcmp.lt.s32.totalorder %v5225, 0
    %v5227 = vsub.s32 0, %v5225
    %v5228 = vsel %vm5226, %v5227, %v5225
    %v5229 = vclz %v5228
    %v5230 = vsub.s32 %v5229, 2
    %vm5231 = vcmp.gt.s32.totalorder 0, %v5230
    %v5232 = vsel %vm5231, 0, %v5230
    %v5233 = vsub.s32 32, %v5232
    %v5234 = vshll.u32 %v5225, %v5232
    %v5235 = vshrl.u32 %v5217, %v5233
    %v5236 = vor.u32 %v5234, %v5235
    %v5237 = vsub.s32 4294967266, %v5232
    %v5238 = vadd.s32 %v5237, 127
    %v5239 = vshll.u32 %v5238, 23
    %v5240 = vor.u32 4788187, %v5239
    %v5241 = vand.u32 2147483647, %v5240
    %v5243 = vcvt.s32.f32 %v5236
    %v5244 = vmul.f32 %v5243, %v5241
    %v5245 = vxor.u32 %v5244, 2147483648
    %v5246 = vsel %vm5163, %v5245, %v5244
    %v5247 = vsub.s32 4, %v5223
    %v5248 = vsel %vm5163, %v5247, %v5223
    %v5249 = vsel %vm5162, %v3909, %v5246
    %v5250 = vsel %vm5162, 0, %v5248
    %v5251 = vcosq.f32.pop %v5249
    %v5252 = vsinq.f32.pop %v5249
    %vm5253 = vweird.f32 %v3909
    %v5254 = vadd.s32 %v5250, 3
    %v5255 = vand.u32 %v5254, 3
    %vm5256 = vcmp.lt.s32.totalorder %v5255, 2
    %vm5257 = vcmp.eq.s32.totalorder %v5255, 0
    %v5258 = vxor.u32 %v5252, 2147483648
    %v5259 = vsel %vm5257, %v5251, %v5258
    %vm5260 = vcmp.eq.s32.totalorder %v5255, 2
    %v5261 = vxor.u32 %v5251, 2147483648
    %v5262 = vsel %vm5260, %v5261, %v5252
    %v5263 = vsel %vm5256, %v5259, %v5262
    %v5264 = vsel %vm5253, nan, %v5263
    %v5265 = vand.u32 2147483647, %v3910
    %vm5266 = vcmp.le.f32.partialorder %v5265, 0.7853982
    %vm5267 = vcmp.lt.s32.totalorder %v3910, 0
    %v5268 = vand.u32 %v3910, 2139095040
    %v5269 = vshrl.u32 %v5268, 23
    %v5270 = vsub.s32 %v5269, 127
    %v5271 = vand.u32 2147483647, %v3910
    %v5272 = vand.u32 %v5271, 8388607
    %v5273 = vor.u32 %v5272, 8388608
    %v5274 = vsub.s32 0, %v5273
    %v5275 = vadd.s32 %v5270, 1
    %vm5276 = vcmp.gt.s32.totalorder %v5275, 0
    %v5277 = vsel %vm5276, %v5275, 0
    %v5278 = vshrl.u32 %v5277, 5
    %v5279 = vand.u32 %v5277, 31
    %v5280 = vsub.s32 32, %v5279
    %v5281 = vshrl.u32 683565275, %v5280
    %v5282 = vshll.u32 683565275, %v5279
    %v5283 = vshrl.u32 2475754826, %v5280
    %v5284 = vor.u32 %v5282, %v5283
    %v5285 = vshll.u32 2475754826, %v5279
    %v5286 = vshrl.u32 2131351028, %v5280
    %v5287 = vor.u32 %v5285, %v5286
    %v5288 = vshll.u32 2131351028, %v5279
    %v5289 = vshrl.u32 2102212464, %v5280
    %v5290 = vor.u32 %v5288, %v5289
    %v5291 = vshll.u32 2102212464, %v5279
    %v5292 = vshrl.u32 920167782, %v5280
    %v5293 = vor.u32 %v5291, %v5292
    %v5294 = vshll.u32 920167782, %v5279
    %v5295 = vshrl.u32 1326507024, %v5280
    %v5296 = vor.u32 %v5294, %v5295
    %vm5297 = vcmp.lt.s32.totalorder %v5278, 1
    %vm5298 = vcmp.lt.s32.totalorder %v5278, 2
    %vm5299 = vcmp.lt.s32.totalorder %v5278, 3
    %vm5300 = vcmp.lt.s32.totalorder %v5278, 4
    %v5301 = vsel %vm5297, %v5281, %v5284
    %v5302 = vsel %vm5300, %v5290, 2102212464
    %v5303 = vsel %vm5299, %v5287, %v5302
    %v5304 = vsel %vm5298, %v5301, %v5303
    %v5305 = vsel %vm5297, %v5284, %v5287
    %v5306 = vsel %vm5300, %v5293, 920167782
    %v5307 = vsel %vm5299, %v5290, %v5306
    %v5308 = vsel %vm5298, %v5305, %v5307
    %v5309 = vsel %vm5297, %v5287, %v5290
    %v5310 = vsel %vm5300, %v5296, 1326507024
    %v5311 = vsel %vm5299, %v5293, %v5310
    %v5312 = vsel %vm5298, %v5309, %v5311
    %v5313 = vshll.u32 %v5273, 8
    %v5314 = vmul.u32.u64.compose %v5313, %v5312
    %v5315 = vextract.low.u32 %v5314
    %v5316 = vextract.high.u32 %v5314
    %v5317 = vmul.u32.u64.compose %v5313, %v5308
    %v5318 = vextract.low.u32 %v5317
    %v5319 = vextract.high.u32 %v5317
    %v5320 = vmul.u32 %v5313, %v5304
    %v5321 = vadd.s32 %v5316, %v5318
    %vm5322 = vc.u32 %v5316, %v5318
    %v5323 = vadd.s32 %v5319, 1
    %v5324 = vsel %vm5322, %v5323, %v5319
    %v5325 = vadd.s32 %v5320, %v5324
    %v5326 = vadd.s32 %v5325, 536870912
    %v5327 = vshrl.u32 %v5326, 30
    %v5328 = vshll.u32 %v5327, 30
    %v5329 = vsub.s32 %v5325, %v5328
    %vm5330 = vcmp.lt.s32.totalorder %v5329, 0
    %v5331 = vsub.s32 0, %v5329
    %v5332 = vsel %vm5330, %v5331, %v5329
    %v5333 = vclz %v5332
    %v5334 = vsub.s32 %v5333, 2
    %vm5335 = vcmp.gt.s32.totalorder 0, %v5334
    %v5336 = vsel %vm5335, 0, %v5334
    %v5337 = vsub.s32 32, %v5336
    %v5338 = vshll.u32 %v5329, %v5336
    %v5339 = vshrl.u32 %v5321, %v5337
    %v5340 = vor.u32 %v5338, %v5339
    %v5341 = vsub.s32 4294967266, %v5336
    %v5342 = vadd.s32 %v5341, 127
    %v5343 = vshll.u32 %v5342, 23
    %v5344 = vor.u32 4788187, %v5343
    %v5345 = vand.u32 2147483647, %v5344
    %v5347 = vcvt.s32.f32 %v5340
    %v5348 = vmul.f32 %v5347, %v5345
    %v5349 = vxor.u32 %v5348, 2147483648
    %v5350 = vsel %vm5267, %v5349, %v5348
    %v5351 = vsub.s32 4, %v5327
    %v5352 = vsel %vm5267, %v5351, %v5327
    %v5353 = vsel %vm5266, %v3910, %v5350
    %v5354 = vsel %vm5266, 0, %v5352
    %v5355 = vcosq.f32.pop %v5353
    %v5356 = vsinq.f32.pop %v5353
    %vm5357 = vweird.f32 %v3910
    %v5358 = vadd.s32 %v5354, 3
    %v5359 = vand.u32 %v5358, 3
    %vm5360 = vcmp.lt.s32.totalorder %v5359, 2
    %vm5361 = vcmp.eq.s32.totalorder %v5359, 0
    %v5362 = vxor.u32 %v5356, 2147483648
    %v5363 = vsel %vm5361, %v5355, %v5362
    %vm5364 = vcmp.eq.s32.totalorder %v5359, 2
    %v5365 = vxor.u32 %v5355, 2147483648
    %v5366 = vsel %vm5364, %v5365, %v5356
    %v5367 = vsel %vm5360, %v5363, %v5366
    %v5368 = vsel %vm5357, nan, %v5367
    %v5369 = vand.u32 2147483647, %v3911
    %vm5370 = vcmp.le.f32.partialorder %v5369, 0.7853982
    %vm5371 = vcmp.lt.s32.totalorder %v3911, 0
    %v5372 = vand.u32 %v3911, 2139095040
    %v5373 = vshrl.u32 %v5372, 23
    %v5374 = vsub.s32 %v5373, 127
    %v5375 = vand.u32 2147483647, %v3911
    %v5376 = vand.u32 %v5375, 8388607
    %v5377 = vor.u32 %v5376, 8388608
    %v5378 = vsub.s32 0, %v5377
    %v5379 = vadd.s32 %v5374, 1
    %vm5380 = vcmp.gt.s32.totalorder %v5379, 0
    %v5381 = vsel %vm5380, %v5379, 0
    %v5382 = vshrl.u32 %v5381, 5
    %v5383 = vand.u32 %v5381, 31
    %v5384 = vsub.s32 32, %v5383
    %v5385 = vshrl.u32 683565275, %v5384
    %v5386 = vshll.u32 683565275, %v5383
    %v5387 = vshrl.u32 2475754826, %v5384
    %v5388 = vor.u32 %v5386, %v5387
    %v5389 = vshll.u32 2475754826, %v5383
    %v5390 = vshrl.u32 2131351028, %v5384
    %v5391 = vor.u32 %v5389, %v5390
    %v5392 = vshll.u32 2131351028, %v5383
    %v5393 = vshrl.u32 2102212464, %v5384
    %v5394 = vor.u32 %v5392, %v5393
    %v5395 = vshll.u32 2102212464, %v5383
    %v5396 = vshrl.u32 920167782, %v5384
    %v5397 = vor.u32 %v5395, %v5396
    %v5398 = vshll.u32 920167782, %v5383
    %v5399 = vshrl.u32 1326507024, %v5384
    %v5400 = vor.u32 %v5398, %v5399
    %vm5401 = vcmp.lt.s32.totalorder %v5382, 1
    %vm5402 = vcmp.lt.s32.totalorder %v5382, 2
    %vm5403 = vcmp.lt.s32.totalorder %v5382, 3
    %vm5404 = vcmp.lt.s32.totalorder %v5382, 4
    %v5405 = vsel %vm5401, %v5385, %v5388
    %v5406 = vsel %vm5404, %v5394, 2102212464
    %v5407 = vsel %vm5403, %v5391, %v5406
    %v5408 = vsel %vm5402, %v5405, %v5407
    %v5409 = vsel %vm5401, %v5388, %v5391
    %v5410 = vsel %vm5404, %v5397, 920167782
    %v5411 = vsel %vm5403, %v5394, %v5410
    %v5412 = vsel %vm5402, %v5409, %v5411
    %v5413 = vsel %vm5401, %v5391, %v5394
    %v5414 = vsel %vm5404, %v5400, 1326507024
    %v5415 = vsel %vm5403, %v5397, %v5414
    %v5416 = vsel %vm5402, %v5413, %v5415
    %v5417 = vshll.u32 %v5377, 8
    %v5418 = vmul.u32.u64.compose %v5417, %v5416
    %v5419 = vextract.low.u32 %v5418
    %v5420 = vextract.high.u32 %v5418
    %v5421 = vmul.u32.u64.compose %v5417, %v5412
    %v5422 = vextract.low.u32 %v5421
    %v5423 = vextract.high.u32 %v5421
    %v5424 = vmul.u32 %v5417, %v5408
    %v5425 = vadd.s32 %v5420, %v5422
    %vm5426 = vc.u32 %v5420, %v5422
    %v5427 = vadd.s32 %v5423, 1
    %v5428 = vsel %vm5426, %v5427, %v5423
    %v5429 = vadd.s32 %v5424, %v5428
    %v5430 = vadd.s32 %v5429, 536870912
    %v5431 = vshrl.u32 %v5430, 30
    %v5432 = vshll.u32 %v5431, 30
    %v5433 = vsub.s32 %v5429, %v5432
    %vm5434 = vcmp.lt.s32.totalorder %v5433, 0
    %v5435 = vsub.s32 0, %v5433
    %v5436 = vsel %vm5434, %v5435, %v5433
    %v5437 = vclz %v5436
    %v5438 = vsub.s32 %v5437, 2
    %vm5439 = vcmp.gt.s32.totalorder 0, %v5438
    %v5440 = vsel %vm5439, 0, %v5438
    %v5441 = vsub.s32 32, %v5440
    %v5442 = vshll.u32 %v5433, %v5440
    %v5443 = vshrl.u32 %v5425, %v5441
    %v5444 = vor.u32 %v5442, %v5443
    %v5445 = vsub.s32 4294967266, %v5440
    %v5446 = vadd.s32 %v5445, 127
    %v5447 = vshll.u32 %v5446, 23
    %v5448 = vor.u32 4788187, %v5447
    %v5449 = vand.u32 2147483647, %v5448
    %v5451 = vcvt.s32.f32 %v5444
    %v5452 = vmul.f32 %v5451, %v5449
    %v5453 = vxor.u32 %v5452, 2147483648
    %v5454 = vsel %vm5371, %v5453, %v5452
    %v5455 = vsub.s32 4, %v5431
    %v5456 = vsel %vm5371, %v5455, %v5431
    %v5457 = vsel %vm5370, %v3911, %v5454
    %v5458 = vsel %vm5370, 0, %v5456
    %v5459 = vcosq.f32.pop %v5457
    %v5460 = vsinq.f32.pop %v5457
    %vm5461 = vweird.f32 %v3911
    %v5462 = vadd.s32 %v5458, 3
    %v5463 = vand.u32 %v5462, 3
    %vm5464 = vcmp.lt.s32.totalorder %v5463, 2
    %vm5465 = vcmp.eq.s32.totalorder %v5463, 0
    %v5466 = vxor.u32 %v5460, 2147483648
    %v5467 = vsel %vm5465, %v5459, %v5466
    %vm5468 = vcmp.eq.s32.totalorder %v5463, 2
    %v5469 = vxor.u32 %v5459, 2147483648
    %v5470 = vsel %vm5468, %v5469, %v5460
    %v5471 = vsel %vm5464, %v5467, %v5470
    %v5472 = vsel %vm5461, nan, %v5471
    %v5473 = vand.u32 2147483647, %v3912
    %vm5474 = vcmp.le.f32.partialorder %v5473, 0.7853982
    %vm5475 = vcmp.lt.s32.totalorder %v3912, 0
    %v5476 = vand.u32 %v3912, 2139095040
    %v5477 = vshrl.u32 %v5476, 23
    %v5478 = vsub.s32 %v5477, 127
    %v5479 = vand.u32 2147483647, %v3912
    %v5480 = vand.u32 %v5479, 8388607
    %v5481 = vor.u32 %v5480, 8388608
    %v5482 = vsub.s32 0, %v5481
    %v5483 = vadd.s32 %v5478, 1
    %vm5484 = vcmp.gt.s32.totalorder %v5483, 0
    %v5485 = vsel %vm5484, %v5483, 0
    %v5486 = vshrl.u32 %v5485, 5
    %v5487 = vand.u32 %v5485, 31
    %v5488 = vsub.s32 32, %v5487
    %v5489 = vshrl.u32 683565275, %v5488
    %v5490 = vshll.u32 683565275, %v5487
    %v5491 = vshrl.u32 2475754826, %v5488
    %v5492 = vor.u32 %v5490, %v5491
    %v5493 = vshll.u32 2475754826, %v5487
    %v5494 = vshrl.u32 2131351028, %v5488
    %v5495 = vor.u32 %v5493, %v5494
    %v5496 = vshll.u32 2131351028, %v5487
    %v5497 = vshrl.u32 2102212464, %v5488
    %v5498 = vor.u32 %v5496, %v5497
    %v5499 = vshll.u32 2102212464, %v5487
    %v5500 = vshrl.u32 920167782, %v5488
    %v5501 = vor.u32 %v5499, %v5500
    %v5502 = vshll.u32 920167782, %v5487
    %v5503 = vshrl.u32 1326507024, %v5488
    %v5504 = vor.u32 %v5502, %v5503
    %vm5505 = vcmp.lt.s32.totalorder %v5486, 1
    %vm5506 = vcmp.lt.s32.totalorder %v5486, 2
    %vm5507 = vcmp.lt.s32.totalorder %v5486, 3
    %vm5508 = vcmp.lt.s32.totalorder %v5486, 4
    %v5509 = vsel %vm5505, %v5489, %v5492
    %v5510 = vsel %vm5508, %v5498, 2102212464
    %v5511 = vsel %vm5507, %v5495, %v5510
    %v5512 = vsel %vm5506, %v5509, %v5511
    %v5513 = vsel %vm5505, %v5492, %v5495
    %v5514 = vsel %vm5508, %v5501, 920167782
    %v5515 = vsel %vm5507, %v5498, %v5514
    %v5516 = vsel %vm5506, %v5513, %v5515
    %v5517 = vsel %vm5505, %v5495, %v5498
    %v5518 = vsel %vm5508, %v5504, 1326507024
    %v5519 = vsel %vm5507, %v5501, %v5518
    %v5520 = vsel %vm5506, %v5517, %v5519
    %v5521 = vshll.u32 %v5481, 8
    %v5522 = vmul.u32.u64.compose %v5521, %v5520
    %v5523 = vextract.low.u32 %v5522
    %v5524 = vextract.high.u32 %v5522
    %v5525 = vmul.u32.u64.compose %v5521, %v5516
    %v5526 = vextract.low.u32 %v5525
    %v5527 = vextract.high.u32 %v5525
    %v5528 = vmul.u32 %v5521, %v5512
    %v5529 = vadd.s32 %v5524, %v5526
    %vm5530 = vc.u32 %v5524, %v5526
    %v5531 = vadd.s32 %v5527, 1
    %v5532 = vsel %vm5530, %v5531, %v5527
    %v5533 = vadd.s32 %v5528, %v5532
    %v5534 = vadd.s32 %v5533, 536870912
    %v5535 = vshrl.u32 %v5534, 30
    %v5536 = vshll.u32 %v5535, 30
    %v5537 = vsub.s32 %v5533, %v5536
    %vm5538 = vcmp.lt.s32.totalorder %v5537, 0
    %v5539 = vsub.s32 0, %v5537
    %v5540 = vsel %vm5538, %v5539, %v5537
    %v5541 = vclz %v5540
    %v5542 = vsub.s32 %v5541, 2
    %vm5543 = vcmp.gt.s32.totalorder 0, %v5542
    %v5544 = vsel %vm5543, 0, %v5542
    %v5545 = vsub.s32 32, %v5544
    %v5546 = vshll.u32 %v5537, %v5544
    %v5547 = vshrl.u32 %v5529, %v5545
    %v5548 = vor.u32 %v5546, %v5547
    %v5549 = vsub.s32 4294967266, %v5544
    %v5550 = vadd.s32 %v5549, 127
    %v5551 = vshll.u32 %v5550, 23
    %v5552 = vor.u32 4788187, %v5551
    %v5553 = vand.u32 2147483647, %v5552
    %v5555 = vcvt.s32.f32 %v5548
    %v5556 = vmul.f32 %v5555, %v5553
    %v5557 = vxor.u32 %v5556, 2147483648
    %v5558 = vsel %vm5475, %v5557, %v5556
    %v5559 = vsub.s32 4, %v5535
    %v5560 = vsel %vm5475, %v5559, %v5535
    %v5561 = vsel %vm5474, %v3912, %v5558
    %v5562 = vsel %vm5474, 0, %v5560
    %v5563 = vcosq.f32.pop %v5561
    %v5564 = vsinq.f32.pop %v5561
    %vm5565 = vweird.f32 %v3912
    %v5566 = vadd.s32 %v5562, 3
    %v5567 = vand.u32 %v5566, 3
    %vm5568 = vcmp.lt.s32.totalorder %v5567, 2
    %vm5569 = vcmp.eq.s32.totalorder %v5567, 0
    %v5570 = vxor.u32 %v5564, 2147483648
    %v5571 = vsel %vm5569, %v5563, %v5570
    %vm5572 = vcmp.eq.s32.totalorder %v5567, 2
    %v5573 = vxor.u32 %v5563, 2147483648
    %v5574 = vsel %vm5572, %v5573, %v5564
    %v5575 = vsel %vm5568, %v5571, %v5574
    %v5576 = vsel %vm5565, nan, %v5575
    %v5577 = vand.u32 2147483647, %v3897
    %vm5578 = vcmp.le.f32.partialorder %v5577, 0.7853982
    %vm5579 = vcmp.lt.s32.totalorder %v3897, 0
    %v5580 = vand.u32 %v3897, 2139095040
    %v5581 = vshrl.u32 %v5580, 23
    %v5582 = vsub.s32 %v5581, 127
    %v5583 = vand.u32 2147483647, %v3897
    %v5584 = vand.u32 %v5583, 8388607
    %v5585 = vor.u32 %v5584, 8388608
    %v5586 = vsub.s32 0, %v5585
    %v5587 = vadd.s32 %v5582, 1
    %vm5588 = vcmp.gt.s32.totalorder %v5587, 0
    %v5589 = vsel %vm5588, %v5587, 0
    %v5590 = vshrl.u32 %v5589, 5
    %v5591 = vand.u32 %v5589, 31
    %v5592 = vsub.s32 32, %v5591
    %v5593 = vshrl.u32 683565275, %v5592
    %v5594 = vshll.u32 683565275, %v5591
    %v5595 = vshrl.u32 2475754826, %v5592
    %v5596 = vor.u32 %v5594, %v5595
    %v5597 = vshll.u32 2475754826, %v5591
    %v5598 = vshrl.u32 2131351028, %v5592
    %v5599 = vor.u32 %v5597, %v5598
    %v5600 = vshll.u32 2131351028, %v5591
    %v5601 = vshrl.u32 2102212464, %v5592
    %v5602 = vor.u32 %v5600, %v5601
    %v5603 = vshll.u32 2102212464, %v5591
    %v5604 = vshrl.u32 920167782, %v5592
    %v5605 = vor.u32 %v5603, %v5604
    %v5606 = vshll.u32 920167782, %v5591
    %v5607 = vshrl.u32 1326507024, %v5592
    %v5608 = vor.u32 %v5606, %v5607
    %vm5609 = vcmp.lt.s32.totalorder %v5590, 1
    %vm5610 = vcmp.lt.s32.totalorder %v5590, 2
    %vm5611 = vcmp.lt.s32.totalorder %v5590, 3
    %vm5612 = vcmp.lt.s32.totalorder %v5590, 4
    %v5613 = vsel %vm5609, %v5593, %v5596
    %v5614 = vsel %vm5612, %v5602, 2102212464
    %v5615 = vsel %vm5611, %v5599, %v5614
    %v5616 = vsel %vm5610, %v5613, %v5615
    %v5617 = vsel %vm5609, %v5596, %v5599
    %v5618 = vsel %vm5612, %v5605, 920167782
    %v5619 = vsel %vm5611, %v5602, %v5618
    %v5620 = vsel %vm5610, %v5617, %v5619
    %v5621 = vsel %vm5609, %v5599, %v5602
    %v5622 = vsel %vm5612, %v5608, 1326507024
    %v5623 = vsel %vm5611, %v5605, %v5622
    %v5624 = vsel %vm5610, %v5621, %v5623
    %v5625 = vshll.u32 %v5585, 8
    %v5626 = vmul.u32.u64.compose %v5625, %v5624
    %v5627 = vextract.low.u32 %v5626
    %v5628 = vextract.high.u32 %v5626
    %v5629 = vmul.u32.u64.compose %v5625, %v5620
    %v5630 = vextract.low.u32 %v5629
    %v5631 = vextract.high.u32 %v5629
    %v5632 = vmul.u32 %v5625, %v5616
    %v5633 = vadd.s32 %v5628, %v5630
    %vm5634 = vc.u32 %v5628, %v5630
    %v5635 = vadd.s32 %v5631, 1
    %v5636 = vsel %vm5634, %v5635, %v5631
    %v5637 = vadd.s32 %v5632, %v5636
    %v5638 = vadd.s32 %v5637, 536870912
    %v5639 = vshrl.u32 %v5638, 30
    %v5640 = vshll.u32 %v5639, 30
    %v5641 = vsub.s32 %v5637, %v5640
    %vm5642 = vcmp.lt.s32.totalorder %v5641, 0
    %v5643 = vsub.s32 0, %v5641
    %v5644 = vsel %vm5642, %v5643, %v5641
    %v5645 = vclz %v5644
    %v5646 = vsub.s32 %v5645, 2
    %vm5647 = vcmp.gt.s32.totalorder 0, %v5646
    %v5648 = vsel %vm5647, 0, %v5646
    %v5649 = vsub.s32 32, %v5648
    %v5650 = vshll.u32 %v5641, %v5648
    %v5651 = vshrl.u32 %v5633, %v5649
    %v5652 = vor.u32 %v5650, %v5651
    %v5653 = vsub.s32 4294967266, %v5648
    %v5654 = vadd.s32 %v5653, 127
    %v5655 = vshll.u32 %v5654, 23
    %v5656 = vor.u32 4788187, %v5655
    %v5657 = vand.u32 2147483647, %v5656
    %v5659 = vcvt.s32.f32 %v5652
    %v5660 = vmul.f32 %v5659, %v5657
    %v5661 = vxor.u32 %v5660, 2147483648
    %v5662 = vsel %vm5579, %v5661, %v5660
    %v5663 = vsub.s32 4, %v5639
    %v5664 = vsel %vm5579, %v5663, %v5639
    %v5665 = vsel %vm5578, %v3897, %v5662
    %v5666 = vsel %vm5578, 0, %v5664
    %v5667 = vcosq.f32.pop %v5665
    %v5668 = vsinq.f32.pop %v5665
    %vm5669 = vweird.f32 %v3897
    %v5670 = vand.u32 %v5666, 3
    %vm5671 = vcmp.lt.s32.totalorder %v5670, 2
    %vm5672 = vcmp.eq.s32.totalorder %v5670, 0
    %v5673 = vxor.u32 %v5668, 2147483648
    %v5674 = vsel %vm5672, %v5667, %v5673
    %vm5675 = vcmp.eq.s32.totalorder %v5670, 2
    %v5676 = vxor.u32 %v5667, 2147483648
    %v5677 = vsel %vm5675, %v5676, %v5668
    %v5678 = vsel %vm5671, %v5674, %v5677
    %v5679 = vsel %vm5669, nan, %v5678
    %v5680 = vand.u32 2147483647, %v3898
    %vm5681 = vcmp.le.f32.partialorder %v5680, 0.7853982
    %vm5682 = vcmp.lt.s32.totalorder %v3898, 0
    %v5683 = vand.u32 %v3898, 2139095040
    %v5684 = vshrl.u32 %v5683, 23
    %v5685 = vsub.s32 %v5684, 127
    %v5686 = vand.u32 2147483647, %v3898
    %v5687 = vand.u32 %v5686, 8388607
    %v5688 = vor.u32 %v5687, 8388608
    %v5689 = vsub.s32 0, %v5688
    %v5690 = vadd.s32 %v5685, 1
    %vm5691 = vcmp.gt.s32.totalorder %v5690, 0
    %v5692 = vsel %vm5691, %v5690, 0
    %v5693 = vshrl.u32 %v5692, 5
    %v5694 = vand.u32 %v5692, 31
    %v5695 = vsub.s32 32, %v5694
    %v5696 = vshrl.u32 683565275, %v5695
    %v5697 = vshll.u32 683565275, %v5694
    %v5698 = vshrl.u32 2475754826, %v5695
    %v5699 = vor.u32 %v5697, %v5698
    %v5700 = vshll.u32 2475754826, %v5694
    %v5701 = vshrl.u32 2131351028, %v5695
    %v5702 = vor.u32 %v5700, %v5701
    %v5703 = vshll.u32 2131351028, %v5694
    %v5704 = vshrl.u32 2102212464, %v5695
    %v5705 = vor.u32 %v5703, %v5704
    %v5706 = vshll.u32 2102212464, %v5694
    %v5707 = vshrl.u32 920167782, %v5695
    %v5708 = vor.u32 %v5706, %v5707
    %v5709 = vshll.u32 920167782, %v5694
    %v5710 = vshrl.u32 1326507024, %v5695
    %v5711 = vor.u32 %v5709, %v5710
    %vm5712 = vcmp.lt.s32.totalorder %v5693, 1
    %vm5713 = vcmp.lt.s32.totalorder %v5693, 2
    %vm5714 = vcmp.lt.s32.totalorder %v5693, 3
    %vm5715 = vcmp.lt.s32.totalorder %v5693, 4
    %v5716 = vsel %vm5712, %v5696, %v5699
    %v5717 = vsel %vm5715, %v5705, 2102212464
    %v5718 = vsel %vm5714, %v5702, %v5717
    %v5719 = vsel %vm5713, %v5716, %v5718
    %v5720 = vsel %vm5712, %v5699, %v5702
    %v5721 = vsel %vm5715, %v5708, 920167782
    %v5722 = vsel %vm5714, %v5705, %v5721
    %v5723 = vsel %vm5713, %v5720, %v5722
    %v5724 = vsel %vm5712, %v5702, %v5705
    %v5725 = vsel %vm5715, %v5711, 1326507024
    %v5726 = vsel %vm5714, %v5708, %v5725
    %v5727 = vsel %vm5713, %v5724, %v5726
    %v5728 = vshll.u32 %v5688, 8
    %v5729 = vmul.u32.u64.compose %v5728, %v5727
    %v5730 = vextract.low.u32 %v5729
    %v5731 = vextract.high.u32 %v5729
    %v5732 = vmul.u32.u64.compose %v5728, %v5723
    %v5733 = vextract.low.u32 %v5732
    %v5734 = vextract.high.u32 %v5732
    %v5735 = vmul.u32 %v5728, %v5719
    %v5736 = vadd.s32 %v5731, %v5733
    %vm5737 = vc.u32 %v5731, %v5733
    %v5738 = vadd.s32 %v5734, 1
    %v5739 = vsel %vm5737, %v5738, %v5734
    %v5740 = vadd.s32 %v5735, %v5739
    %v5741 = vadd.s32 %v5740, 536870912
    %v5742 = vshrl.u32 %v5741, 30
    %v5743 = vshll.u32 %v5742, 30
    %v5744 = vsub.s32 %v5740, %v5743
    %vm5745 = vcmp.lt.s32.totalorder %v5744, 0
    %v5746 = vsub.s32 0, %v5744
    %v5747 = vsel %vm5745, %v5746, %v5744
    %v5748 = vclz %v5747
    %v5749 = vsub.s32 %v5748, 2
    %vm5750 = vcmp.gt.s32.totalorder 0, %v5749
    %v5751 = vsel %vm5750, 0, %v5749
    %v5752 = vsub.s32 32, %v5751
    %v5753 = vshll.u32 %v5744, %v5751
    %v5754 = vshrl.u32 %v5736, %v5752
    %v5755 = vor.u32 %v5753, %v5754
    %v5756 = vsub.s32 4294967266, %v5751
    %v5757 = vadd.s32 %v5756, 127
    %v5758 = vshll.u32 %v5757, 23
    %v5759 = vor.u32 4788187, %v5758
    %v5760 = vand.u32 2147483647, %v5759
    %v5762 = vcvt.s32.f32 %v5755
    %v5763 = vmul.f32 %v5762, %v5760
    %v5764 = vxor.u32 %v5763, 2147483648
    %v5765 = vsel %vm5682, %v5764, %v5763
    %v5766 = vsub.s32 4, %v5742
    %v5767 = vsel %vm5682, %v5766, %v5742
    %v5768 = vsel %vm5681, %v3898, %v5765
    %v5769 = vsel %vm5681, 0, %v5767
    %v5770 = vcosq.f32.pop %v5768
    %v5771 = vsinq.f32.pop %v5768
    %vm5772 = vweird.f32 %v3898
    %v5773 = vand.u32 %v5769, 3
    %vm5774 = vcmp.lt.s32.totalorder %v5773, 2
    %vm5775 = vcmp.eq.s32.totalorder %v5773, 0
    %v5776 = vxor.u32 %v5771, 2147483648
    %v5777 = vsel %vm5775, %v5770, %v5776
    %vm5778 = vcmp.eq.s32.totalorder %v5773, 2
    %v5779 = vxor.u32 %v5770, 2147483648
    %v5780 = vsel %vm5778, %v5779, %v5771
    %v5781 = vsel %vm5774, %v5777, %v5780
    %v5782 = vsel %vm5772, nan, %v5781
    %v5783 = vand.u32 2147483647, %v3899
    %vm5784 = vcmp.le.f32.partialorder %v5783, 0.7853982
    %vm5785 = vcmp.lt.s32.totalorder %v3899, 0
    %v5786 = vand.u32 %v3899, 2139095040
    %v5787 = vshrl.u32 %v5786, 23
    %v5788 = vsub.s32 %v5787, 127
    %v5789 = vand.u32 2147483647, %v3899
    %v5790 = vand.u32 %v5789, 8388607
    %v5791 = vor.u32 %v5790, 8388608
    %v5792 = vsub.s32 0, %v5791
    %v5793 = vadd.s32 %v5788, 1
    %vm5794 = vcmp.gt.s32.totalorder %v5793, 0
    %v5795 = vsel %vm5794, %v5793, 0
    %v5796 = vshrl.u32 %v5795, 5
    %v5797 = vand.u32 %v5795, 31
    %v5798 = vsub.s32 32, %v5797
    %v5799 = vshrl.u32 683565275, %v5798
    %v5800 = vshll.u32 683565275, %v5797
    %v5801 = vshrl.u32 2475754826, %v5798
    %v5802 = vor.u32 %v5800, %v5801
    %v5803 = vshll.u32 2475754826, %v5797
    %v5804 = vshrl.u32 2131351028, %v5798
    %v5805 = vor.u32 %v5803, %v5804
    %v5806 = vshll.u32 2131351028, %v5797
    %v5807 = vshrl.u32 2102212464, %v5798
    %v5808 = vor.u32 %v5806, %v5807
    %v5809 = vshll.u32 2102212464, %v5797
    %v5810 = vshrl.u32 920167782, %v5798
    %v5811 = vor.u32 %v5809, %v5810
    %v5812 = vshll.u32 920167782, %v5797
    %v5813 = vshrl.u32 1326507024, %v5798
    %v5814 = vor.u32 %v5812, %v5813
    %vm5815 = vcmp.lt.s32.totalorder %v5796, 1
    %vm5816 = vcmp.lt.s32.totalorder %v5796, 2
    %vm5817 = vcmp.lt.s32.totalorder %v5796, 3
    %vm5818 = vcmp.lt.s32.totalorder %v5796, 4
    %v5819 = vsel %vm5815, %v5799, %v5802
    %v5820 = vsel %vm5818, %v5808, 2102212464
    %v5821 = vsel %vm5817, %v5805, %v5820
    %v5822 = vsel %vm5816, %v5819, %v5821
    %v5823 = vsel %vm5815, %v5802, %v5805
    %v5824 = vsel %vm5818, %v5811, 920167782
    %v5825 = vsel %vm5817, %v5808, %v5824
    %v5826 = vsel %vm5816, %v5823, %v5825
    %v5827 = vsel %vm5815, %v5805, %v5808
    %v5828 = vsel %vm5818, %v5814, 1326507024
    %v5829 = vsel %vm5817, %v5811, %v5828
    %v5830 = vsel %vm5816, %v5827, %v5829
    %v5831 = vshll.u32 %v5791, 8
    %v5832 = vmul.u32.u64.compose %v5831, %v5830
    %v5833 = vextract.low.u32 %v5832
    %v5834 = vextract.high.u32 %v5832
    %v5835 = vmul.u32.u64.compose %v5831, %v5826
    %v5836 = vextract.low.u32 %v5835
    %v5837 = vextract.high.u32 %v5835
    %v5838 = vmul.u32 %v5831, %v5822
    %v5839 = vadd.s32 %v5834, %v5836
    %vm5840 = vc.u32 %v5834, %v5836
    %v5841 = vadd.s32 %v5837, 1
    %v5842 = vsel %vm5840, %v5841, %v5837
    %v5843 = vadd.s32 %v5838, %v5842
    %v5844 = vadd.s32 %v5843, 536870912
    %v5845 = vshrl.u32 %v5844, 30
    %v5846 = vshll.u32 %v5845, 30
    %v5847 = vsub.s32 %v5843, %v5846
    %vm5848 = vcmp.lt.s32.totalorder %v5847, 0
    %v5849 = vsub.s32 0, %v5847
    %v5850 = vsel %vm5848, %v5849, %v5847
    %v5851 = vclz %v5850
    %v5852 = vsub.s32 %v5851, 2
    %vm5853 = vcmp.gt.s32.totalorder 0, %v5852
    %v5854 = vsel %vm5853, 0, %v5852
    %v5855 = vsub.s32 32, %v5854
    %v5856 = vshll.u32 %v5847, %v5854
    %v5857 = vshrl.u32 %v5839, %v5855
    %v5858 = vor.u32 %v5856, %v5857
    %v5859 = vsub.s32 4294967266, %v5854
    %v5860 = vadd.s32 %v5859, 127
    %v5861 = vshll.u32 %v5860, 23
    %v5862 = vor.u32 4788187, %v5861
    %v5863 = vand.u32 2147483647, %v5862
    %v5865 = vcvt.s32.f32 %v5858
    %v5866 = vmul.f32 %v5865, %v5863
    %v5867 = vxor.u32 %v5866, 2147483648
    %v5868 = vsel %vm5785, %v5867, %v5866
    %v5869 = vsub.s32 4, %v5845
    %v5870 = vsel %vm5785, %v5869, %v5845
    %v5871 = vsel %vm5784, %v3899, %v5868
    %v5872 = vsel %vm5784, 0, %v5870
    %v5873 = vcosq.f32.pop %v5871
    %v5874 = vsinq.f32.pop %v5871
    %vm5875 = vweird.f32 %v3899
    %v5876 = vand.u32 %v5872, 3
    %vm5877 = vcmp.lt.s32.totalorder %v5876, 2
    %vm5878 = vcmp.eq.s32.totalorder %v5876, 0
    %v5879 = vxor.u32 %v5874, 2147483648
    %v5880 = vsel %vm5878, %v5873, %v5879
    %vm5881 = vcmp.eq.s32.totalorder %v5876, 2
    %v5882 = vxor.u32 %v5873, 2147483648
    %v5883 = vsel %vm5881, %v5882, %v5874
    %v5884 = vsel %vm5877, %v5880, %v5883
    %v5885 = vsel %vm5875, nan, %v5884
    %v5886 = vand.u32 2147483647, %v3900
    %vm5887 = vcmp.le.f32.partialorder %v5886, 0.7853982
    %vm5888 = vcmp.lt.s32.totalorder %v3900, 0
    %v5889 = vand.u32 %v3900, 2139095040
    %v5890 = vshrl.u32 %v5889, 23
    %v5891 = vsub.s32 %v5890, 127
    %v5892 = vand.u32 2147483647, %v3900
    %v5893 = vand.u32 %v5892, 8388607
    %v5894 = vor.u32 %v5893, 8388608
    %v5895 = vsub.s32 0, %v5894
    %v5896 = vadd.s32 %v5891, 1
    %vm5897 = vcmp.gt.s32.totalorder %v5896, 0
    %v5898 = vsel %vm5897, %v5896, 0
    %v5899 = vshrl.u32 %v5898, 5
    %v5900 = vand.u32 %v5898, 31
    %v5901 = vsub.s32 32, %v5900
    %v5902 = vshrl.u32 683565275, %v5901
    %v5903 = vshll.u32 683565275, %v5900
    %v5904 = vshrl.u32 2475754826, %v5901
    %v5905 = vor.u32 %v5903, %v5904
    %v5906 = vshll.u32 2475754826, %v5900
    %v5907 = vshrl.u32 2131351028, %v5901
    %v5908 = vor.u32 %v5906, %v5907
    %v5909 = vshll.u32 2131351028, %v5900
    %v5910 = vshrl.u32 2102212464, %v5901
    %v5911 = vor.u32 %v5909, %v5910
    %v5912 = vshll.u32 2102212464, %v5900
    %v5913 = vshrl.u32 920167782, %v5901
    %v5914 = vor.u32 %v5912, %v5913
    %v5915 = vshll.u32 920167782, %v5900
    %v5916 = vshrl.u32 1326507024, %v5901
    %v5917 = vor.u32 %v5915, %v5916
    %vm5918 = vcmp.lt.s32.totalorder %v5899, 1
    %vm5919 = vcmp.lt.s32.totalorder %v5899, 2
    %vm5920 = vcmp.lt.s32.totalorder %v5899, 3
    %vm5921 = vcmp.lt.s32.totalorder %v5899, 4
    %v5922 = vsel %vm5918, %v5902, %v5905
    %v5923 = vsel %vm5921, %v5911, 2102212464
    %v5924 = vsel %vm5920, %v5908, %v5923
    %v5925 = vsel %vm5919, %v5922, %v5924
    %v5926 = vsel %vm5918, %v5905, %v5908
    %v5927 = vsel %vm5921, %v5914, 920167782
    %v5928 = vsel %vm5920, %v5911, %v5927
    %v5929 = vsel %vm5919, %v5926, %v5928
    %v5930 = vsel %vm5918, %v5908, %v5911
    %v5931 = vsel %vm5921, %v5917, 1326507024
    %v5932 = vsel %vm5920, %v5914, %v5931
    %v5933 = vsel %vm5919, %v5930, %v5932
    %v5934 = vshll.u32 %v5894, 8
    %v5935 = vmul.u32.u64.compose %v5934, %v5933
    %v5936 = vextract.low.u32 %v5935
    %v5937 = vextract.high.u32 %v5935
    %v5938 = vmul.u32.u64.compose %v5934, %v5929
    %v5939 = vextract.low.u32 %v5938
    %v5940 = vextract.high.u32 %v5938
    %v5941 = vmul.u32 %v5934, %v5925
    %v5942 = vadd.s32 %v5937, %v5939
    %vm5943 = vc.u32 %v5937, %v5939
    %v5944 = vadd.s32 %v5940, 1
    %v5945 = vsel %vm5943, %v5944, %v5940
    %v5946 = vadd.s32 %v5941, %v5945
    %v5947 = vadd.s32 %v5946, 536870912
    %v5948 = vshrl.u32 %v5947, 30
    %v5949 = vshll.u32 %v5948, 30
    %v5950 = vsub.s32 %v5946, %v5949
    %vm5951 = vcmp.lt.s32.totalorder %v5950, 0
    %v5952 = vsub.s32 0, %v5950
    %v5953 = vsel %vm5951, %v5952, %v5950
    %v5954 = vclz %v5953
    %v5955 = vsub.s32 %v5954, 2
    %vm5956 = vcmp.gt.s32.totalorder 0, %v5955
    %v5957 = vsel %vm5956, 0, %v5955
    %v5958 = vsub.s32 32, %v5957
    %v5959 = vshll.u32 %v5950, %v5957
    %v5960 = vshrl.u32 %v5942, %v5958
    %v5961 = vor.u32 %v5959, %v5960
    %v5962 = vsub.s32 4294967266, %v5957
    %v5963 = vadd.s32 %v5962, 127
    %v5964 = vshll.u32 %v5963, 23
    %v5965 = vor.u32 4788187, %v5964
    %v5966 = vand.u32 2147483647, %v5965
    %v5968 = vcvt.s32.f32 %v5961
    %v5969 = vmul.f32 %v5968, %v5966
    %v5970 = vxor.u32 %v5969, 2147483648
    %v5971 = vsel %vm5888, %v5970, %v5969
    %v5972 = vsub.s32 4, %v5948
    %v5973 = vsel %vm5888, %v5972, %v5948
    %v5974 = vsel %vm5887, %v3900, %v5971
    %v5975 = vsel %vm5887, 0, %v5973
    %v5976 = vcosq.f32.pop %v5974
    %v5977 = vsinq.f32.pop %v5974
    %vm5978 = vweird.f32 %v3900
    %v5979 = vand.u32 %v5975, 3
    %vm5980 = vcmp.lt.s32.totalorder %v5979, 2
    %vm5981 = vcmp.eq.s32.totalorder %v5979, 0
    %v5982 = vxor.u32 %v5977, 2147483648
    %v5983 = vsel %vm5981, %v5976, %v5982
    %vm5984 = vcmp.eq.s32.totalorder %v5979, 2
    %v5985 = vxor.u32 %v5976, 2147483648
    %v5986 = vsel %vm5984, %v5985, %v5977
    %v5987 = vsel %vm5980, %v5983, %v5986
    %v5988 = vsel %vm5978, nan, %v5987
    %v5989 = vand.u32 2147483647, %v3901
    %vm5990 = vcmp.le.f32.partialorder %v5989, 0.7853982
    %vm5991 = vcmp.lt.s32.totalorder %v3901, 0
    %v5992 = vand.u32 %v3901, 2139095040
    %v5993 = vshrl.u32 %v5992, 23
    %v5994 = vsub.s32 %v5993, 127
    %v5995 = vand.u32 2147483647, %v3901
    %v5996 = vand.u32 %v5995, 8388607
    %v5997 = vor.u32 %v5996, 8388608
    %v5998 = vsub.s32 0, %v5997
    %v5999 = vadd.s32 %v5994, 1
    %vm6000 = vcmp.gt.s32.totalorder %v5999, 0
    %v6001 = vsel %vm6000, %v5999, 0
    %v6002 = vshrl.u32 %v6001, 5
    %v6003 = vand.u32 %v6001, 31
    %v6004 = vsub.s32 32, %v6003
    %v6005 = vshrl.u32 683565275, %v6004
    %v6006 = vshll.u32 683565275, %v6003
    %v6007 = vshrl.u32 2475754826, %v6004
    %v6008 = vor.u32 %v6006, %v6007
    %v6009 = vshll.u32 2475754826, %v6003
    %v6010 = vshrl.u32 2131351028, %v6004
    %v6011 = vor.u32 %v6009, %v6010
    %v6012 = vshll.u32 2131351028, %v6003
    %v6013 = vshrl.u32 2102212464, %v6004
    %v6014 = vor.u32 %v6012, %v6013
    %v6015 = vshll.u32 2102212464, %v6003
    %v6016 = vshrl.u32 920167782, %v6004
    %v6017 = vor.u32 %v6015, %v6016
    %v6018 = vshll.u32 920167782, %v6003
    %v6019 = vshrl.u32 1326507024, %v6004
    %v6020 = vor.u32 %v6018, %v6019
    %vm6021 = vcmp.lt.s32.totalorder %v6002, 1
    %vm6022 = vcmp.lt.s32.totalorder %v6002, 2
    %vm6023 = vcmp.lt.s32.totalorder %v6002, 3
    %vm6024 = vcmp.lt.s32.totalorder %v6002, 4
    %v6025 = vsel %vm6021, %v6005, %v6008
    %v6026 = vsel %vm6024, %v6014, 2102212464
    %v6027 = vsel %vm6023, %v6011, %v6026
    %v6028 = vsel %vm6022, %v6025, %v6027
    %v6029 = vsel %vm6021, %v6008, %v6011
    %v6030 = vsel %vm6024, %v6017, 920167782
    %v6031 = vsel %vm6023, %v6014, %v6030
    %v6032 = vsel %vm6022, %v6029, %v6031
    %v6033 = vsel %vm6021, %v6011, %v6014
    %v6034 = vsel %vm6024, %v6020, 1326507024
    %v6035 = vsel %vm6023, %v6017, %v6034
    %v6036 = vsel %vm6022, %v6033, %v6035
    %v6037 = vshll.u32 %v5997, 8
    %v6038 = vmul.u32.u64.compose %v6037, %v6036
    %v6039 = vextract.low.u32 %v6038
    %v6040 = vextract.high.u32 %v6038
    %v6041 = vmul.u32.u64.compose %v6037, %v6032
    %v6042 = vextract.low.u32 %v6041
    %v6043 = vextract.high.u32 %v6041
    %v6044 = vmul.u32 %v6037, %v6028
    %v6045 = vadd.s32 %v6040, %v6042
    %vm6046 = vc.u32 %v6040, %v6042
    %v6047 = vadd.s32 %v6043, 1
    %v6048 = vsel %vm6046, %v6047, %v6043
    %v6049 = vadd.s32 %v6044, %v6048
    %v6050 = vadd.s32 %v6049, 536870912
    %v6051 = vshrl.u32 %v6050, 30
    %v6052 = vshll.u32 %v6051, 30
    %v6053 = vsub.s32 %v6049, %v6052
    %vm6054 = vcmp.lt.s32.totalorder %v6053, 0
    %v6055 = vsub.s32 0, %v6053
    %v6056 = vsel %vm6054, %v6055, %v6053
    %v6057 = vclz %v6056
    %v6058 = vsub.s32 %v6057, 2
    %vm6059 = vcmp.gt.s32.totalorder 0, %v6058
    %v6060 = vsel %vm6059, 0, %v6058
    %v6061 = vsub.s32 32, %v6060
    %v6062 = vshll.u32 %v6053, %v6060
    %v6063 = vshrl.u32 %v6045, %v6061
    %v6064 = vor.u32 %v6062, %v6063
    %v6065 = vsub.s32 4294967266, %v6060
    %v6066 = vadd.s32 %v6065, 127
    %v6067 = vshll.u32 %v6066, 23
    %v6068 = vor.u32 4788187, %v6067
    %v6069 = vand.u32 2147483647, %v6068
    %v6071 = vcvt.s32.f32 %v6064
    %v6072 = vmul.f32 %v6071, %v6069
    %v6073 = vxor.u32 %v6072, 2147483648
    %v6074 = vsel %vm5991, %v6073, %v6072
    %v6075 = vsub.s32 4, %v6051
    %v6076 = vsel %vm5991, %v6075, %v6051
    %v6077 = vsel %vm5990, %v3901, %v6074
    %v6078 = vsel %vm5990, 0, %v6076
    %v6079 = vcosq.f32.pop %v6077
    %v6080 = vsinq.f32.pop %v6077
    %vm6081 = vweird.f32 %v3901
    %v6082 = vand.u32 %v6078, 3
    %vm6083 = vcmp.lt.s32.totalorder %v6082, 2
    %vm6084 = vcmp.eq.s32.totalorder %v6082, 0
    %v6085 = vxor.u32 %v6080, 2147483648
    %v6086 = vsel %vm6084, %v6079, %v6085
    %vm6087 = vcmp.eq.s32.totalorder %v6082, 2
    %v6088 = vxor.u32 %v6079, 2147483648
    %v6089 = vsel %vm6087, %v6088, %v6080
    %v6090 = vsel %vm6083, %v6086, %v6089
    %v6091 = vsel %vm6081, nan, %v6090
    %v6092 = vand.u32 2147483647, %v3902
    %vm6093 = vcmp.le.f32.partialorder %v6092, 0.7853982
    %vm6094 = vcmp.lt.s32.totalorder %v3902, 0
    %v6095 = vand.u32 %v3902, 2139095040
    %v6096 = vshrl.u32 %v6095, 23
    %v6097 = vsub.s32 %v6096, 127
    %v6098 = vand.u32 2147483647, %v3902
    %v6099 = vand.u32 %v6098, 8388607
    %v6100 = vor.u32 %v6099, 8388608
    %v6101 = vsub.s32 0, %v6100
    %v6102 = vadd.s32 %v6097, 1
    %vm6103 = vcmp.gt.s32.totalorder %v6102, 0
    %v6104 = vsel %vm6103, %v6102, 0
    %v6105 = vshrl.u32 %v6104, 5
    %v6106 = vand.u32 %v6104, 31
    %v6107 = vsub.s32 32, %v6106
    %v6108 = vshrl.u32 683565275, %v6107
    %v6109 = vshll.u32 683565275, %v6106
    %v6110 = vshrl.u32 2475754826, %v6107
    %v6111 = vor.u32 %v6109, %v6110
    %v6112 = vshll.u32 2475754826, %v6106
    %v6113 = vshrl.u32 2131351028, %v6107
    %v6114 = vor.u32 %v6112, %v6113
    %v6115 = vshll.u32 2131351028, %v6106
    %v6116 = vshrl.u32 2102212464, %v6107
    %v6117 = vor.u32 %v6115, %v6116
    %v6118 = vshll.u32 2102212464, %v6106
    %v6119 = vshrl.u32 920167782, %v6107
    %v6120 = vor.u32 %v6118, %v6119
    %v6121 = vshll.u32 920167782, %v6106
    %v6122 = vshrl.u32 1326507024, %v6107
    %v6123 = vor.u32 %v6121, %v6122
    %vm6124 = vcmp.lt.s32.totalorder %v6105, 1
    %vm6125 = vcmp.lt.s32.totalorder %v6105, 2
    %vm6126 = vcmp.lt.s32.totalorder %v6105, 3
    %vm6127 = vcmp.lt.s32.totalorder %v6105, 4
    %v6128 = vsel %vm6124, %v6108, %v6111
    %v6129 = vsel %vm6127, %v6117, 2102212464
    %v6130 = vsel %vm6126, %v6114, %v6129
    %v6131 = vsel %vm6125, %v6128, %v6130
    %v6132 = vsel %vm6124, %v6111, %v6114
    %v6133 = vsel %vm6127, %v6120, 920167782
    %v6134 = vsel %vm6126, %v6117, %v6133
    %v6135 = vsel %vm6125, %v6132, %v6134
    %v6136 = vsel %vm6124, %v6114, %v6117
    %v6137 = vsel %vm6127, %v6123, 1326507024
    %v6138 = vsel %vm6126, %v6120, %v6137
    %v6139 = vsel %vm6125, %v6136, %v6138
    %v6140 = vshll.u32 %v6100, 8
    %v6141 = vmul.u32.u64.compose %v6140, %v6139
    %v6142 = vextract.low.u32 %v6141
    %v6143 = vextract.high.u32 %v6141
    %v6144 = vmul.u32.u64.compose %v6140, %v6135
    %v6145 = vextract.low.u32 %v6144
    %v6146 = vextract.high.u32 %v6144
    %v6147 = vmul.u32 %v6140, %v6131
    %v6148 = vadd.s32 %v6143, %v6145
    %vm6149 = vc.u32 %v6143, %v6145
    %v6150 = vadd.s32 %v6146, 1
    %v6151 = vsel %vm6149, %v6150, %v6146
    %v6152 = vadd.s32 %v6147, %v6151
    %v6153 = vadd.s32 %v6152, 536870912
    %v6154 = vshrl.u32 %v6153, 30
    %v6155 = vshll.u32 %v6154, 30
    %v6156 = vsub.s32 %v6152, %v6155
    %vm6157 = vcmp.lt.s32.totalorder %v6156, 0
    %v6158 = vsub.s32 0, %v6156
    %v6159 = vsel %vm6157, %v6158, %v6156
    %v6160 = vclz %v6159
    %v6161 = vsub.s32 %v6160, 2
    %vm6162 = vcmp.gt.s32.totalorder 0, %v6161
    %v6163 = vsel %vm6162, 0, %v6161
    %v6164 = vsub.s32 32, %v6163
    %v6165 = vshll.u32 %v6156, %v6163
    %v6166 = vshrl.u32 %v6148, %v6164
    %v6167 = vor.u32 %v6165, %v6166
    %v6168 = vsub.s32 4294967266, %v6163
    %v6169 = vadd.s32 %v6168, 127
    %v6170 = vshll.u32 %v6169, 23
    %v6171 = vor.u32 4788187, %v6170
    %v6172 = vand.u32 2147483647, %v6171
    %v6174 = vcvt.s32.f32 %v6167
    %v6175 = vmul.f32 %v6174, %v6172
    %v6176 = vxor.u32 %v6175, 2147483648
    %v6177 = vsel %vm6094, %v6176, %v6175
    %v6178 = vsub.s32 4, %v6154
    %v6179 = vsel %vm6094, %v6178, %v6154
    %v6180 = vsel %vm6093, %v3902, %v6177
    %v6181 = vsel %vm6093, 0, %v6179
    %v6182 = vcosq.f32.pop %v6180
    %v6183 = vsinq.f32.pop %v6180
    %vm6184 = vweird.f32 %v3902
    %v6185 = vand.u32 %v6181, 3
    %vm6186 = vcmp.lt.s32.totalorder %v6185, 2
    %vm6187 = vcmp.eq.s32.totalorder %v6185, 0
    %v6188 = vxor.u32 %v6183, 2147483648
    %v6189 = vsel %vm6187, %v6182, %v6188
    %vm6190 = vcmp.eq.s32.totalorder %v6185, 2
    %v6191 = vxor.u32 %v6182, 2147483648
    %v6192 = vsel %vm6190, %v6191, %v6183
    %v6193 = vsel %vm6186, %v6189, %v6192
    %v6194 = vsel %vm6184, nan, %v6193
    %v6195 = vand.u32 2147483647, %v3903
    %vm6196 = vcmp.le.f32.partialorder %v6195, 0.7853982
    %vm6197 = vcmp.lt.s32.totalorder %v3903, 0
    %v6198 = vand.u32 %v3903, 2139095040
    %v6199 = vshrl.u32 %v6198, 23
    %v6200 = vsub.s32 %v6199, 127
    %v6201 = vand.u32 2147483647, %v3903
    %v6202 = vand.u32 %v6201, 8388607
    %v6203 = vor.u32 %v6202, 8388608
    %v6204 = vsub.s32 0, %v6203
    %v6205 = vadd.s32 %v6200, 1
    %vm6206 = vcmp.gt.s32.totalorder %v6205, 0
    %v6207 = vsel %vm6206, %v6205, 0
    %v6208 = vshrl.u32 %v6207, 5
    %v6209 = vand.u32 %v6207, 31
    %v6210 = vsub.s32 32, %v6209
    %v6211 = vshrl.u32 683565275, %v6210
    %v6212 = vshll.u32 683565275, %v6209
    %v6213 = vshrl.u32 2475754826, %v6210
    %v6214 = vor.u32 %v6212, %v6213
    %v6215 = vshll.u32 2475754826, %v6209
    %v6216 = vshrl.u32 2131351028, %v6210
    %v6217 = vor.u32 %v6215, %v6216
    %v6218 = vshll.u32 2131351028, %v6209
    %v6219 = vshrl.u32 2102212464, %v6210
    %v6220 = vor.u32 %v6218, %v6219
    %v6221 = vshll.u32 2102212464, %v6209
    %v6222 = vshrl.u32 920167782, %v6210
    %v6223 = vor.u32 %v6221, %v6222
    %v6224 = vshll.u32 920167782, %v6209
    %v6225 = vshrl.u32 1326507024, %v6210
    %v6226 = vor.u32 %v6224, %v6225
    %vm6227 = vcmp.lt.s32.totalorder %v6208, 1
    %vm6228 = vcmp.lt.s32.totalorder %v6208, 2
    %vm6229 = vcmp.lt.s32.totalorder %v6208, 3
    %vm6230 = vcmp.lt.s32.totalorder %v6208, 4
    %v6231 = vsel %vm6227, %v6211, %v6214
    %v6232 = vsel %vm6230, %v6220, 2102212464
    %v6233 = vsel %vm6229, %v6217, %v6232
    %v6234 = vsel %vm6228, %v6231, %v6233
    %v6235 = vsel %vm6227, %v6214, %v6217
    %v6236 = vsel %vm6230, %v6223, 920167782
    %v6237 = vsel %vm6229, %v6220, %v6236
    %v6238 = vsel %vm6228, %v6235, %v6237
    %v6239 = vsel %vm6227, %v6217, %v6220
    %v6240 = vsel %vm6230, %v6226, 1326507024
    %v6241 = vsel %vm6229, %v6223, %v6240
    %v6242 = vsel %vm6228, %v6239, %v6241
    %v6243 = vshll.u32 %v6203, 8
    %v6244 = vmul.u32.u64.compose %v6243, %v6242
    %v6245 = vextract.low.u32 %v6244
    %v6246 = vextract.high.u32 %v6244
    %v6247 = vmul.u32.u64.compose %v6243, %v6238
    %v6248 = vextract.low.u32 %v6247
    %v6249 = vextract.high.u32 %v6247
    %v6250 = vmul.u32 %v6243, %v6234
    %v6251 = vadd.s32 %v6246, %v6248
    %vm6252 = vc.u32 %v6246, %v6248
    %v6253 = vadd.s32 %v6249, 1
    %v6254 = vsel %vm6252, %v6253, %v6249
    %v6255 = vadd.s32 %v6250, %v6254
    %v6256 = vadd.s32 %v6255, 536870912
    %v6257 = vshrl.u32 %v6256, 30
    %v6258 = vshll.u32 %v6257, 30
    %v6259 = vsub.s32 %v6255, %v6258
    %vm6260 = vcmp.lt.s32.totalorder %v6259, 0
    %v6261 = vsub.s32 0, %v6259
    %v6262 = vsel %vm6260, %v6261, %v6259
    %v6263 = vclz %v6262
    %v6264 = vsub.s32 %v6263, 2
    %vm6265 = vcmp.gt.s32.totalorder 0, %v6264
    %v6266 = vsel %vm6265, 0, %v6264
    %v6267 = vsub.s32 32, %v6266
    %v6268 = vshll.u32 %v6259, %v6266
    %v6269 = vshrl.u32 %v6251, %v6267
    %v6270 = vor.u32 %v6268, %v6269
    %v6271 = vsub.s32 4294967266, %v6266
    %v6272 = vadd.s32 %v6271, 127
    %v6273 = vshll.u32 %v6272, 23
    %v6274 = vor.u32 4788187, %v6273
    %v6275 = vand.u32 2147483647, %v6274
    %v6277 = vcvt.s32.f32 %v6270
    %v6278 = vmul.f32 %v6277, %v6275
    %v6279 = vxor.u32 %v6278, 2147483648
    %v6280 = vsel %vm6197, %v6279, %v6278
    %v6281 = vsub.s32 4, %v6257
    %v6282 = vsel %vm6197, %v6281, %v6257
    %v6283 = vsel %vm6196, %v3903, %v6280
    %v6284 = vsel %vm6196, 0, %v6282
    %v6285 = vcosq.f32.pop %v6283
    %v6286 = vsinq.f32.pop %v6283
    %vm6287 = vweird.f32 %v3903
    %v6288 = vand.u32 %v6284, 3
    %vm6289 = vcmp.lt.s32.totalorder %v6288, 2
    %vm6290 = vcmp.eq.s32.totalorder %v6288, 0
    %v6291 = vxor.u32 %v6286, 2147483648
    %v6292 = vsel %vm6290, %v6285, %v6291
    %vm6293 = vcmp.eq.s32.totalorder %v6288, 2
    %v6294 = vxor.u32 %v6285, 2147483648
    %v6295 = vsel %vm6293, %v6294, %v6286
    %v6296 = vsel %vm6289, %v6292, %v6295
    %v6297 = vsel %vm6287, nan, %v6296
    %v6298 = vand.u32 2147483647, %v3904
    %vm6299 = vcmp.le.f32.partialorder %v6298, 0.7853982
    %vm6300 = vcmp.lt.s32.totalorder %v3904, 0
    %v6301 = vand.u32 %v3904, 2139095040
    %v6302 = vshrl.u32 %v6301, 23
    %v6303 = vsub.s32 %v6302, 127
    %v6304 = vand.u32 2147483647, %v3904
    %v6305 = vand.u32 %v6304, 8388607
    %v6306 = vor.u32 %v6305, 8388608
    %v6307 = vsub.s32 0, %v6306
    %v6308 = vadd.s32 %v6303, 1
    %vm6309 = vcmp.gt.s32.totalorder %v6308, 0
    %v6310 = vsel %vm6309, %v6308, 0
    %v6311 = vshrl.u32 %v6310, 5
    %v6312 = vand.u32 %v6310, 31
    %v6313 = vsub.s32 32, %v6312
    %v6314 = vshrl.u32 683565275, %v6313
    %v6315 = vshll.u32 683565275, %v6312
    %v6316 = vshrl.u32 2475754826, %v6313
    %v6317 = vor.u32 %v6315, %v6316
    %v6318 = vshll.u32 2475754826, %v6312
    %v6319 = vshrl.u32 2131351028, %v6313
    %v6320 = vor.u32 %v6318, %v6319
    %v6321 = vshll.u32 2131351028, %v6312
    %v6322 = vshrl.u32 2102212464, %v6313
    %v6323 = vor.u32 %v6321, %v6322
    %v6324 = vshll.u32 2102212464, %v6312
    %v6325 = vshrl.u32 920167782, %v6313
    %v6326 = vor.u32 %v6324, %v6325
    %v6327 = vshll.u32 920167782, %v6312
    %v6328 = vshrl.u32 1326507024, %v6313
    %v6329 = vor.u32 %v6327, %v6328
    %vm6330 = vcmp.lt.s32.totalorder %v6311, 1
    %vm6331 = vcmp.lt.s32.totalorder %v6311, 2
    %vm6332 = vcmp.lt.s32.totalorder %v6311, 3
    %vm6333 = vcmp.lt.s32.totalorder %v6311, 4
    %v6334 = vsel %vm6330, %v6314, %v6317
    %v6335 = vsel %vm6333, %v6323, 2102212464
    %v6336 = vsel %vm6332, %v6320, %v6335
    %v6337 = vsel %vm6331, %v6334, %v6336
    %v6338 = vsel %vm6330, %v6317, %v6320
    %v6339 = vsel %vm6333, %v6326, 920167782
    %v6340 = vsel %vm6332, %v6323, %v6339
    %v6341 = vsel %vm6331, %v6338, %v6340
    %v6342 = vsel %vm6330, %v6320, %v6323
    %v6343 = vsel %vm6333, %v6329, 1326507024
    %v6344 = vsel %vm6332, %v6326, %v6343
    %v6345 = vsel %vm6331, %v6342, %v6344
    %v6346 = vshll.u32 %v6306, 8
    %v6347 = vmul.u32.u64.compose %v6346, %v6345
    %v6348 = vextract.low.u32 %v6347
    %v6349 = vextract.high.u32 %v6347
    %v6350 = vmul.u32.u64.compose %v6346, %v6341
    %v6351 = vextract.low.u32 %v6350
    %v6352 = vextract.high.u32 %v6350
    %v6353 = vmul.u32 %v6346, %v6337
    %v6354 = vadd.s32 %v6349, %v6351
    %vm6355 = vc.u32 %v6349, %v6351
    %v6356 = vadd.s32 %v6352, 1
    %v6357 = vsel %vm6355, %v6356, %v6352
    %v6358 = vadd.s32 %v6353, %v6357
    %v6359 = vadd.s32 %v6358, 536870912
    %v6360 = vshrl.u32 %v6359, 30
    %v6361 = vshll.u32 %v6360, 30
    %v6362 = vsub.s32 %v6358, %v6361
    %vm6363 = vcmp.lt.s32.totalorder %v6362, 0
    %v6364 = vsub.s32 0, %v6362
    %v6365 = vsel %vm6363, %v6364, %v6362
    %v6366 = vclz %v6365
    %v6367 = vsub.s32 %v6366, 2
    %vm6368 = vcmp.gt.s32.totalorder 0, %v6367
    %v6369 = vsel %vm6368, 0, %v6367
    %v6370 = vsub.s32 32, %v6369
    %v6371 = vshll.u32 %v6362, %v6369
    %v6372 = vshrl.u32 %v6354, %v6370
    %v6373 = vor.u32 %v6371, %v6372
    %v6374 = vsub.s32 4294967266, %v6369
    %v6375 = vadd.s32 %v6374, 127
    %v6376 = vshll.u32 %v6375, 23
    %v6377 = vor.u32 4788187, %v6376
    %v6378 = vand.u32 2147483647, %v6377
    %v6380 = vcvt.s32.f32 %v6373
    %v6381 = vmul.f32 %v6380, %v6378
    %v6382 = vxor.u32 %v6381, 2147483648
    %v6383 = vsel %vm6300, %v6382, %v6381
    %v6384 = vsub.s32 4, %v6360
    %v6385 = vsel %vm6300, %v6384, %v6360
    %v6386 = vsel %vm6299, %v3904, %v6383
    %v6387 = vsel %vm6299, 0, %v6385
    %v6388 = vcosq.f32.pop %v6386
    %v6389 = vsinq.f32.pop %v6386
    %vm6390 = vweird.f32 %v3904
    %v6391 = vand.u32 %v6387, 3
    %vm6392 = vcmp.lt.s32.totalorder %v6391, 2
    %vm6393 = vcmp.eq.s32.totalorder %v6391, 0
    %v6394 = vxor.u32 %v6389, 2147483648
    %v6395 = vsel %vm6393, %v6388, %v6394
    %vm6396 = vcmp.eq.s32.totalorder %v6391, 2
    %v6397 = vxor.u32 %v6388, 2147483648
    %v6398 = vsel %vm6396, %v6397, %v6389
    %v6399 = vsel %vm6392, %v6395, %v6398
    %v6400 = vsel %vm6390, nan, %v6399
    %v6401 = vand.u32 2147483647, %v3905
    %vm6402 = vcmp.le.f32.partialorder %v6401, 0.7853982
    %vm6403 = vcmp.lt.s32.totalorder %v3905, 0
    %v6404 = vand.u32 %v3905, 2139095040
    %v6405 = vshrl.u32 %v6404, 23
    %v6406 = vsub.s32 %v6405, 127
    %v6407 = vand.u32 2147483647, %v3905
    %v6408 = vand.u32 %v6407, 8388607
    %v6409 = vor.u32 %v6408, 8388608
    %v6410 = vsub.s32 0, %v6409
    %v6411 = vadd.s32 %v6406, 1
    %vm6412 = vcmp.gt.s32.totalorder %v6411, 0
    %v6413 = vsel %vm6412, %v6411, 0
    %v6414 = vshrl.u32 %v6413, 5
    %v6415 = vand.u32 %v6413, 31
    %v6416 = vsub.s32 32, %v6415
    %v6417 = vshrl.u32 683565275, %v6416
    %v6418 = vshll.u32 683565275, %v6415
    %v6419 = vshrl.u32 2475754826, %v6416
    %v6420 = vor.u32 %v6418, %v6419
    %v6421 = vshll.u32 2475754826, %v6415
    %v6422 = vshrl.u32 2131351028, %v6416
    %v6423 = vor.u32 %v6421, %v6422
    %v6424 = vshll.u32 2131351028, %v6415
    %v6425 = vshrl.u32 2102212464, %v6416
    %v6426 = vor.u32 %v6424, %v6425
    %v6427 = vshll.u32 2102212464, %v6415
    %v6428 = vshrl.u32 920167782, %v6416
    %v6429 = vor.u32 %v6427, %v6428
    %v6430 = vshll.u32 920167782, %v6415
    %v6431 = vshrl.u32 1326507024, %v6416
    %v6432 = vor.u32 %v6430, %v6431
    %vm6433 = vcmp.lt.s32.totalorder %v6414, 1
    %vm6434 = vcmp.lt.s32.totalorder %v6414, 2
    %vm6435 = vcmp.lt.s32.totalorder %v6414, 3
    %vm6436 = vcmp.lt.s32.totalorder %v6414, 4
    %v6437 = vsel %vm6433, %v6417, %v6420
    %v6438 = vsel %vm6436, %v6426, 2102212464
    %v6439 = vsel %vm6435, %v6423, %v6438
    %v6440 = vsel %vm6434, %v6437, %v6439
    %v6441 = vsel %vm6433, %v6420, %v6423
    %v6442 = vsel %vm6436, %v6429, 920167782
    %v6443 = vsel %vm6435, %v6426, %v6442
    %v6444 = vsel %vm6434, %v6441, %v6443
    %v6445 = vsel %vm6433, %v6423, %v6426
    %v6446 = vsel %vm6436, %v6432, 1326507024
    %v6447 = vsel %vm6435, %v6429, %v6446
    %v6448 = vsel %vm6434, %v6445, %v6447
    %v6449 = vshll.u32 %v6409, 8
    %v6450 = vmul.u32.u64.compose %v6449, %v6448
    %v6451 = vextract.low.u32 %v6450
    %v6452 = vextract.high.u32 %v6450
    %v6453 = vmul.u32.u64.compose %v6449, %v6444
    %v6454 = vextract.low.u32 %v6453
    %v6455 = vextract.high.u32 %v6453
    %v6456 = vmul.u32 %v6449, %v6440
    %v6457 = vadd.s32 %v6452, %v6454
    %vm6458 = vc.u32 %v6452, %v6454
    %v6459 = vadd.s32 %v6455, 1
    %v6460 = vsel %vm6458, %v6459, %v6455
    %v6461 = vadd.s32 %v6456, %v6460
    %v6462 = vadd.s32 %v6461, 536870912
    %v6463 = vshrl.u32 %v6462, 30
    %v6464 = vshll.u32 %v6463, 30
    %v6465 = vsub.s32 %v6461, %v6464
    %vm6466 = vcmp.lt.s32.totalorder %v6465, 0
    %v6467 = vsub.s32 0, %v6465
    %v6468 = vsel %vm6466, %v6467, %v6465
    %v6469 = vclz %v6468
    %v6470 = vsub.s32 %v6469, 2
    %vm6471 = vcmp.gt.s32.totalorder 0, %v6470
    %v6472 = vsel %vm6471, 0, %v6470
    %v6473 = vsub.s32 32, %v6472
    %v6474 = vshll.u32 %v6465, %v6472
    %v6475 = vshrl.u32 %v6457, %v6473
    %v6476 = vor.u32 %v6474, %v6475
    %v6477 = vsub.s32 4294967266, %v6472
    %v6478 = vadd.s32 %v6477, 127
    %v6479 = vshll.u32 %v6478, 23
    %v6480 = vor.u32 4788187, %v6479
    %v6481 = vand.u32 2147483647, %v6480
    %v6483 = vcvt.s32.f32 %v6476
    %v6484 = vmul.f32 %v6483, %v6481
    %v6485 = vxor.u32 %v6484, 2147483648
    %v6486 = vsel %vm6403, %v6485, %v6484
    %v6487 = vsub.s32 4, %v6463
    %v6488 = vsel %vm6403, %v6487, %v6463
    %v6489 = vsel %vm6402, %v3905, %v6486
    %v6490 = vsel %vm6402, 0, %v6488
    %v6491 = vcosq.f32.pop %v6489
    %v6492 = vsinq.f32.pop %v6489
    %vm6493 = vweird.f32 %v3905
    %v6494 = vand.u32 %v6490, 3
    %vm6495 = vcmp.lt.s32.totalorder %v6494, 2
    %vm6496 = vcmp.eq.s32.totalorder %v6494, 0
    %v6497 = vxor.u32 %v6492, 2147483648
    %v6498 = vsel %vm6496, %v6491, %v6497
    %vm6499 = vcmp.eq.s32.totalorder %v6494, 2
    %v6500 = vxor.u32 %v6491, 2147483648
    %v6501 = vsel %vm6499, %v6500, %v6492
    %v6502 = vsel %vm6495, %v6498, %v6501
    %v6503 = vsel %vm6493, nan, %v6502
    %v6504 = vand.u32 2147483647, %v3906
    %vm6505 = vcmp.le.f32.partialorder %v6504, 0.7853982
    %vm6506 = vcmp.lt.s32.totalorder %v3906, 0
    %v6507 = vand.u32 %v3906, 2139095040
    %v6508 = vshrl.u32 %v6507, 23
    %v6509 = vsub.s32 %v6508, 127
    %v6510 = vand.u32 2147483647, %v3906
    %v6511 = vand.u32 %v6510, 8388607
    %v6512 = vor.u32 %v6511, 8388608
    %v6513 = vsub.s32 0, %v6512
    %v6514 = vadd.s32 %v6509, 1
    %vm6515 = vcmp.gt.s32.totalorder %v6514, 0
    %v6516 = vsel %vm6515, %v6514, 0
    %v6517 = vshrl.u32 %v6516, 5
    %v6518 = vand.u32 %v6516, 31
    %v6519 = vsub.s32 32, %v6518
    %v6520 = vshrl.u32 683565275, %v6519
    %v6521 = vshll.u32 683565275, %v6518
    %v6522 = vshrl.u32 2475754826, %v6519
    %v6523 = vor.u32 %v6521, %v6522
    %v6524 = vshll.u32 2475754826, %v6518
    %v6525 = vshrl.u32 2131351028, %v6519
    %v6526 = vor.u32 %v6524, %v6525
    %v6527 = vshll.u32 2131351028, %v6518
    %v6528 = vshrl.u32 2102212464, %v6519
    %v6529 = vor.u32 %v6527, %v6528
    %v6530 = vshll.u32 2102212464, %v6518
    %v6531 = vshrl.u32 920167782, %v6519
    %v6532 = vor.u32 %v6530, %v6531
    %v6533 = vshll.u32 920167782, %v6518
    %v6534 = vshrl.u32 1326507024, %v6519
    %v6535 = vor.u32 %v6533, %v6534
    %vm6536 = vcmp.lt.s32.totalorder %v6517, 1
    %vm6537 = vcmp.lt.s32.totalorder %v6517, 2
    %vm6538 = vcmp.lt.s32.totalorder %v6517, 3
    %vm6539 = vcmp.lt.s32.totalorder %v6517, 4
    %v6540 = vsel %vm6536, %v6520, %v6523
    %v6541 = vsel %vm6539, %v6529, 2102212464
    %v6542 = vsel %vm6538, %v6526, %v6541
    %v6543 = vsel %vm6537, %v6540, %v6542
    %v6544 = vsel %vm6536, %v6523, %v6526
    %v6545 = vsel %vm6539, %v6532, 920167782
    %v6546 = vsel %vm6538, %v6529, %v6545
    %v6547 = vsel %vm6537, %v6544, %v6546
    %v6548 = vsel %vm6536, %v6526, %v6529
    %v6549 = vsel %vm6539, %v6535, 1326507024
    %v6550 = vsel %vm6538, %v6532, %v6549
    %v6551 = vsel %vm6537, %v6548, %v6550
    %v6552 = vshll.u32 %v6512, 8
    %v6553 = vmul.u32.u64.compose %v6552, %v6551
    %v6554 = vextract.low.u32 %v6553
    %v6555 = vextract.high.u32 %v6553
    %v6556 = vmul.u32.u64.compose %v6552, %v6547
    %v6557 = vextract.low.u32 %v6556
    %v6558 = vextract.high.u32 %v6556
    %v6559 = vmul.u32 %v6552, %v6543
    %v6560 = vadd.s32 %v6555, %v6557
    %vm6561 = vc.u32 %v6555, %v6557
    %v6562 = vadd.s32 %v6558, 1
    %v6563 = vsel %vm6561, %v6562, %v6558
    %v6564 = vadd.s32 %v6559, %v6563
    %v6565 = vadd.s32 %v6564, 536870912
    %v6566 = vshrl.u32 %v6565, 30
    %v6567 = vshll.u32 %v6566, 30
    %v6568 = vsub.s32 %v6564, %v6567
    %vm6569 = vcmp.lt.s32.totalorder %v6568, 0
    %v6570 = vsub.s32 0, %v6568
    %v6571 = vsel %vm6569, %v6570, %v6568
    %v6572 = vclz %v6571
    %v6573 = vsub.s32 %v6572, 2
    %vm6574 = vcmp.gt.s32.totalorder 0, %v6573
    %v6575 = vsel %vm6574, 0, %v6573
    %v6576 = vsub.s32 32, %v6575
    %v6577 = vshll.u32 %v6568, %v6575
    %v6578 = vshrl.u32 %v6560, %v6576
    %v6579 = vor.u32 %v6577, %v6578
    %v6580 = vsub.s32 4294967266, %v6575
    %v6581 = vadd.s32 %v6580, 127
    %v6582 = vshll.u32 %v6581, 23
    %v6583 = vor.u32 4788187, %v6582
    %v6584 = vand.u32 2147483647, %v6583
    %v6586 = vcvt.s32.f32 %v6579
    %v6587 = vmul.f32 %v6586, %v6584
    %v6588 = vxor.u32 %v6587, 2147483648
    %v6589 = vsel %vm6506, %v6588, %v6587
    %v6590 = vsub.s32 4, %v6566
    %v6591 = vsel %vm6506, %v6590, %v6566
    %v6592 = vsel %vm6505, %v3906, %v6589
    %v6593 = vsel %vm6505, 0, %v6591
    %v6594 = vcosq.f32.pop %v6592
    %v6595 = vsinq.f32.pop %v6592
    %vm6596 = vweird.f32 %v3906
    %v6597 = vand.u32 %v6593, 3
    %vm6598 = vcmp.lt.s32.totalorder %v6597, 2
    %vm6599 = vcmp.eq.s32.totalorder %v6597, 0
    %v6600 = vxor.u32 %v6595, 2147483648
    %v6601 = vsel %vm6599, %v6594, %v6600
    %vm6602 = vcmp.eq.s32.totalorder %v6597, 2
    %v6603 = vxor.u32 %v6594, 2147483648
    %v6604 = vsel %vm6602, %v6603, %v6595
    %v6605 = vsel %vm6598, %v6601, %v6604
    %v6606 = vsel %vm6596, nan, %v6605
    %v6607 = vand.u32 2147483647, %v3907
    %vm6608 = vcmp.le.f32.partialorder %v6607, 0.7853982
    %vm6609 = vcmp.lt.s32.totalorder %v3907, 0
    %v6610 = vand.u32 %v3907, 2139095040
    %v6611 = vshrl.u32 %v6610, 23
    %v6612 = vsub.s32 %v6611, 127
    %v6613 = vand.u32 2147483647, %v3907
    %v6614 = vand.u32 %v6613, 8388607
    %v6615 = vor.u32 %v6614, 8388608
    %v6616 = vsub.s32 0, %v6615
    %v6617 = vadd.s32 %v6612, 1
    %vm6618 = vcmp.gt.s32.totalorder %v6617, 0
    %v6619 = vsel %vm6618, %v6617, 0
    %v6620 = vshrl.u32 %v6619, 5
    %v6621 = vand.u32 %v6619, 31
    %v6622 = vsub.s32 32, %v6621
    %v6623 = vshrl.u32 683565275, %v6622
    %v6624 = vshll.u32 683565275, %v6621
    %v6625 = vshrl.u32 2475754826, %v6622
    %v6626 = vor.u32 %v6624, %v6625
    %v6627 = vshll.u32 2475754826, %v6621
    %v6628 = vshrl.u32 2131351028, %v6622
    %v6629 = vor.u32 %v6627, %v6628
    %v6630 = vshll.u32 2131351028, %v6621
    %v6631 = vshrl.u32 2102212464, %v6622
    %v6632 = vor.u32 %v6630, %v6631
    %v6633 = vshll.u32 2102212464, %v6621
    %v6634 = vshrl.u32 920167782, %v6622
    %v6635 = vor.u32 %v6633, %v6634
    %v6636 = vshll.u32 920167782, %v6621
    %v6637 = vshrl.u32 1326507024, %v6622
    %v6638 = vor.u32 %v6636, %v6637
    %vm6639 = vcmp.lt.s32.totalorder %v6620, 1
    %vm6640 = vcmp.lt.s32.totalorder %v6620, 2
    %vm6641 = vcmp.lt.s32.totalorder %v6620, 3
    %vm6642 = vcmp.lt.s32.totalorder %v6620, 4
    %v6643 = vsel %vm6639, %v6623, %v6626
    %v6644 = vsel %vm6642, %v6632, 2102212464
    %v6645 = vsel %vm6641, %v6629, %v6644
    %v6646 = vsel %vm6640, %v6643, %v6645
    %v6647 = vsel %vm6639, %v6626, %v6629
    %v6648 = vsel %vm6642, %v6635, 920167782
    %v6649 = vsel %vm6641, %v6632, %v6648
    %v6650 = vsel %vm6640, %v6647, %v6649
    %v6651 = vsel %vm6639, %v6629, %v6632
    %v6652 = vsel %vm6642, %v6638, 1326507024
    %v6653 = vsel %vm6641, %v6635, %v6652
    %v6654 = vsel %vm6640, %v6651, %v6653
    %v6655 = vshll.u32 %v6615, 8
    %v6656 = vmul.u32.u64.compose %v6655, %v6654
    %v6657 = vextract.low.u32 %v6656
    %v6658 = vextract.high.u32 %v6656
    %v6659 = vmul.u32.u64.compose %v6655, %v6650
    %v6660 = vextract.low.u32 %v6659
    %v6661 = vextract.high.u32 %v6659
    %v6662 = vmul.u32 %v6655, %v6646
    %v6663 = vadd.s32 %v6658, %v6660
    %vm6664 = vc.u32 %v6658, %v6660
    %v6665 = vadd.s32 %v6661, 1
    %v6666 = vsel %vm6664, %v6665, %v6661
    %v6667 = vadd.s32 %v6662, %v6666
    %v6668 = vadd.s32 %v6667, 536870912
    %v6669 = vshrl.u32 %v6668, 30
    %v6670 = vshll.u32 %v6669, 30
    %v6671 = vsub.s32 %v6667, %v6670
    %vm6672 = vcmp.lt.s32.totalorder %v6671, 0
    %v6673 = vsub.s32 0, %v6671
    %v6674 = vsel %vm6672, %v6673, %v6671
    %v6675 = vclz %v6674
    %v6676 = vsub.s32 %v6675, 2
    %vm6677 = vcmp.gt.s32.totalorder 0, %v6676
    %v6678 = vsel %vm6677, 0, %v6676
    %v6679 = vsub.s32 32, %v6678
    %v6680 = vshll.u32 %v6671, %v6678
    %v6681 = vshrl.u32 %v6663, %v6679
    %v6682 = vor.u32 %v6680, %v6681
    %v6683 = vsub.s32 4294967266, %v6678
    %v6684 = vadd.s32 %v6683, 127
    %v6685 = vshll.u32 %v6684, 23
    %v6686 = vor.u32 4788187, %v6685
    %v6687 = vand.u32 2147483647, %v6686
    %v6689 = vcvt.s32.f32 %v6682
    %v6690 = vmul.f32 %v6689, %v6687
    %v6691 = vxor.u32 %v6690, 2147483648
    %v6692 = vsel %vm6609, %v6691, %v6690
    %v6693 = vsub.s32 4, %v6669
    %v6694 = vsel %vm6609, %v6693, %v6669
    %v6695 = vsel %vm6608, %v3907, %v6692
    %v6696 = vsel %vm6608, 0, %v6694
    %v6697 = vcosq.f32.pop %v6695
    %v6698 = vsinq.f32.pop %v6695
    %vm6699 = vweird.f32 %v3907
    %v6700 = vand.u32 %v6696, 3
    %vm6701 = vcmp.lt.s32.totalorder %v6700, 2
    %vm6702 = vcmp.eq.s32.totalorder %v6700, 0
    %v6703 = vxor.u32 %v6698, 2147483648
    %v6704 = vsel %vm6702, %v6697, %v6703
    %vm6705 = vcmp.eq.s32.totalorder %v6700, 2
    %v6706 = vxor.u32 %v6697, 2147483648
    %v6707 = vsel %vm6705, %v6706, %v6698
    %v6708 = vsel %vm6701, %v6704, %v6707
    %v6709 = vsel %vm6699, nan, %v6708
    %v6710 = vand.u32 2147483647, %v3908
    %vm6711 = vcmp.le.f32.partialorder %v6710, 0.7853982
    %vm6712 = vcmp.lt.s32.totalorder %v3908, 0
    %v6713 = vand.u32 %v3908, 2139095040
    %v6714 = vshrl.u32 %v6713, 23
    %v6715 = vsub.s32 %v6714, 127
    %v6716 = vand.u32 2147483647, %v3908
    %v6717 = vand.u32 %v6716, 8388607
    %v6718 = vor.u32 %v6717, 8388608
    %v6719 = vsub.s32 0, %v6718
    %v6720 = vadd.s32 %v6715, 1
    %vm6721 = vcmp.gt.s32.totalorder %v6720, 0
    %v6722 = vsel %vm6721, %v6720, 0
    %v6723 = vshrl.u32 %v6722, 5
    %v6724 = vand.u32 %v6722, 31
    %v6725 = vsub.s32 32, %v6724
    %v6726 = vshrl.u32 683565275, %v6725
    %v6727 = vshll.u32 683565275, %v6724
    %v6728 = vshrl.u32 2475754826, %v6725
    %v6729 = vor.u32 %v6727, %v6728
    %v6730 = vshll.u32 2475754826, %v6724
    %v6731 = vshrl.u32 2131351028, %v6725
    %v6732 = vor.u32 %v6730, %v6731
    %v6733 = vshll.u32 2131351028, %v6724
    %v6734 = vshrl.u32 2102212464, %v6725
    %v6735 = vor.u32 %v6733, %v6734
    %v6736 = vshll.u32 2102212464, %v6724
    %v6737 = vshrl.u32 920167782, %v6725
    %v6738 = vor.u32 %v6736, %v6737
    %v6739 = vshll.u32 920167782, %v6724
    %v6740 = vshrl.u32 1326507024, %v6725
    %v6741 = vor.u32 %v6739, %v6740
    %vm6742 = vcmp.lt.s32.totalorder %v6723, 1
    %vm6743 = vcmp.lt.s32.totalorder %v6723, 2
    %vm6744 = vcmp.lt.s32.totalorder %v6723, 3
    %vm6745 = vcmp.lt.s32.totalorder %v6723, 4
    %v6746 = vsel %vm6742, %v6726, %v6729
    %v6747 = vsel %vm6745, %v6735, 2102212464
    %v6748 = vsel %vm6744, %v6732, %v6747
    %v6749 = vsel %vm6743, %v6746, %v6748
    %v6750 = vsel %vm6742, %v6729, %v6732
    %v6751 = vsel %vm6745, %v6738, 920167782
    %v6752 = vsel %vm6744, %v6735, %v6751
    %v6753 = vsel %vm6743, %v6750, %v6752
    %v6754 = vsel %vm6742, %v6732, %v6735
    %v6755 = vsel %vm6745, %v6741, 1326507024
    %v6756 = vsel %vm6744, %v6738, %v6755
    %v6757 = vsel %vm6743, %v6754, %v6756
    %v6758 = vshll.u32 %v6718, 8
    %v6759 = vmul.u32.u64.compose %v6758, %v6757
    %v6760 = vextract.low.u32 %v6759
    %v6761 = vextract.high.u32 %v6759
    %v6762 = vmul.u32.u64.compose %v6758, %v6753
    %v6763 = vextract.low.u32 %v6762
    %v6764 = vextract.high.u32 %v6762
    %v6765 = vmul.u32 %v6758, %v6749
    %v6766 = vadd.s32 %v6761, %v6763
    %vm6767 = vc.u32 %v6761, %v6763
    %v6768 = vadd.s32 %v6764, 1
    %v6769 = vsel %vm6767, %v6768, %v6764
    %v6770 = vadd.s32 %v6765, %v6769
    %v6771 = vadd.s32 %v6770, 536870912
    %v6772 = vshrl.u32 %v6771, 30
    %v6773 = vshll.u32 %v6772, 30
    %v6774 = vsub.s32 %v6770, %v6773
    %vm6775 = vcmp.lt.s32.totalorder %v6774, 0
    %v6776 = vsub.s32 0, %v6774
    %v6777 = vsel %vm6775, %v6776, %v6774
    %v6778 = vclz %v6777
    %v6779 = vsub.s32 %v6778, 2
    %vm6780 = vcmp.gt.s32.totalorder 0, %v6779
    %v6781 = vsel %vm6780, 0, %v6779
    %v6782 = vsub.s32 32, %v6781
    %v6783 = vshll.u32 %v6774, %v6781
    %v6784 = vshrl.u32 %v6766, %v6782
    %v6785 = vor.u32 %v6783, %v6784
    %v6786 = vsub.s32 4294967266, %v6781
    %v6787 = vadd.s32 %v6786, 127
    %v6788 = vshll.u32 %v6787, 23
    %v6789 = vor.u32 4788187, %v6788
    %v6790 = vand.u32 2147483647, %v6789
    %v6792 = vcvt.s32.f32 %v6785
    %v6793 = vmul.f32 %v6792, %v6790
    %v6794 = vxor.u32 %v6793, 2147483648
    %v6795 = vsel %vm6712, %v6794, %v6793
    %v6796 = vsub.s32 4, %v6772
    %v6797 = vsel %vm6712, %v6796, %v6772
    %v6798 = vsel %vm6711, %v3908, %v6795
    %v6799 = vsel %vm6711, 0, %v6797
    %v6800 = vcosq.f32.pop %v6798
    %v6801 = vsinq.f32.pop %v6798
    %vm6802 = vweird.f32 %v3908
    %v6803 = vand.u32 %v6799, 3
    %vm6804 = vcmp.lt.s32.totalorder %v6803, 2
    %vm6805 = vcmp.eq.s32.totalorder %v6803, 0
    %v6806 = vxor.u32 %v6801, 2147483648
    %v6807 = vsel %vm6805, %v6800, %v6806
    %vm6808 = vcmp.eq.s32.totalorder %v6803, 2
    %v6809 = vxor.u32 %v6800, 2147483648
    %v6810 = vsel %vm6808, %v6809, %v6801
    %v6811 = vsel %vm6804, %v6807, %v6810
    %v6812 = vsel %vm6802, nan, %v6811
    %v6813 = vand.u32 2147483647, %v3909
    %vm6814 = vcmp.le.f32.partialorder %v6813, 0.7853982
    %vm6815 = vcmp.lt.s32.totalorder %v3909, 0
    %v6816 = vand.u32 %v3909, 2139095040
    %v6817 = vshrl.u32 %v6816, 23
    %v6818 = vsub.s32 %v6817, 127
    %v6819 = vand.u32 2147483647, %v3909
    %v6820 = vand.u32 %v6819, 8388607
    %v6821 = vor.u32 %v6820, 8388608
    %v6822 = vsub.s32 0, %v6821
    %v6823 = vadd.s32 %v6818, 1
    %vm6824 = vcmp.gt.s32.totalorder %v6823, 0
    %v6825 = vsel %vm6824, %v6823, 0
    %v6826 = vshrl.u32 %v6825, 5
    %v6827 = vand.u32 %v6825, 31
    %v6828 = vsub.s32 32, %v6827
    %v6829 = vshrl.u32 683565275, %v6828
    %v6830 = vshll.u32 683565275, %v6827
    %v6831 = vshrl.u32 2475754826, %v6828
    %v6832 = vor.u32 %v6830, %v6831
    %v6833 = vshll.u32 2475754826, %v6827
    %v6834 = vshrl.u32 2131351028, %v6828
    %v6835 = vor.u32 %v6833, %v6834
    %v6836 = vshll.u32 2131351028, %v6827
    %v6837 = vshrl.u32 2102212464, %v6828
    %v6838 = vor.u32 %v6836, %v6837
    %v6839 = vshll.u32 2102212464, %v6827
    %v6840 = vshrl.u32 920167782, %v6828
    %v6841 = vor.u32 %v6839, %v6840
    %v6842 = vshll.u32 920167782, %v6827
    %v6843 = vshrl.u32 1326507024, %v6828
    %v6844 = vor.u32 %v6842, %v6843
    %vm6845 = vcmp.lt.s32.totalorder %v6826, 1
    %vm6846 = vcmp.lt.s32.totalorder %v6826, 2
    %vm6847 = vcmp.lt.s32.totalorder %v6826, 3
    %vm6848 = vcmp.lt.s32.totalorder %v6826, 4
    %v6849 = vsel %vm6845, %v6829, %v6832
    %v6850 = vsel %vm6848, %v6838, 2102212464
    %v6851 = vsel %vm6847, %v6835, %v6850
    %v6852 = vsel %vm6846, %v6849, %v6851
    %v6853 = vsel %vm6845, %v6832, %v6835
    %v6854 = vsel %vm6848, %v6841, 920167782
    %v6855 = vsel %vm6847, %v6838, %v6854
    %v6856 = vsel %vm6846, %v6853, %v6855
    %v6857 = vsel %vm6845, %v6835, %v6838
    %v6858 = vsel %vm6848, %v6844, 1326507024
    %v6859 = vsel %vm6847, %v6841, %v6858
    %v6860 = vsel %vm6846, %v6857, %v6859
    %v6861 = vshll.u32 %v6821, 8
    %v6862 = vmul.u32.u64.compose %v6861, %v6860
    %v6863 = vextract.low.u32 %v6862
    %v6864 = vextract.high.u32 %v6862
    %v6865 = vmul.u32.u64.compose %v6861, %v6856
    %v6866 = vextract.low.u32 %v6865
    %v6867 = vextract.high.u32 %v6865
    %v6868 = vmul.u32 %v6861, %v6852
    %v6869 = vadd.s32 %v6864, %v6866
    %vm6870 = vc.u32 %v6864, %v6866
    %v6871 = vadd.s32 %v6867, 1
    %v6872 = vsel %vm6870, %v6871, %v6867
    %v6873 = vadd.s32 %v6868, %v6872
    %v6874 = vadd.s32 %v6873, 536870912
    %v6875 = vshrl.u32 %v6874, 30
    %v6876 = vshll.u32 %v6875, 30
    %v6877 = vsub.s32 %v6873, %v6876
    %vm6878 = vcmp.lt.s32.totalorder %v6877, 0
    %v6879 = vsub.s32 0, %v6877
    %v6880 = vsel %vm6878, %v6879, %v6877
    %v6881 = vclz %v6880
    %v6882 = vsub.s32 %v6881, 2
    %vm6883 = vcmp.gt.s32.totalorder 0, %v6882
    %v6884 = vsel %vm6883, 0, %v6882
    %v6885 = vsub.s32 32, %v6884
    %v6886 = vshll.u32 %v6877, %v6884
    %v6887 = vshrl.u32 %v6869, %v6885
    %v6888 = vor.u32 %v6886, %v6887
    %v6889 = vsub.s32 4294967266, %v6884
    %v6890 = vadd.s32 %v6889, 127
    %v6891 = vshll.u32 %v6890, 23
    %v6892 = vor.u32 4788187, %v6891
    %v6893 = vand.u32 2147483647, %v6892
    %v6895 = vcvt.s32.f32 %v6888
    %v6896 = vmul.f32 %v6895, %v6893
    %v6897 = vxor.u32 %v6896, 2147483648
    %v6898 = vsel %vm6815, %v6897, %v6896
    %v6899 = vsub.s32 4, %v6875
    %v6900 = vsel %vm6815, %v6899, %v6875
    %v6901 = vsel %vm6814, %v3909, %v6898
    %v6902 = vsel %vm6814, 0, %v6900
    %v6903 = vcosq.f32.pop %v6901
    %v6904 = vsinq.f32.pop %v6901
    %vm6905 = vweird.f32 %v3909
    %v6906 = vand.u32 %v6902, 3
    %vm6907 = vcmp.lt.s32.totalorder %v6906, 2
    %vm6908 = vcmp.eq.s32.totalorder %v6906, 0
    %v6909 = vxor.u32 %v6904, 2147483648
    %v6910 = vsel %vm6908, %v6903, %v6909
    %vm6911 = vcmp.eq.s32.totalorder %v6906, 2
    %v6912 = vxor.u32 %v6903, 2147483648
    %v6913 = vsel %vm6911, %v6912, %v6904
    %v6914 = vsel %vm6907, %v6910, %v6913
    %v6915 = vsel %vm6905, nan, %v6914
    %v6916 = vand.u32 2147483647, %v3910
    %vm6917 = vcmp.le.f32.partialorder %v6916, 0.7853982
    %vm6918 = vcmp.lt.s32.totalorder %v3910, 0
    %v6919 = vand.u32 %v3910, 2139095040
    %v6920 = vshrl.u32 %v6919, 23
    %v6921 = vsub.s32 %v6920, 127
    %v6922 = vand.u32 2147483647, %v3910
    %v6923 = vand.u32 %v6922, 8388607
    %v6924 = vor.u32 %v6923, 8388608
    %v6925 = vsub.s32 0, %v6924
    %v6926 = vadd.s32 %v6921, 1
    %vm6927 = vcmp.gt.s32.totalorder %v6926, 0
    %v6928 = vsel %vm6927, %v6926, 0
    %v6929 = vshrl.u32 %v6928, 5
    %v6930 = vand.u32 %v6928, 31
    %v6931 = vsub.s32 32, %v6930
    %v6932 = vshrl.u32 683565275, %v6931
    %v6933 = vshll.u32 683565275, %v6930
    %v6934 = vshrl.u32 2475754826, %v6931
    %v6935 = vor.u32 %v6933, %v6934
    %v6936 = vshll.u32 2475754826, %v6930
    %v6937 = vshrl.u32 2131351028, %v6931
    %v6938 = vor.u32 %v6936, %v6937
    %v6939 = vshll.u32 2131351028, %v6930
    %v6940 = vshrl.u32 2102212464, %v6931
    %v6941 = vor.u32 %v6939, %v6940
    %v6942 = vshll.u32 2102212464, %v6930
    %v6943 = vshrl.u32 920167782, %v6931
    %v6944 = vor.u32 %v6942, %v6943
    %v6945 = vshll.u32 920167782, %v6930
    %v6946 = vshrl.u32 1326507024, %v6931
    %v6947 = vor.u32 %v6945, %v6946
    %vm6948 = vcmp.lt.s32.totalorder %v6929, 1
    %vm6949 = vcmp.lt.s32.totalorder %v6929, 2
    %vm6950 = vcmp.lt.s32.totalorder %v6929, 3
    %vm6951 = vcmp.lt.s32.totalorder %v6929, 4
    %v6952 = vsel %vm6948, %v6932, %v6935
    %v6953 = vsel %vm6951, %v6941, 2102212464
    %v6954 = vsel %vm6950, %v6938, %v6953
    %v6955 = vsel %vm6949, %v6952, %v6954
    %v6956 = vsel %vm6948, %v6935, %v6938
    %v6957 = vsel %vm6951, %v6944, 920167782
    %v6958 = vsel %vm6950, %v6941, %v6957
    %v6959 = vsel %vm6949, %v6956, %v6958
    %v6960 = vsel %vm6948, %v6938, %v6941
    %v6961 = vsel %vm6951, %v6947, 1326507024
    %v6962 = vsel %vm6950, %v6944, %v6961
    %v6963 = vsel %vm6949, %v6960, %v6962
    %v6964 = vshll.u32 %v6924, 8
    %v6965 = vmul.u32.u64.compose %v6964, %v6963
    %v6966 = vextract.low.u32 %v6965
    %v6967 = vextract.high.u32 %v6965
    %v6968 = vmul.u32.u64.compose %v6964, %v6959
    %v6969 = vextract.low.u32 %v6968
    %v6970 = vextract.high.u32 %v6968
    %v6971 = vmul.u32 %v6964, %v6955
    %v6972 = vadd.s32 %v6967, %v6969
    %vm6973 = vc.u32 %v6967, %v6969
    %v6974 = vadd.s32 %v6970, 1
    %v6975 = vsel %vm6973, %v6974, %v6970
    %v6976 = vadd.s32 %v6971, %v6975
    %v6977 = vadd.s32 %v6976, 536870912
    %v6978 = vshrl.u32 %v6977, 30
    %v6979 = vshll.u32 %v6978, 30
    %v6980 = vsub.s32 %v6976, %v6979
    %vm6981 = vcmp.lt.s32.totalorder %v6980, 0
    %v6982 = vsub.s32 0, %v6980
    %v6983 = vsel %vm6981, %v6982, %v6980
    %v6984 = vclz %v6983
    %v6985 = vsub.s32 %v6984, 2
    %vm6986 = vcmp.gt.s32.totalorder 0, %v6985
    %v6987 = vsel %vm6986, 0, %v6985
    %v6988 = vsub.s32 32, %v6987
    %v6989 = vshll.u32 %v6980, %v6987
    %v6990 = vshrl.u32 %v6972, %v6988
    %v6991 = vor.u32 %v6989, %v6990
    %v6992 = vsub.s32 4294967266, %v6987
    %v6993 = vadd.s32 %v6992, 127
    %v6994 = vshll.u32 %v6993, 23
    %v6995 = vor.u32 4788187, %v6994
    %v6996 = vand.u32 2147483647, %v6995
    %v6998 = vcvt.s32.f32 %v6991
    %v6999 = vmul.f32 %v6998, %v6996
    %v7000 = vxor.u32 %v6999, 2147483648
    %v7001 = vsel %vm6918, %v7000, %v6999
    %v7002 = vsub.s32 4, %v6978
    %v7003 = vsel %vm6918, %v7002, %v6978
    %v7004 = vsel %vm6917, %v3910, %v7001
    %v7005 = vsel %vm6917, 0, %v7003
    %v7006 = vcosq.f32.pop %v7004
    %v7007 = vsinq.f32.pop %v7004
    %vm7008 = vweird.f32 %v3910
    %v7009 = vand.u32 %v7005, 3
    %vm7010 = vcmp.lt.s32.totalorder %v7009, 2
    %vm7011 = vcmp.eq.s32.totalorder %v7009, 0
    %v7012 = vxor.u32 %v7007, 2147483648
    %v7013 = vsel %vm7011, %v7006, %v7012
    %vm7014 = vcmp.eq.s32.totalorder %v7009, 2
    %v7015 = vxor.u32 %v7006, 2147483648
    %v7016 = vsel %vm7014, %v7015, %v7007
    %v7017 = vsel %vm7010, %v7013, %v7016
    %v7018 = vsel %vm7008, nan, %v7017
    %v7019 = vand.u32 2147483647, %v3911
    %vm7020 = vcmp.le.f32.partialorder %v7019, 0.7853982
    %vm7021 = vcmp.lt.s32.totalorder %v3911, 0
    %v7022 = vand.u32 %v3911, 2139095040
    %v7023 = vshrl.u32 %v7022, 23
    %v7024 = vsub.s32 %v7023, 127
    %v7025 = vand.u32 2147483647, %v3911
    %v7026 = vand.u32 %v7025, 8388607
    %v7027 = vor.u32 %v7026, 8388608
    %v7028 = vsub.s32 0, %v7027
    %v7029 = vadd.s32 %v7024, 1
    %vm7030 = vcmp.gt.s32.totalorder %v7029, 0
    %v7031 = vsel %vm7030, %v7029, 0
    %v7032 = vshrl.u32 %v7031, 5
    %v7033 = vand.u32 %v7031, 31
    %v7034 = vsub.s32 32, %v7033
    %v7035 = vshrl.u32 683565275, %v7034
    %v7036 = vshll.u32 683565275, %v7033
    %v7037 = vshrl.u32 2475754826, %v7034
    %v7038 = vor.u32 %v7036, %v7037
    %v7039 = vshll.u32 2475754826, %v7033
    %v7040 = vshrl.u32 2131351028, %v7034
    %v7041 = vor.u32 %v7039, %v7040
    %v7042 = vshll.u32 2131351028, %v7033
    %v7043 = vshrl.u32 2102212464, %v7034
    %v7044 = vor.u32 %v7042, %v7043
    %v7045 = vshll.u32 2102212464, %v7033
    %v7046 = vshrl.u32 920167782, %v7034
    %v7047 = vor.u32 %v7045, %v7046
    %v7048 = vshll.u32 920167782, %v7033
    %v7049 = vshrl.u32 1326507024, %v7034
    %v7050 = vor.u32 %v7048, %v7049
    %vm7051 = vcmp.lt.s32.totalorder %v7032, 1
    %vm7052 = vcmp.lt.s32.totalorder %v7032, 2
    %vm7053 = vcmp.lt.s32.totalorder %v7032, 3
    %vm7054 = vcmp.lt.s32.totalorder %v7032, 4
    %v7055 = vsel %vm7051, %v7035, %v7038
    %v7056 = vsel %vm7054, %v7044, 2102212464
    %v7057 = vsel %vm7053, %v7041, %v7056
    %v7058 = vsel %vm7052, %v7055, %v7057
    %v7059 = vsel %vm7051, %v7038, %v7041
    %v7060 = vsel %vm7054, %v7047, 920167782
    %v7061 = vsel %vm7053, %v7044, %v7060
    %v7062 = vsel %vm7052, %v7059, %v7061
    %v7063 = vsel %vm7051, %v7041, %v7044
    %v7064 = vsel %vm7054, %v7050, 1326507024
    %v7065 = vsel %vm7053, %v7047, %v7064
    %v7066 = vsel %vm7052, %v7063, %v7065
    %v7067 = vshll.u32 %v7027, 8
    %v7068 = vmul.u32.u64.compose %v7067, %v7066
    %v7069 = vextract.low.u32 %v7068
    %v7070 = vextract.high.u32 %v7068
    %v7071 = vmul.u32.u64.compose %v7067, %v7062
    %v7072 = vextract.low.u32 %v7071
    %v7073 = vextract.high.u32 %v7071
    %v7074 = vmul.u32 %v7067, %v7058
    %v7075 = vadd.s32 %v7070, %v7072
    %vm7076 = vc.u32 %v7070, %v7072
    %v7077 = vadd.s32 %v7073, 1
    %v7078 = vsel %vm7076, %v7077, %v7073
    %v7079 = vadd.s32 %v7074, %v7078
    %v7080 = vadd.s32 %v7079, 536870912
    %v7081 = vshrl.u32 %v7080, 30
    %v7082 = vshll.u32 %v7081, 30
    %v7083 = vsub.s32 %v7079, %v7082
    %vm7084 = vcmp.lt.s32.totalorder %v7083, 0
    %v7085 = vsub.s32 0, %v7083
    %v7086 = vsel %vm7084, %v7085, %v7083
    %v7087 = vclz %v7086
    %v7088 = vsub.s32 %v7087, 2
    %vm7089 = vcmp.gt.s32.totalorder 0, %v7088
    %v7090 = vsel %vm7089, 0, %v7088
    %v7091 = vsub.s32 32, %v7090
    %v7092 = vshll.u32 %v7083, %v7090
    %v7093 = vshrl.u32 %v7075, %v7091
    %v7094 = vor.u32 %v7092, %v7093
    %v7095 = vsub.s32 4294967266, %v7090
    %v7096 = vadd.s32 %v7095, 127
    %v7097 = vshll.u32 %v7096, 23
    %v7098 = vor.u32 4788187, %v7097
    %v7099 = vand.u32 2147483647, %v7098
    %v7101 = vcvt.s32.f32 %v7094
    %v7102 = vmul.f32 %v7101, %v7099
    %v7103 = vxor.u32 %v7102, 2147483648
    %v7104 = vsel %vm7021, %v7103, %v7102
    %v7105 = vsub.s32 4, %v7081
    %v7106 = vsel %vm7021, %v7105, %v7081
    %v7107 = vsel %vm7020, %v3911, %v7104
    %v7108 = vsel %vm7020, 0, %v7106
    %v7109 = vcosq.f32.pop %v7107
    %v7110 = vsinq.f32.pop %v7107
    %vm7111 = vweird.f32 %v3911
    %v7112 = vand.u32 %v7108, 3
    %vm7113 = vcmp.lt.s32.totalorder %v7112, 2
    %vm7114 = vcmp.eq.s32.totalorder %v7112, 0
    %v7115 = vxor.u32 %v7110, 2147483648
    %v7116 = vsel %vm7114, %v7109, %v7115
    %vm7117 = vcmp.eq.s32.totalorder %v7112, 2
    %v7118 = vxor.u32 %v7109, 2147483648
    %v7119 = vsel %vm7117, %v7118, %v7110
    %v7120 = vsel %vm7113, %v7116, %v7119
    %v7121 = vsel %vm7111, nan, %v7120
    %v7122 = vand.u32 2147483647, %v3912
    %vm7123 = vcmp.le.f32.partialorder %v7122, 0.7853982
    %vm7124 = vcmp.lt.s32.totalorder %v3912, 0
    %v7125 = vand.u32 %v3912, 2139095040
    %v7126 = vshrl.u32 %v7125, 23
    %v7127 = vsub.s32 %v7126, 127
    %v7128 = vand.u32 2147483647, %v3912
    %v7129 = vand.u32 %v7128, 8388607
    %v7130 = vor.u32 %v7129, 8388608
    %v7131 = vsub.s32 0, %v7130
    %v7132 = vadd.s32 %v7127, 1
    %vm7133 = vcmp.gt.s32.totalorder %v7132, 0
    %v7134 = vsel %vm7133, %v7132, 0
    %v7135 = vshrl.u32 %v7134, 5
    %v7136 = vand.u32 %v7134, 31
    %v7137 = vsub.s32 32, %v7136
    %v7138 = vshrl.u32 683565275, %v7137
    %v7139 = vshll.u32 683565275, %v7136
    %v7140 = vshrl.u32 2475754826, %v7137
    %v7141 = vor.u32 %v7139, %v7140
    %v7142 = vshll.u32 2475754826, %v7136
    %v7143 = vshrl.u32 2131351028, %v7137
    %v7144 = vor.u32 %v7142, %v7143
    %v7145 = vshll.u32 2131351028, %v7136
    %v7146 = vshrl.u32 2102212464, %v7137
    %v7147 = vor.u32 %v7145, %v7146
    %v7148 = vshll.u32 2102212464, %v7136
    %v7149 = vshrl.u32 920167782, %v7137
    %v7150 = vor.u32 %v7148, %v7149
    %v7151 = vshll.u32 920167782, %v7136
    %v7152 = vshrl.u32 1326507024, %v7137
    %v7153 = vor.u32 %v7151, %v7152
    %vm7154 = vcmp.lt.s32.totalorder %v7135, 1
    %vm7155 = vcmp.lt.s32.totalorder %v7135, 2
    %vm7156 = vcmp.lt.s32.totalorder %v7135, 3
    %vm7157 = vcmp.lt.s32.totalorder %v7135, 4
    %v7158 = vsel %vm7154, %v7138, %v7141
    %v7159 = vsel %vm7157, %v7147, 2102212464
    %v7160 = vsel %vm7156, %v7144, %v7159
    %v7161 = vsel %vm7155, %v7158, %v7160
    %v7162 = vsel %vm7154, %v7141, %v7144
    %v7163 = vsel %vm7157, %v7150, 920167782
    %v7164 = vsel %vm7156, %v7147, %v7163
    %v7165 = vsel %vm7155, %v7162, %v7164
    %v7166 = vsel %vm7154, %v7144, %v7147
    %v7167 = vsel %vm7157, %v7153, 1326507024
    %v7168 = vsel %vm7156, %v7150, %v7167
    %v7169 = vsel %vm7155, %v7166, %v7168
    %v7170 = vshll.u32 %v7130, 8
    %v7171 = vmul.u32.u64.compose %v7170, %v7169
    %v7172 = vextract.low.u32 %v7171
    %v7173 = vextract.high.u32 %v7171
    %v7174 = vmul.u32.u64.compose %v7170, %v7165
    %v7175 = vextract.low.u32 %v7174
    %v7176 = vextract.high.u32 %v7174
    %v7177 = vmul.u32 %v7170, %v7161
    %v7178 = vadd.s32 %v7173, %v7175
    %vm7179 = vc.u32 %v7173, %v7175
    %v7180 = vadd.s32 %v7176, 1
    %v7181 = vsel %vm7179, %v7180, %v7176
    %v7182 = vadd.s32 %v7177, %v7181
    %v7183 = vadd.s32 %v7182, 536870912
    %v7184 = vshrl.u32 %v7183, 30
    %v7185 = vshll.u32 %v7184, 30
    %v7186 = vsub.s32 %v7182, %v7185
    %vm7187 = vcmp.lt.s32.totalorder %v7186, 0
    %v7188 = vsub.s32 0, %v7186
    %v7189 = vsel %vm7187, %v7188, %v7186
    %v7190 = vclz %v7189
    %v7191 = vsub.s32 %v7190, 2
    %vm7192 = vcmp.gt.s32.totalorder 0, %v7191
    %v7193 = vsel %vm7192, 0, %v7191
    %v7194 = vsub.s32 32, %v7193
    %v7195 = vshll.u32 %v7186, %v7193
    %v7196 = vshrl.u32 %v7178, %v7194
    %v7197 = vor.u32 %v7195, %v7196
    %v7198 = vsub.s32 4294967266, %v7193
    %v7199 = vadd.s32 %v7198, 127
    %v7200 = vshll.u32 %v7199, 23
    %v7201 = vor.u32 4788187, %v7200
    %v7202 = vand.u32 2147483647, %v7201
    %v7204 = vcvt.s32.f32 %v7197
    %v7205 = vmul.f32 %v7204, %v7202
    %v7206 = vxor.u32 %v7205, 2147483648
    %v7207 = vsel %vm7124, %v7206, %v7205
    %v7208 = vsub.s32 4, %v7184
    %v7209 = vsel %vm7124, %v7208, %v7184
    %v7210 = vsel %vm7123, %v3912, %v7207
    %v7211 = vsel %vm7123, 0, %v7209
    %v7212 = vcosq.f32.pop %v7210
    %v7213 = vsinq.f32.pop %v7210
    %vm7214 = vweird.f32 %v3912
    %v7215 = vand.u32 %v7211, 3
    %vm7216 = vcmp.lt.s32.totalorder %v7215, 2
    %vm7217 = vcmp.eq.s32.totalorder %v7215, 0
    %v7218 = vxor.u32 %v7213, 2147483648
    %v7219 = vsel %vm7217, %v7212, %v7218
    %vm7220 = vcmp.eq.s32.totalorder %v7215, 2
    %v7221 = vxor.u32 %v7212, 2147483648
    %v7222 = vsel %vm7220, %v7221, %v7213
    %v7223 = vsel %vm7216, %v7219, %v7222
    %v7224 = vsel %vm7214, nan, %v7223
    %7241 = vrot.lane.b32.xlu0 %v2095, 30
    %v7242 = vpop.permute.xlu0 %7241
    %7243 = vrot.lane.b32.xlu0 %v2198, 30
    %v7244 = vpop.permute.xlu0 %7243
    %7245 = vrot.lane.b32.xlu0 %v2301, 30
    %v7246 = vpop.permute.xlu0 %7245
    %7247 = vrot.lane.b32.xlu0 %v2404, 30
    %v7248 = vpop.permute.xlu0 %7247
    %7249 = vrot.lane.b32.xlu0 %v2507, 30
    %v7250 = vpop.permute.xlu0 %7249
    %7251 = vrot.lane.b32.xlu0 %v2610, 30
    %v7252 = vpop.permute.xlu0 %7251
    %7253 = vrot.lane.b32.xlu0 %v2713, 30
    %v7254 = vpop.permute.xlu0 %7253
    %7255 = vrot.lane.b32.xlu0 %v2816, 30
    %v7256 = vpop.permute.xlu0 %7255
    %7257 = vrot.lane.b32.xlu0 %v2919, 30
    %v7258 = vpop.permute.xlu0 %7257
    %7259 = vrot.lane.b32.xlu0 %v3022, 30
    %v7260 = vpop.permute.xlu0 %7259
    %7261 = vrot.lane.b32.xlu0 %v3125, 30
    %v7262 = vpop.permute.xlu0 %7261
    %7263 = vrot.lane.b32.xlu0 %v3228, 30
    %v7264 = vpop.permute.xlu0 %7263
    %7265 = vrot.lane.b32.xlu0 %v3331, 30
    %v7266 = vpop.permute.xlu0 %7265
    %7267 = vrot.lane.b32.xlu0 %v3434, 30
    %v7268 = vpop.permute.xlu0 %7267
    %7269 = vrot.lane.b32.xlu0 %v3537, 30
    %v7270 = vpop.permute.xlu0 %7269
    %7271 = vrot.lane.b32.xlu0 %v3640, 30
    %v7272 = vpop.permute.xlu0 %7271
    %7289 = vrot.lane.b32.xlu0 %v12, 57
    %v7290 = vpop.permute.xlu0 %7289
    %7291 = vrot.lane.b32.xlu0 %v13, 57
    %v7292 = vpop.permute.xlu0 %7291
    %7293 = vrot.lane.b32.xlu0 %v14, 57
    %v7294 = vpop.permute.xlu0 %7293
    %7295 = vrot.lane.b32.xlu0 %v15, 57
    %v7296 = vpop.permute.xlu0 %7295
    %7297 = vrot.lane.b32.xlu0 %v16, 57
    %v7298 = vpop.permute.xlu0 %7297
    %7299 = vrot.lane.b32.xlu0 %v17, 57
    %v7300 = vpop.permute.xlu0 %7299
    %7301 = vrot.lane.b32.xlu0 %v18, 57
    %v7302 = vpop.permute.xlu0 %7301
    %7303 = vrot.lane.b32.xlu0 %v19, 57
    %v7304 = vpop.permute.xlu0 %7303
    %7305 = vrot.lane.b32.xlu0 %v20, 57
    %v7306 = vpop.permute.xlu0 %7305
    %7307 = vrot.lane.b32.xlu0 %v21, 57
    %v7308 = vpop.permute.xlu0 %7307
    %7309 = vrot.lane.b32.xlu0 %v22, 57
    %v7310 = vpop.permute.xlu0 %7309
    %7311 = vrot.lane.b32.xlu0 %v23, 57
    %v7312 = vpop.permute.xlu0 %7311
    %7313 = vrot.lane.b32.xlu0 %v24, 57
    %v7314 = vpop.permute.xlu0 %7313
    %7315 = vrot.lane.b32.xlu0 %v25, 57
    %v7316 = vpop.permute.xlu0 %7315
    %7317 = vrot.lane.b32.xlu0 %v26, 57
    %v7318 = vpop.permute.xlu0 %7317
    %7319 = vrot.lane.b32.xlu0 %v27, 57
    %v7320 = vpop.permute.xlu0 %7319
    %7353 = vrot.lane.b32.xlu0 %v4016, 64
    %v7354 = vpop.permute.xlu0 %7353
    %7355 = vrot.lane.b32.xlu0 %v4120, 64
    %v7356 = vpop.permute.xlu0 %7355
    %7357 = vrot.lane.b32.xlu0 %v4224, 64
    %v7358 = vpop.permute.xlu0 %7357
    %7359 = vrot.lane.b32.xlu0 %v4328, 64
    %v7360 = vpop.permute.xlu0 %7359
    %7361 = vrot.lane.b32.xlu0 %v4432, 64
    %v7362 = vpop.permute.xlu0 %7361
    %7363 = vrot.lane.b32.xlu0 %v4536, 64
    %v7364 = vpop.permute.xlu0 %7363
    %7365 = vrot.lane.b32.xlu0 %v4640, 64
    %v7366 = vpop.permute.xlu0 %7365
    %7367 = vrot.lane.b32.xlu0 %v4744, 64
    %v7368 = vpop.permute.xlu0 %7367
    %7369 = vrot.lane.b32.xlu0 %v4848, 64
    %v7370 = vpop.permute.xlu0 %7369
    %7371 = vrot.lane.b32.xlu0 %v4952, 64
    %v7372 = vpop.permute.xlu0 %7371
    %7373 = vrot.lane.b32.xlu0 %v5056, 64
    %v7374 = vpop.permute.xlu0 %7373
    %7375 = vrot.lane.b32.xlu0 %v5160, 64
    %v7376 = vpop.permute.xlu0 %7375
    %7377 = vrot.lane.b32.xlu0 %v5264, 64
    %v7378 = vpop.permute.xlu0 %7377
    %7379 = vrot.lane.b32.xlu0 %v5368, 64
    %v7380 = vpop.permute.xlu0 %7379
    %7381 = vrot.lane.b32.xlu0 %v5472, 64
    %v7382 = vpop.permute.xlu0 %7381
    %7383 = vrot.lane.b32.xlu0 %v5576, 64
    %v7384 = vpop.permute.xlu0 %7383
    %7417 = vrot.lane.b32.xlu0 %v5679, 94
    %v7418 = vpop.permute.xlu0 %7417
    %7419 = vrot.lane.b32.xlu0 %v5782, 94
    %v7420 = vpop.permute.xlu0 %7419
    %7421 = vrot.lane.b32.xlu0 %v5885, 94
    %v7422 = vpop.permute.xlu0 %7421
    %7423 = vrot.lane.b32.xlu0 %v5988, 94
    %v7424 = vpop.permute.xlu0 %7423
    %7425 = vrot.lane.b32.xlu0 %v6091, 94
    %v7426 = vpop.permute.xlu0 %7425
    %7427 = vrot.lane.b32.xlu0 %v6194, 94
    %v7428 = vpop.permute.xlu0 %7427
    %7429 = vrot.lane.b32.xlu0 %v6297, 94
    %v7430 = vpop.permute.xlu0 %7429
    %7431 = vrot.lane.b32.xlu0 %v6400, 94
    %v7432 = vpop.permute.xlu0 %7431
    %7433 = vrot.lane.b32.xlu0 %v6503, 94
    %v7434 = vpop.permute.xlu0 %7433
    %7435 = vrot.lane.b32.xlu0 %v6606, 94
    %v7436 = vpop.permute.xlu0 %7435
    %7437 = vrot.lane.b32.xlu0 %v6709, 94
    %v7438 = vpop.permute.xlu0 %7437
    %7439 = vrot.lane.b32.xlu0 %v6812, 94
    %v7440 = vpop.permute.xlu0 %7439
    %7441 = vrot.lane.b32.xlu0 %v6915, 94
    %v7442 = vpop.permute.xlu0 %7441
    %7443 = vrot.lane.b32.xlu0 %v7018, 94
    %v7444 = vpop.permute.xlu0 %7443
    %7445 = vrot.lane.b32.xlu0 %v7121, 94
    %v7446 = vpop.permute.xlu0 %7445
    %7447 = vrot.lane.b32.xlu0 %v7224, 94
    %v7448 = vpop.permute.xlu0 %7447
    %7465 = vrot.lane.b32.xlu0 %v12, 114
    %v7466 = vpop.permute.xlu0 %7465
    %7467 = vrot.lane.b32.xlu0 %v13, 114
    %v7468 = vpop.permute.xlu0 %7467
    %7469 = vrot.lane.b32.xlu0 %v14, 114
    %v7470 = vpop.permute.xlu0 %7469
    %7471 = vrot.lane.b32.xlu0 %v15, 114
    %v7472 = vpop.permute.xlu0 %7471
    %7473 = vrot.lane.b32.xlu0 %v16, 114
    %v7474 = vpop.permute.xlu0 %7473
    %7475 = vrot.lane.b32.xlu0 %v17, 114
    %v7476 = vpop.permute.xlu0 %7475
    %7477 = vrot.lane.b32.xlu0 %v18, 114
    %v7478 = vpop.permute.xlu0 %7477
    %7479 = vrot.lane.b32.xlu0 %v19, 114
    %v7480 = vpop.permute.xlu0 %7479
    %7481 = vrot.lane.b32.xlu0 %v20, 114
    %v7482 = vpop.permute.xlu0 %7481
    %7483 = vrot.lane.b32.xlu0 %v21, 114
    %v7484 = vpop.permute.xlu0 %7483
    %7485 = vrot.lane.b32.xlu0 %v22, 114
    %v7486 = vpop.permute.xlu0 %7485
    %7487 = vrot.lane.b32.xlu0 %v23, 114
    %v7488 = vpop.permute.xlu0 %7487
    %7489 = vrot.lane.b32.xlu0 %v24, 114
    %v7490 = vpop.permute.xlu0 %7489
    %7491 = vrot.lane.b32.xlu0 %v25, 114
    %v7492 = vpop.permute.xlu0 %7491
    %7493 = vrot.lane.b32.xlu0 %v26, 114
    %v7494 = vpop.permute.xlu0 %7493
    %7495 = vrot.lane.b32.xlu0 %v27, 114
    %v7496 = vpop.permute.xlu0 %7495
    %vm7513 = vcmask 244736
    %v7514 = vsel %vm7513, %v432, %v7242
    %v7515 = vsel %vm7513, %v536, %v7244
    %v7516 = vsel %vm7513, %v640, %v7246
    %v7517 = vsel %vm7513, %v744, %v7248
    %v7518 = vsel %vm7513, %v848, %v7250
    %v7519 = vsel %vm7513, %v952, %v7252
    %v7520 = vsel %vm7513, %v1056, %v7254
    %v7521 = vsel %vm7513, %v1160, %v7256
    %v7522 = vsel %vm7513, %v1264, %v7258
    %v7523 = vsel %vm7513, %v1368, %v7260
    %v7524 = vsel %vm7513, %v1472, %v7262
    %v7525 = vsel %vm7513, %v1576, %v7264
    %v7526 = vsel %vm7513, %v1680, %v7266
    %v7527 = vsel %vm7513, %v1784, %v7268
    %v7528 = vsel %vm7513, %v1888, %v7270
    %v7529 = vsel %vm7513, %v1992, %v7272
    %vm7530 = vcmask 490496
    %v7531 = vsel %vm7530, %v7514, %v7290
    %v7532 = vsel %vm7530, %v7515, %v7292
    %v7533 = vsel %vm7530, %v7516, %v7294
    %v7534 = vsel %vm7530, %v7517, %v7296
    %v7535 = vsel %vm7530, %v7518, %v7298
    %v7536 = vsel %vm7530, %v7519, %v7300
    %v7537 = vsel %vm7530, %v7520, %v7302
    %v7538 = vsel %vm7530, %v7521, %v7304
    %v7539 = vsel %vm7530, %v7522, %v7306
    %v7540 = vsel %vm7530, %v7523, %v7308
    %v7541 = vsel %vm7530, %v7524, %v7310
    %v7542 = vsel %vm7530, %v7525, %v7312
    %v7543 = vsel %vm7530, %v7526, %v7314
    %v7544 = vsel %vm7530, %v7527, %v7316
    %v7545 = vsel %vm7530, %v7528, %v7318
    %v7546 = vsel %vm7530, %v7529, %v7320
    %vm7547 = vcmask 523264
    %v7548 = vsel %vm7547, %v7531, %v7354
    %v7549 = vsel %vm7547, %v7532, %v7356
    %v7550 = vsel %vm7547, %v7533, %v7358
    %v7551 = vsel %vm7547, %v7534, %v7360
    %v7552 = vsel %vm7547, %v7535, %v7362
    %v7553 = vsel %vm7547, %v7536, %v7364
    %v7554 = vsel %vm7547, %v7537, %v7366
    %v7555 = vsel %vm7547, %v7538, %v7368
    %v7556 = vsel %vm7547, %v7539, %v7370
    %v7557 = vsel %vm7547, %v7540, %v7372
    %v7558 = vsel %vm7547, %v7541, %v7374
    %v7559 = vsel %vm7547, %v7542, %v7376
    %v7560 = vsel %vm7547, %v7543, %v7378
    %v7561 = vsel %vm7547, %v7544, %v7380
    %v7562 = vsel %vm7547, %v7545, %v7382
    %v7563 = vsel %vm7547, %v7546, %v7384
    %vm7564 = vcmask 769024
    %v7565 = vsel %vm7564, %v7548, %v7418
    %v7566 = vsel %vm7564, %v7549, %v7420
    %v7567 = vsel %vm7564, %v7550, %v7422
    %v7568 = vsel %vm7564, %v7551, %v7424
    %v7569 = vsel %vm7564, %v7552, %v7426
    %v7570 = vsel %vm7564, %v7553, %v7428
    %v7571 = vsel %vm7564, %v7554, %v7430
    %v7572 = vsel %vm7564, %v7555, %v7432
    %v7573 = vsel %vm7564, %v7556, %v7434
    %v7574 = vsel %vm7564, %v7557, %v7436
    %v7575 = vsel %vm7564, %v7558, %v7438
    %v7576 = vsel %vm7564, %v7559, %v7440
    %v7577 = vsel %vm7564, %v7560, %v7442
    %v7578 = vsel %vm7564, %v7561, %v7444
    %v7579 = vsel %vm7564, %v7562, %v7446
    %v7580 = vsel %vm7564, %v7563, %v7448
    %vm7581 = vcmask 1014784
    %v7582 = vsel %vm7581, %v7565, %v7466
    %v7583 = vsel %vm7581, %v7566, %v7468
    %v7584 = vsel %vm7581, %v7567, %v7470
    %v7585 = vsel %vm7581, %v7568, %v7472
    %v7586 = vsel %vm7581, %v7569, %v7474
    %v7587 = vsel %vm7581, %v7570, %v7476
    %v7588 = vsel %vm7581, %v7571, %v7478
    %v7589 = vsel %vm7581, %v7572, %v7480
    %v7590 = vsel %vm7581, %v7573, %v7482
    %v7591 = vsel %vm7581, %v7574, %v7484
    %v7592 = vsel %vm7581, %v7575, %v7486
    %v7593 = vsel %vm7581, %v7576, %v7488
    %v7594 = vsel %vm7581, %v7577, %v7490
    %v7595 = vsel %vm7581, %v7578, %v7492
    %v7596 = vsel %vm7581, %v7579, %v7494
    %v7597 = vsel %vm7581, %v7580, %v7496
    %7598 = vst [vmem:[#allocation2] sm:$0xff] %v7582
    %7599 = vst [vmem:[#allocation2 + $0x8] sm:$0xff] %v7583
    %7600 = vst [vmem:[#allocation2 + $0x10] sm:$0xff] %v7584
    %7601 = vst [vmem:[#allocation2 + $0x18] sm:$0xff] %v7585
    %7602 = vst [vmem:[#allocation2 + $0x20] sm:$0xff] %v7586
    %7603 = vst [vmem:[#allocation2 + $0x28] sm:$0xff] %v7587
    %7604 = vst [vmem:[#allocation2 + $0x30] sm:$0xff] %v7588
    %7605 = vst [vmem:[#allocation2 + $0x38] sm:$0xff] %v7589
    %7606 = vst [vmem:[#allocation2 + $0x40] sm:$0xff] %v7590
    %7607 = vst [vmem:[#allocation2 + $0x48] sm:$0xff] %v7591
    %7608 = vst [vmem:[#allocation2 + $0x50] sm:$0xff] %v7592
    %7609 = vst [vmem:[#allocation2 + $0x58] sm:$0xff] %v7593
    %7610 = vst [vmem:[#allocation2 + $0x60] sm:$0xff] %v7594
    %7611 = vst [vmem:[#allocation2 + $0x68] sm:$0xff] %v7595
    %7612 = vst [vmem:[#allocation2 + $0x70] sm:$0xff] %v7596
    %7613 = vst [vmem:[#allocation2 + $0x78] sm:$0xff] %v7597
    // Predicated region
    $region10: #{tpu_custom_call.1} parent=1 // pred_check
      _
    $region11: #{tpu_custom_call.1} parent=1 // pred_check_branch
      %7615 = sbr.rel (0) target = $region13
    $region12: #{tpu_custom_call.1} parent=1 // pred_region
      %s7617 = ssub.s32 2048, 2048
      %7618 = vsyncadd [#allocation3], %s7617
      %s7619 = sshll.u32 [#allocation2], 4
      %s7620 = int_to_ptr.vmem [resolvable:$true] %s7619
      %7625 = dma.vmem_to_hbm [thread:$0]  %s7620, 2048, %s2, [#allocation3], 128, 128, 8
    $region13: #{tpu_custom_call.1} parent=1 // pred_fallthru
      _
    // Predicated region
    $region14: #{tpu_custom_call.1} parent=1 // pred_check
      _
    $region15: #{tpu_custom_call.1} parent=1 // pred_check_branch
      %7627 = sbr.rel (0) target = $region17
    $region16: #{tpu_custom_call.1} parent=1 // pred_region
      %7628 = dma.done [#allocation3], 2048
    $region17: #{tpu_custom_call.1} parent=1 // pred_fallthru
      _
    %7629 = vsyncpa [#allocation3], 1

</llo_original>
